<compile_context>
chip_gen: v7x
topology: tpu7x:2x2x1
jax: 0.10.0
libtpu: 0.0.40
codegen_flags: <defaults>
</compile_context>

<pallas_src>
import math
import functools

import jax
import jax.numpy as jnp
from jax.experimental import pallas as pl
from jax.experimental.pallas import tpu as pltpu


# ----------------------------- in-kernel helpers -----------------------------

def _layer_norm(h, g, b):
    # LayerNorm over the last dim, eps = 1e-5 (PyTorch default), f32 stats.
    mu = jnp.mean(h, axis=-1, keepdims=True)
    var = jnp.mean((h - mu) ** 2, axis=-1, keepdims=True)
    return (h - mu) * jax.lax.rsqrt(var + 1e-5) * g + b


def _split_heads(x, num_heads):
    """(L, E) f32 -> (H, L, dh) bf16 head-batched layout for the MXU."""
    L, E = x.shape
    dh = E // num_heads
    x = x.astype(jnp.bfloat16)
    return jnp.stack([x[:, h * dh:(h + 1) * dh] for h in range(num_heads)],
                     axis=0)


def _mha_core(q, k, v, wo_h, num_heads, mask=None):
    """Multi-head attention on already-projected q/k/v.

    q: (Lq, E) f32 (1/sqrt(dh) already folded into the Q projection),
    k, v: (Lk, E) f32, wo_h: (H, dh, E) bf16 pre-reshaped out-projection.
    All head matmuls are single head-batched contractions (no per-head loop,
    no trailing concatenate).  Softmax stays in f32; the normalisation uses
    the EUP approximate reciprocal (free bundle slot).
    """
    qh = _split_heads(q, num_heads)                           # (H, Lq, dh)
    kh = _split_heads(k, num_heads)                           # (H, Lk, dh)
    vh = _split_heads(v, num_heads)                           # (H, Lk, dh)
    s = jnp.einsum('hqd,hkd->hqk', qh, kh,
                   preferred_element_type=jnp.float32)        # (H, Lq, Lk)
    if mask is not None:
        s = s + mask[None]
    m = jnp.max(s, axis=-1, keepdims=True)
    p = jnp.exp(s - m)
    inv = pl.reciprocal(jnp.sum(p, axis=-1, keepdims=True), approx=True)
    p = (p * inv).astype(jnp.bfloat16)
    ctx = jnp.einsum('hqk,hkd->hqd', p, vh,
                     preferred_element_type=jnp.float32)      # (H, Lq, dh)
    out = jnp.einsum('hqd,hde->hqe', ctx.astype(jnp.bfloat16), wo_h,
                     preferred_element_type=jnp.float32)      # (H, Lq, E)
    return jnp.sum(out, axis=0)                               # (Lq, E)


def _ffn(h, w1, b1, w2, b2):
    f = jnp.dot(h.astype(jnp.bfloat16), w1,
                preferred_element_type=jnp.float32) + b1
    f = jnp.maximum(f, 0.0)
    return jnp.dot(f.astype(jnp.bfloat16), w2,
                   preferred_element_type=jnp.float32) + b2


# ------------------------------ fused stack kernels --------------------------

def _encoder_stack_kernel(num_heads,
                          pooled_ref, cw_ref, cb_ref, f1w_ref, f1b_ref, pix_ref,
                          wqkv_ref, bqkv_ref, wo_ref, bo_ref,
                          n1g_ref, n1b_ref, w1_ref, b1_ref, w2_ref, b2_ref,
                          n2g_ref, n2b_ref,
                          o_ref, h_ref):
    l = pl.program_id(1)

    # Layer 0 only: synthetic image-encoder 1x1-conv + fc1 + pixel embedding.
    @pl.when(l == 0)
    def _():
        x = pooled_ref[0].astype(jnp.bfloat16)                # (P, C_pad)
        h = jnp.dot(x, cw_ref[...],
                    preferred_element_type=jnp.float32) + cb_ref[...]
        h = jnp.dot(h.astype(jnp.bfloat16), f1w_ref[...],
                    preferred_element_type=jnp.float32) + f1b_ref[...]
        h_ref[...] = h + pix_ref[...]

    # One nn.TransformerEncoderLayer (post-norm, relu); dropout = identity.
    x = h_ref[...]                                            # (P, E) f32
    E = x.shape[-1]
    qkv = jnp.dot(x.astype(jnp.bfloat16), wqkv_ref[0],
                  preferred_element_type=jnp.float32) + bqkv_ref[0]
    attn = _mha_core(qkv[:, :E], qkv[:, E:2 * E], qkv[:, 2 * E:],
                     wo_ref[0], num_heads) + bo_ref[0]
    h1 = _layer_norm(x + attn, n1g_ref[0], n1b_ref[0])
    f = _ffn(h1, w1_ref[0], b1_ref[0], w2_ref[0], b2_ref[0])
    h_ref[...] = _layer_norm(h1 + f, n2g_ref[0], n2b_ref[0])

    @pl.when(l == pl.num_programs(1) - 1)
    def _():
        o_ref[0] = h_ref[...]


def _decoder_stack_kernel(num_heads,
                          tgt_ref, mem_ref, kpm_ref,
                          sa_wqkv_ref, sa_bqkv_ref, sa_wo_ref, sa_bo_ref,
                          n1g_ref, n1b_ref,
                          ca_wq_ref, ca_bq_ref, ca_wkv_ref, ca_bkv_ref,
                          ca_wo_ref, ca_bo_ref, n2g_ref, n2b_ref,
                          w1_ref, b1_ref, w2_ref, b2_ref, n3g_ref, n3b_ref,
                          fc2w_ref, fc2b_ref,
                          o_ref, h_ref, mask_ref):
    l = pl.program_id(1)
    Lc = tgt_ref.shape[1]
    E = tgt_ref.shape[2]

    # Layer 0 only: load the caption features into the VMEM carry and build the
    # causal + key-padding additive mask once (finite -1e30 sentinel, no NaN).
    @pl.when(l == 0)
    def _():
        h_ref[...] = tgt_ref[0]
        row = jax.lax.broadcasted_iota(jnp.int32, (Lc, Lc), 0)
        col = jax.lax.broadcasted_iota(jnp.int32, (Lc, Lc), 1)
        causal = jnp.where(col <= row, 0.0, -1e30)
        mask_ref[...] = causal + jnp.where(kpm_ref[0] > 0.5, -1e30, 0.0)

    x = h_ref[...]                                            # (Lc, E) f32
    mem = mem_ref[0]                                          # (P,  E) f32
    mask = mask_ref[...]                                      # (Lc, Lc)

    # --- masked self-attention + add/LayerNorm ---
    qkv = jnp.dot(x.astype(jnp.bfloat16), sa_wqkv_ref[0],
                  preferred_element_type=jnp.float32) + sa_bqkv_ref[0]
    sa = _mha_core(qkv[:, :E], qkv[:, E:2 * E], qkv[:, 2 * E:],
                   sa_wo_ref[0], num_heads, mask=mask) + sa_bo_ref[0]
    h1 = _layer_norm(x + sa, n1g_ref[0], n1b_ref[0])

    # --- cross-attention over the (VMEM-resident) image memory ---
    qc = jnp.dot(h1.astype(jnp.bfloat16), ca_wq_ref[0],
                 preferred_element_type=jnp.float32) + ca_bq_ref[0]
    kvc = jnp.dot(mem.astype(jnp.bfloat16), ca_wkv_ref[0],
                  preferred_element_type=jnp.float32) + ca_bkv_ref[0]
    ca = _mha_core(qc, kvc[:, :E], kvc[:, E:],
                   ca_wo_ref[0], num_heads) + ca_bo_ref[0]
    h2 = _layer_norm(h1 + ca, n2g_ref[0], n2b_ref[0])

    # --- FFN + add/LayerNorm ---
    f = _ffn(h2, w1_ref[0], b1_ref[0], w2_ref[0], b2_ref[0])
    h_ref[...] = _layer_norm(h2 + f, n3g_ref[0], n3b_ref[0])

    # Last layer only: fc2 + exact f32 softmax over the (lane-dense) vocab.
    @pl.when(l == pl.num_programs(1) - 1)
    def _():
        y = jnp.dot(h_ref[...].astype(jnp.bfloat16), fc2w_ref[...],
                    preferred_element_type=jnp.float32) + fc2b_ref[...]
        m = jnp.max(y, axis=-1, keepdims=True)
        e = jnp.exp(y - m)
        o_ref[0] = e / jnp.sum(e, axis=-1, keepdims=True)


# ------------------------------ call wrappers --------------------------------

def _batch_spec(shape):
    """Leading dim is the (parallel) batch grid axis; rest is one full block."""
    nd = len(shape)
    return pl.BlockSpec((1,) + tuple(shape[1:]),
                        lambda b, l, _n=nd: (b,) + (0,) * (_n - 1))


def _layer_spec(shape):
    """Leading dim is indexed by the (arbitrary) layer grid axis."""
    nd = len(shape)
    return pl.BlockSpec((1,) + tuple(shape[1:]),
                        lambda b, l, _n=nd: (l,) + (0,) * (_n - 1))


def _rep_spec(shape):
    """Grid-invariant: fetched once, stays VMEM-resident."""
    nd = len(shape)
    return pl.BlockSpec(tuple(shape), lambda b, l, _n=nd: (0,) * _n)


_COMPILER_PARAMS = pltpu.CompilerParams(
    dimension_semantics=("parallel", "arbitrary"),
    vmem_limit_bytes=32 * 1024 * 1024)

_ENC_LAYER_KEYS = ('wqkv', 'bqkv', 'wo', 'bo', 'n1g', 'n1b',
                   'w1', 'b1', 'w2', 'b2', 'n2g', 'n2b')
_DEC_LAYER_KEYS = ('sa_wqkv', 'sa_bqkv', 'sa_wo', 'sa_bo', 'n1g', 'n1b',
                   'ca_wq', 'ca_bq', 'ca_wkv', 'ca_bkv', 'ca_wo', 'ca_bo',
                   'n2g', 'n2b', 'w1', 'b1', 'w2', 'b2', 'n3g', 'n3b')


def encoder_stack(pooled, params, num_heads):
    B, P, _ = pooled.shape
    E = params['fc1_w'].shape[1]
    enc = params['enc']
    n_layers = enc['wqkv'].shape[0]
    stem = [params['enc_conv_w'], params['enc_conv_b'],
            params['fc1_w'], params['fc1_b'], params['pixel_embedding']]
    lay = [enc[k] for k in _ENC_LAYER_KEYS]
    return pl.pallas_call(
        functools.partial(_encoder_stack_kernel, num_heads),
        grid=(B, n_layers),
        in_specs=[_batch_spec(pooled.shape)]
                 + [_rep_spec(a.shape) for a in stem]
                 + [_layer_spec(a.shape) for a in lay],
        out_specs=_batch_spec((B, P, E)),
        out_shape=jax.ShapeDtypeStruct((B, P, E), jnp.float32),
        scratch_shapes=[pltpu.VMEM((P, E), jnp.float32)],
        compiler_params=_COMPILER_PARAMS,
    )(pooled, *stem, *lay)


def decoder_stack(tgt, memory, kpm, params, num_heads):
    B, Lc, E = tgt.shape
    dec = params['dec']
    n_layers = dec['sa_wqkv'].shape[0]
    V = params['fc2_w'].shape[1]
    lay = [dec[k] for k in _DEC_LAYER_KEYS]
    head = [params['fc2_w'], params['fc2_b']]
    return pl.pallas_call(
        functools.partial(_decoder_stack_kernel, num_heads),
        grid=(B, n_layers),
        in_specs=[_batch_spec(tgt.shape), _batch_spec(memory.shape),
                  _batch_spec(kpm.shape)]
                 + [_layer_spec(a.shape) for a in lay]
                 + [_rep_spec(a.shape) for a in head],
        out_specs=_batch_spec((B, Lc, V)),
        out_shape=jax.ShapeDtypeStruct((B, Lc, V), jnp.float32),
        scratch_shapes=[pltpu.VMEM((Lc, E), jnp.float32),
                        pltpu.VMEM((Lc, Lc), jnp.float32)],
        compiler_params=_COMPILER_PARAMS,
    )(tgt, memory, kpm, *lay, *head)


# ------------------------------- full forward --------------------------------

def transformer_forward(params, image, caption, *, pad_id=3, num_heads=4):
    B, C, Hi, Wi = image.shape

    # TODO(synk): the real image_encoder (e.g. DenseNet) is an external frozen
    # nn.Module; a 2x2 avg-pool + 1x1-conv stand-in with the same output
    # contract (wxh_features with 8x8 = 64 spatial positions) is used.  The
    # pool commutes with the 1x1 conv, so pooling first (cheap JAX op) and
    # running the conv inside the encoder kernel is exact.
    x = image.transpose(0, 2, 3, 1)                                  # NHWC
    x = x.reshape(B, Hi // 2, 2, Wi // 2, 2, C).mean(axis=(2, 4))    # (B,8,8,C)
    pooled = x.reshape(B, (Hi // 2) * (Wi // 2), C)                  # (B,64,C)
    cpad = params['enc_conv_w'].shape[0] - C
    if cpad:
        pooled = jnp.pad(pooled, ((0, 0), (0, 0), (0, cpad)))        # (B,64,8)

    img_features = encoder_stack(pooled, params, num_heads)          # (B,64,E)

    # TODO(synk): embedding gathers stay in the JAX wrapper (data-dependent
    # row gather; not worth a Pallas kernel at these sizes).
    Lc = caption.shape[1]
    posit_embed = params['posit_embedding'][:Lc]                     # (Lc, E)
    token_embed = params['token_embedding'][caption]                 # (B,Lc,E)
    cap = token_embed + posit_embed[None]
    kpm = (caption == pad_id).astype(jnp.float32).reshape(B, 1, Lc)

    return decoder_stack(cap, img_features, kpm, params, num_heads)  # (B,Lc,V)


# ------------------------------ parameter init --------------------------------

def init_params(key, *, num_tokens, num_posits, fc_features, embed_dim, fwd_dim,
                num_heads, num_layers_enc, num_layers_dec, in_channels):
    E, F, H = embed_dim, fwd_dim, num_heads
    dh = E // H
    q_scale = 1.0 / math.sqrt(dh)          # folded into the Q projection
    keys = iter(jax.random.split(key, 64))

    def rnd(shape, fan_in):
        return jax.random.normal(next(keys), shape, jnp.float32) / math.sqrt(fan_in)

    def zeros(shape):
        return jnp.zeros(shape, jnp.float32)

    def ones(shape):
        return jnp.ones(shape, jnp.float32)

    def enc_layers(n):
        wqkv = rnd((n, E, 3 * E), E)
        wqkv = wqkv.at[:, :, :E].multiply(q_scale)
        return dict(
            wqkv=wqkv.astype(jnp.bfloat16), bqkv=zeros((n, 1, 3 * E)),
            wo=rnd((n, E, E), E).reshape(n, H, dh, E).astype(jnp.bfloat16),
            bo=zeros((n, 1, E)),
            n1g=ones((n, 1, E)), n1b=zeros((n, 1, E)),
            w1=rnd((n, E, F), E).astype(jnp.bfloat16), b1=zeros((n, 1, F)),
            w2=rnd((n, F, E), F).astype(jnp.bfloat16), b2=zeros((n, 1, E)),
            n2g=ones((n, 1, E)), n2b=zeros((n, 1, E)))

    def dec_layers(n):
        sa_wqkv = rnd((n, E, 3 * E), E)
        sa_wqkv = sa_wqkv.at[:, :, :E].multiply(q_scale)
        return dict(
            sa_wqkv=sa_wqkv.astype(jnp.bfloat16), sa_bqkv=zeros((n, 1, 3 * E)),
            sa_wo=rnd((n, E, E), E).reshape(n, H, dh, E).astype(jnp.bfloat16),
            sa_bo=zeros((n, 1, E)),
            n1g=ones((n, 1, E)), n1b=zeros((n, 1, E)),
            ca_wq=(rnd((n, E, E), E) * q_scale).astype(jnp.bfloat16),
            ca_bq=zeros((n, 1, E)),
            ca_wkv=rnd((n, E, 2 * E), E).astype(jnp.bfloat16),
            ca_bkv=zeros((n, 1, 2 * E)),
            ca_wo=rnd((n, E, E), E).reshape(n, H, dh, E).astype(jnp.bfloat16),
            ca_bo=zeros((n, 1, E)),
            n2g=ones((n, 1, E)), n2b=zeros((n, 1, E)),
            w1=rnd((n, E, F), E).astype(jnp.bfloat16), b1=zeros((n, 1, F)),
            w2=rnd((n, F, E), F).astype(jnp.bfloat16), b2=zeros((n, 1, E)),
            n3g=ones((n, 1, E)), n3b=zeros((n, 1, E)))

    # 1x1-conv weight: channel contraction zero-padded to 8 (sublane friendly).
    c_pad = max(8, in_channels)
    conv_w = jnp.zeros((c_pad, fc_features), jnp.float32)
    conv_w = conv_w.at[:in_channels].set(rnd((in_channels, fc_features),
                                             in_channels))

    return dict(
        token_embedding=jax.random.normal(next(keys), (num_tokens, E), jnp.float32),
        posit_embedding=jax.random.normal(next(keys), (num_posits, E), jnp.float32),
        pixel_embedding=jax.random.normal(next(keys), (64, E), jnp.float32),
        enc_conv_w=conv_w.astype(jnp.bfloat16),
        enc_conv_b=zeros((1, fc_features)),
        fc1_w=rnd((fc_features, E), fc_features).astype(jnp.bfloat16),
        fc1_b=zeros((1, E)),
        fc2_w=rnd((E, num_tokens), E).astype(jnp.bfloat16),
        fc2_b=zeros((1, num_tokens)),
        enc=enc_layers(num_layers_enc),
        dec=dec_layers(num_layers_dec))


# ----------------------- pure-JAX reference (f32) -----------------------------

def transformer_forward_ref(params, image, caption, *, pad_id=3, num_heads=4):
    f32 = lambda a: jnp.asarray(a, jnp.float32)
    B, C, Hi, Wi = image.shape
    x = image.transpose(0, 2, 3, 1)
    x = x.reshape(B, Hi // 2, 2, Wi // 2, 2, C).mean(axis=(2, 4))
    pooled = x.reshape(B, (Hi // 2) * (Wi // 2), C)
    cpad = params['enc_conv_w'].shape[0] - C
    pooled = jnp.pad(pooled, ((0, 0), (0, 0), (0, cpad)))

    def ln(h, g, b):
        mu = jnp.mean(h, -1, keepdims=True)
        var = jnp.mean((h - mu) ** 2, -1, keepdims=True)
        return (h - mu) * jax.lax.rsqrt(var + 1e-5) * g + b

    def mha(q, k, v, wo_h, mask=None):
        Bq, Lq, E = q.shape
        dh = E // num_heads
        qh = q.reshape(Bq, Lq, num_heads, dh).transpose(0, 2, 1, 3)
        kh = k.reshape(Bq, -1, num_heads, dh).transpose(0, 2, 1, 3)
        vh = v.reshape(Bq, -1, num_heads, dh).transpose(0, 2, 1, 3)
        s = jnp.einsum('bhqd,bhkd->bhqk', qh, kh)
        if mask is not None:
            s = s + mask[:, None]
        p = jax.nn.softmax(s, axis=-1)
        ctx = jnp.einsum('bhqk,bhkd->bhqd', p, vh)
        return jnp.einsum('bhqd,hde->bqe', ctx, f32(wo_h))

    E = params['fc1_w'].shape[1]
    h = pooled @ f32(params['enc_conv_w']) + params['enc_conv_b']
    h = h @ f32(params['fc1_w']) + params['fc1_b']
    img = h + params['pixel_embedding'][None]
    enc = params['enc']
    for i in range(enc['wqkv'].shape[0]):
        qkv = img @ f32(enc['wqkv'][i]) + enc['bqkv'][i]
        attn = mha(qkv[..., :E], qkv[..., E:2 * E], qkv[..., 2 * E:],
                   enc['wo'][i]) + enc['bo'][i]
        h1 = ln(img + attn, enc['n1g'][i], enc['n1b'][i])
        ff = jnp.maximum(h1 @ f32(enc['w1'][i]) + enc['b1'][i], 0.0)
        ff = ff @ f32(enc['w2'][i]) + enc['b2'][i]
        img = ln(h1 + ff, enc['n2g'][i], enc['n2b'][i])

    Lc = caption.shape[1]
    cap = params['token_embedding'][caption] + params['posit_embedding'][:Lc][None]
    row = jnp.arange(Lc)[:, None]
    col = jnp.arange(Lc)[None, :]
    causal = jnp.where(col <= row, 0.0, -1e30)
    kpm = jnp.where(caption == pad_id, -1e30, 0.0)[:, None, :]
    mask = causal[None] + kpm

    dec = params['dec']
    h = cap
    for i in range(dec['sa_wqkv'].shape[0]):
        qkv = h @ f32(dec['sa_wqkv'][i]) + dec['sa_bqkv'][i]
        sa = mha(qkv[..., :E], qkv[..., E:2 * E], qkv[..., 2 * E:],
                 dec['sa_wo'][i], mask=mask) + dec['sa_bo'][i]
        h1 = ln(h + sa, dec['n1g'][i], dec['n1b'][i])
        qc = h1 @ f32(dec['ca_wq'][i]) + dec['ca_bq'][i]
        kvc = img @ f32(dec['ca_wkv'][i]) + dec['ca_bkv'][i]
        ca = mha(qc, kvc[..., :E], kvc[..., E:],
                 dec['ca_wo'][i]) + dec['ca_bo'][i]
        h2 = ln(h1 + ca, dec['n2g'][i], dec['n2b'][i])
        ff = jnp.maximum(h2 @ f32(dec['w1'][i]) + dec['b1'][i], 0.0)
        ff = ff @ f32(dec['w2'][i]) + dec['b2'][i]
        h = ln(h2 + ff, dec['n3g'][i], dec['n3b'][i])

    y = h @ f32(params['fc2_w']) + params['fc2_b']
    return jax.nn.softmax(y, axis=-1)


# ----------------------------------- main -------------------------------------

if __name__ == "__main__":
    # Small, lane-dense shapes consistent with the module's forward:
    # 16x16 image -> 8x8 = 64 spatial features (matches nn.Embedding(64, E));
    # embed/ffn/vocab dims are multiples of 128 so every kernel output and
    # lane-wise reduction is full-width.
    B, C, Hi, Wi = 2, 3, 16, 16
    num_tokens, num_posits = 128, 16
    fc_features, embed_dim, num_heads, fwd_dim = 128, 128, 4, 256
    num_layers_enc, num_layers_dec = 1, 2
    seq_len = 8
    bos_id, eos_id, pad_id = 1, 2, 3

    key = jax.random.PRNGKey(0)
    k_params, k_img = jax.random.split(key)

    params = init_params(k_params,
                         num_tokens=num_tokens, num_posits=num_posits,
                         fc_features=fc_features, embed_dim=embed_dim,
                         fwd_dim=fwd_dim, num_heads=num_heads,
                         num_layers_enc=num_layers_enc,
                         num_layers_dec=num_layers_dec, in_channels=C)

    image = jax.random.normal(k_img, (B, C, Hi, Wi), jnp.float32)   # NCHW
    caption = jnp.array([[bos_id, 5, 6, 7, 8, 9, 10, eos_id],
                         [bos_id, 11, 12, eos_id, pad_id, pad_id, pad_id, pad_id]],
                        dtype=jnp.int32)

    fwd = jax.jit(functools.partial(transformer_forward,
                                    pad_id=pad_id, num_heads=num_heads))
    preds = jax.block_until_ready(fwd(params, image, caption))

    assert preds.shape == (B, seq_len, num_tokens), preds.shape
    assert bool(jnp.all(jnp.isfinite(preds)))
    row_sums = jnp.sum(preds, axis=-1)
    assert bool(jnp.all(jnp.abs(row_sums - 1.0) < 1e-4)), row_sums

    # Cross-check against a pure-JAX f32 reference (loose tolerance: the kernel
    # uses bf16 matmul operands and an approximate reciprocal in attention).
    ref = transformer_forward_ref(params, image, caption,
                                  pad_id=pad_id, num_heads=num_heads)
    max_err = float(jnp.max(jnp.abs(preds - ref)))
    assert max_err < 5e-2, f"max abs diff vs reference: {max_err}"

    print("KERNEL_OK")
</pallas_src>

<mosaic_0001>
module attributes {stable_mosaic.version = 11 : i64} {
  func.func @_encoder_stack_kernel(%arg0: i32, %arg1: i32, %arg2: memref<1x64x8xf32, #tpu.memory_space<vmem>>, %arg3: memref<8x128xbf16, #tpu.memory_space<vmem>>, %arg4: memref<1x128xf32, #tpu.memory_space<vmem>>, %arg5: memref<128x128xbf16, #tpu.memory_space<vmem>>, %arg6: memref<1x128xf32, #tpu.memory_space<vmem>>, %arg7: memref<64x128xf32, #tpu.memory_space<vmem>>, %arg8: memref<1x128x384xbf16, #tpu.memory_space<vmem>>, %arg9: memref<1x1x384xf32, #tpu.memory_space<vmem>>, %arg10: memref<1x4x32x128xbf16, #tpu.memory_space<vmem>>, %arg11: memref<1x1x128xf32, #tpu.memory_space<vmem>>, %arg12: memref<1x1x128xf32, #tpu.memory_space<vmem>>, %arg13: memref<1x1x128xf32, #tpu.memory_space<vmem>>, %arg14: memref<1x128x256xbf16, #tpu.memory_space<vmem>>, %arg15: memref<1x1x256xf32, #tpu.memory_space<vmem>>, %arg16: memref<1x256x128xbf16, #tpu.memory_space<vmem>>, %arg17: memref<1x1x128xf32, #tpu.memory_space<vmem>>, %arg18: memref<1x1x128xf32, #tpu.memory_space<vmem>>, %arg19: memref<1x1x128xf32, #tpu.memory_space<vmem>>, %arg20: memref<1x64x128xf32, #tpu.memory_space<vmem>>, %arg21: memref<64x128xf32, #tpu.memory_space<vmem>>) attributes {dimension_semantics = [#tpu.dimension_semantics<parallel>, #tpu.dimension_semantics<arbitrary>], iteration_bounds = array<i64: 2, 1>, scalar_prefetch = 0 : i64, scratch_operands = 1 : i64, tpu.core_type = #tpu.core_type<tc>, window_params = [{transform_indices = @transform_0, window_bounds = array<i64: 1, 64, 8>}, {pipeline_mode = #tpu.pipeline_mode<synchronous>, transform_indices = @transform_1, window_bounds = array<i64: 8, 128>}, {pipeline_mode = #tpu.pipeline_mode<synchronous>, transform_indices = @transform_2, window_bounds = array<i64: 1, 128>}, {pipeline_mode = #tpu.pipeline_mode<synchronous>, transform_indices = @transform_3, window_bounds = array<i64: 128, 128>}, {pipeline_mode = #tpu.pipeline_mode<synchronous>, transform_indices = @transform_4, window_bounds = array<i64: 1, 128>}, {pipeline_mode = #tpu.pipeline_mode<synchronous>, transform_indices = @transform_5, window_bounds = array<i64: 64, 128>}, {transform_indices = @transform_6, window_bounds = array<i64: 1, 128, 384>}, {transform_indices = @transform_7, window_bounds = array<i64: 1, 1, 384>}, {transform_indices = @transform_8, window_bounds = array<i64: 1, 4, 32, 128>}, {transform_indices = @transform_9, window_bounds = array<i64: 1, 1, 128>}, {transform_indices = @transform_10, window_bounds = array<i64: 1, 1, 128>}, {transform_indices = @transform_11, window_bounds = array<i64: 1, 1, 128>}, {transform_indices = @transform_12, window_bounds = array<i64: 1, 128, 256>}, {transform_indices = @transform_13, window_bounds = array<i64: 1, 1, 256>}, {transform_indices = @transform_14, window_bounds = array<i64: 1, 256, 128>}, {transform_indices = @transform_15, window_bounds = array<i64: 1, 1, 128>}, {transform_indices = @transform_16, window_bounds = array<i64: 1, 1, 128>}, {transform_indices = @transform_17, window_bounds = array<i64: 1, 1, 128>}, {transform_indices = @transform_18, window_bounds = array<i64: 1, 64, 128>}]} {
    %c0_i32 = arith.constant 0 : i32
    %0 = arith.cmpi eq, %arg1, %c0_i32 : i32
    %1 = arith.extui %0 : i1 to i32
    %c0_i32_0 = arith.constant 0 : i32
    %2 = arith.cmpi ne, %1, %c0_i32_0 : i32
    scf.if %2 {
      %c0_62 = arith.constant 0 : index
      %c0_63 = arith.constant 0 : index
      %c0_64 = arith.constant 0 : index
      %143 = vector.load %arg2[%c0_62, %c0_63, %c0_64] : memref<1x64x8xf32, #tpu.memory_space<vmem>>, vector<1x64x8xf32>
      %144 = vector.shape_cast %143 : vector<1x64x8xf32> to vector<64x8xf32>
      %145 = arith.truncf %144 : vector<64x8xf32> to vector<64x8xbf16>
      %c0_65 = arith.constant 0 : index
      %c0_66 = arith.constant 0 : index
      %146 = vector.load %arg3[%c0_65, %c0_66] : memref<8x128xbf16, #tpu.memory_space<vmem>>, vector<8x128xbf16>
      %cst_67 = arith.constant dense<0.000000e+00> : vector<64x128xf32>
      %147 = tpu.matmul %145, %146, %cst_67 {dimension_numbers = #tpu.dot_dimension_numbers<[1], [0], [0], [1], [0, 0, 1, 1], [], []>} : vector<64x8xbf16>, vector<8x128xbf16>, vector<64x128xf32> -> vector<64x128xf32>
      %c0_68 = arith.constant 0 : index
      %c0_69 = arith.constant 0 : index
      %148 = vector.load %arg4[%c0_68, %c0_69] : memref<1x128xf32, #tpu.memory_space<vmem>>, vector<1x128xf32>
      %149 = vector.broadcast %148 : vector<1x128xf32> to vector<64x128xf32>
      %150 = arith.addf %147, %149 : vector<64x128xf32>
      %151 = arith.truncf %150 : vector<64x128xf32> to vector<64x128xbf16>
      %c0_70 = arith.constant 0 : index
      %c0_71 = arith.constant 0 : index
      %152 = vector.load %arg5[%c0_70, %c0_71] : memref<128x128xbf16, #tpu.memory_space<vmem>>, vector<128x128xbf16>
      %cst_72 = arith.constant dense<0.000000e+00> : vector<64x128xf32>
      %153 = tpu.matmul %151, %152, %cst_72 {dimension_numbers = #tpu.dot_dimension_numbers<[1], [0], [0], [1], [0, 0, 1, 1], [], []>} : vector<64x128xbf16>, vector<128x128xbf16>, vector<64x128xf32> -> vector<64x128xf32>
      %c0_73 = arith.constant 0 : index
      %c0_74 = arith.constant 0 : index
      %154 = vector.load %arg6[%c0_73, %c0_74] : memref<1x128xf32, #tpu.memory_space<vmem>>, vector<1x128xf32>
      %155 = vector.broadcast %154 : vector<1x128xf32> to vector<64x128xf32>
      %156 = arith.addf %153, %155 : vector<64x128xf32>
      %c0_75 = arith.constant 0 : index
      %c0_76 = arith.constant 0 : index
      %157 = vector.load %arg7[%c0_75, %c0_76] : memref<64x128xf32, #tpu.memory_space<vmem>>, vector<64x128xf32>
      %158 = arith.addf %156, %157 : vector<64x128xf32>
      %c0_77 = arith.constant 0 : index
      %c0_78 = arith.constant 0 : index
      %159 = vector.load %arg21[%c0_77, %c0_78] : memref<64x128xf32, #tpu.memory_space<vmem>>, vector<64x128xf32>
      tpu.vector_store %arg21[%c0_77, %c0_78], %158 {strides = array<i32>} : memref<64x128xf32, #tpu.memory_space<vmem>>, vector<64x128xf32>,
    } else {
    }
    %c0 = arith.constant 0 : index
    %c0_1 = arith.constant 0 : index
    %3 = vector.load %arg21[%c0, %c0_1] : memref<64x128xf32, #tpu.memory_space<vmem>>, vector<64x128xf32>
    %4 = arith.truncf %3 : vector<64x128xf32> to vector<64x128xbf16>
    %c0_2 = arith.constant 0 : index
    %c0_3 = arith.constant 0 : index
    %c0_4 = arith.constant 0 : index
    %5 = vector.load %arg8[%c0_2, %c0_3, %c0_4] : memref<1x128x384xbf16, #tpu.memory_space<vmem>>, vector<1x128x384xbf16>
    %6 = vector.shape_cast %5 : vector<1x128x384xbf16> to vector<128x384xbf16>
    %cst = arith.constant dense<0.000000e+00> : vector<64x384xf32>
    %7 = tpu.matmul %4, %6, %cst {dimension_numbers = #tpu.dot_dimension_numbers<[1], [0], [0], [1], [0, 0, 1, 1], [], []>} : vector<64x128xbf16>, vector<128x384xbf16>, vector<64x384xf32> -> vector<64x384xf32>
    %c0_5 = arith.constant 0 : index
    %c0_6 = arith.constant 0 : index
    %c0_7 = arith.constant 0 : index
    %8 = vector.load %arg9[%c0_5, %c0_6, %c0_7] : memref<1x1x384xf32, #tpu.memory_space<vmem>>, vector<1x1x384xf32>
    %9 = vector.shape_cast %8 : vector<1x1x384xf32> to vector<1x384xf32>
    %10 = vector.broadcast %9 : vector<1x384xf32> to vector<64x384xf32>
    %11 = arith.addf %7, %10 : vector<64x384xf32>
    %12 = vector.extract_strided_slice %11 {offsets = [0, 0], sizes = [64, 128], strides = [1, 1]} : vector<64x384xf32> to vector<64x128xf32>
    %13 = vector.extract_strided_slice %11 {offsets = [0, 128], sizes = [64, 128], strides = [1, 1]} : vector<64x384xf32> to vector<64x128xf32>
    %14 = vector.extract_strided_slice %11 {offsets = [0, 256], sizes = [64, 128], strides = [1, 1]} : vector<64x384xf32> to vector<64x128xf32>
    %c0_8 = arith.constant 0 : index
    %c0_9 = arith.constant 0 : index
    %c0_10 = arith.constant 0 : index
    %c0_11 = arith.constant 0 : index
    %15 = vector.load %arg10[%c0_8, %c0_9, %c0_10, %c0_11] : memref<1x4x32x128xbf16, #tpu.memory_space<vmem>>, vector<1x4x32x128xbf16>
    %16 = vector.shape_cast %15 : vector<1x4x32x128xbf16> to vector<4x32x128xbf16>
    %17 = arith.truncf %12 : vector<64x128xf32> to vector<64x128xbf16>
    %18 = vector.extract_strided_slice %17 {offsets = [0, 0], sizes = [64, 32], strides = [1, 1]} : vector<64x128xbf16> to vector<64x32xbf16>
    %19 = vector.extract_strided_slice %17 {offsets = [0, 32], sizes = [64, 32], strides = [1, 1]} : vector<64x128xbf16> to vector<64x32xbf16>
    %20 = vector.extract_strided_slice %17 {offsets = [0, 64], sizes = [64, 32], strides = [1, 1]} : vector<64x128xbf16> to vector<64x32xbf16>
    %21 = vector.extract_strided_slice %17 {offsets = [0, 96], sizes = [64, 32], strides = [1, 1]} : vector<64x128xbf16> to vector<64x32xbf16>
    %22 = vector.shape_cast %18 : vector<64x32xbf16> to vector<1x64x32xbf16>
    %23 = vector.shape_cast %19 : vector<64x32xbf16> to vector<1x64x32xbf16>
    %24 = vector.shape_cast %20 : vector<64x32xbf16> to vector<1x64x32xbf16>
    %25 = vector.shape_cast %21 : vector<64x32xbf16> to vector<1x64x32xbf16>
    %26 = tpu.concatenate %22, %23, %24, %25 in 0 : vector<1x64x32xbf16>, vector<1x64x32xbf16>, vector<1x64x32xbf16>, vector<1x64x32xbf16> -> vector<4x64x32xbf16>
    %27 = arith.truncf %13 : vector<64x128xf32> to vector<64x128xbf16>
    %28 = vector.extract_strided_slice %27 {offsets = [0, 0], sizes = [64, 32], strides = [1, 1]} : vector<64x128xbf16> to vector<64x32xbf16>
    %29 = vector.extract_strided_slice %27 {offsets = [0, 32], sizes = [64, 32], strides = [1, 1]} : vector<64x128xbf16> to vector<64x32xbf16>
    %30 = vector.extract_strided_slice %27 {offsets = [0, 64], sizes = [64, 32], strides = [1, 1]} : vector<64x128xbf16> to vector<64x32xbf16>
    %31 = vector.extract_strided_slice %27 {offsets = [0, 96], sizes = [64, 32], strides = [1, 1]} : vector<64x128xbf16> to vector<64x32xbf16>
    %32 = vector.shape_cast %28 : vector<64x32xbf16> to vector<1x64x32xbf16>
    %33 = vector.shape_cast %29 : vector<64x32xbf16> to vector<1x64x32xbf16>
    %34 = vector.shape_cast %30 : vector<64x32xbf16> to vector<1x64x32xbf16>
    %35 = vector.shape_cast %31 : vector<64x32xbf16> to vector<1x64x32xbf16>
    %36 = tpu.concatenate %32, %33, %34, %35 in 0 : vector<1x64x32xbf16>, vector<1x64x32xbf16>, vector<1x64x32xbf16>, vector<1x64x32xbf16> -> vector<4x64x32xbf16>
    %37 = arith.truncf %14 : vector<64x128xf32> to vector<64x128xbf16>
    %38 = vector.extract_strided_slice %37 {offsets = [0, 0], sizes = [64, 32], strides = [1, 1]} : vector<64x128xbf16> to vector<64x32xbf16>
    %39 = vector.extract_strided_slice %37 {offsets = [0, 32], sizes = [64, 32], strides = [1, 1]} : vector<64x128xbf16> to vector<64x32xbf16>
    %40 = vector.extract_strided_slice %37 {offsets = [0, 64], sizes = [64, 32], strides = [1, 1]} : vector<64x128xbf16> to vector<64x32xbf16>
    %41 = vector.extract_strided_slice %37 {offsets = [0, 96], sizes = [64, 32], strides = [1, 1]} : vector<64x128xbf16> to vector<64x32xbf16>
    %42 = vector.shape_cast %38 : vector<64x32xbf16> to vector<1x64x32xbf16>
    %43 = vector.shape_cast %39 : vector<64x32xbf16> to vector<1x64x32xbf16>
    %44 = vector.shape_cast %40 : vector<64x32xbf16> to vector<1x64x32xbf16>
    %45 = vector.shape_cast %41 : vector<64x32xbf16> to vector<1x64x32xbf16>
    %46 = tpu.concatenate %42, %43, %44, %45 in 0 : vector<1x64x32xbf16>, vector<1x64x32xbf16>, vector<1x64x32xbf16>, vector<1x64x32xbf16> -> vector<4x64x32xbf16>
    "tpu.trace_start"() <{level = 10 : i32, message = "hqd,hkd->hqk"}> : () -> ()
    %cst_12 = arith.constant dense<0.000000e+00> : vector<4x64x64xf32>
    %47 = tpu.matmul %26, %36, %cst_12 {dimension_numbers = #tpu.dot_dimension_numbers<[2], [2], [1], [1], [0, 0, 0, 1, 1, 1], [0], [0]>} : vector<4x64x32xbf16>, vector<4x64x32xbf16>, vector<4x64x64xf32> -> vector<4x64x64xf32>
    "tpu.trace_stop"() : () -> ()
    %cst_13 = arith.constant dense<0xFF800000> : vector<4x64xf32>
    %48 = vector.multi_reduction <maximumf>, %47, %cst_13 [2] : vector<4x64x64xf32> to vector<4x64xf32>
    %49 = vector.shape_cast %48 : vector<4x64xf32> to vector<4x64x1xf32>
    %50 = vector.broadcast %49 : vector<4x64x1xf32> to vector<4x64x64xf32>
    %51 = arith.subf %47, %50 : vector<4x64x64xf32>
    %52 = math.exp %51 : vector<4x64x64xf32>
    %cst_14 = arith.constant dense<0.000000e+00> : vector<4x64xf32>
    %53 = vector.multi_reduction <add>, %52, %cst_14 [2] : vector<4x64x64xf32> to vector<4x64xf32>
    %54 = vector.shape_cast %53 : vector<4x64xf32> to vector<4x64x1xf32>
    %55 = tpu.reciprocal %54 {approx = true} : vector<4x64x1xf32> -> vector<4x64x1xf32>
    %56 = vector.broadcast %55 : vector<4x64x1xf32> to vector<4x64x64xf32>
    %57 = arith.mulf %52, %56 : vector<4x64x64xf32>
    %58 = arith.truncf %57 : vector<4x64x64xf32> to vector<4x64x64xbf16>
    "tpu.trace_start"() <{level = 10 : i32, message = "hqk,hkd->hqd"}> : () -> ()
    %cst_15 = arith.constant dense<0.000000e+00> : vector<4x64x32xf32>
    %59 = tpu.matmul %58, %46, %cst_15 {dimension_numbers = #tpu.dot_dimension_numbers<[2], [1], [1], [2], [0, 0, 0, 1, 1, 2], [0], [0]>} : vector<4x64x64xbf16>, vector<4x64x32xbf16>, vector<4x64x32xf32> -> vector<4x64x32xf32>
    "tpu.trace_stop"() : () -> ()
    %60 = arith.truncf %59 : vector<4x64x32xf32> to vector<4x64x32xbf16>
    "tpu.trace_start"() <{level = 10 : i32, message = "hqd,hde->hqe"}> : () -> ()
    %cst_16 = arith.constant dense<0.000000e+00> : vector<4x64x128xf32>
    %61 = tpu.matmul %60, %16, %cst_16 {dimension_numbers = #tpu.dot_dimension_numbers<[2], [1], [1], [2], [0, 0, 0, 1, 1, 2], [0], [0]>} : vector<4x64x32xbf16>, vector<4x32x128xbf16>, vector<4x64x128xf32> -> vector<4x64x128xf32>
    "tpu.trace_stop"() : () -> ()
    %cst_17 = arith.constant dense<0.000000e+00> : vector<64x128xf32>
    %62 = vector.multi_reduction <add>, %61, %cst_17 [0] : vector<4x64x128xf32> to vector<64x128xf32>
    %c0_18 = arith.constant 0 : index
    %c0_19 = arith.constant 0 : index
    %c0_20 = arith.constant 0 : index
    %63 = vector.load %arg11[%c0_18, %c0_19, %c0_20] : memref<1x1x128xf32, #tpu.memory_space<vmem>>, vector<1x1x128xf32>
    %64 = vector.shape_cast %63 : vector<1x1x128xf32> to vector<1x128xf32>
    %65 = vector.broadcast %64 : vector<1x128xf32> to vector<64x128xf32>
    %66 = arith.addf %62, %65 : vector<64x128xf32>
    %67 = arith.addf %3, %66 : vector<64x128xf32>
    %c0_21 = arith.constant 0 : index
    %c0_22 = arith.constant 0 : index
    %c0_23 = arith.constant 0 : index
    %68 = vector.load %arg12[%c0_21, %c0_22, %c0_23] : memref<1x1x128xf32, #tpu.memory_space<vmem>>, vector<1x1x128xf32>
    %69 = vector.shape_cast %68 : vector<1x1x128xf32> to vector<1x128xf32>
    %c0_24 = arith.constant 0 : index
    %c0_25 = arith.constant 0 : index
    %c0_26 = arith.constant 0 : index
    %70 = vector.load %arg13[%c0_24, %c0_25, %c0_26] : memref<1x1x128xf32, #tpu.memory_space<vmem>>, vector<1x1x128xf32>
    %71 = vector.shape_cast %70 : vector<1x1x128xf32> to vector<1x128xf32>
    %cst_27 = arith.constant dense<0.000000e+00> : vector<64xf32>
    %72 = vector.multi_reduction <add>, %67, %cst_27 [1] : vector<64x128xf32> to vector<64xf32>
    %73 = vector.shape_cast %72 : vector<64xf32> to vector<64x1xf32>
    %cst_28 = arith.constant 1.280000e+02 : f32
    %74 = vector.broadcast %cst_28 : f32 to vector<64x1xf32>
    %75 = arith.divf %73, %74 : vector<64x1xf32>
    %76 = vector.broadcast %75 : vector<64x1xf32> to vector<64x128xf32>
    %77 = arith.subf %67, %76 : vector<64x128xf32>
    %78 = arith.mulf %77, %77 : vector<64x128xf32>
    %cst_29 = arith.constant dense<0.000000e+00> : vector<64xf32>
    %79 = vector.multi_reduction <add>, %78, %cst_29 [1] : vector<64x128xf32> to vector<64xf32>
    %80 = vector.shape_cast %79 : vector<64xf32> to vector<64x1xf32>
    %cst_30 = arith.constant 1.280000e+02 : f32
    %81 = vector.broadcast %cst_30 : f32 to vector<64x1xf32>
    %82 = arith.divf %80, %81 : vector<64x1xf32>
    %83 = vector.broadcast %75 : vector<64x1xf32> to vector<64x128xf32>
    %84 = arith.subf %67, %83 : vector<64x128xf32>
    %cst_31 = arith.constant 9.99999974E-6 : f32
    %85 = vector.broadcast %cst_31 : f32 to vector<64x1xf32>
    %86 = arith.addf %82, %85 : vector<64x1xf32>
    %87 = math.rsqrt %86 : vector<64x1xf32>
    %88 = vector.broadcast %87 : vector<64x1xf32> to vector<64x128xf32>
    %89 = arith.mulf %84, %88 : vector<64x128xf32>
    %90 = vector.broadcast %69 : vector<1x128xf32> to vector<64x128xf32>
    %91 = arith.mulf %89, %90 : vector<64x128xf32>
    %92 = vector.broadcast %71 : vector<1x128xf32> to vector<64x128xf32>
    %93 = arith.addf %91, %92 : vector<64x128xf32>
    %c0_32 = arith.constant 0 : index
    %c0_33 = arith.constant 0 : index
    %c0_34 = arith.constant 0 : index
    %94 = vector.load %arg14[%c0_32, %c0_33, %c0_34] : memref<1x128x256xbf16, #tpu.memory_space<vmem>>, vector<1x128x256xbf16>
    %95 = vector.shape_cast %94 : vector<1x128x256xbf16> to vector<128x256xbf16>
    %c0_35 = arith.constant 0 : index
    %c0_36 = arith.constant 0 : index
    %c0_37 = arith.constant 0 : index
    %96 = vector.load %arg15[%c0_35, %c0_36, %c0_37] : memref<1x1x256xf32, #tpu.memory_space<vmem>>, vector<1x1x256xf32>
    %97 = vector.shape_cast %96 : vector<1x1x256xf32> to vector<1x256xf32>
    %c0_38 = arith.constant 0 : index
    %c0_39 = arith.constant 0 : index
    %c0_40 = arith.constant 0 : index
    %98 = vector.load %arg16[%c0_38, %c0_39, %c0_40] : memref<1x256x128xbf16, #tpu.memory_space<vmem>>, vector<1x256x128xbf16>
    %99 = vector.shape_cast %98 : vector<1x256x128xbf16> to vector<256x128xbf16>
    %c0_41 = arith.constant 0 : index
    %c0_42 = arith.constant 0 : index
    %c0_43 = arith.constant 0 : index
    %100 = vector.load %arg17[%c0_41, %c0_42, %c0_43] : memref<1x1x128xf32, #tpu.memory_space<vmem>>, vector<1x1x128xf32>
    %101 = vector.shape_cast %100 : vector<1x1x128xf32> to vector<1x128xf32>
    %102 = arith.truncf %93 : vector<64x128xf32> to vector<64x128xbf16>
    %cst_44 = arith.constant dense<0.000000e+00> : vector<64x256xf32>
    %103 = tpu.matmul %102, %95, %cst_44 {dimension_numbers = #tpu.dot_dimension_numbers<[1], [0], [0], [1], [0, 0, 1, 1], [], []>} : vector<64x128xbf16>, vector<128x256xbf16>, vector<64x256xf32> -> vector<64x256xf32>
    %104 = vector.broadcast %97 : vector<1x256xf32> to vector<64x256xf32>
    %105 = arith.addf %103, %104 : vector<64x256xf32>
    %cst_45 = arith.constant 0.000000e+00 : f32
    %106 = vector.broadcast %cst_45 : f32 to vector<64x256xf32>
    %107 = arith.maximumf %105, %106 : vector<64x256xf32>
    %108 = arith.truncf %107 : vector<64x256xf32> to vector<64x256xbf16>
    %cst_46 = arith.constant dense<0.000000e+00> : vector<64x128xf32>
    %109 = tpu.matmul %108, %99, %cst_46 {dimension_numbers = #tpu.dot_dimension_numbers<[1], [0], [0], [1], [0, 0, 1, 1], [], []>} : vector<64x256xbf16>, vector<256x128xbf16>, vector<64x128xf32> -> vector<64x128xf32>
    %110 = vector.broadcast %101 : vector<1x128xf32> to vector<64x128xf32>
    %111 = arith.addf %109, %110 : vector<64x128xf32>
    %112 = arith.addf %93, %111 : vector<64x128xf32>
    %c0_47 = arith.constant 0 : index
    %c0_48 = arith.constant 0 : index
    %c0_49 = arith.constant 0 : index
    %113 = vector.load %arg18[%c0_47, %c0_48, %c0_49] : memref<1x1x128xf32, #tpu.memory_space<vmem>>, vector<1x1x128xf32>
    %114 = vector.shape_cast %113 : vector<1x1x128xf32> to vector<1x128xf32>
    %c0_50 = arith.constant 0 : index
    %c0_51 = arith.constant 0 : index
    %c0_52 = arith.constant 0 : index
    %115 = vector.load %arg19[%c0_50, %c0_51, %c0_52] : memref<1x1x128xf32, #tpu.memory_space<vmem>>, vector<1x1x128xf32>
    %116 = vector.shape_cast %115 : vector<1x1x128xf32> to vector<1x128xf32>
    %cst_53 = arith.constant dense<0.000000e+00> : vector<64xf32>
    %117 = vector.multi_reduction <add>, %112, %cst_53 [1] : vector<64x128xf32> to vector<64xf32>
    %118 = vector.shape_cast %117 : vector<64xf32> to vector<64x1xf32>
    %cst_54 = arith.constant 1.280000e+02 : f32
    %119 = vector.broadcast %cst_54 : f32 to vector<64x1xf32>
    %120 = arith.divf %118, %119 : vector<64x1xf32>
    %121 = vector.broadcast %120 : vector<64x1xf32> to vector<64x128xf32>
    %122 = arith.subf %112, %121 : vector<64x128xf32>
    %123 = arith.mulf %122, %122 : vector<64x128xf32>
    %cst_55 = arith.constant dense<0.000000e+00> : vector<64xf32>
    %124 = vector.multi_reduction <add>, %123, %cst_55 [1] : vector<64x128xf32> to vector<64xf32>
    %125 = vector.shape_cast %124 : vector<64xf32> to vector<64x1xf32>
    %cst_56 = arith.constant 1.280000e+02 : f32
    %126 = vector.broadcast %cst_56 : f32 to vector<64x1xf32>
    %127 = arith.divf %125, %126 : vector<64x1xf32>
    %128 = vector.broadcast %120 : vector<64x1xf32> to vector<64x128xf32>
    %129 = arith.subf %112, %128 : vector<64x128xf32>
    %cst_57 = arith.constant 9.99999974E-6 : f32
    %130 = vector.broadcast %cst_57 : f32 to vector<64x1xf32>
    %131 = arith.addf %127, %130 : vector<64x1xf32>
    %132 = math.rsqrt %131 : vector<64x1xf32>
    %133 = vector.broadcast %132 : vector<64x1xf32> to vector<64x128xf32>
    %134 = arith.mulf %129, %133 : vector<64x128xf32>
    %135 = vector.broadcast %114 : vector<1x128xf32> to vector<64x128xf32>
    %136 = arith.mulf %134, %135 : vector<64x128xf32>
    %137 = vector.broadcast %116 : vector<1x128xf32> to vector<64x128xf32>
    %138 = arith.addf %136, %137 : vector<64x128xf32>
    %c0_58 = arith.constant 0 : index
    %c0_59 = arith.constant 0 : index
    %139 = vector.load %arg21[%c0_58, %c0_59] : memref<64x128xf32, #tpu.memory_space<vmem>>, vector<64x128xf32>
    tpu.vector_store %arg21[%c0_58, %c0_59], %138 {strides = array<i32>} : memref<64x128xf32, #tpu.memory_space<vmem>>, vector<64x128xf32>,
    %c0_i32_60 = arith.constant 0 : i32
    %140 = arith.cmpi eq, %arg1, %c0_i32_60 : i32
    %141 = arith.extui %140 : i1 to i32
    %c0_i32_61 = arith.constant 0 : i32
    %142 = arith.cmpi ne, %141, %c0_i32_61 : i32
    scf.if %142 {
      %c0_62 = arith.constant 0 : index
      %c0_63 = arith.constant 0 : index
      %143 = vector.load %arg21[%c0_62, %c0_63] : memref<64x128xf32, #tpu.memory_space<vmem>>, vector<64x128xf32>
      %c0_64 = arith.constant 0 : index
      %c0_65 = arith.constant 0 : index
      %c0_66 = arith.constant 0 : index
      %144 = vector.load %arg20[%c0_64, %c0_65, %c0_66] : memref<1x64x128xf32, #tpu.memory_space<vmem>>, vector<1x64x128xf32>
      %145 = vector.shape_cast %144 : vector<1x64x128xf32> to vector<64x128xf32>
      %146 = vector.shape_cast %143 : vector<64x128xf32> to vector<1x64x128xf32>
      tpu.vector_store %arg20[%c0_64, %c0_65, %c0_66], %146 {strides = array<i32>} : memref<1x64x128xf32, #tpu.memory_space<vmem>>, vector<1x64x128xf32>,
    } else {
    }
    return
  }
  func.func @transform_0(%arg0: i32, %arg1: i32) -> (i32, i32, i32) {
    %c0_i32 = arith.constant 0 : i32
    %c0_i32_0 = arith.constant 0 : i32
    %c0_i32_1 = arith.constant 0 : i32
    return %arg0, %c0_i32, %c0_i32_0 : i32, i32, i32
  }
  func.func @transform_1(%arg0: i32, %arg1: i32) -> (i32, i32) {
    %c0_i32 = arith.constant 0 : i32
    %c0_i32_0 = arith.constant 0 : i32
    %c0_i32_1 = arith.constant 0 : i32
    return %c0_i32, %c0_i32_0 : i32, i32
  }
  func.func @transform_2(%arg0: i32, %arg1: i32) -> (i32, i32) {
    %c0_i32 = arith.constant 0 : i32
    %c0_i32_0 = arith.constant 0 : i32
    %c0_i32_1 = arith.constant 0 : i32
    return %c0_i32, %c0_i32_0 : i32, i32
  }
  func.func @transform_3(%arg0: i32, %arg1: i32) -> (i32, i32) {
    %c0_i32 = arith.constant 0 : i32
    %c0_i32_0 = arith.constant 0 : i32
    %c0_i32_1 = arith.constant 0 : i32
    return %c0_i32, %c0_i32_0 : i32, i32
  }
  func.func @transform_4(%arg0: i32, %arg1: i32) -> (i32, i32) {
    %c0_i32 = arith.constant 0 : i32
    %c0_i32_0 = arith.constant 0 : i32
    %c0_i32_1 = arith.constant 0 : i32
    return %c0_i32, %c0_i32_0 : i32, i32
  }
  func.func @transform_5(%arg0: i32, %arg1: i32) -> (i32, i32) {
    %c0_i32 = arith.constant 0 : i32
    %c0_i32_0 = arith.constant 0 : i32
    %c0_i32_1 = arith.constant 0 : i32
    return %c0_i32, %c0_i32_0 : i32, i32
  }
  func.func @transform_6(%arg0: i32, %arg1: i32) -> (i32, i32, i32) {
    %c0_i32 = arith.constant 0 : i32
    %c0_i32_0 = arith.constant 0 : i32
    %c0_i32_1 = arith.constant 0 : i32
    return %arg1, %c0_i32, %c0_i32_0 : i32, i32, i32
  }
  func.func @transform_7(%arg0: i32, %arg1: i32) -> (i32, i32, i32) {
    %c0_i32 = arith.constant 0 : i32
    %c0_i32_0 = arith.constant 0 : i32
    %c0_i32_1 = arith.constant 0 : i32
    return %arg1, %c0_i32, %c0_i32_0 : i32, i32, i32
  }
  func.func @transform_8(%arg0: i32, %arg1: i32) -> (i32, i32, i32, i32) {
    %c0_i32 = arith.constant 0 : i32
    %c0_i32_0 = arith.constant 0 : i32
    %c0_i32_1 = arith.constant 0 : i32
    %c0_i32_2 = arith.constant 0 : i32
    return %arg1, %c0_i32, %c0_i32_0, %c0_i32_1 : i32, i32, i32, i32
  }
  func.func @transform_9(%arg0: i32, %arg1: i32) -> (i32, i32, i32) {
    %c0_i32 = arith.constant 0 : i32
    %c0_i32_0 = arith.constant 0 : i32
    %c0_i32_1 = arith.constant 0 : i32
    return %arg1, %c0_i32, %c0_i32_0 : i32, i32, i32
  }
  func.func @transform_10(%arg0: i32, %arg1: i32) -> (i32, i32, i32) {
    %c0_i32 = arith.constant 0 : i32
    %c0_i32_0 = arith.constant 0 : i32
    %c0_i32_1 = arith.constant 0 : i32
    return %arg1, %c0_i32, %c0_i32_0 : i32, i32, i32
  }
  func.func @transform_11(%arg0: i32, %arg1: i32) -> (i32, i32, i32) {
    %c0_i32 = arith.constant 0 : i32
    %c0_i32_0 = arith.constant 0 : i32
    %c0_i32_1 = arith.constant 0 : i32
    return %arg1, %c0_i32, %c0_i32_0 : i32, i32, i32
  }
  func.func @transform_12(%arg0: i32, %arg1: i32) -> (i32, i32, i32) {
    %c0_i32 = arith.constant 0 : i32
    %c0_i32_0 = arith.constant 0 : i32
    %c0_i32_1 = arith.constant 0 : i32
    return %arg1, %c0_i32, %c0_i32_0 : i32, i32, i32
  }
  func.func @transform_13(%arg0: i32, %arg1: i32) -> (i32, i32, i32) {
    %c0_i32 = arith.constant 0 : i32
    %c0_i32_0 = arith.constant 0 : i32
    %c0_i32_1 = arith.constant 0 : i32
    return %arg1, %c0_i32, %c0_i32_0 : i32, i32, i32
  }
  func.func @transform_14(%arg0: i32, %arg1: i32) -> (i32, i32, i32) {
    %c0_i32 = arith.constant 0 : i32
    %c0_i32_0 = arith.constant 0 : i32
    %c0_i32_1 = arith.constant 0 : i32
    return %arg1, %c0_i32, %c0_i32_0 : i32, i32, i32
  }
  func.func @transform_15(%arg0: i32, %arg1: i32) -> (i32, i32, i32) {
    %c0_i32 = arith.constant 0 : i32
    %c0_i32_0 = arith.constant 0 : i32
    %c0_i32_1 = arith.constant 0 : i32
    return %arg1, %c0_i32, %c0_i32_0 : i32, i32, i32
  }
  func.func @transform_16(%arg0: i32, %arg1: i32) -> (i32, i32, i32) {
    %c0_i32 = arith.constant 0 : i32
    %c0_i32_0 = arith.constant 0 : i32
    %c0_i32_1 = arith.constant 0 : i32
    return %arg1, %c0_i32, %c0_i32_0 : i32, i32, i32
  }
  func.func @transform_17(%arg0: i32, %arg1: i32) -> (i32, i32, i32) {
    %c0_i32 = arith.constant 0 : i32
    %c0_i32_0 = arith.constant 0 : i32
    %c0_i32_1 = arith.constant 0 : i32
    return %arg1, %c0_i32, %c0_i32_0 : i32, i32, i32
  }
  func.func @transform_18(%arg0: i32, %arg1: i32) -> (i32, i32, i32) {
    %c0_i32 = arith.constant 0 : i32
    %c0_i32_0 = arith.constant 0 : i32
    %c0_i32_1 = arith.constant 0 : i32
    return %arg0, %c0_i32, %c0_i32_0 : i32, i32, i32
  }
}

module attributes {stable_mosaic.version = 11 : i64} {
  func.func @_decoder_stack_kernel(%arg0: i32, %arg1: i32, %arg2: memref<1x8x128xf32, #tpu.memory_space<vmem>>, %arg3: memref<1x64x128xf32, #tpu.memory_space<vmem>>, %arg4: memref<1x1x8xf32, #tpu.memory_space<vmem>>, %arg5: memref<1x128x384xbf16, #tpu.memory_space<vmem>>, %arg6: memref<1x1x384xf32, #tpu.memory_space<vmem>>, %arg7: memref<1x4x32x128xbf16, #tpu.memory_space<vmem>>, %arg8: memref<1x1x128xf32, #tpu.memory_space<vmem>>, %arg9: memref<1x1x128xf32, #tpu.memory_space<vmem>>, %arg10: memref<1x1x128xf32, #tpu.memory_space<vmem>>, %arg11: memref<1x128x128xbf16, #tpu.memory_space<vmem>>, %arg12: memref<1x1x128xf32, #tpu.memory_space<vmem>>, %arg13: memref<1x128x256xbf16, #tpu.memory_space<vmem>>, %arg14: memref<1x1x256xf32, #tpu.memory_space<vmem>>, %arg15: memref<1x4x32x128xbf16, #tpu.memory_space<vmem>>, %arg16: memref<1x1x128xf32, #tpu.memory_space<vmem>>, %arg17: memref<1x1x128xf32, #tpu.memory_space<vmem>>, %arg18: memref<1x1x128xf32, #tpu.memory_space<vmem>>, %arg19: memref<1x128x256xbf16, #tpu.memory_space<vmem>>, %arg20: memref<1x1x256xf32, #tpu.memory_space<vmem>>, %arg21: memref<1x256x128xbf16, #tpu.memory_space<vmem>>, %arg22: memref<1x1x128xf32, #tpu.memory_space<vmem>>, %arg23: memref<1x1x128xf32, #tpu.memory_space<vmem>>, %arg24: memref<1x1x128xf32, #tpu.memory_space<vmem>>, %arg25: memref<128x128xbf16, #tpu.memory_space<vmem>>, %arg26: memref<1x128xf32, #tpu.memory_space<vmem>>, %arg27: memref<1x8x128xf32, #tpu.memory_space<vmem>>, %arg28: memref<8x128xf32, #tpu.memory_space<vmem>>, %arg29: memref<8x8xf32, #tpu.memory_space<vmem>>) attributes {dimension_semantics = [#tpu.dimension_semantics<parallel>, #tpu.dimension_semantics<arbitrary>], iteration_bounds = array<i64: 2, 2>, scalar_prefetch = 0 : i64, scratch_operands = 2 : i64, tpu.core_type = #tpu.core_type<tc>, window_params = [{transform_indices = @transform_0, window_bounds = array<i64: 1, 8, 128>}, {transform_indices = @transform_1, window_bounds = array<i64: 1, 64, 128>}, {transform_indices = @transform_2, window_bounds = array<i64: 1, 1, 8>}, {transform_indices = @transform_3, window_bounds = array<i64: 1, 128, 384>}, {transform_indices = @transform_4, window_bounds = array<i64: 1, 1, 384>}, {transform_indices = @transform_5, window_bounds = array<i64: 1, 4, 32, 128>}, {transform_indices = @transform_6, window_bounds = array<i64: 1, 1, 128>}, {transform_indices = @transform_7, window_bounds = array<i64: 1, 1, 128>}, {transform_indices = @transform_8, window_bounds = array<i64: 1, 1, 128>}, {transform_indices = @transform_9, window_bounds = array<i64: 1, 128, 128>}, {transform_indices = @transform_10, window_bounds = array<i64: 1, 1, 128>}, {transform_indices = @transform_11, window_bounds = array<i64: 1, 128, 256>}, {transform_indices = @transform_12, window_bounds = array<i64: 1, 1, 256>}, {transform_indices = @transform_13, window_bounds = array<i64: 1, 4, 32, 128>}, {transform_indices = @transform_14, window_bounds = array<i64: 1, 1, 128>}, {transform_indices = @transform_15, window_bounds = array<i64: 1, 1, 128>}, {transform_indices = @transform_16, window_bounds = array<i64: 1, 1, 128>}, {transform_indices = @transform_17, window_bounds = array<i64: 1, 128, 256>}, {transform_indices = @transform_18, window_bounds = array<i64: 1, 1, 256>}, {transform_indices = @transform_19, window_bounds = array<i64: 1, 256, 128>}, {transform_indices = @transform_20, window_bounds = array<i64: 1, 1, 128>}, {transform_indices = @transform_21, window_bounds = array<i64: 1, 1, 128>}, {transform_indices = @transform_22, window_bounds = array<i64: 1, 1, 128>}, {pipeline_mode = #tpu.pipeline_mode<synchronous>, transform_indices = @transform_23, window_bounds = array<i64: 128, 128>}, {pipeline_mode = #tpu.pipeline_mode<synchronous>, transform_indices = @transform_24, window_bounds = array<i64: 1, 128>}, {transform_indices = @transform_25, window_bounds = array<i64: 1, 8, 128>}]} {
    %c0_i32 = arith.constant 0 : i32
    %0 = arith.cmpi eq, %arg1, %c0_i32 : i32
    %1 = arith.extui %0 : i1 to i32
    %c0_i32_0 = arith.constant 0 : i32
    %2 = arith.cmpi ne, %1, %c0_i32_0 : i32
    scf.if %2 {
      %c0_104 = arith.constant 0 : index
      %c0_105 = arith.constant 0 : index
      %c0_106 = arith.constant 0 : index
      %246 = vector.load %arg2[%c0_104, %c0_105, %c0_106] : memref<1x8x128xf32, #tpu.memory_space<vmem>>, vector<1x8x128xf32>
      %247 = vector.shape_cast %246 : vector<1x8x128xf32> to vector<8x128xf32>
      %c0_107 = arith.constant 0 : index
      %c0_108 = arith.constant 0 : index
      %248 = vector.load %arg28[%c0_107, %c0_108] : memref<8x128xf32, #tpu.memory_space<vmem>>, vector<8x128xf32>
      tpu.vector_store %arg28[%c0_107, %c0_108], %247 {strides = array<i32>} : memref<8x128xf32, #tpu.memory_space<vmem>>, vector<8x128xf32>,
      %249 = tpu.iota {dimensions = array<i32: 0>} : vector<8x8xi32>
      %250 = tpu.iota {dimensions = array<i32: 1>} : vector<8x8xi32>
      %251 = arith.cmpi sle, %250, %249 : vector<8x8xi32>
      %cst_109 = arith.constant 0.000000e+00 : f32
      %cst_110 = arith.constant -1.000000e+30 : f32
      %252 = vector.broadcast %cst_109 : f32 to vector<8x8xf32>
      %253 = vector.broadcast %cst_110 : f32 to vector<8x8xf32>
      %254 = arith.select %251, %252, %253 : vector<8x8xi1>, vector<8x8xf32>
      %c0_111 = arith.constant 0 : index
      %c0_112 = arith.constant 0 : index
      %c0_113 = arith.constant 0 : index
      %255 = vector.load %arg4[%c0_111, %c0_112, %c0_113] : memref<1x1x8xf32, #tpu.memory_space<vmem>>, vector<1x1x8xf32>
      %256 = vector.shape_cast %255 : vector<1x1x8xf32> to vector<1x8xf32>
      %cst_114 = arith.constant 5.000000e-01 : f32
      %257 = vector.broadcast %cst_114 : f32 to vector<1x8xf32>
      %258 = arith.cmpf ogt, %256, %257 : vector<1x8xf32>
      %cst_115 = arith.constant -1.000000e+30 : f32
      %cst_116 = arith.constant 0.000000e+00 : f32
      %259 = vector.broadcast %cst_115 : f32 to vector<1x8xf32>
      %260 = vector.broadcast %cst_116 : f32 to vector<1x8xf32>
      %261 = arith.select %258, %259, %260 : vector<1x8xi1>, vector<1x8xf32>
      %262 = vector.broadcast %261 : vector<1x8xf32> to vector<8x8xf32>
      %263 = arith.addf %254, %262 : vector<8x8xf32>
      %c0_117 = arith.constant 0 : index
      %c0_118 = arith.constant 0 : index
      %264 = vector.load %arg29[%c0_117, %c0_118] : memref<8x8xf32, #tpu.memory_space<vmem>>, vector<8x8xf32>
      tpu.vector_store %arg29[%c0_117, %c0_118], %263 {strides = array<i32>} : memref<8x8xf32, #tpu.memory_space<vmem>>, vector<8x8xf32>,
    } else {
    }
    %c0 = arith.constant 0 : index
    %c0_1 = arith.constant 0 : index
    %3 = vector.load %arg28[%c0, %c0_1] : memref<8x128xf32, #tpu.memory_space<vmem>>, vector<8x128xf32>
    %c0_2 = arith.constant 0 : index
    %c0_3 = arith.constant 0 : index
    %c0_4 = arith.constant 0 : index
    %4 = vector.load %arg3[%c0_2, %c0_3, %c0_4] : memref<1x64x128xf32, #tpu.memory_space<vmem>>, vector<1x64x128xf32>
    %5 = vector.shape_cast %4 : vector<1x64x128xf32> to vector<64x128xf32>
    %c0_5 = arith.constant 0 : index
    %c0_6 = arith.constant 0 : index
    %6 = vector.load %arg29[%c0_5, %c0_6] : memref<8x8xf32, #tpu.memory_space<vmem>>, vector<8x8xf32>
    %7 = arith.truncf %3 : vector<8x128xf32> to vector<8x128xbf16>
    %c0_7 = arith.constant 0 : index
    %c0_8 = arith.constant 0 : index
    %c0_9 = arith.constant 0 : index
    %8 = vector.load %arg5[%c0_7, %c0_8, %c0_9] : memref<1x128x384xbf16, #tpu.memory_space<vmem>>, vector<1x128x384xbf16>
    %9 = vector.shape_cast %8 : vector<1x128x384xbf16> to vector<128x384xbf16>
    %cst = arith.constant dense<0.000000e+00> : vector<8x384xf32>
    %10 = tpu.matmul %7, %9, %cst {dimension_numbers = #tpu.dot_dimension_numbers<[1], [0], [0], [1], [0, 0, 1, 1], [], []>} : vector<8x128xbf16>, vector<128x384xbf16>, vector<8x384xf32> -> vector<8x384xf32>
    %c0_10 = arith.constant 0 : index
    %c0_11 = arith.constant 0 : index
    %c0_12 = arith.constant 0 : index
    %11 = vector.load %arg6[%c0_10, %c0_11, %c0_12] : memref<1x1x384xf32, #tpu.memory_space<vmem>>, vector<1x1x384xf32>
    %12 = vector.shape_cast %11 : vector<1x1x384xf32> to vector<1x384xf32>
    %13 = vector.broadcast %12 : vector<1x384xf32> to vector<8x384xf32>
    %14 = arith.addf %10, %13 : vector<8x384xf32>
    %15 = vector.extract_strided_slice %14 {offsets = [0, 0], sizes = [8, 128], strides = [1, 1]} : vector<8x384xf32> to vector<8x128xf32>
    %16 = vector.extract_strided_slice %14 {offsets = [0, 128], sizes = [8, 128], strides = [1, 1]} : vector<8x384xf32> to vector<8x128xf32>
    %17 = vector.extract_strided_slice %14 {offsets = [0, 256], sizes = [8, 128], strides = [1, 1]} : vector<8x384xf32> to vector<8x128xf32>
    %c0_13 = arith.constant 0 : index
    %c0_14 = arith.constant 0 : index
    %c0_15 = arith.constant 0 : index
    %c0_16 = arith.constant 0 : index
    %18 = vector.load %arg7[%c0_13, %c0_14, %c0_15, %c0_16] : memref<1x4x32x128xbf16, #tpu.memory_space<vmem>>, vector<1x4x32x128xbf16>
    %19 = vector.shape_cast %18 : vector<1x4x32x128xbf16> to vector<4x32x128xbf16>
    %20 = arith.truncf %15 : vector<8x128xf32> to vector<8x128xbf16>
    %21 = vector.extract_strided_slice %20 {offsets = [0, 0], sizes = [8, 32], strides = [1, 1]} : vector<8x128xbf16> to vector<8x32xbf16>
    %22 = vector.extract_strided_slice %20 {offsets = [0, 32], sizes = [8, 32], strides = [1, 1]} : vector<8x128xbf16> to vector<8x32xbf16>
    %23 = vector.extract_strided_slice %20 {offsets = [0, 64], sizes = [8, 32], strides = [1, 1]} : vector<8x128xbf16> to vector<8x32xbf16>
    %24 = vector.extract_strided_slice %20 {offsets = [0, 96], sizes = [8, 32], strides = [1, 1]} : vector<8x128xbf16> to vector<8x32xbf16>
    %25 = vector.shape_cast %21 : vector<8x32xbf16> to vector<1x8x32xbf16>
    %26 = vector.shape_cast %22 : vector<8x32xbf16> to vector<1x8x32xbf16>
    %27 = vector.shape_cast %23 : vector<8x32xbf16> to vector<1x8x32xbf16>
    %28 = vector.shape_cast %24 : vector<8x32xbf16> to vector<1x8x32xbf16>
    %29 = tpu.concatenate %25, %26, %27, %28 in 0 : vector<1x8x32xbf16>, vector<1x8x32xbf16>, vector<1x8x32xbf16>, vector<1x8x32xbf16> -> vector<4x8x32xbf16>
    %30 = arith.truncf %16 : vector<8x128xf32> to vector<8x128xbf16>
    %31 = vector.extract_strided_slice %30 {offsets = [0, 0], sizes = [8, 32], strides = [1, 1]} : vector<8x128xbf16> to vector<8x32xbf16>
    %32 = vector.extract_strided_slice %30 {offsets = [0, 32], sizes = [8, 32], strides = [1, 1]} : vector<8x128xbf16> to vector<8x32xbf16>
    %33 = vector.extract_strided_slice %30 {offsets = [0, 64], sizes = [8, 32], strides = [1, 1]} : vector<8x128xbf16> to vector<8x32xbf16>
    %34 = vector.extract_strided_slice %30 {offsets = [0, 96], sizes = [8, 32], strides = [1, 1]} : vector<8x128xbf16> to vector<8x32xbf16>
    %35 = vector.shape_cast %31 : vector<8x32xbf16> to vector<1x8x32xbf16>
    %36 = vector.shape_cast %32 : vector<8x32xbf16> to vector<1x8x32xbf16>
    %37 = vector.shape_cast %33 : vector<8x32xbf16> to vector<1x8x32xbf16>
    %38 = vector.shape_cast %34 : vector<8x32xbf16> to vector<1x8x32xbf16>
    %39 = tpu.concatenate %35, %36, %37, %38 in 0 : vector<1x8x32xbf16>, vector<1x8x32xbf16>, vector<1x8x32xbf16>, vector<1x8x32xbf16> -> vector<4x8x32xbf16>
    %40 = arith.truncf %17 : vector<8x128xf32> to vector<8x128xbf16>
    %41 = vector.extract_strided_slice %40 {offsets = [0, 0], sizes = [8, 32], strides = [1, 1]} : vector<8x128xbf16> to vector<8x32xbf16>
    %42 = vector.extract_strided_slice %40 {offsets = [0, 32], sizes = [8, 32], strides = [1, 1]} : vector<8x128xbf16> to vector<8x32xbf16>
    %43 = vector.extract_strided_slice %40 {offsets = [0, 64], sizes = [8, 32], strides = [1, 1]} : vector<8x128xbf16> to vector<8x32xbf16>
    %44 = vector.extract_strided_slice %40 {offsets = [0, 96], sizes = [8, 32], strides = [1, 1]} : vector<8x128xbf16> to vector<8x32xbf16>
    %45 = vector.shape_cast %41 : vector<8x32xbf16> to vector<1x8x32xbf16>
    %46 = vector.shape_cast %42 : vector<8x32xbf16> to vector<1x8x32xbf16>
    %47 = vector.shape_cast %43 : vector<8x32xbf16> to vector<1x8x32xbf16>
    %48 = vector.shape_cast %44 : vector<8x32xbf16> to vector<1x8x32xbf16>
    %49 = tpu.concatenate %45, %46, %47, %48 in 0 : vector<1x8x32xbf16>, vector<1x8x32xbf16>, vector<1x8x32xbf16>, vector<1x8x32xbf16> -> vector<4x8x32xbf16>
    "tpu.trace_start"() <{level = 10 : i32, message = "hqd,hkd->hqk"}> : () -> ()
    %cst_17 = arith.constant dense<0.000000e+00> : vector<4x8x8xf32>
    %50 = tpu.matmul %29, %39, %cst_17 {dimension_numbers = #tpu.dot_dimension_numbers<[2], [2], [1], [1], [0, 0, 0, 1, 1, 1], [0], [0]>} : vector<4x8x32xbf16>, vector<4x8x32xbf16>, vector<4x8x8xf32> -> vector<4x8x8xf32>
    "tpu.trace_stop"() : () -> ()
    %51 = vector.shape_cast %6 : vector<8x8xf32> to vector<1x8x8xf32>
    %52 = vector.broadcast %51 : vector<1x8x8xf32> to vector<4x8x8xf32>
    %53 = arith.addf %50, %52 : vector<4x8x8xf32>
    %cst_18 = arith.constant dense<0xFF800000> : vector<4x8xf32>
    %54 = vector.multi_reduction <maximumf>, %53, %cst_18 [2] : vector<4x8x8xf32> to vector<4x8xf32>
    %55 = vector.shape_cast %54 : vector<4x8xf32> to vector<4x8x1xf32>
    %56 = vector.broadcast %55 : vector<4x8x1xf32> to vector<4x8x8xf32>
    %57 = arith.subf %53, %56 : vector<4x8x8xf32>
    %58 = math.exp %57 : vector<4x8x8xf32>
    %cst_19 = arith.constant dense<0.000000e+00> : vector<4x8xf32>
    %59 = vector.multi_reduction <add>, %58, %cst_19 [2] : vector<4x8x8xf32> to vector<4x8xf32>
    %60 = vector.shape_cast %59 : vector<4x8xf32> to vector<4x8x1xf32>
    %61 = tpu.reciprocal %60 {approx = true} : vector<4x8x1xf32> -> vector<4x8x1xf32>
    %62 = vector.broadcast %61 : vector<4x8x1xf32> to vector<4x8x8xf32>
    %63 = arith.mulf %58, %62 : vector<4x8x8xf32>
    %64 = arith.truncf %63 : vector<4x8x8xf32> to vector<4x8x8xbf16>
    "tpu.trace_start"() <{level = 10 : i32, message = "hqk,hkd->hqd"}> : () -> ()
    %cst_20 = arith.constant dense<0.000000e+00> : vector<4x8x32xf32>
    %65 = tpu.matmul %64, %49, %cst_20 {dimension_numbers = #tpu.dot_dimension_numbers<[2], [1], [1], [2], [0, 0, 0, 1, 1, 2], [0], [0]>} : vector<4x8x8xbf16>, vector<4x8x32xbf16>, vector<4x8x32xf32> -> vector<4x8x32xf32>
    "tpu.trace_stop"() : () -> ()
    %66 = arith.truncf %65 : vector<4x8x32xf32> to vector<4x8x32xbf16>
    "tpu.trace_start"() <{level = 10 : i32, message = "hqd,hde->hqe"}> : () -> ()
    %cst_21 = arith.constant dense<0.000000e+00> : vector<4x8x128xf32>
    %67 = tpu.matmul %66, %19, %cst_21 {dimension_numbers = #tpu.dot_dimension_numbers<[2], [1], [1], [2], [0, 0, 0, 1, 1, 2], [0], [0]>} : vector<4x8x32xbf16>, vector<4x32x128xbf16>, vector<4x8x128xf32> -> vector<4x8x128xf32>
    "tpu.trace_stop"() : () -> ()
    %cst_22 = arith.constant dense<0.000000e+00> : vector<8x128xf32>
    %68 = vector.multi_reduction <add>, %67, %cst_22 [0] : vector<4x8x128xf32> to vector<8x128xf32>
    %c0_23 = arith.constant 0 : index
    %c0_24 = arith.constant 0 : index
    %c0_25 = arith.constant 0 : index
    %69 = vector.load %arg8[%c0_23, %c0_24, %c0_25] : memref<1x1x128xf32, #tpu.memory_space<vmem>>, vector<1x1x128xf32>
    %70 = vector.shape_cast %69 : vector<1x1x128xf32> to vector<1x128xf32>
    %71 = vector.broadcast %70 : vector<1x128xf32> to vector<8x128xf32>
    %72 = arith.addf %68, %71 : vector<8x128xf32>
    %73 = arith.addf %3, %72 : vector<8x128xf32>
    %c0_26 = arith.constant 0 : index
    %c0_27 = arith.constant 0 : index
    %c0_28 = arith.constant 0 : index
    %74 = vector.load %arg9[%c0_26, %c0_27, %c0_28] : memref<1x1x128xf32, #tpu.memory_space<vmem>>, vector<1x1x128xf32>
    %75 = vector.shape_cast %74 : vector<1x1x128xf32> to vector<1x128xf32>
    %c0_29 = arith.constant 0 : index
    %c0_30 = arith.constant 0 : index
    %c0_31 = arith.constant 0 : index
    %76 = vector.load %arg10[%c0_29, %c0_30, %c0_31] : memref<1x1x128xf32, #tpu.memory_space<vmem>>, vector<1x1x128xf32>
    %77 = vector.shape_cast %76 : vector<1x1x128xf32> to vector<1x128xf32>
    %cst_32 = arith.constant dense<0.000000e+00> : vector<8xf32>
    %78 = vector.multi_reduction <add>, %73, %cst_32 [1] : vector<8x128xf32> to vector<8xf32>
    %79 = vector.shape_cast %78 : vector<8xf32> to vector<8x1xf32>
    %cst_33 = arith.constant 1.280000e+02 : f32
    %80 = vector.broadcast %cst_33 : f32 to vector<8x1xf32>
    %81 = arith.divf %79, %80 : vector<8x1xf32>
    %82 = vector.broadcast %81 : vector<8x1xf32> to vector<8x128xf32>
    %83 = arith.subf %73, %82 : vector<8x128xf32>
    %84 = arith.mulf %83, %83 : vector<8x128xf32>
    %cst_34 = arith.constant dense<0.000000e+00> : vector<8xf32>
    %85 = vector.multi_reduction <add>, %84, %cst_34 [1] : vector<8x128xf32> to vector<8xf32>
    %86 = vector.shape_cast %85 : vector<8xf32> to vector<8x1xf32>
    %cst_35 = arith.constant 1.280000e+02 : f32
    %87 = vector.broadcast %cst_35 : f32 to vector<8x1xf32>
    %88 = arith.divf %86, %87 : vector<8x1xf32>
    %89 = vector.broadcast %81 : vector<8x1xf32> to vector<8x128xf32>
    %90 = arith.subf %73, %89 : vector<8x128xf32>
    %cst_36 = arith.constant 9.99999974E-6 : f32
    %91 = vector.broadcast %cst_36 : f32 to vector<8x1xf32>
    %92 = arith.addf %88, %91 : vector<8x1xf32>
    %93 = math.rsqrt %92 : vector<8x1xf32>
    %94 = vector.broadcast %93 : vector<8x1xf32> to vector<8x128xf32>
    %95 = arith.mulf %90, %94 : vector<8x128xf32>
    %96 = vector.broadcast %75 : vector<1x128xf32> to vector<8x128xf32>
    %97 = arith.mulf %95, %96 : vector<8x128xf32>
    %98 = vector.broadcast %77 : vector<1x128xf32> to vector<8x128xf32>
    %99 = arith.addf %97, %98 : vector<8x128xf32>
    %100 = arith.truncf %99 : vector<8x128xf32> to vector<8x128xbf16>
    %c0_37 = arith.constant 0 : index
    %c0_38 = arith.constant 0 : index
    %c0_39 = arith.constant 0 : index
    %101 = vector.load %arg11[%c0_37, %c0_38, %c0_39] : memref<1x128x128xbf16, #tpu.memory_space<vmem>>, vector<1x128x128xbf16>
    %102 = vector.shape_cast %101 : vector<1x128x128xbf16> to vector<128x128xbf16>
    %cst_40 = arith.constant dense<0.000000e+00> : vector<8x128xf32>
    %103 = tpu.matmul %100, %102, %cst_40 {dimension_numbers = #tpu.dot_dimension_numbers<[1], [0], [0], [1], [0, 0, 1, 1], [], []>} : vector<8x128xbf16>, vector<128x128xbf16>, vector<8x128xf32> -> vector<8x128xf32>
    %c0_41 = arith.constant 0 : index
    %c0_42 = arith.constant 0 : index
    %c0_43 = arith.constant 0 : index
    %104 = vector.load %arg12[%c0_41, %c0_42, %c0_43] : memref<1x1x128xf32, #tpu.memory_space<vmem>>, vector<1x1x128xf32>
    %105 = vector.shape_cast %104 : vector<1x1x128xf32> to vector<1x128xf32>
    %106 = vector.broadcast %105 : vector<1x128xf32> to vector<8x128xf32>
    %107 = arith.addf %103, %106 : vector<8x128xf32>
    %108 = arith.truncf %5 : vector<64x128xf32> to vector<64x128xbf16>
    %c0_44 = arith.constant 0 : index
    %c0_45 = arith.constant 0 : index
    %c0_46 = arith.constant 0 : index
    %109 = vector.load %arg13[%c0_44, %c0_45, %c0_46] : memref<1x128x256xbf16, #tpu.memory_space<vmem>>, vector<1x128x256xbf16>
    %110 = vector.shape_cast %109 : vector<1x128x256xbf16> to vector<128x256xbf16>
    %cst_47 = arith.constant dense<0.000000e+00> : vector<64x256xf32>
    %111 = tpu.matmul %108, %110, %cst_47 {dimension_numbers = #tpu.dot_dimension_numbers<[1], [0], [0], [1], [0, 0, 1, 1], [], []>} : vector<64x128xbf16>, vector<128x256xbf16>, vector<64x256xf32> -> vector<64x256xf32>
    %c0_48 = arith.constant 0 : index
    %c0_49 = arith.constant 0 : index
    %c0_50 = arith.constant 0 : index
    %112 = vector.load %arg14[%c0_48, %c0_49, %c0_50] : memref<1x1x256xf32, #tpu.memory_space<vmem>>, vector<1x1x256xf32>
    %113 = vector.shape_cast %112 : vector<1x1x256xf32> to vector<1x256xf32>
    %114 = vector.broadcast %113 : vector<1x256xf32> to vector<64x256xf32>
    %115 = arith.addf %111, %114 : vector<64x256xf32>
    %116 = vector.extract_strided_slice %115 {offsets = [0, 0], sizes = [64, 128], strides = [1, 1]} : vector<64x256xf32> to vector<64x128xf32>
    %117 = vector.extract_strided_slice %115 {offsets = [0, 128], sizes = [64, 128], strides = [1, 1]} : vector<64x256xf32> to vector<64x128xf32>
    %c0_51 = arith.constant 0 : index
    %c0_52 = arith.constant 0 : index
    %c0_53 = arith.constant 0 : index
    %c0_54 = arith.constant 0 : index
    %118 = vector.load %arg15[%c0_51, %c0_52, %c0_53, %c0_54] : memref<1x4x32x128xbf16, #tpu.memory_space<vmem>>, vector<1x4x32x128xbf16>
    %119 = vector.shape_cast %118 : vector<1x4x32x128xbf16> to vector<4x32x128xbf16>
    %120 = arith.truncf %107 : vector<8x128xf32> to vector<8x128xbf16>
    %121 = vector.extract_strided_slice %120 {offsets = [0, 0], sizes = [8, 32], strides = [1, 1]} : vector<8x128xbf16> to vector<8x32xbf16>
    %122 = vector.extract_strided_slice %120 {offsets = [0, 32], sizes = [8, 32], strides = [1, 1]} : vector<8x128xbf16> to vector<8x32xbf16>
    %123 = vector.extract_strided_slice %120 {offsets = [0, 64], sizes = [8, 32], strides = [1, 1]} : vector<8x128xbf16> to vector<8x32xbf16>
    %124 = vector.extract_strided_slice %120 {offsets = [0, 96], sizes = [8, 32], strides = [1, 1]} : vector<8x128xbf16> to vector<8x32xbf16>
    %125 = vector.shape_cast %121 : vector<8x32xbf16> to vector<1x8x32xbf16>
    %126 = vector.shape_cast %122 : vector<8x32xbf16> to vector<1x8x32xbf16>
    %127 = vector.shape_cast %123 : vector<8x32xbf16> to vector<1x8x32xbf16>
    %128 = vector.shape_cast %124 : vector<8x32xbf16> to vector<1x8x32xbf16>
    %129 = tpu.concatenate %125, %126, %127, %128 in 0 : vector<1x8x32xbf16>, vector<1x8x32xbf16>, vector<1x8x32xbf16>, vector<1x8x32xbf16> -> vector<4x8x32xbf16>
    %130 = arith.truncf %116 : vector<64x128xf32> to vector<64x128xbf16>
    %131 = vector.extract_strided_slice %130 {offsets = [0, 0], sizes = [64, 32], strides = [1, 1]} : vector<64x128xbf16> to vector<64x32xbf16>
    %132 = vector.extract_strided_slice %130 {offsets = [0, 32], sizes = [64, 32], strides = [1, 1]} : vector<64x128xbf16> to vector<64x32xbf16>
    %133 = vector.extract_strided_slice %130 {offsets = [0, 64], sizes = [64, 32], strides = [1, 1]} : vector<64x128xbf16> to vector<64x32xbf16>
    %134 = vector.extract_strided_slice %130 {offsets = [0, 96], sizes = [64, 32], strides = [1, 1]} : vector<64x128xbf16> to vector<64x32xbf16>
    %135 = vector.shape_cast %131 : vector<64x32xbf16> to vector<1x64x32xbf16>
    %136 = vector.shape_cast %132 : vector<64x32xbf16> to vector<1x64x32xbf16>
    %137 = vector.shape_cast %133 : vector<64x32xbf16> to vector<1x64x32xbf16>
    %138 = vector.shape_cast %134 : vector<64x32xbf16> to vector<1x64x32xbf16>
    %139 = tpu.concatenate %135, %136, %137, %138 in 0 : vector<1x64x32xbf16>, vector<1x64x32xbf16>, vector<1x64x32xbf16>, vector<1x64x32xbf16> -> vector<4x64x32xbf16>
    %140 = arith.truncf %117 : vector<64x128xf32> to vector<64x128xbf16>
    %141 = vector.extract_strided_slice %140 {offsets = [0, 0], sizes = [64, 32], strides = [1, 1]} : vector<64x128xbf16> to vector<64x32xbf16>
    %142 = vector.extract_strided_slice %140 {offsets = [0, 32], sizes = [64, 32], strides = [1, 1]} : vector<64x128xbf16> to vector<64x32xbf16>
    %143 = vector.extract_strided_slice %140 {offsets = [0, 64], sizes = [64, 32], strides = [1, 1]} : vector<64x128xbf16> to vector<64x32xbf16>
    %144 = vector.extract_strided_slice %140 {offsets = [0, 96], sizes = [64, 32], strides = [1, 1]} : vector<64x128xbf16> to vector<64x32xbf16>
    %145 = vector.shape_cast %141 : vector<64x32xbf16> to vector<1x64x32xbf16>
    %146 = vector.shape_cast %142 : vector<64x32xbf16> to vector<1x64x32xbf16>
    %147 = vector.shape_cast %143 : vector<64x32xbf16> to vector<1x64x32xbf16>
    %148 = vector.shape_cast %144 : vector<64x32xbf16> to vector<1x64x32xbf16>
    %149 = tpu.concatenate %145, %146, %147, %148 in 0 : vector<1x64x32xbf16>, vector<1x64x32xbf16>, vector<1x64x32xbf16>, vector<1x64x32xbf16> -> vector<4x64x32xbf16>
    "tpu.trace_start"() <{level = 10 : i32, message = "hqd,hkd->hqk"}> : () -> ()
    %cst_55 = arith.constant dense<0.000000e+00> : vector<4x8x64xf32>
    %150 = tpu.matmul %129, %139, %cst_55 {dimension_numbers = #tpu.dot_dimension_numbers<[2], [2], [1], [1], [0, 0, 0, 1, 1, 1], [0], [0]>} : vector<4x8x32xbf16>, vector<4x64x32xbf16>, vector<4x8x64xf32> -> vector<4x8x64xf32>
    "tpu.trace_stop"() : () -> ()
    %cst_56 = arith.constant dense<0xFF800000> : vector<4x8xf32>
    %151 = vector.multi_reduction <maximumf>, %150, %cst_56 [2] : vector<4x8x64xf32> to vector<4x8xf32>
    %152 = vector.shape_cast %151 : vector<4x8xf32> to vector<4x8x1xf32>
    %153 = vector.broadcast %152 : vector<4x8x1xf32> to vector<4x8x64xf32>
    %154 = arith.subf %150, %153 : vector<4x8x64xf32>
    %155 = math.exp %154 : vector<4x8x64xf32>
    %cst_57 = arith.constant dense<0.000000e+00> : vector<4x8xf32>
    %156 = vector.multi_reduction <add>, %155, %cst_57 [2] : vector<4x8x64xf32> to vector<4x8xf32>
    %157 = vector.shape_cast %156 : vector<4x8xf32> to vector<4x8x1xf32>
    %158 = tpu.reciprocal %157 {approx = true} : vector<4x8x1xf32> -> vector<4x8x1xf32>
    %159 = vector.broadcast %158 : vector<4x8x1xf32> to vector<4x8x64xf32>
    %160 = arith.mulf %155, %159 : vector<4x8x64xf32>
    %161 = arith.truncf %160 : vector<4x8x64xf32> to vector<4x8x64xbf16>
    "tpu.trace_start"() <{level = 10 : i32, message = "hqk,hkd->hqd"}> : () -> ()
    %cst_58 = arith.constant dense<0.000000e+00> : vector<4x8x32xf32>
    %162 = tpu.matmul %161, %149, %cst_58 {dimension_numbers = #tpu.dot_dimension_numbers<[2], [1], [1], [2], [0, 0, 0, 1, 1, 2], [0], [0]>} : vector<4x8x64xbf16>, vector<4x64x32xbf16>, vector<4x8x32xf32> -> vector<4x8x32xf32>
    "tpu.trace_stop"() : () -> ()
    %163 = arith.truncf %162 : vector<4x8x32xf32> to vector<4x8x32xbf16>
    "tpu.trace_start"() <{level = 10 : i32, message = "hqd,hde->hqe"}> : () -> ()
    %cst_59 = arith.constant dense<0.000000e+00> : vector<4x8x128xf32>
    %164 = tpu.matmul %163, %119, %cst_59 {dimension_numbers = #tpu.dot_dimension_numbers<[2], [1], [1], [2], [0, 0, 0, 1, 1, 2], [0], [0]>} : vector<4x8x32xbf16>, vector<4x32x128xbf16>, vector<4x8x128xf32> -> vector<4x8x128xf32>
    "tpu.trace_stop"() : () -> ()
    %cst_60 = arith.constant dense<0.000000e+00> : vector<8x128xf32>
    %165 = vector.multi_reduction <add>, %164, %cst_60 [0] : vector<4x8x128xf32> to vector<8x128xf32>
    %c0_61 = arith.constant 0 : index
    %c0_62 = arith.constant 0 : index
    %c0_63 = arith.constant 0 : index
    %166 = vector.load %arg16[%c0_61, %c0_62, %c0_63] : memref<1x1x128xf32, #tpu.memory_space<vmem>>, vector<1x1x128xf32>
    %167 = vector.shape_cast %166 : vector<1x1x128xf32> to vector<1x128xf32>
    %168 = vector.broadcast %167 : vector<1x128xf32> to vector<8x128xf32>
    %169 = arith.addf %165, %168 : vector<8x128xf32>
    %170 = arith.addf %99, %169 : vector<8x128xf32>
    %c0_64 = arith.constant 0 : index
    %c0_65 = arith.constant 0 : index
    %c0_66 = arith.constant 0 : index
    %171 = vector.load %arg17[%c0_64, %c0_65, %c0_66] : memref<1x1x128xf32, #tpu.memory_space<vmem>>, vector<1x1x128xf32>
    %172 = vector.shape_cast %171 : vector<1x1x128xf32> to vector<1x128xf32>
    %c0_67 = arith.constant 0 : index
    %c0_68 = arith.constant 0 : index
    %c0_69 = arith.constant 0 : index
    %173 = vector.load %arg18[%c0_67, %c0_68, %c0_69] : memref<1x1x128xf32, #tpu.memory_space<vmem>>, vector<1x1x128xf32>
    %174 = vector.shape_cast %173 : vector<1x1x128xf32> to vector<1x128xf32>
    %cst_70 = arith.constant dense<0.000000e+00> : vector<8xf32>
    %175 = vector.multi_reduction <add>, %170, %cst_70 [1] : vector<8x128xf32> to vector<8xf32>
    %176 = vector.shape_cast %175 : vector<8xf32> to vector<8x1xf32>
    %cst_71 = arith.constant 1.280000e+02 : f32
    %177 = vector.broadcast %cst_71 : f32 to vector<8x1xf32>
    %178 = arith.divf %176, %177 : vector<8x1xf32>
    %179 = vector.broadcast %178 : vector<8x1xf32> to vector<8x128xf32>
    %180 = arith.subf %170, %179 : vector<8x128xf32>
    %181 = arith.mulf %180, %180 : vector<8x128xf32>
    %cst_72 = arith.constant dense<0.000000e+00> : vector<8xf32>
    %182 = vector.multi_reduction <add>, %181, %cst_72 [1] : vector<8x128xf32> to vector<8xf32>
    %183 = vector.shape_cast %182 : vector<8xf32> to vector<8x1xf32>
    %cst_73 = arith.constant 1.280000e+02 : f32
    %184 = vector.broadcast %cst_73 : f32 to vector<8x1xf32>
    %185 = arith.divf %183, %184 : vector<8x1xf32>
    %186 = vector.broadcast %178 : vector<8x1xf32> to vector<8x128xf32>
    %187 = arith.subf %170, %186 : vector<8x128xf32>
    %cst_74 = arith.constant 9.99999974E-6 : f32
    %188 = vector.broadcast %cst_74 : f32 to vector<8x1xf32>
    %189 = arith.addf %185, %188 : vector<8x1xf32>
    %190 = math.rsqrt %189 : vector<8x1xf32>
    %191 = vector.broadcast %190 : vector<8x1xf32> to vector<8x128xf32>
    %192 = arith.mulf %187, %191 : vector<8x128xf32>
    %193 = vector.broadcast %172 : vector<1x128xf32> to vector<8x128xf32>
    %194 = arith.mulf %192, %193 : vector<8x128xf32>
    %195 = vector.broadcast %174 : vector<1x128xf32> to vector<8x128xf32>
    %196 = arith.addf %194, %195 : vector<8x128xf32>
    %c0_75 = arith.constant 0 : index
    %c0_76 = arith.constant 0 : index
    %c0_77 = arith.constant 0 : index
    %197 = vector.load %arg19[%c0_75, %c0_76, %c0_77] : memref<1x128x256xbf16, #tpu.memory_space<vmem>>, vector<1x128x256xbf16>
    %198 = vector.shape_cast %197 : vector<1x128x256xbf16> to vector<128x256xbf16>
    %c0_78 = arith.constant 0 : index
    %c0_79 = arith.constant 0 : index
    %c0_80 = arith.constant 0 : index
    %199 = vector.load %arg20[%c0_78, %c0_79, %c0_80] : memref<1x1x256xf32, #tpu.memory_space<vmem>>, vector<1x1x256xf32>
    %200 = vector.shape_cast %199 : vector<1x1x256xf32> to vector<1x256xf32>
    %c0_81 = arith.constant 0 : index
    %c0_82 = arith.constant 0 : index
    %c0_83 = arith.constant 0 : index
    %201 = vector.load %arg21[%c0_81, %c0_82, %c0_83] : memref<1x256x128xbf16, #tpu.memory_space<vmem>>, vector<1x256x128xbf16>
    %202 = vector.shape_cast %201 : vector<1x256x128xbf16> to vector<256x128xbf16>
    %c0_84 = arith.constant 0 : index
    %c0_85 = arith.constant 0 : index
    %c0_86 = arith.constant 0 : index
    %203 = vector.load %arg22[%c0_84, %c0_85, %c0_86] : memref<1x1x128xf32, #tpu.memory_space<vmem>>, vector<1x1x128xf32>
    %204 = vector.shape_cast %203 : vector<1x1x128xf32> to vector<1x128xf32>
    %205 = arith.truncf %196 : vector<8x128xf32> to vector<8x128xbf16>
    %cst_87 = arith.constant dense<0.000000e+00> : vector<8x256xf32>
    %206 = tpu.matmul %205, %198, %cst_87 {dimension_numbers = #tpu.dot_dimension_numbers<[1], [0], [0], [1], [0, 0, 1, 1], [], []>} : vector<8x128xbf16>, vector<128x256xbf16>, vector<8x256xf32> -> vector<8x256xf32>
    %207 = vector.broadcast %200 : vector<1x256xf32> to vector<8x256xf32>
    %208 = arith.addf %206, %207 : vector<8x256xf32>
    %cst_88 = arith.constant 0.000000e+00 : f32
    %209 = vector.broadcast %cst_88 : f32 to vector<8x256xf32>
    %210 = arith.maximumf %208, %209 : vector<8x256xf32>
    %211 = arith.truncf %210 : vector<8x256xf32> to vector<8x256xbf16>
    %cst_89 = arith.constant dense<0.000000e+00> : vector<8x128xf32>
    %212 = tpu.matmul %211, %202, %cst_89 {dimension_numbers = #tpu.dot_dimension_numbers<[1], [0], [0], [1], [0, 0, 1, 1], [], []>} : vector<8x256xbf16>, vector<256x128xbf16>, vector<8x128xf32> -> vector<8x128xf32>
    %213 = vector.broadcast %204 : vector<1x128xf32> to vector<8x128xf32>
    %214 = arith.addf %212, %213 : vector<8x128xf32>
    %215 = arith.addf %196, %214 : vector<8x128xf32>
    %c0_90 = arith.constant 0 : index
    %c0_91 = arith.constant 0 : index
    %c0_92 = arith.constant 0 : index
    %216 = vector.load %arg23[%c0_90, %c0_91, %c0_92] : memref<1x1x128xf32, #tpu.memory_space<vmem>>, vector<1x1x128xf32>
    %217 = vector.shape_cast %216 : vector<1x1x128xf32> to vector<1x128xf32>
    %c0_93 = arith.constant 0 : index
    %c0_94 = arith.constant 0 : index
    %c0_95 = arith.constant 0 : index
    %218 = vector.load %arg24[%c0_93, %c0_94, %c0_95] : memref<1x1x128xf32, #tpu.memory_space<vmem>>, vector<1x1x128xf32>
    %219 = vector.shape_cast %218 : vector<1x1x128xf32> to vector<1x128xf32>
    %cst_96 = arith.constant dense<0.000000e+00> : vector<8xf32>
    %220 = vector.multi_reduction <add>, %215, %cst_96 [1] : vector<8x128xf32> to vector<8xf32>
    %221 = vector.shape_cast %220 : vector<8xf32> to vector<8x1xf32>
    %cst_97 = arith.constant 1.280000e+02 : f32
    %222 = vector.broadcast %cst_97 : f32 to vector<8x1xf32>
    %223 = arith.divf %221, %222 : vector<8x1xf32>
    %224 = vector.broadcast %223 : vector<8x1xf32> to vector<8x128xf32>
    %225 = arith.subf %215, %224 : vector<8x128xf32>
    %226 = arith.mulf %225, %225 : vector<8x128xf32>
    %cst_98 = arith.constant dense<0.000000e+00> : vector<8xf32>
    %227 = vector.multi_reduction <add>, %226, %cst_98 [1] : vector<8x128xf32> to vector<8xf32>
    %228 = vector.shape_cast %227 : vector<8xf32> to vector<8x1xf32>
    %cst_99 = arith.constant 1.280000e+02 : f32
    %229 = vector.broadcast %cst_99 : f32 to vector<8x1xf32>
    %230 = arith.divf %228, %229 : vector<8x1xf32>
    %231 = vector.broadcast %223 : vector<8x1xf32> to vector<8x128xf32>
    %232 = arith.subf %215, %231 : vector<8x128xf32>
    %cst_100 = arith.constant 9.99999974E-6 : f32
    %233 = vector.broadcast %cst_100 : f32 to vector<8x1xf32>
    %234 = arith.addf %230, %233 : vector<8x1xf32>
    %235 = math.rsqrt %234 : vector<8x1xf32>
    %236 = vector.broadcast %235 : vector<8x1xf32> to vector<8x128xf32>
    %237 = arith.mulf %232, %236 : vector<8x128xf32>
    %238 = vector.broadcast %217 : vector<1x128xf32> to vector<8x128xf32>
    %239 = arith.mulf %237, %238 : vector<8x128xf32>
    %240 = vector.broadcast %219 : vector<1x128xf32> to vector<8x128xf32>
    %241 = arith.addf %239, %240 : vector<8x128xf32>
    %c0_101 = arith.constant 0 : index
    %c0_102 = arith.constant 0 : index
    %242 = vector.load %arg28[%c0_101, %c0_102] : memref<8x128xf32, #tpu.memory_space<vmem>>, vector<8x128xf32>
    tpu.vector_store %arg28[%c0_101, %c0_102], %241 {strides = array<i32>} : memref<8x128xf32, #tpu.memory_space<vmem>>, vector<8x128xf32>,
    %c1_i32 = arith.constant 1 : i32
    %243 = arith.cmpi eq, %arg1, %c1_i32 : i32
    %244 = arith.extui %243 : i1 to i32
    %c0_i32_103 = arith.constant 0 : i32
    %245 = arith.cmpi ne, %244, %c0_i32_103 : i32
    scf.if %245 {
      %c0_104 = arith.constant 0 : index
      %c0_105 = arith.constant 0 : index
      %246 = vector.load %arg28[%c0_104, %c0_105] : memref<8x128xf32, #tpu.memory_space<vmem>>, vector<8x128xf32>
      %247 = arith.truncf %246 : vector<8x128xf32> to vector<8x128xbf16>
      %c0_106 = arith.constant 0 : index
      %c0_107 = arith.constant 0 : index
      %248 = vector.load %arg25[%c0_106, %c0_107] : memref<128x128xbf16, #tpu.memory_space<vmem>>, vector<128x128xbf16>
      %cst_108 = arith.constant dense<0.000000e+00> : vector<8x128xf32>
      %249 = tpu.matmul %247, %248, %cst_108 {dimension_numbers = #tpu.dot_dimension_numbers<[1], [0], [0], [1], [0, 0, 1, 1], [], []>} : vector<8x128xbf16>, vector<128x128xbf16>, vector<8x128xf32> -> vector<8x128xf32>
      %c0_109 = arith.constant 0 : index
      %c0_110 = arith.constant 0 : index
      %250 = vector.load %arg26[%c0_109, %c0_110] : memref<1x128xf32, #tpu.memory_space<vmem>>, vector<1x128xf32>
      %251 = vector.broadcast %250 : vector<1x128xf32> to vector<8x128xf32>
      %252 = arith.addf %249, %251 : vector<8x128xf32>
      %cst_111 = arith.constant dense<0xFF800000> : vector<8xf32>
      %253 = vector.multi_reduction <maximumf>, %252, %cst_111 [1] : vector<8x128xf32> to vector<8xf32>
      %254 = vector.shape_cast %253 : vector<8xf32> to vector<8x1xf32>
      %255 = vector.broadcast %254 : vector<8x1xf32> to vector<8x128xf32>
      %256 = arith.subf %252, %255 : vector<8x128xf32>
      %257 = math.exp %256 : vector<8x128xf32>
      %cst_112 = arith.constant dense<0.000000e+00> : vector<8xf32>
      %258 = vector.multi_reduction <add>, %257, %cst_112 [1] : vector<8x128xf32> to vector<8xf32>
      %259 = vector.shape_cast %258 : vector<8xf32> to vector<8x1xf32>
      %260 = vector.broadcast %259 : vector<8x1xf32> to vector<8x128xf32>
      %261 = arith.divf %257, %260 : vector<8x128xf32>
      %c0_113 = arith.constant 0 : index
      %c0_114 = arith.constant 0 : index
      %c0_115 = arith.constant 0 : index
      %262 = vector.load %arg27[%c0_113, %c0_114, %c0_115] : memref<1x8x128xf32, #tpu.memory_space<vmem>>, vector<1x8x128xf32>
      %263 = vector.shape_cast %262 : vector<1x8x128xf32> to vector<8x128xf32>
      %264 = vector.shape_cast %261 : vector<8x128xf32> to vector<1x8x128xf32>
      tpu.vector_store %arg27[%c0_113, %c0_114, %c0_115], %264 {strides = array<i32>} : memref<1x8x128xf32, #tpu.memory_space<vmem>>, vector<1x8x128xf32>,
    } else {
    }
    return
  }
  func.func @transform_0(%arg0: i32, %arg1: i32) -> (i32, i32, i32) {
    %c0_i32 = arith.constant 0 : i32
    %c0_i32_0 = arith.constant 0 : i32
    %c0_i32_1 = arith.constant 0 : i32
    return %arg0, %c0_i32, %c0_i32_0 : i32, i32, i32
  }
  func.func @transform_1(%arg0: i32, %arg1: i32) -> (i32, i32, i32) {
    %c0_i32 = arith.constant 0 : i32
    %c0_i32_0 = arith.constant 0 : i32
    %c0_i32_1 = arith.constant 0 : i32
    return %arg0, %c0_i32, %c0_i32_0 : i32, i32, i32
  }
  func.func @transform_2(%arg0: i32, %arg1: i32) -> (i32, i32, i32) {
    %c0_i32 = arith.constant 0 : i32
    %c0_i32_0 = arith.constant 0 : i32
    %c0_i32_1 = arith.constant 0 : i32
    return %arg0, %c0_i32, %c0_i32_0 : i32, i32, i32
  }
  func.func @transform_3(%arg0: i32, %arg1: i32) -> (i32, i32, i32) {
    %c0_i32 = arith.constant 0 : i32
    %c0_i32_0 = arith.constant 0 : i32
    %c0_i32_1 = arith.constant 0 : i32
    return %arg1, %c0_i32, %c0_i32_0 : i32, i32, i32
  }
  func.func @transform_4(%arg0: i32, %arg1: i32) -> (i32, i32, i32) {
    %c0_i32 = arith.constant 0 : i32
    %c0_i32_0 = arith.constant 0 : i32
    %c0_i32_1 = arith.constant 0 : i32
    return %arg1, %c0_i32, %c0_i32_0 : i32, i32, i32
  }
  func.func @transform_5(%arg0: i32, %arg1: i32) -> (i32, i32, i32, i32) {
    %c0_i32 = arith.constant 0 : i32
    %c0_i32_0 = arith.constant 0 : i32
    %c0_i32_1 = arith.constant 0 : i32
    %c0_i32_2 = arith.constant 0 : i32
    return %arg1, %c0_i32, %c0_i32_0, %c0_i32_1 : i32, i32, i32, i32
  }
  func.func @transform_6(%arg0: i32, %arg1: i32) -> (i32, i32, i32) {
    %c0_i32 = arith.constant 0 : i32
    %c0_i32_0 = arith.constant 0 : i32
    %c0_i32_1 = arith.constant 0 : i32
    return %arg1, %c0_i32, %c0_i32_0 : i32, i32, i32
  }
  func.func @transform_7(%arg0: i32, %arg1: i32) -> (i32, i32, i32) {
    %c0_i32 = arith.constant 0 : i32
    %c0_i32_0 = arith.constant 0 : i32
    %c0_i32_1 = arith.constant 0 : i32
    return %arg1, %c0_i32, %c0_i32_0 : i32, i32, i32
  }
  func.func @transform_8(%arg0: i32, %arg1: i32) -> (i32, i32, i32) {
    %c0_i32 = arith.constant 0 : i32
    %c0_i32_0 = arith.constant 0 : i32
    %c0_i32_1 = arith.constant 0 : i32
    return %arg1, %c0_i32, %c0_i32_0 : i32, i32, i32
  }
  func.func @transform_9(%arg0: i32, %arg1: i32) -> (i32, i32, i32) {
    %c0_i32 = arith.constant 0 : i32
    %c0_i32_0 = arith.constant 0 : i32
    %c0_i32_1 = arith.constant 0 : i32
    return %arg1, %c0_i32, %c0_i32_0 : i32, i32, i32
  }
  func.func @transform_10(%arg0: i32, %arg1: i32) -> (i32, i32, i32) {
    %c0_i32 = arith.constant 0 : i32
    %c0_i32_0 = arith.constant 0 : i32
    %c0_i32_1 = arith.constant 0 : i32
    return %arg1, %c0_i32, %c0_i32_0 : i32, i32, i32
  }
  func.func @transform_11(%arg0: i32, %arg1: i32) -> (i32, i32, i32) {
    %c0_i32 = arith.constant 0 : i32
    %c0_i32_0 = arith.constant 0 : i32
    %c0_i32_1 = arith.constant 0 : i32
    return %arg1, %c0_i32, %c0_i32_0 : i32, i32, i32
  }
  func.func @transform_12(%arg0: i32, %arg1: i32) -> (i32, i32, i32) {
    %c0_i32 = arith.constant 0 : i32
    %c0_i32_0 = arith.constant 0 : i32
    %c0_i32_1 = arith.constant 0 : i32
    return %arg1, %c0_i32, %c0_i32_0 : i32, i32, i32
  }
  func.func @transform_13(%arg0: i32, %arg1: i32) -> (i32, i32, i32, i32) {
    %c0_i32 = arith.constant 0 : i32
    %c0_i32_0 = arith.constant 0 : i32
    %c0_i32_1 = arith.constant 0 : i32
    %c0_i32_2 = arith.constant 0 : i32
    return %arg1, %c0_i32, %c0_i32_0, %c0_i32_1 : i32, i32, i32, i32
  }
  func.func @transform_14(%arg0: i32, %arg1: i32) -> (i32, i32, i32) {
    %c0_i32 = arith.constant 0 : i32
    %c0_i32_0 = arith.constant 0 : i32
    %c0_i32_1 = arith.constant 0 : i32
    return %arg1, %c0_i32, %c0_i32_0 : i32, i32, i32
  }
  func.func @transform_15(%arg0: i32, %arg1: i32) -> (i32, i32, i32) {
    %c0_i32 = arith.constant 0 : i32
    %c0_i32_0 = arith.constant 0 : i32
    %c0_i32_1 = arith.constant 0 : i32
    return %arg1, %c0_i32, %c0_i32_0 : i32, i32, i32
  }
  func.func @transform_16(%arg0: i32, %arg1: i32) -> (i32, i32, i32) {
    %c0_i32 = arith.constant 0 : i32
    %c0_i32_0 = arith.constant 0 : i32
    %c0_i32_1 = arith.constant 0 : i32
    return %arg1, %c0_i32, %c0_i32_0 : i32, i32, i32
  }
  func.func @transform_17(%arg0: i32, %arg1: i32) -> (i32, i32, i32) {
    %c0_i32 = arith.constant 0 : i32
    %c0_i32_0 = arith.constant 0 : i32
    %c0_i32_1 = arith.constant 0 : i32
    return %arg1, %c0_i32, %c0_i32_0 : i32, i32, i32
  }
  func.func @transform_18(%arg0: i32, %arg1: i32) -> (i32, i32, i32) {
    %c0_i32 = arith.constant 0 : i32
    %c0_i32_0 = arith.constant 0 : i32
    %c0_i32_1 = arith.constant 0 : i32
    return %arg1, %c0_i32, %c0_i32_0 : i32, i32, i32
  }
  func.func @transform_19(%arg0: i32, %arg1: i32) -> (i32, i32, i32) {
    %c0_i32 = arith.constant 0 : i32
    %c0_i32_0 = arith.constant 0 : i32
    %c0_i32_1 = arith.constant 0 : i32
    return %arg1, %c0_i32, %c0_i32_0 : i32, i32, i32
  }
  func.func @transform_20(%arg0: i32, %arg1: i32) -> (i32, i32, i32) {
    %c0_i32 = arith.constant 0 : i32
    %c0_i32_0 = arith.constant 0 : i32
    %c0_i32_1 = arith.constant 0 : i32
    return %arg1, %c0_i32, %c0_i32_0 : i32, i32, i32
  }
  func.func @transform_21(%arg0: i32, %arg1: i32) -> (i32, i32, i32) {
    %c0_i32 = arith.constant 0 : i32
    %c0_i32_0 = arith.constant 0 : i32
    %c0_i32_1 = arith.constant 0 : i32
    return %arg1, %c0_i32, %c0_i32_0 : i32, i32, i32
  }
  func.func @transform_22(%arg0: i32, %arg1: i32) -> (i32, i32, i32) {
    %c0_i32 = arith.constant 0 : i32
    %c0_i32_0 = arith.constant 0 : i32
    %c0_i32_1 = arith.constant 0 : i32
    return %arg1, %c0_i32, %c0_i32_0 : i32, i32, i32
  }
  func.func @transform_23(%arg0: i32, %arg1: i32) -> (i32, i32) {
    %c0_i32 = arith.constant 0 : i32
    %c0_i32_0 = arith.constant 0 : i32
    %c0_i32_1 = arith.constant 0 : i32
    return %c0_i32, %c0_i32_0 : i32, i32
  }
  func.func @transform_24(%arg0: i32, %arg1: i32) -> (i32, i32) {
    %c0_i32 = arith.constant 0 : i32
    %c0_i32_0 = arith.constant 0 : i32
    %c0_i32_1 = arith.constant 0 : i32
    return %c0_i32, %c0_i32_0 : i32, i32
  }
  func.func @transform_25(%arg0: i32, %arg1: i32) -> (i32, i32, i32) {
    %c0_i32 = arith.constant 0 : i32
    %c0_i32_0 = arith.constant 0 : i32
    %c0_i32_1 = arith.constant 0 : i32
    return %arg0, %c0_i32, %c0_i32_0 : i32, i32, i32
  }
}

</mosaic_0001>

<llo_original>
// kernel: transformer_forward.2
$region0: #{transformer_forward.2}
  #allocation0 [shape = 'u32[]', space=smem, size = 0x4, offset = 0x4, fixed_abs, tag = 'smem constant byte address 0x4 - core index']
  #allocation1 [shape = 'u32[144,128]{1,0:T(1,128)}', space=vmem, size = 0x12000, scoped, tag = 'internal scratch']
  #allocation2 [shape = 'f32[64,128]{1,0:T(8,128)}', space=vmem, size = 0x8000, scoped, tag = 'scratch operand']
  %s0 = inlined_call_operand.vmem [shape: f32[2,64,8], index: 0, kind: input, shape index: {}]
  %s1 = inlined_call_operand.vmem [shape: bf16[8,128], index: 1, kind: input, shape index: {}]
  %s2 = inlined_call_operand.vmem [shape: f32[1,128], index: 2, kind: input, shape index: {}]
  %s3 = inlined_call_operand.vmem [shape: bf16[128,128], index: 3, kind: input, shape index: {}]
  %s4 = inlined_call_operand.vmem [shape: f32[1,128], index: 4, kind: input, shape index: {}]
  %s5 = inlined_call_operand.vmem [shape: f32[64,128], index: 5, kind: input, shape index: {}]
  %s6 = inlined_call_operand.vmem [shape: bf16[1,128,384], index: 6, kind: input, shape index: {}]
  %s7 = inlined_call_operand.vmem [shape: f32[1,1,384], index: 7, kind: input, shape index: {}]
  %s8 = inlined_call_operand.vmem [shape: bf16[1,4,32,128], index: 8, kind: input, shape index: {}]
  %s9 = inlined_call_operand.vmem [shape: f32[1,1,128], index: 9, kind: input, shape index: {}]
  %s10 = inlined_call_operand.vmem [shape: f32[1,1,128], index: 10, kind: input, shape index: {}]
  %s11 = inlined_call_operand.vmem [shape: f32[1,1,128], index: 11, kind: input, shape index: {}]
  %s12 = inlined_call_operand.vmem [shape: bf16[1,128,256], index: 12, kind: input, shape index: {}]
  %s13 = inlined_call_operand.vmem [shape: f32[1,1,256], index: 13, kind: input, shape index: {}]
  %s14 = inlined_call_operand.vmem [shape: bf16[1,256,128], index: 14, kind: input, shape index: {}]
  %s15 = inlined_call_operand.vmem [shape: f32[1,1,128], index: 15, kind: input, shape index: {}]
  %s16 = inlined_call_operand.hbm [shape: f32[1,1,128], index: 16, kind: input, shape index: {}]
  %s17 = inlined_call_operand.hbm [shape: f32[1,1,128], index: 17, kind: input, shape index: {}]
  %s18 = inlined_call_operand.vmem [shape: f32[2,64,128], index: 18, kind: output, shape index: {}]
  %s19 = sld [smem:[#allocation0]]
  $region121: #{transformer_forward.2} parent=0
    _
  %s21 = ssub.s32 1, %s19
  %s22 = scalar_select 0, %s21, %s19
  $region1: #{transformer_forward.2} parent=0
    #allocation3 [shape = 'u8[512]{0}', space=vmem, size = 0x400, scoped, tag = 'input window, operand 16, single buffered']
    #allocation4 [shape = 's32[2]{0}', space=sflag, size = 0x8, scoped, tag = 'scoped memory for transformer_forward.2']
    #allocation5 [shape = 'u8[512]{0}', space=vmem, size = 0x400, scoped, tag = 'input window, operand 17, single buffered']
    #allocation6 [shape = 's32[1]{0}', space=sflag, size = 0x4, scoped, tag = 'scoped memory for transformer_forward.2']
    %23 = vsyncpa [#allocation4], 0
    %24 = vsyncpa [#allocation6], 0
    loop: start=0, step=1, limit=4
    $region2: #{transformer_forward.2} parent=1 // loop_pre_header
      _
    $region3: #{transformer_forward.2} parent=1 // loop_header
      %s26 = sphi 0, %s30
      %p27 = scmp.ge.s32.totalorder %s26, 4
      %s33 = sphi 0, %s45
      %s34 = sphi 0, %s41
      %s35 = sphi 0, %s33
      %s36 = sphi 0, %s34
      %s37 = sphi 0, %s35
      %s38 = sphi 0, %s36
      %s48 = sphi 0, %s50
      %s51 = sphi 0, %s48
      %s52 = sphi 0, %s51
      %s68 = sphi 0, %s52
      %s72 = sphi 0, %s72
      %s74 = sphi 0, %s72
      %s75 = sphi 0, %s74
      %s89 = sphi 0, %s75
      %s93 = sphi 0, %s93
      %s95 = sphi 0, %s93
      %s96 = sphi 0, %s95
      %s110 = sphi 0, %s96
      %s114 = sphi 0, %s114
      %s116 = sphi 0, %s114
      %s117 = sphi 0, %s116
      %s131 = sphi 0, %s117
      %s135 = sphi 0, %s135
      %s137 = sphi 0, %s135
      %s138 = sphi 0, %s137
      %s152 = sphi 0, %s138
      %s156 = sphi 0, %s156
      %s158 = sphi 0, %s156
      %s159 = sphi 0, %s158
      %s173 = sphi 0, %s159
      %s179 = sphi 0, %s181
      %s182 = sphi 0, %s179
      %s183 = sphi 0, %s182
      %s199 = sphi 0, %s183
      %s205 = sphi 0, %s207
      %s208 = sphi 0, %s205
      %s209 = sphi 0, %s208
      %s225 = sphi 0, %s209
      %s231 = sphi 0, %s233
      %s234 = sphi 0, %s231
      %s235 = sphi 0, %s234
      %s251 = sphi 0, %s235
      %s257 = sphi 0, %s259
      %s260 = sphi 0, %s257
      %s261 = sphi 0, %s260
      %s277 = sphi 0, %s261
      %s283 = sphi 0, %s285
      %s286 = sphi 0, %s283
      %s287 = sphi 0, %s286
      %s303 = sphi 0, %s287
      %s309 = sphi 0, %s311
      %s312 = sphi 0, %s309
      %s313 = sphi 0, %s312
      %s329 = sphi 0, %s313
      %s335 = sphi 0, %s337
      %s338 = sphi 0, %s335
      %s339 = sphi 0, %s338
      %s355 = sphi 0, %s339
      %s361 = sphi 0, %s363
      %s364 = sphi 0, %s361
      %s365 = sphi 0, %s364
      %s381 = sphi 0, %s365
      %s387 = sphi 0, %s389
      %s390 = sphi 0, %s387
      %s391 = sphi 0, %s390
      %s407 = sphi 0, %s391
      %s413 = sphi 0, %s415
      %s416 = sphi 0, %s413
      %s417 = sphi 0, %s416
      %s433 = sphi 0, %s417
      %s439 = sphi 0, %s441
      %s442 = sphi 0, %s439
      %s443 = sphi 0, %s442
      %s459 = sphi 0, %s443
      %s465 = sphi 0, %s467
      %s468 = sphi 0, %s465
      %s469 = sphi 0, %s468
      %s485 = sphi 0, %s469
      %s491 = sphi 0, %s493
      %s494 = sphi 0, %s491
      %s495 = sphi 0, %s494
      %s511 = sphi 0, %s495
    $region4: #{transformer_forward.2} parent=1 // loop_header_branch
      %29 = sbr.rel (%p27) target = $region8
    $region5: #{transformer_forward.2} parent=1 // loop_body
      %s31 = ssub.s32 %s26, 1
      %s32 = ssub.s32 %s26, 2
      %s39 = sadd.s32 1, %s34
      %p40 = scmp.ge.s32.totalorder %s39, 1
      %s41 = scalar_select %p40, 0, %s39
      %s42 = sadd.s32 1, %s33
      %s43 = scalar_select %p40, %s42, %s33
      %p44 = scmp.ge.s32.totalorder %s43, 2
      %s45 = scalar_select %p44, 0, %s43
      %s46 = ssub.s32 %s33, %s45
      %p47 = scmp.eq.s32.totalorder %s46, 0
      %s49 = sadd.s32 %s48, 1
      %s50 = scalar_select %p47, %s48, %s49
      %p53 = pneg %p47
      %p54 = scmp.eq.s32.totalorder %s26, 1
      %p55 = por %p53, %p54
      %p56 = scmp.ne.s32.totalorder %s48, %s51
      %p57 = scmp.eq.s32.totalorder %s26, 0
      %p58 = por %p56, %p57
      %p59 = scmp.ne.s32.totalorder %s48, %s51
      %p60 = scmp.eq.s32.totalorder %s31, 1
      %p61 = por %p59, %p60
      %p62 = scmp.ne.s32.totalorder %s51, %s52
      %p63 = scmp.eq.s32.totalorder %s31, 0
      %p64 = por %p62, %p63
      %p65 = scmp.ne.s32.totalorder %s51, %s52
      %p66 = scmp.eq.s32.totalorder %s32, 1
      %p67 = por %p65, %p66
      %p69 = scmp.ne.s32.totalorder %s52, %s68
      %p70 = scmp.eq.s32.totalorder %s32, 0
      %p71 = por %p69, %p70
      %s73 = sadd.s32 %s72, 1
      %p76 = scmp.eq.s32.totalorder %s26, 1
      %p77 = scmp.ne.s32.totalorder %s72, %s74
      %p78 = scmp.eq.s32.totalorder %s26, 0
      %p79 = por %p77, %p78
      %p80 = scmp.ne.s32.totalorder %s72, %s74
      %p81 = scmp.eq.s32.totalorder %s31, 1
      %p82 = por %p80, %p81
      %p83 = scmp.ne.s32.totalorder %s74, %s75
      %p84 = scmp.eq.s32.totalorder %s31, 0
      %p85 = por %p83, %p84
      %p86 = scmp.ne.s32.totalorder %s74, %s75
      %p87 = scmp.eq.s32.totalorder %s32, 1
      %p88 = por %p86, %p87
      %p90 = scmp.ne.s32.totalorder %s75, %s89
      %p91 = scmp.eq.s32.totalorder %s32, 0
      %p92 = por %p90, %p91
      %s94 = sadd.s32 %s93, 1
      %p97 = scmp.eq.s32.totalorder %s26, 1
      %p98 = scmp.ne.s32.totalorder %s93, %s95
      %p99 = scmp.eq.s32.totalorder %s26, 0
      %p100 = por %p98, %p99
      %p101 = scmp.ne.s32.totalorder %s93, %s95
      %p102 = scmp.eq.s32.totalorder %s31, 1
      %p103 = por %p101, %p102
      %p104 = scmp.ne.s32.totalorder %s95, %s96
      %p105 = scmp.eq.s32.totalorder %s31, 0
      %p106 = por %p104, %p105
      %p107 = scmp.ne.s32.totalorder %s95, %s96
      %p108 = scmp.eq.s32.totalorder %s32, 1
      %p109 = por %p107, %p108
      %p111 = scmp.ne.s32.totalorder %s96, %s110
      %p112 = scmp.eq.s32.totalorder %s32, 0
      %p113 = por %p111, %p112
      %s115 = sadd.s32 %s114, 1
      %p118 = scmp.eq.s32.totalorder %s26, 1
      %p119 = scmp.ne.s32.totalorder %s114, %s116
      %p120 = scmp.eq.s32.totalorder %s26, 0
      %p121 = por %p119, %p120
      %p122 = scmp.ne.s32.totalorder %s114, %s116
      %p123 = scmp.eq.s32.totalorder %s31, 1
      %p124 = por %p122, %p123
      %p125 = scmp.ne.s32.totalorder %s116, %s117
      %p126 = scmp.eq.s32.totalorder %s31, 0
      %p127 = por %p125, %p126
      %p128 = scmp.ne.s32.totalorder %s116, %s117
      %p129 = scmp.eq.s32.totalorder %s32, 1
      %p130 = por %p128, %p129
      %p132 = scmp.ne.s32.totalorder %s117, %s131
      %p133 = scmp.eq.s32.totalorder %s32, 0
      %p134 = por %p132, %p133
      %s136 = sadd.s32 %s135, 1
      %p139 = scmp.eq.s32.totalorder %s26, 1
      %p140 = scmp.ne.s32.totalorder %s135, %s137
      %p141 = scmp.eq.s32.totalorder %s26, 0
      %p142 = por %p140, %p141
      %p143 = scmp.ne.s32.totalorder %s135, %s137
      %p144 = scmp.eq.s32.totalorder %s31, 1
      %p145 = por %p143, %p144
      %p146 = scmp.ne.s32.totalorder %s137, %s138
      %p147 = scmp.eq.s32.totalorder %s31, 0
      %p148 = por %p146, %p147
      %p149 = scmp.ne.s32.totalorder %s137, %s138
      %p150 = scmp.eq.s32.totalorder %s32, 1
      %p151 = por %p149, %p150
      %p153 = scmp.ne.s32.totalorder %s138, %s152
      %p154 = scmp.eq.s32.totalorder %s32, 0
      %p155 = por %p153, %p154
      %s157 = sadd.s32 %s156, 1
      %p160 = scmp.eq.s32.totalorder %s26, 1
      %p161 = scmp.ne.s32.totalorder %s156, %s158
      %p162 = scmp.eq.s32.totalorder %s26, 0
      %p163 = por %p161, %p162
      %p164 = scmp.ne.s32.totalorder %s156, %s158
      %p165 = scmp.eq.s32.totalorder %s31, 1
      %p166 = por %p164, %p165
      %p167 = scmp.ne.s32.totalorder %s158, %s159
      %p168 = scmp.eq.s32.totalorder %s31, 0
      %p169 = por %p167, %p168
      %p170 = scmp.ne.s32.totalorder %s158, %s159
      %p171 = scmp.eq.s32.totalorder %s32, 1
      %p172 = por %p170, %p171
      %p174 = scmp.ne.s32.totalorder %s159, %s173
      %p175 = scmp.eq.s32.totalorder %s32, 0
      %p176 = por %p174, %p175
      %s177 = ssub.s32 %s34, %s41
      %p178 = scmp.eq.s32.totalorder %s177, 0
      %s180 = sadd.s32 %s179, 1
      %s181 = scalar_select %p178, %s179, %s180
      %p184 = pneg %p178
      %p185 = scmp.eq.s32.totalorder %s26, 1
      %p186 = por %p184, %p185
      %p187 = scmp.ne.s32.totalorder %s179, %s182
      %p188 = scmp.eq.s32.totalorder %s26, 0
      %p189 = por %p187, %p188
      %p190 = scmp.ne.s32.totalorder %s179, %s182
      %p191 = scmp.eq.s32.totalorder %s31, 1
      %p192 = por %p190, %p191
      %p193 = scmp.ne.s32.totalorder %s182, %s183
      %p194 = scmp.eq.s32.totalorder %s31, 0
      %p195 = por %p193, %p194
      %p196 = scmp.ne.s32.totalorder %s182, %s183
      %p197 = scmp.eq.s32.totalorder %s32, 1
      %p198 = por %p196, %p197
      %p200 = scmp.ne.s32.totalorder %s183, %s199
      %p201 = scmp.eq.s32.totalorder %s32, 0
      %p202 = por %p200, %p201
      %s203 = ssub.s32 %s34, %s41
      %p204 = scmp.eq.s32.totalorder %s203, 0
      %s206 = sadd.s32 %s205, 1
      %s207 = scalar_select %p204, %s205, %s206
      %p210 = pneg %p204
      %p211 = scmp.eq.s32.totalorder %s26, 1
      %p212 = por %p210, %p211
      %p213 = scmp.ne.s32.totalorder %s205, %s208
      %p214 = scmp.eq.s32.totalorder %s26, 0
      %p215 = por %p213, %p214
      %p216 = scmp.ne.s32.totalorder %s205, %s208
      %p217 = scmp.eq.s32.totalorder %s31, 1
      %p218 = por %p216, %p217
      %p219 = scmp.ne.s32.totalorder %s208, %s209
      %p220 = scmp.eq.s32.totalorder %s31, 0
      %p221 = por %p219, %p220
      %p222 = scmp.ne.s32.totalorder %s208, %s209
      %p223 = scmp.eq.s32.totalorder %s32, 1
      %p224 = por %p222, %p223
      %p226 = scmp.ne.s32.totalorder %s209, %s225
      %p227 = scmp.eq.s32.totalorder %s32, 0
      %p228 = por %p226, %p227
      %s229 = ssub.s32 %s34, %s41
      %p230 = scmp.eq.s32.totalorder %s229, 0
      %s232 = sadd.s32 %s231, 1
      %s233 = scalar_select %p230, %s231, %s232
      %p236 = pneg %p230
      %p237 = scmp.eq.s32.totalorder %s26, 1
      %p238 = por %p236, %p237
      %p239 = scmp.ne.s32.totalorder %s231, %s234
      %p240 = scmp.eq.s32.totalorder %s26, 0
      %p241 = por %p239, %p240
      %p242 = scmp.ne.s32.totalorder %s231, %s234
      %p243 = scmp.eq.s32.totalorder %s31, 1
      %p244 = por %p242, %p243
      %p245 = scmp.ne.s32.totalorder %s234, %s235
      %p246 = scmp.eq.s32.totalorder %s31, 0
      %p247 = por %p245, %p246
      %p248 = scmp.ne.s32.totalorder %s234, %s235
      %p249 = scmp.eq.s32.totalorder %s32, 1
      %p250 = por %p248, %p249
      %p252 = scmp.ne.s32.totalorder %s235, %s251
      %p253 = scmp.eq.s32.totalorder %s32, 0
      %p254 = por %p252, %p253
      %s255 = ssub.s32 %s34, %s41
      %p256 = scmp.eq.s32.totalorder %s255, 0
      %s258 = sadd.s32 %s257, 1
      %s259 = scalar_select %p256, %s257, %s258
      %p262 = pneg %p256
      %p263 = scmp.eq.s32.totalorder %s26, 1
      %p264 = por %p262, %p263
      %p265 = scmp.ne.s32.totalorder %s257, %s260
      %p266 = scmp.eq.s32.totalorder %s26, 0
      %p267 = por %p265, %p266
      %p268 = scmp.ne.s32.totalorder %s257, %s260
      %p269 = scmp.eq.s32.totalorder %s31, 1
      %p270 = por %p268, %p269
      %p271 = scmp.ne.s32.totalorder %s260, %s261
      %p272 = scmp.eq.s32.totalorder %s31, 0
      %p273 = por %p271, %p272
      %p274 = scmp.ne.s32.totalorder %s260, %s261
      %p275 = scmp.eq.s32.totalorder %s32, 1
      %p276 = por %p274, %p275
      %p278 = scmp.ne.s32.totalorder %s261, %s277
      %p279 = scmp.eq.s32.totalorder %s32, 0
      %p280 = por %p278, %p279
      %s281 = ssub.s32 %s34, %s41
      %p282 = scmp.eq.s32.totalorder %s281, 0
      %s284 = sadd.s32 %s283, 1
      %s285 = scalar_select %p282, %s283, %s284
      %p288 = pneg %p282
      %p289 = scmp.eq.s32.totalorder %s26, 1
      %p290 = por %p288, %p289
      %p291 = scmp.ne.s32.totalorder %s283, %s286
      %p292 = scmp.eq.s32.totalorder %s26, 0
      %p293 = por %p291, %p292
      %p294 = scmp.ne.s32.totalorder %s283, %s286
      %p295 = scmp.eq.s32.totalorder %s31, 1
      %p296 = por %p294, %p295
      %p297 = scmp.ne.s32.totalorder %s286, %s287
      %p298 = scmp.eq.s32.totalorder %s31, 0
      %p299 = por %p297, %p298
      %p300 = scmp.ne.s32.totalorder %s286, %s287
      %p301 = scmp.eq.s32.totalorder %s32, 1
      %p302 = por %p300, %p301
      %p304 = scmp.ne.s32.totalorder %s287, %s303
      %p305 = scmp.eq.s32.totalorder %s32, 0
      %p306 = por %p304, %p305
      %s307 = ssub.s32 %s34, %s41
      %p308 = scmp.eq.s32.totalorder %s307, 0
      %s310 = sadd.s32 %s309, 1
      %s311 = scalar_select %p308, %s309, %s310
      %p314 = pneg %p308
      %p315 = scmp.eq.s32.totalorder %s26, 1
      %p316 = por %p314, %p315
      %p317 = scmp.ne.s32.totalorder %s309, %s312
      %p318 = scmp.eq.s32.totalorder %s26, 0
      %p319 = por %p317, %p318
      %p320 = scmp.ne.s32.totalorder %s309, %s312
      %p321 = scmp.eq.s32.totalorder %s31, 1
      %p322 = por %p320, %p321
      %p323 = scmp.ne.s32.totalorder %s312, %s313
      %p324 = scmp.eq.s32.totalorder %s31, 0
      %p325 = por %p323, %p324
      %p326 = scmp.ne.s32.totalorder %s312, %s313
      %p327 = scmp.eq.s32.totalorder %s32, 1
      %p328 = por %p326, %p327
      %p330 = scmp.ne.s32.totalorder %s313, %s329
      %p331 = scmp.eq.s32.totalorder %s32, 0
      %p332 = por %p330, %p331
      %s333 = ssub.s32 %s34, %s41
      %p334 = scmp.eq.s32.totalorder %s333, 0
      %s336 = sadd.s32 %s335, 1
      %s337 = scalar_select %p334, %s335, %s336
      %p340 = pneg %p334
      %p341 = scmp.eq.s32.totalorder %s26, 1
      %p342 = por %p340, %p341
      %p343 = scmp.ne.s32.totalorder %s335, %s338
      %p344 = scmp.eq.s32.totalorder %s26, 0
      %p345 = por %p343, %p344
      %p346 = scmp.ne.s32.totalorder %s335, %s338
      %p347 = scmp.eq.s32.totalorder %s31, 1
      %p348 = por %p346, %p347
      %p349 = scmp.ne.s32.totalorder %s338, %s339
      %p350 = scmp.eq.s32.totalorder %s31, 0
      %p351 = por %p349, %p350
      %p352 = scmp.ne.s32.totalorder %s338, %s339
      %p353 = scmp.eq.s32.totalorder %s32, 1
      %p354 = por %p352, %p353
      %p356 = scmp.ne.s32.totalorder %s339, %s355
      %p357 = scmp.eq.s32.totalorder %s32, 0
      %p358 = por %p356, %p357
      %s359 = ssub.s32 %s34, %s41
      %p360 = scmp.eq.s32.totalorder %s359, 0
      %s362 = sadd.s32 %s361, 1
      %s363 = scalar_select %p360, %s361, %s362
      %p366 = pneg %p360
      %p367 = scmp.eq.s32.totalorder %s26, 1
      %p368 = por %p366, %p367
      %p369 = scmp.ne.s32.totalorder %s361, %s364
      %p370 = scmp.eq.s32.totalorder %s26, 0
      %p371 = por %p369, %p370
      %p372 = scmp.ne.s32.totalorder %s361, %s364
      %p373 = scmp.eq.s32.totalorder %s31, 1
      %p374 = por %p372, %p373
      %p375 = scmp.ne.s32.totalorder %s364, %s365
      %p376 = scmp.eq.s32.totalorder %s31, 0
      %p377 = por %p375, %p376
      %p378 = scmp.ne.s32.totalorder %s364, %s365
      %p379 = scmp.eq.s32.totalorder %s32, 1
      %p380 = por %p378, %p379
      %p382 = scmp.ne.s32.totalorder %s365, %s381
      %p383 = scmp.eq.s32.totalorder %s32, 0
      %p384 = por %p382, %p383
      %s385 = ssub.s32 %s34, %s41
      %p386 = scmp.eq.s32.totalorder %s385, 0
      %s388 = sadd.s32 %s387, 1
      %s389 = scalar_select %p386, %s387, %s388
      %p392 = pneg %p386
      %p393 = scmp.eq.s32.totalorder %s26, 1
      %p394 = por %p392, %p393
      %p395 = scmp.ne.s32.totalorder %s387, %s390
      %p396 = scmp.eq.s32.totalorder %s26, 0
      %p397 = por %p395, %p396
      %p398 = scmp.ne.s32.totalorder %s387, %s390
      %p399 = scmp.eq.s32.totalorder %s31, 1
      %p400 = por %p398, %p399
      %p401 = scmp.ne.s32.totalorder %s390, %s391
      %p402 = scmp.eq.s32.totalorder %s31, 0
      %p403 = por %p401, %p402
      %p404 = scmp.ne.s32.totalorder %s390, %s391
      %p405 = scmp.eq.s32.totalorder %s32, 1
      %p406 = por %p404, %p405
      %p408 = scmp.ne.s32.totalorder %s391, %s407
      %p409 = scmp.eq.s32.totalorder %s32, 0
      %p410 = por %p408, %p409
      %s411 = ssub.s32 %s34, %s41
      %p412 = scmp.eq.s32.totalorder %s411, 0
      %s414 = sadd.s32 %s413, 1
      %s415 = scalar_select %p412, %s413, %s414
      %p418 = pneg %p412
      %p419 = scmp.eq.s32.totalorder %s26, 1
      %p420 = por %p418, %p419
      %p421 = scmp.ne.s32.totalorder %s413, %s416
      %p422 = scmp.eq.s32.totalorder %s26, 0
      %p423 = por %p421, %p422
      %p424 = scmp.ne.s32.totalorder %s413, %s416
      %p425 = scmp.eq.s32.totalorder %s31, 1
      %p426 = por %p424, %p425
      %p427 = scmp.ne.s32.totalorder %s416, %s417
      %p428 = scmp.eq.s32.totalorder %s31, 0
      %p429 = por %p427, %p428
      %p430 = scmp.ne.s32.totalorder %s416, %s417
      %p431 = scmp.eq.s32.totalorder %s32, 1
      %p432 = por %p430, %p431
      %p434 = scmp.ne.s32.totalorder %s417, %s433
      %p435 = scmp.eq.s32.totalorder %s32, 0
      %p436 = por %p434, %p435
      %s437 = ssub.s32 %s34, %s41
      %p438 = scmp.eq.s32.totalorder %s437, 0
      %s440 = sadd.s32 %s439, 1
      %s441 = scalar_select %p438, %s439, %s440
      %p444 = pneg %p438
      %p445 = scmp.eq.s32.totalorder %s26, 1
      %p446 = por %p444, %p445
      %p447 = scmp.ne.s32.totalorder %s439, %s442
      %p448 = scmp.eq.s32.totalorder %s26, 0
      %p449 = por %p447, %p448
      %p450 = scmp.ne.s32.totalorder %s439, %s442
      %p451 = scmp.eq.s32.totalorder %s31, 1
      %p452 = por %p450, %p451
      %p453 = scmp.ne.s32.totalorder %s442, %s443
      %p454 = scmp.eq.s32.totalorder %s31, 0
      %p455 = por %p453, %p454
      %p456 = scmp.ne.s32.totalorder %s442, %s443
      %p457 = scmp.eq.s32.totalorder %s32, 1
      %p458 = por %p456, %p457
      %p460 = scmp.ne.s32.totalorder %s443, %s459
      %p461 = scmp.eq.s32.totalorder %s32, 0
      %p462 = por %p460, %p461
      %s463 = ssub.s32 %s34, %s41
      %p464 = scmp.eq.s32.totalorder %s463, 0
      %s466 = sadd.s32 %s465, 1
      %s467 = scalar_select %p464, %s465, %s466
      %p470 = pneg %p464
      %p471 = scmp.eq.s32.totalorder %s26, 1
      %p472 = por %p470, %p471
      %p473 = scmp.ne.s32.totalorder %s465, %s468
      %p474 = scmp.eq.s32.totalorder %s26, 0
      %p475 = por %p473, %p474
      %p476 = scmp.ne.s32.totalorder %s465, %s468
      %p477 = scmp.eq.s32.totalorder %s31, 1
      %p478 = por %p476, %p477
      %p479 = scmp.ne.s32.totalorder %s468, %s469
      %p480 = scmp.eq.s32.totalorder %s31, 0
      %p481 = por %p479, %p480
      %p482 = scmp.ne.s32.totalorder %s468, %s469
      %p483 = scmp.eq.s32.totalorder %s32, 1
      %p484 = por %p482, %p483
      %p486 = scmp.ne.s32.totalorder %s469, %s485
      %p487 = scmp.eq.s32.totalorder %s32, 0
      %p488 = por %p486, %p487
      %s489 = ssub.s32 %s33, %s45
      %p490 = scmp.eq.s32.totalorder %s489, 0
      %s492 = sadd.s32 %s491, 1
      %s493 = scalar_select %p490, %s491, %s492
      %p496 = pneg %p490
      %p497 = scmp.eq.s32.totalorder %s26, 1
      %p498 = por %p496, %p497
      %p499 = scmp.ne.s32.totalorder %s491, %s494
      %p500 = scmp.eq.s32.totalorder %s26, 0
      %p501 = por %p499, %p500
      %p502 = scmp.ne.s32.totalorder %s491, %s494
      %p503 = scmp.eq.s32.totalorder %s31, 1
      %p504 = por %p502, %p503
      %p505 = scmp.ne.s32.totalorder %s494, %s495
      %p506 = scmp.eq.s32.totalorder %s31, 0
      %p507 = por %p505, %p506
      %p508 = scmp.ne.s32.totalorder %s494, %s495
      %p509 = scmp.eq.s32.totalorder %s32, 1
      %p510 = por %p508, %p509
      %p512 = scmp.ne.s32.totalorder %s495, %s511
      %p513 = scmp.eq.s32.totalorder %s32, 0
      %p514 = por %p512, %p513
      %p515 = scmp.le.s32.totalorder 1, %s26
      %p516 = scmp.lt.s32.totalorder %s26, 3
      %p517 = pnand %p515, %p516
      %p518 = pneg %p517
      // Predicated region
      $region9: #{transformer_forward.2} parent=5 // pred_check
        _
      $region10: #{transformer_forward.2} parent=5 // pred_check_branch
        %520 = sbr.rel (%p517) target = $region12
      $region11: #{transformer_forward.2} parent=5 // pred_region
        %s521 = ssub.s32 %s26, 1
        // Predicated region
        $region13: #{transformer_forward.2} parent=11 // pred_check
          %p522 = pneg %p85
        $region14: #{transformer_forward.2} parent=11 // pred_check_branch
          %524 = sbr.rel (%p522) target = $region16
        $region15: #{transformer_forward.2} parent=11 // pred_region
          _
        $region16: #{transformer_forward.2} parent=11 // pred_fallthru
          _
        // Predicated region
        $region17: #{transformer_forward.2} parent=11 // pred_check
          %p525 = pneg %p106
        $region18: #{transformer_forward.2} parent=11 // pred_check_branch
          %527 = sbr.rel (%p525) target = $region20
        $region19: #{transformer_forward.2} parent=11 // pred_region
          _
        $region20: #{transformer_forward.2} parent=11 // pred_fallthru
          _
        // Predicated region
        $region21: #{transformer_forward.2} parent=11 // pred_check
          %p528 = pneg %p127
        $region22: #{transformer_forward.2} parent=11 // pred_check_branch
          %530 = sbr.rel (%p528) target = $region24
        $region23: #{transformer_forward.2} parent=11 // pred_region
          _
        $region24: #{transformer_forward.2} parent=11 // pred_fallthru
          _
        // Predicated region
        $region25: #{transformer_forward.2} parent=11 // pred_check
          %p531 = pneg %p148
        $region26: #{transformer_forward.2} parent=11 // pred_check_branch
          %533 = sbr.rel (%p531) target = $region28
        $region27: #{transformer_forward.2} parent=11 // pred_region
          _
        $region28: #{transformer_forward.2} parent=11 // pred_fallthru
          _
        // Predicated region
        $region29: #{transformer_forward.2} parent=11 // pred_check
          %p534 = pneg %p169
        $region30: #{transformer_forward.2} parent=11 // pred_check_branch
          %536 = sbr.rel (%p534) target = $region32
        $region31: #{transformer_forward.2} parent=11 // pred_region
          _
        $region32: #{transformer_forward.2} parent=11 // pred_fallthru
          _
        // Predicated region
        $region33: #{transformer_forward.2} parent=11 // pred_check
          %p537 = pneg %p195
        $region34: #{transformer_forward.2} parent=11 // pred_check_branch
          %539 = sbr.rel (%p537) target = $region36
        $region35: #{transformer_forward.2} parent=11 // pred_region
          %p540 = scmp.lt.s32.totalorder %s36, 0
          %s541 = scalar_select %p540, %s36, 0
          %s542 = smul.addr %s541, 48
          %s543 = smul.addr %s542, 4
          %s544 = scalar_lea.vmem %s6, %s543
        $region36: #{transformer_forward.2} parent=11 // pred_fallthru
          _
        // Predicated region
        $region37: #{transformer_forward.2} parent=11 // pred_check
          %p545 = pneg %p221
        $region38: #{transformer_forward.2} parent=11 // pred_check_branch
          %547 = sbr.rel (%p545) target = $region40
        $region39: #{transformer_forward.2} parent=11 // pred_region
          %p548 = scmp.lt.s32.totalorder %s36, 0
          %s549 = scalar_select %p548, %s36, 0
          %s550 = smul.addr %s549, 3
          %s551 = scalar_lea.vmem %s7, %s550
        $region40: #{transformer_forward.2} parent=11 // pred_fallthru
          _
        // Predicated region
        $region41: #{transformer_forward.2} parent=11 // pred_check
          %p552 = pneg %p247
        $region42: #{transformer_forward.2} parent=11 // pred_check_branch
          %554 = sbr.rel (%p552) target = $region44
        $region43: #{transformer_forward.2} parent=11 // pred_region
          %p555 = scmp.lt.s32.totalorder %s36, 0
          %s556 = scalar_select %p555, %s36, 0
          %s557 = smul.addr %s556, 16
          %s558 = smul.addr %s557, 4
          %s559 = scalar_lea.vmem %s8, %s558
        $region44: #{transformer_forward.2} parent=11 // pred_fallthru
          _
        // Predicated region
        $region45: #{transformer_forward.2} parent=11 // pred_check
          %p560 = pneg %p273
        $region46: #{transformer_forward.2} parent=11 // pred_check_branch
          %562 = sbr.rel (%p560) target = $region48
        $region47: #{transformer_forward.2} parent=11 // pred_region
          %p563 = scmp.lt.s32.totalorder %s36, 0
          %s564 = scalar_select %p563, %s36, 0
          %s565 = scalar_lea.vmem %s9, %s564
        $region48: #{transformer_forward.2} parent=11 // pred_fallthru
          _
        // Predicated region
        $region49: #{transformer_forward.2} parent=11 // pred_check
          %p566 = pneg %p299
        $region50: #{transformer_forward.2} parent=11 // pred_check_branch
          %568 = sbr.rel (%p566) target = $region52
        $region51: #{transformer_forward.2} parent=11 // pred_region
          %p569 = scmp.lt.s32.totalorder %s36, 0
          %s570 = scalar_select %p569, %s36, 0
          %s571 = scalar_lea.vmem %s10, %s570
        $region52: #{transformer_forward.2} parent=11 // pred_fallthru
          _
        // Predicated region
        $region53: #{transformer_forward.2} parent=11 // pred_check
          %p572 = pneg %p325
        $region54: #{transformer_forward.2} parent=11 // pred_check_branch
          %574 = sbr.rel (%p572) target = $region56
        $region55: #{transformer_forward.2} parent=11 // pred_region
          %p575 = scmp.lt.s32.totalorder %s36, 0
          %s576 = scalar_select %p575, %s36, 0
          %s577 = scalar_lea.vmem %s11, %s576
        $region56: #{transformer_forward.2} parent=11 // pred_fallthru
          _
        // Predicated region
        $region57: #{transformer_forward.2} parent=11 // pred_check
          %p578 = pneg %p351
        $region58: #{transformer_forward.2} parent=11 // pred_check_branch
          %580 = sbr.rel (%p578) target = $region60
        $region59: #{transformer_forward.2} parent=11 // pred_region
          %p581 = scmp.lt.s32.totalorder %s36, 0
          %s582 = scalar_select %p581, %s36, 0
          %s583 = smul.addr %s582, 32
          %s584 = smul.addr %s583, 4
          %s585 = scalar_lea.vmem %s12, %s584
        $region60: #{transformer_forward.2} parent=11 // pred_fallthru
          _
        // Predicated region
        $region61: #{transformer_forward.2} parent=11 // pred_check
          %p586 = pneg %p377
        $region62: #{transformer_forward.2} parent=11 // pred_check_branch
          %588 = sbr.rel (%p586) target = $region64
        $region63: #{transformer_forward.2} parent=11 // pred_region
          %p589 = scmp.lt.s32.totalorder %s36, 0
          %s590 = scalar_select %p589, %s36, 0
          %s591 = smul.addr %s590, 2
          %s592 = scalar_lea.vmem %s13, %s591
        $region64: #{transformer_forward.2} parent=11 // pred_fallthru
          _
        // Predicated region
        $region65: #{transformer_forward.2} parent=11 // pred_check
          %p593 = pneg %p403
        $region66: #{transformer_forward.2} parent=11 // pred_check_branch
          %595 = sbr.rel (%p593) target = $region68
        $region67: #{transformer_forward.2} parent=11 // pred_region
          %p596 = scmp.lt.s32.totalorder %s36, 0
          %s597 = scalar_select %p596, %s36, 0
          %s598 = smul.addr %s597, 32
          %s599 = smul.addr %s598, 4
          %s600 = scalar_lea.vmem %s14, %s599
        $region68: #{transformer_forward.2} parent=11 // pred_fallthru
          _
        // Predicated region
        $region69: #{transformer_forward.2} parent=11 // pred_check
          %p601 = pneg %p429
        $region70: #{transformer_forward.2} parent=11 // pred_check_branch
          %603 = sbr.rel (%p601) target = $region72
        $region71: #{transformer_forward.2} parent=11 // pred_region
          %p604 = scmp.lt.s32.totalorder %s36, 0
          %s605 = scalar_select %p604, %s36, 0
          %s606 = scalar_lea.vmem %s15, %s605
        $region72: #{transformer_forward.2} parent=11 // pred_fallthru
          _
        // Predicated region
        $region73: #{transformer_forward.2} parent=11 // pred_check
          %p607 = pneg %p455
        $region74: #{transformer_forward.2} parent=11 // pred_check_branch
          %609 = sbr.rel (%p607) target = $region76
        $region75: #{transformer_forward.2} parent=11 // pred_region
          %s611 = ssub.s32 16, 16
          %612 = vsyncadd [#allocation4], %s611
          %s613 = smul.addr %s36, 16
          %s614 = scalar_lea.hbm %s16, %s613
          %s616 = sshll.u32 [#allocation3], 4
          %s617 = int_to_ptr.vmem [resolvable:$true] %s616
          %619 = dma.hbm_to_vmem [thread:$0]  %s614, 16, %s617, [#allocation4]
        $region76: #{transformer_forward.2} parent=11 // pred_fallthru
          _
        // Predicated region
        $region77: #{transformer_forward.2} parent=11 // pred_check
          %p620 = pneg %p481
        $region78: #{transformer_forward.2} parent=11 // pred_check_branch
          %622 = sbr.rel (%p620) target = $region80
        $region79: #{transformer_forward.2} parent=11 // pred_region
          %s624 = ssub.s32 16, 16
          %625 = vsyncadd [#allocation6], %s624
          %s626 = smul.addr %s36, 16
          %s627 = scalar_lea.hbm %s17, %s626
          %s629 = sshll.u32 [#allocation5], 4
          %s630 = int_to_ptr.vmem [resolvable:$true] %s629
          %632 = dma.hbm_to_vmem [thread:$0]  %s627, 16, %s630, [#allocation6]
        $region80: #{transformer_forward.2} parent=11 // pred_fallthru
          _
      $region12: #{transformer_forward.2} parent=5 // pred_fallthru
        _
      %p633 = scmp.lt.s32.totalorder %s26, 2
      // Predicated region
      $region81: #{transformer_forward.2} parent=5 // pred_check
        %p634 = pneg %p633
      $region82: #{transformer_forward.2} parent=5 // pred_check_branch
        %636 = sbr.rel (%p634) target = $region84
      $region83: #{transformer_forward.2} parent=5 // pred_region
        // Predicated region
        $region85: #{transformer_forward.2} parent=83 // pred_check
          %p637 = pneg %p58
        $region86: #{transformer_forward.2} parent=83 // pred_check_branch
          %639 = sbr.rel (%p637) target = $region88
        $region87: #{transformer_forward.2} parent=83 // pred_region
          %p640 = scmp.lt.s32.totalorder %s33, 1
          %s641 = scalar_select %p640, %s33, 1
          %s642 = smul.addr %s641, 8
          %s643 = smul.addr %s642, 8
          %s644 = scalar_lea.vmem %s0, %s643
        $region88: #{transformer_forward.2} parent=83 // pred_fallthru
          _
      $region84: #{transformer_forward.2} parent=5 // pred_fallthru
        _
      %p645 = scmp.le.s32.totalorder 1, %s26
      %p646 = scmp.lt.s32.totalorder %s26, 3
      %p647 = pnand %p645, %p646
      %p648 = pneg %p647
      // Predicated region
      $region89: #{transformer_forward.2} parent=5 // pred_check
        _
      $region90: #{transformer_forward.2} parent=5 // pred_check_branch
        %650 = sbr.rel (%p647) target = $region92
      $region91: #{transformer_forward.2} parent=5 // pred_region
        %s651 = ssub.s32 %s26, 1
        // Predicated region
        $region93: #{transformer_forward.2} parent=91 // pred_check
          %p652 = pneg %p455
        $region94: #{transformer_forward.2} parent=91 // pred_check_branch
          %654 = sbr.rel (%p652) target = $region96
        $region95: #{transformer_forward.2} parent=91 // pred_region
          %655 = dma.done [#allocation4], 16
        $region96: #{transformer_forward.2} parent=91 // pred_fallthru
          _
        // Predicated region
        $region97: #{transformer_forward.2} parent=91 // pred_check
          %p656 = pneg %p481
        $region98: #{transformer_forward.2} parent=91 // pred_check_branch
          %658 = sbr.rel (%p656) target = $region100
        $region99: #{transformer_forward.2} parent=91 // pred_region
          %659 = dma.done [#allocation6], 16
        $region100: #{transformer_forward.2} parent=91 // pred_fallthru
          _
        %p660 = scmp.lt.s32.totalorder %s35, 1
        %s661 = scalar_select %p660, %s35, 1
        %s662 = smul.addr %s661, 8
        %s663 = smul.addr %s662, 8
        %s664 = scalar_lea.vmem %s0, %s663
        %p665 = pneg %p64
        %p666 = pneg %p61
        %p667 = pneg %p85
        %p668 = pneg %p82
        %p669 = pneg %p106
        %p670 = pneg %p103
        %p671 = pneg %p127
        %p672 = pneg %p124
        %p673 = pneg %p148
        %p674 = pneg %p145
        %p675 = pneg %p169
        %p676 = pneg %p166
        %p677 = scmp.lt.s32.totalorder %s36, 0
        %s678 = scalar_select %p677, %s36, 0
        %s679 = smul.addr %s678, 48
        %s680 = smul.addr %s679, 4
        %s681 = scalar_lea.vmem %s6, %s680
        %p682 = pneg %p195
        %p683 = pneg %p192
        %p684 = scmp.lt.s32.totalorder %s36, 0
        %s685 = scalar_select %p684, %s36, 0
        %s686 = smul.addr %s685, 3
        %s687 = scalar_lea.vmem %s7, %s686
        %p688 = pneg %p221
        %p689 = pneg %p218
        %p690 = scmp.lt.s32.totalorder %s36, 0
        %s691 = scalar_select %p690, %s36, 0
        %s692 = smul.addr %s691, 16
        %s693 = smul.addr %s692, 4
        %s694 = scalar_lea.vmem %s8, %s693
        %p695 = pneg %p247
        %p696 = pneg %p244
        %p697 = scmp.lt.s32.totalorder %s36, 0
        %s698 = scalar_select %p697, %s36, 0
        %s699 = scalar_lea.vmem %s9, %s698
        %p700 = pneg %p273
        %p701 = pneg %p270
        %p702 = scmp.lt.s32.totalorder %s36, 0
        %s703 = scalar_select %p702, %s36, 0
        %s704 = scalar_lea.vmem %s10, %s703
        %p705 = pneg %p299
        %p706 = pneg %p296
        %p707 = scmp.lt.s32.totalorder %s36, 0
        %s708 = scalar_select %p707, %s36, 0
        %s709 = scalar_lea.vmem %s11, %s708
        %p710 = pneg %p325
        %p711 = pneg %p322
        %p712 = scmp.lt.s32.totalorder %s36, 0
        %s713 = scalar_select %p712, %s36, 0
        %s714 = smul.addr %s713, 32
        %s715 = smul.addr %s714, 4
        %s716 = scalar_lea.vmem %s12, %s715
        %p717 = pneg %p351
        %p718 = pneg %p348
        %p719 = scmp.lt.s32.totalorder %s36, 0
        %s720 = scalar_select %p719, %s36, 0
        %s721 = smul.addr %s720, 2
        %s722 = scalar_lea.vmem %s13, %s721
        %p723 = pneg %p377
        %p724 = pneg %p374
        %p725 = scmp.lt.s32.totalorder %s36, 0
        %s726 = scalar_select %p725, %s36, 0
        %s727 = smul.addr %s726, 32
        %s728 = smul.addr %s727, 4
        %s729 = scalar_lea.vmem %s14, %s728
        %p730 = pneg %p403
        %p731 = pneg %p400
        %p732 = scmp.lt.s32.totalorder %s36, 0
        %s733 = scalar_select %p732, %s36, 0
        %s734 = scalar_lea.vmem %s15, %s733
        %p735 = pneg %p429
        %p736 = pneg %p426
        %p737 = pneg %p455
        %p738 = pneg %p452
        %p739 = pneg %p481
        %p740 = pneg %p478
        %p741 = pneg %p507
        %p742 = pneg %p504
        %p743 = scmp.lt.s32.totalorder %s35, 1
        %s744 = scalar_select %p743, %s35, 1
        %s745 = smul.addr %s744, 8
        %s746 = smul.addr %s745, 8
        %s747 = scalar_lea.vmem %s18, %s746
        %p748 = scmp.lt.s32.totalorder %s35, 1
        %s749 = scalar_select %p748, %s35, 1
        %s750 = smul.addr %s749, 8
        %s751 = smul.addr %s750, 8
        %s752 = scalar_lea.vmem %s0, %s751
        %p753 = scmp.lt.s32.totalorder %s36, 0
        %s754 = scalar_select %p753, %s36, 0
        %s755 = smul.addr %s754, 48
        %s756 = smul.addr %s755, 4
        %s757 = scalar_lea.vmem %s6, %s756
        %p758 = scmp.lt.s32.totalorder %s36, 0
        %s759 = scalar_select %p758, %s36, 0
        %s760 = smul.addr %s759, 3
        %s761 = scalar_lea.vmem %s7, %s760
        %p762 = scmp.lt.s32.totalorder %s36, 0
        %s763 = scalar_select %p762, %s36, 0
        %s764 = smul.addr %s763, 16
        %s765 = smul.addr %s764, 4
        %s766 = scalar_lea.vmem %s8, %s765
        %p767 = scmp.lt.s32.totalorder %s36, 0
        %s768 = scalar_select %p767, %s36, 0
        %s769 = scalar_lea.vmem %s9, %s768
        %p770 = scmp.lt.s32.totalorder %s36, 0
        %s771 = scalar_select %p770, %s36, 0
        %s772 = scalar_lea.vmem %s10, %s771
        %p773 = scmp.lt.s32.totalorder %s36, 0
        %s774 = scalar_select %p773, %s36, 0
        %s775 = scalar_lea.vmem %s11, %s774
        %p776 = scmp.lt.s32.totalorder %s36, 0
        %s777 = scalar_select %p776, %s36, 0
        %s778 = smul.addr %s777, 32
        %s779 = smul.addr %s778, 4
        %s780 = scalar_lea.vmem %s12, %s779
        %p781 = scmp.lt.s32.totalorder %s36, 0
        %s782 = scalar_select %p781, %s36, 0
        %s783 = smul.addr %s782, 2
        %s784 = scalar_lea.vmem %s13, %s783
        %p785 = scmp.lt.s32.totalorder %s36, 0
        %s786 = scalar_select %p785, %s36, 0
        %s787 = smul.addr %s786, 32
        %s788 = smul.addr %s787, 4
        %s789 = scalar_lea.vmem %s14, %s788
        %p790 = scmp.lt.s32.totalorder %s36, 0
        %s791 = scalar_select %p790, %s36, 0
        %s792 = scalar_lea.vmem %s15, %s791
        %p793 = scmp.lt.s32.totalorder %s35, 1
        %s794 = scalar_select %p793, %s35, 1
        %s795 = smul.addr %s794, 8
        %s796 = smul.addr %s795, 8
        %s797 = scalar_lea.vmem %s18, %s796
        %p799 = scmp.eq.s32.totalorder %s36, 0
        // Predicated region
        $region101: #{transformer_forward.2} parent=91 // pred_check
          %p800 = pneg %p799
        $region102: #{transformer_forward.2} parent=91 // pred_check_branch
          %802 = sbr.rel (%p800) target = $region104
        $region103: #{transformer_forward.2} parent=91 // pred_region
          %v803 = vld [vmem:[%s752] sm:$0xff]
          %v804 = vld [vmem:[%s752 + $0x8] sm:$0xff]
          %v805 = vld [vmem:[%s752 + $0x10] sm:$0xff]
          %v806 = vld [vmem:[%s752 + $0x18] sm:$0xff]
          %v807 = vld [vmem:[%s752 + $0x20] sm:$0xff]
          %v808 = vld [vmem:[%s752 + $0x28] sm:$0xff]
          %v809 = vld [vmem:[%s752 + $0x30] sm:$0xff]
          %v810 = vld [vmem:[%s752 + $0x38] sm:$0xff]
          %v811 = vpack.c.bf16 %v804, %v803
          %v812 = vpack.c.bf16 %v806, %v805
          %v813 = vpack.c.bf16 %v808, %v807
          %v814 = vpack.c.bf16 %v810, %v809
          %v815 = vld [vmem:[%s1] sm:$0xf]
          %v816 = vld [vmem:[%s2] sm:$0x1]
          %v818 = vlaneseq
          %v819 = vshrl.u32 %v818, 7
          %v820 = vsub.s32 0, %v819
          %v821 = vrot.slane %v816, %v820
          %vm823 = vcmask 64512
          %v825 = vsel %vm823, %v811, 0
          %v828 = vsel %vm823, %v812, 0
          %v831 = vsel %vm823, %v813, 0
          %v834 = vsel %vm823, %v814, 0
          %vm836 = vcmask 1043456
          %v838 = vsel %vm836, %v815, 0
          %840 = vmatprep.subr.bf16.mxu0 0
          %841 = vmatpush1.bf16.msra.mxu0 %v838
          %842 = vmatprep.subr.bf16.mxu0 0
          %843 = vmatpush1.bf16.msra.mxu0 0
          %844 = vmatprep.subr.bf16.mxu0 0
          %845 = vmatpush1.bf16.msra.mxu0 0
          %846 = vmatprep.subr.bf16.mxu0 0
          %847 = vmatpush1.bf16.msra.mxu0 0
          %848 = vmatprep.subr.bf16.mxu0 0
          %849 = vmatpush1.bf16.msra.mxu0 0
          %850 = vmatprep.subr.bf16.mxu0 0
          %851 = vmatpush1.bf16.msra.mxu0 0
          %852 = vmatprep.subr.bf16.mxu0 0
          %853 = vmatpush1.bf16.msra.mxu0 0
          %854 = vmatprep.subr.bf16.mxu0 0
          %855 = vmatpush1.bf16.msra.mxu0 0
          %856 = vmatprep.subr.bf16.mxu0 0
          %857 = vmatpush1.bf16.msra.mxu0 0
          %858 = vmatprep.subr.bf16.mxu0 0
          %859 = vmatpush1.bf16.msra.mxu0 0
          %860 = vmatprep.subr.bf16.mxu0 0
          %861 = vmatpush1.bf16.msra.mxu0 0
          %862 = vmatprep.subr.bf16.mxu0 0
          %863 = vmatpush1.bf16.msra.mxu0 0
          %864 = vmatprep.subr.bf16.mxu0 0
          %865 = vmatpush1.bf16.msra.mxu0 0
          %866 = vmatprep.subr.bf16.mxu0 0
          %867 = vmatpush1.bf16.msra.mxu0 0
          %868 = vmatprep.subr.bf16.mxu0 0
          %869 = vmatpush1.bf16.msra.mxu0 0
          %870 = vmatprep.subr.bf16.mxu0 0
          %871 = vmatpush1.bf16.msra.mxu0 0
          %872 = vmatprep.mubr.bf16.mxu0 0
          %873 = vmatmul.mubr.bf16.gmra.mrb[0].mxu0 %v825
          %v874 = vpop.f32.mrb[0].mxu0
          %v875 = vadd.f32 %v821, %v874
          %v876 = vpop.f32.mrb[0].mxu0
          %v877 = vpop.f32.mrb[0].mxu0
          %v878 = vadd.f32 %v821, %v877
          %v879 = vpop.f32.mrb[0].mxu0
          %880 = vmatprep.mubr.bf16.mxu0 0
          %881 = vmatmul.mubr.bf16.gmra.mrb[0].mxu0 %v828
          %v882 = vpop.f32.mrb[0].mxu0
          %v883 = vadd.f32 %v821, %v882
          %v884 = vpop.f32.mrb[0].mxu0
          %v885 = vpop.f32.mrb[0].mxu0
          %v886 = vadd.f32 %v821, %v885
          %v887 = vpop.f32.mrb[0].mxu0
          %888 = vmatprep.mubr.bf16.mxu0 0
          %889 = vmatmul.mubr.bf16.gmra.mrb[0].mxu0 %v831
          %v890 = vpop.f32.mrb[0].mxu0
          %v891 = vadd.f32 %v821, %v890
          %v892 = vpop.f32.mrb[0].mxu0
          %v893 = vpop.f32.mrb[0].mxu0
          %v894 = vadd.f32 %v821, %v893
          %v895 = vpop.f32.mrb[0].mxu0
          %896 = vmatprep.mubr.bf16.mxu0 0
          %897 = vmatmul.mubr.bf16.gmra.mrb[0].mxu0 %v834
          %v898 = vpop.f32.mrb[0].mxu0
          %v899 = vadd.f32 %v821, %v898
          %v900 = vpop.f32.mrb[0].mxu0
          %v901 = vpop.f32.mrb[0].mxu0
          %v902 = vadd.f32 %v821, %v901
          %v903 = vpop.f32.mrb[0].mxu0
          %904 = vdwg.mxu0
          %v905 = vpack.c.bf16 %v878, %v875
          %v906 = vpack.c.bf16 %v886, %v883
          %v907 = vpack.c.bf16 %v894, %v891
          %v908 = vpack.c.bf16 %v902, %v899
          %v909 = vld [vmem:[%s3] sm:$0xf]
          %v910 = vld [vmem:[%s3 + $0x4] sm:$0xf]
          %v911 = vld [vmem:[%s3 + $0x8] sm:$0xf]
          %v912 = vld [vmem:[%s3 + $0xc] sm:$0xf]
          %v913 = vld [vmem:[%s3 + $0x10] sm:$0xf]
          %v914 = vld [vmem:[%s3 + $0x14] sm:$0xf]
          %v915 = vld [vmem:[%s3 + $0x18] sm:$0xf]
          %v916 = vld [vmem:[%s3 + $0x1c] sm:$0xf]
          %v917 = vld [vmem:[%s3 + $0x20] sm:$0xf]
          %v918 = vld [vmem:[%s3 + $0x24] sm:$0xf]
          %v919 = vld [vmem:[%s3 + $0x28] sm:$0xf]
          %v920 = vld [vmem:[%s3 + $0x2c] sm:$0xf]
          %v921 = vld [vmem:[%s3 + $0x30] sm:$0xf]
          %v922 = vld [vmem:[%s3 + $0x34] sm:$0xf]
          %v923 = vld [vmem:[%s3 + $0x38] sm:$0xf]
          %v924 = vld [vmem:[%s3 + $0x3c] sm:$0xf]
          %v925 = vld [vmem:[%s4] sm:$0x1]
          %v927 = vlaneseq
          %v928 = vshrl.u32 %v927, 7
          %v929 = vsub.s32 0, %v928
          %v930 = vrot.slane %v925, %v929
          %v948 = vunpack.c.l.b16 %v909
          %v949 = vunpack.c.l.b16 %v910
          %v950 = vunpack.c.l.b16 %v911
          %v951 = vunpack.c.l.b16 %v912
          %v952 = vunpack.c.l.b16 %v913
          %v953 = vunpack.c.l.b16 %v914
          %v954 = vunpack.c.l.b16 %v915
          %v955 = vunpack.c.l.b16 %v916
          %v956 = vunpack.c.l.b16 %v917
          %v957 = vunpack.c.l.b16 %v918
          %v958 = vunpack.c.l.b16 %v919
          %v959 = vunpack.c.l.b16 %v920
          %v960 = vunpack.c.l.b16 %v921
          %v961 = vunpack.c.l.b16 %v922
          %v962 = vunpack.c.l.b16 %v923
          %v963 = vunpack.c.l.b16 %v924
          %v964 = vpack.c.b16 %v949, %v948
          %v965 = vpack.c.b16 %v951, %v950
          %v966 = vpack.c.b16 %v953, %v952
          %v967 = vpack.c.b16 %v955, %v954
          %v968 = vpack.c.b16 %v957, %v956
          %v969 = vpack.c.b16 %v959, %v958
          %v970 = vpack.c.b16 %v961, %v960
          %v971 = vpack.c.b16 %v963, %v962
          %980 = vmatprep.subr.bf16.mxu0 0
          %981 = vmatpush1.bf16.msra.mxu0 %v964
          %982 = vmatprep.subr.bf16.mxu0 0
          %983 = vmatpush1.bf16.msra.mxu0 %v965
          %984 = vmatprep.subr.bf16.mxu0 0
          %985 = vmatpush1.bf16.msra.mxu0 %v966
          %986 = vmatprep.subr.bf16.mxu0 0
          %987 = vmatpush1.bf16.msra.mxu0 %v967
          %988 = vmatprep.subr.bf16.mxu0 0
          %989 = vmatpush1.bf16.msra.mxu0 %v968
          %990 = vmatprep.subr.bf16.mxu0 0
          %991 = vmatpush1.bf16.msra.mxu0 %v969
          %992 = vmatprep.subr.bf16.mxu0 0
          %993 = vmatpush1.bf16.msra.mxu0 %v970
          %994 = vmatprep.subr.bf16.mxu0 0
          %995 = vmatpush1.bf16.msra.mxu0 %v971
          %996 = vmatprep.subr.bf16.mxu0 0
          %997 = vmatpush1.bf16.msra.mxu0 0
          %998 = vmatprep.subr.bf16.mxu0 0
          %999 = vmatpush1.bf16.msra.mxu0 0
          %1000 = vmatprep.subr.bf16.mxu0 0
          %1001 = vmatpush1.bf16.msra.mxu0 0
          %1002 = vmatprep.subr.bf16.mxu0 0
          %1003 = vmatpush1.bf16.msra.mxu0 0
          %1004 = vmatprep.subr.bf16.mxu0 0
          %1005 = vmatpush1.bf16.msra.mxu0 0
          %1006 = vmatprep.subr.bf16.mxu0 0
          %1007 = vmatpush1.bf16.msra.mxu0 0
          %1008 = vmatprep.subr.bf16.mxu0 0
          %1009 = vmatpush1.bf16.msra.mxu0 0
          %1010 = vmatprep.subr.bf16.mxu0 0
          %1011 = vmatpush1.bf16.msra.mxu0 0
          %1012 = vmatprep.mubr.bf16.mxu0 0
          %1013 = vmatmul.mubr.bf16.gmra.mrb[0].mxu0 %v905
          %v1014 = vpop.f32.mrb[0].mxu0
          %v1015 = vadd.f32 %v930, %v1014
          %v1016 = vpop.f32.mrb[0].mxu0
          %v1017 = vpop.f32.mrb[0].mxu0
          %v1018 = vadd.f32 %v930, %v1017
          %v1019 = vpop.f32.mrb[0].mxu0
          %1020 = vmatprep.mubr.bf16.mxu0 0
          %1021 = vmatmul.mubr.bf16.gmra.mrb[0].mxu0 %v906
          %v1022 = vpop.f32.mrb[0].mxu0
          %v1023 = vadd.f32 %v930, %v1022
          %v1024 = vpop.f32.mrb[0].mxu0
          %v1025 = vpop.f32.mrb[0].mxu0
          %v1026 = vadd.f32 %v930, %v1025
          %v1027 = vpop.f32.mrb[0].mxu0
          %1028 = vmatprep.mubr.bf16.mxu0 0
          %1029 = vmatmul.mubr.bf16.gmra.mrb[0].mxu0 %v907
          %v1030 = vpop.f32.mrb[0].mxu0
          %v1031 = vadd.f32 %v930, %v1030
          %v1032 = vpop.f32.mrb[0].mxu0
          %v1033 = vpop.f32.mrb[0].mxu0
          %v1034 = vadd.f32 %v930, %v1033
          %v1035 = vpop.f32.mrb[0].mxu0
          %1036 = vmatprep.mubr.bf16.mxu0 0
          %1037 = vmatmul.mubr.bf16.gmra.mrb[0].mxu0 %v908
          %v1038 = vpop.f32.mrb[0].mxu0
          %v1039 = vadd.f32 %v930, %v1038
          %v1040 = vpop.f32.mrb[0].mxu0
          %v1041 = vpop.f32.mrb[0].mxu0
          %v1042 = vadd.f32 %v930, %v1041
          %v1043 = vpop.f32.mrb[0].mxu0
          %1044 = vdwg.mxu0
          %v1045 = vld [vmem:[%s5] sm:$0xff]
          %v1046 = vld [vmem:[%s5 + $0x8] sm:$0xff]
          %v1047 = vld [vmem:[%s5 + $0x10] sm:$0xff]
          %v1048 = vld [vmem:[%s5 + $0x18] sm:$0xff]
          %v1049 = vld [vmem:[%s5 + $0x20] sm:$0xff]
          %v1050 = vld [vmem:[%s5 + $0x28] sm:$0xff]
          %v1051 = vld [vmem:[%s5 + $0x30] sm:$0xff]
          %v1052 = vld [vmem:[%s5 + $0x38] sm:$0xff]
          %v1053 = vadd.f32 %v1015, %v1045
          %v1054 = vadd.f32 %v1018, %v1046
          %v1055 = vadd.f32 %v1023, %v1047
          %v1056 = vadd.f32 %v1026, %v1048
          %v1057 = vadd.f32 %v1031, %v1049
          %v1058 = vadd.f32 %v1034, %v1050
          %v1059 = vadd.f32 %v1039, %v1051
          %v1060 = vadd.f32 %v1042, %v1052
          %1061 = vst [vmem:[#allocation2] sm:$0xff] %v1053
          %1062 = vst [vmem:[#allocation2 + $0x8] sm:$0xff] %v1054
          %1063 = vst [vmem:[#allocation2 + $0x10] sm:$0xff] %v1055
          %1064 = vst [vmem:[#allocation2 + $0x18] sm:$0xff] %v1056
          %1065 = vst [vmem:[#allocation2 + $0x20] sm:$0xff] %v1057
          %1066 = vst [vmem:[#allocation2 + $0x28] sm:$0xff] %v1058
          %1067 = vst [vmem:[#allocation2 + $0x30] sm:$0xff] %v1059
          %1068 = vst [vmem:[#allocation2 + $0x38] sm:$0xff] %v1060
        $region104: #{transformer_forward.2} parent=91 // pred_fallthru
          _
        %v1069 = vld [vmem:[#allocation2] sm:$0xff]
        %v1070 = vld [vmem:[#allocation2 + $0x8] sm:$0xff]
        %v1071 = vld [vmem:[#allocation2 + $0x10] sm:$0xff]
        %v1072 = vld [vmem:[#allocation2 + $0x18] sm:$0xff]
        %v1073 = vld [vmem:[#allocation2 + $0x20] sm:$0xff]
        %v1074 = vld [vmem:[#allocation2 + $0x28] sm:$0xff]
        %v1075 = vld [vmem:[#allocation2 + $0x30] sm:$0xff]
        %v1076 = vld [vmem:[#allocation2 + $0x38] sm:$0xff]
        %v1077 = vpack.c.bf16 %v1070, %v1069
        %v1078 = vpack.c.bf16 %v1072, %v1071
        %v1079 = vpack.c.bf16 %v1074, %v1073
        %v1080 = vpack.c.bf16 %v1076, %v1075
        %v1081 = vld [vmem:[%s757] sm:$0xff]
        %v1082 = vld [vmem:[%s757 + $0x8] sm:$0xf]
        %v1083 = vld [vmem:[%s757 + $0xc] sm:$0xff]
        %v1084 = vld [vmem:[%s757 + $0x14] sm:$0xf]
        %v1085 = vld [vmem:[%s757 + $0x18] sm:$0xff]
        %v1086 = vld [vmem:[%s757 + $0x20] sm:$0xf]
        %v1087 = vld [vmem:[%s757 + $0x24] sm:$0xff]
        %v1088 = vld [vmem:[%s757 + $0x2c] sm:$0xf]
        %v1089 = vld [vmem:[%s757 + $0x30] sm:$0xff]
        %v1090 = vld [vmem:[%s757 + $0x38] sm:$0xf]
        %v1091 = vld [vmem:[%s757 + $0x3c] sm:$0xff]
        %v1092 = vld [vmem:[%s757 + $0x44] sm:$0xf]
        %v1093 = vld [vmem:[%s757 + $0x48] sm:$0xff]
        %v1094 = vld [vmem:[%s757 + $0x50] sm:$0xf]
        %v1095 = vld [vmem:[%s757 + $0x54] sm:$0xff]
        %v1096 = vld [vmem:[%s757 + $0x5c] sm:$0xf]
        %v1097 = vld [vmem:[%s757 + $0x60] sm:$0xff]
        %v1098 = vld [vmem:[%s757 + $0x68] sm:$0xf]
        %v1099 = vld [vmem:[%s757 + $0x6c] sm:$0xff]
        %v1100 = vld [vmem:[%s757 + $0x74] sm:$0xf]
        %v1101 = vld [vmem:[%s757 + $0x78] sm:$0xff]
        %v1102 = vld [vmem:[%s757 + $0x80] sm:$0xf]
        %v1103 = vld [vmem:[%s757 + $0x84] sm:$0xff]
        %v1104 = vld [vmem:[%s757 + $0x8c] sm:$0xf]
        %v1105 = vld [vmem:[%s757 + $0x90] sm:$0xff]
        %v1106 = vld [vmem:[%s757 + $0x98] sm:$0xf]
        %v1107 = vld [vmem:[%s757 + $0x9c] sm:$0xff]
        %v1108 = vld [vmem:[%s757 + $0xa4] sm:$0xf]
        %v1109 = vld [vmem:[%s757 + $0xa8] sm:$0xff]
        %v1110 = vld [vmem:[%s757 + $0xb0] sm:$0xf]
        %v1111 = vld [vmem:[%s757 + $0xb4] sm:$0xff]
        %v1112 = vld [vmem:[%s757 + $0xbc] sm:$0xf]
        %v1113 = vld [vmem:[%s761] sm:$0x7]
        %v1115 = vlaneseq
        %v1116 = vshrl.u32 %v1115, 7
        %v1117 = vsub.s32 0, %v1116
        %v1118 = vrot.slane %v1113, %v1117
        %v1119 = vlaneseq
        %v1120 = vshrl.u32 %v1119, 7
        %v1121 = vsub.s32 1, %v1120
        %v1122 = vrot.slane %v1113, %v1121
        %v1123 = vlaneseq
        %v1124 = vshrl.u32 %v1123, 7
        %v1125 = vsub.s32 2, %v1124
        %v1126 = vrot.slane %v1113, %v1125
        %v1162 = vunpack.c.l.b16 %v1081
        %v1163 = vunpack.c.h.b16 %v1081
        %v1164 = vunpack.c.l.b16 %v1082
        %v1165 = vunpack.c.l.b16 %v1083
        %v1166 = vunpack.c.h.b16 %v1083
        %v1167 = vunpack.c.l.b16 %v1084
        %v1168 = vunpack.c.l.b16 %v1085
        %v1169 = vunpack.c.h.b16 %v1085
        %v1170 = vunpack.c.l.b16 %v1086
        %v1171 = vunpack.c.l.b16 %v1087
        %v1172 = vunpack.c.h.b16 %v1087
        %v1173 = vunpack.c.l.b16 %v1088
        %v1174 = vunpack.c.l.b16 %v1089
        %v1175 = vunpack.c.h.b16 %v1089
        %v1176 = vunpack.c.l.b16 %v1090
        %v1177 = vunpack.c.l.b16 %v1091
        %v1178 = vunpack.c.h.b16 %v1091
        %v1179 = vunpack.c.l.b16 %v1092
        %v1180 = vunpack.c.l.b16 %v1093
        %v1181 = vunpack.c.h.b16 %v1093
        %v1182 = vunpack.c.l.b16 %v1094
        %v1183 = vunpack.c.l.b16 %v1095
        %v1184 = vunpack.c.h.b16 %v1095
        %v1185 = vunpack.c.l.b16 %v1096
        %v1186 = vunpack.c.l.b16 %v1097
        %v1187 = vunpack.c.h.b16 %v1097
        %v1188 = vunpack.c.l.b16 %v1098
        %v1189 = vunpack.c.l.b16 %v1099
        %v1190 = vunpack.c.h.b16 %v1099
        %v1191 = vunpack.c.l.b16 %v1100
        %v1192 = vunpack.c.l.b16 %v1101
        %v1193 = vunpack.c.h.b16 %v1101
        %v1194 = vunpack.c.l.b16 %v1102
        %v1195 = vunpack.c.l.b16 %v1103
        %v1196 = vunpack.c.h.b16 %v1103
        %v1197 = vunpack.c.l.b16 %v1104
        %v1198 = vunpack.c.l.b16 %v1105
        %v1199 = vunpack.c.h.b16 %v1105
        %v1200 = vunpack.c.l.b16 %v1106
        %v1201 = vunpack.c.l.b16 %v1107
        %v1202 = vunpack.c.h.b16 %v1107
        %v1203 = vunpack.c.l.b16 %v1108
        %v1204 = vunpack.c.l.b16 %v1109
        %v1205 = vunpack.c.h.b16 %v1109
        %v1206 = vunpack.c.l.b16 %v1110
        %v1207 = vunpack.c.l.b16 %v1111
        %v1208 = vunpack.c.h.b16 %v1111
        %v1209 = vunpack.c.l.b16 %v1112
        %v1210 = vpack.c.b16 %v1165, %v1162
        %v1211 = vpack.c.b16 %v1166, %v1163
        %v1212 = vpack.c.b16 %v1167, %v1164
        %v1213 = vpack.c.b16 %v1171, %v1168
        %v1214 = vpack.c.b16 %v1172, %v1169
        %v1215 = vpack.c.b16 %v1173, %v1170
        %v1216 = vpack.c.b16 %v1177, %v1174
        %v1217 = vpack.c.b16 %v1178, %v1175
        %v1218 = vpack.c.b16 %v1179, %v1176
        %v1219 = vpack.c.b16 %v1183, %v1180
        %v1220 = vpack.c.b16 %v1184, %v1181
        %v1221 = vpack.c.b16 %v1185, %v1182
        %v1222 = vpack.c.b16 %v1189, %v1186
        %v1223 = vpack.c.b16 %v1190, %v1187
        %v1224 = vpack.c.b16 %v1191, %v1188
        %v1225 = vpack.c.b16 %v1195, %v1192
        %v1226 = vpack.c.b16 %v1196, %v1193
        %v1227 = vpack.c.b16 %v1197, %v1194
        %v1228 = vpack.c.b16 %v1201, %v1198
        %v1229 = vpack.c.b16 %v1202, %v1199
        %v1230 = vpack.c.b16 %v1203, %v1200
        %v1231 = vpack.c.b16 %v1207, %v1204
        %v1232 = vpack.c.b16 %v1208, %v1205
        %v1233 = vpack.c.b16 %v1209, %v1206
        %1258 = vmatprep.subr.bf16.mxu0 %v1211
        %1259 = vmatpush1.bf16.msra.mxu0 %v1210
        %1260 = vmatprep.subr.bf16.mxu0 %v1214
        %1261 = vmatpush1.bf16.msra.mxu0 %v1213
        %1262 = vmatprep.subr.bf16.mxu0 %v1217
        %1263 = vmatpush1.bf16.msra.mxu0 %v1216
        %1264 = vmatprep.subr.bf16.mxu0 %v1220
        %1265 = vmatpush1.bf16.msra.mxu0 %v1219
        %1266 = vmatprep.subr.bf16.mxu0 %v1223
        %1267 = vmatpush1.bf16.msra.mxu0 %v1222
        %1268 = vmatprep.subr.bf16.mxu0 %v1226
        %1269 = vmatpush1.bf16.msra.mxu0 %v1225
        %1270 = vmatprep.subr.bf16.mxu0 %v1229
        %1271 = vmatpush1.bf16.msra.mxu0 %v1228
        %1272 = vmatprep.subr.bf16.mxu0 %v1232
        %1273 = vmatpush1.bf16.msra.mxu0 %v1231
        %1274 = vmatprep.subr.bf16.mxu0 0
        %1275 = vmatpush1.bf16.msra.mxu0 0
        %1276 = vmatprep.subr.bf16.mxu0 0
        %1277 = vmatpush1.bf16.msra.mxu0 0
        %1278 = vmatprep.subr.bf16.mxu0 0
        %1279 = vmatpush1.bf16.msra.mxu0 0
        %1280 = vmatprep.subr.bf16.mxu0 0
        %1281 = vmatpush1.bf16.msra.mxu0 0
        %1282 = vmatprep.subr.bf16.mxu0 0
        %1283 = vmatpush1.bf16.msra.mxu0 0
        %1284 = vmatprep.subr.bf16.mxu0 0
        %1285 = vmatpush1.bf16.msra.mxu0 0
        %1286 = vmatprep.subr.bf16.mxu0 0
        %1287 = vmatpush1.bf16.msra.mxu0 0
        %1288 = vmatprep.subr.bf16.mxu0 0
        %1289 = vmatpush1.bf16.msra.mxu0 0
        %1290 = vmatprep.mubr.bf16.mxu0 0
        %1291 = vmatmul.mubr.bf16.gmra.mrb[0].mxu0 %v1077
        %v1292 = vpop.f32.mrb[0].mxu0
        %v1293 = vadd.f32 %v1118, %v1292
        %v1294 = vpop.f32.mrb[0].mxu0
        %v1295 = vadd.f32 %v1122, %v1294
        %v1296 = vpop.f32.mrb[0].mxu0
        %v1297 = vadd.f32 %v1118, %v1296
        %v1298 = vpop.f32.mrb[0].mxu0
        %v1299 = vadd.f32 %v1122, %v1298
        %1300 = vmatprep.mubr.bf16.mxu0 0
        %1301 = vmatmul.mubr.bf16.gmra.mrb[0].mxu0 %v1078
        %v1302 = vpop.f32.mrb[0].mxu0
        %v1303 = vadd.f32 %v1118, %v1302
        %v1304 = vpop.f32.mrb[0].mxu0
        %v1305 = vadd.f32 %v1122, %v1304
        %v1306 = vpop.f32.mrb[0].mxu0
        %v1307 = vadd.f32 %v1118, %v1306
        %v1308 = vpop.f32.mrb[0].mxu0
        %v1309 = vadd.f32 %v1122, %v1308
        %1310 = vmatprep.mubr.bf16.mxu0 0
        %1311 = vmatmul.mubr.bf16.gmra.mrb[0].mxu0 %v1079
        %v1312 = vpop.f32.mrb[0].mxu0
        %v1313 = vadd.f32 %v1118, %v1312
        %v1314 = vpop.f32.mrb[0].mxu0
        %v1315 = vadd.f32 %v1122, %v1314
        %v1316 = vpop.f32.mrb[0].mxu0
        %v1317 = vadd.f32 %v1118, %v1316
        %v1318 = vpop.f32.mrb[0].mxu0
        %v1319 = vadd.f32 %v1122, %v1318
        %1320 = vmatprep.mubr.bf16.mxu0 0
        %1321 = vmatmul.mubr.bf16.gmra.mrb[0].mxu0 %v1080
        %v1322 = vpop.f32.mrb[0].mxu0
        %v1323 = vadd.f32 %v1118, %v1322
        %v1324 = vpop.f32.mrb[0].mxu0
        %v1325 = vadd.f32 %v1122, %v1324
        %v1326 = vpop.f32.mrb[0].mxu0
        %v1327 = vadd.f32 %v1118, %v1326
        %v1328 = vpop.f32.mrb[0].mxu0
        %v1329 = vadd.f32 %v1122, %v1328
        %1330 = vdwg.mxu0
        %1331 = vmatprep.subr.bf16.mxu0 0
        %1332 = vmatpush1.bf16.msra.mxu0 %v1212
        %1333 = vmatprep.subr.bf16.mxu0 0
        %1334 = vmatpush1.bf16.msra.mxu0 %v1215
        %1335 = vmatprep.subr.bf16.mxu0 0
        %1336 = vmatpush1.bf16.msra.mxu0 %v1218
        %1337 = vmatprep.subr.bf16.mxu0 0
        %1338 = vmatpush1.bf16.msra.mxu0 %v1221
        %1339 = vmatprep.subr.bf16.mxu0 0
        %1340 = vmatpush1.bf16.msra.mxu0 %v1224
        %1341 = vmatprep.subr.bf16.mxu0 0
        %1342 = vmatpush1.bf16.msra.mxu0 %v1227
        %1343 = vmatprep.subr.bf16.mxu0 0
        %1344 = vmatpush1.bf16.msra.mxu0 %v1230
        %1345 = vmatprep.subr.bf16.mxu0 0
        %1346 = vmatpush1.bf16.msra.mxu0 %v1233
        %1347 = vmatprep.subr.bf16.mxu0 0
        %1348 = vmatpush1.bf16.msra.mxu0 0
        %1349 = vmatprep.subr.bf16.mxu0 0
        %1350 = vmatpush1.bf16.msra.mxu0 0
        %1351 = vmatprep.subr.bf16.mxu0 0
        %1352 = vmatpush1.bf16.msra.mxu0 0
        %1353 = vmatprep.subr.bf16.mxu0 0
        %1354 = vmatpush1.bf16.msra.mxu0 0
        %1355 = vmatprep.subr.bf16.mxu0 0
        %1356 = vmatpush1.bf16.msra.mxu0 0
        %1357 = vmatprep.subr.bf16.mxu0 0
        %1358 = vmatpush1.bf16.msra.mxu0 0
        %1359 = vmatprep.subr.bf16.mxu0 0
        %1360 = vmatpush1.bf16.msra.mxu0 0
        %1361 = vmatprep.subr.bf16.mxu0 0
        %1362 = vmatpush1.bf16.msra.mxu0 0
        %1363 = vmatprep.mubr.bf16.mxu0 0
        %1364 = vmatmul.mubr.bf16.gmra.mrb[0].mxu0 %v1077
        %v1365 = vpop.f32.mrb[0].mxu0
        %v1366 = vadd.f32 %v1126, %v1365
        %v1367 = vpop.f32.mrb[0].mxu0
        %v1368 = vpop.f32.mrb[0].mxu0
        %v1369 = vadd.f32 %v1126, %v1368
        %v1370 = vpop.f32.mrb[0].mxu0
        %1371 = vmatprep.mubr.bf16.mxu0 0
        %1372 = vmatmul.mubr.bf16.gmra.mrb[0].mxu0 %v1078
        %v1373 = vpop.f32.mrb[0].mxu0
        %v1374 = vadd.f32 %v1126, %v1373
        %v1375 = vpop.f32.mrb[0].mxu0
        %v1376 = vpop.f32.mrb[0].mxu0
        %v1377 = vadd.f32 %v1126, %v1376
        %v1378 = vpop.f32.mrb[0].mxu0
        %1379 = vmatprep.mubr.bf16.mxu0 0
        %1380 = vmatmul.mubr.bf16.gmra.mrb[0].mxu0 %v1079
        %v1381 = vpop.f32.mrb[0].mxu0
        %v1382 = vadd.f32 %v1126, %v1381
        %v1383 = vpop.f32.mrb[0].mxu0
        %v1384 = vpop.f32.mrb[0].mxu0
        %v1385 = vadd.f32 %v1126, %v1384
        %v1386 = vpop.f32.mrb[0].mxu0
        %1387 = vmatprep.mubr.bf16.mxu0 0
        %1388 = vmatmul.mubr.bf16.gmra.mrb[0].mxu0 %v1080
        %v1389 = vpop.f32.mrb[0].mxu0
        %v1390 = vadd.f32 %v1126, %v1389
        %v1391 = vpop.f32.mrb[0].mxu0
        %v1392 = vpop.f32.mrb[0].mxu0
        %v1393 = vadd.f32 %v1126, %v1392
        %v1394 = vpop.f32.mrb[0].mxu0
        %1395 = vdwg.mxu0
        %v1396 = vld [vmem:[%s766] sm:$0xf]
        %v1397 = vld [vmem:[%s766 + $0x4] sm:$0xf]
        %v1398 = vld [vmem:[%s766 + $0x8] sm:$0xf]
        %v1399 = vld [vmem:[%s766 + $0xc] sm:$0xf]
        %v1400 = vld [vmem:[%s766 + $0x10] sm:$0xf]
        %v1401 = vld [vmem:[%s766 + $0x14] sm:$0xf]
        %v1402 = vld [vmem:[%s766 + $0x18] sm:$0xf]
        %v1403 = vld [vmem:[%s766 + $0x1c] sm:$0xf]
        %v1404 = vld [vmem:[%s766 + $0x20] sm:$0xf]
        %v1405 = vld [vmem:[%s766 + $0x24] sm:$0xf]
        %v1406 = vld [vmem:[%s766 + $0x28] sm:$0xf]
        %v1407 = vld [vmem:[%s766 + $0x2c] sm:$0xf]
        %v1408 = vld [vmem:[%s766 + $0x30] sm:$0xf]
        %v1409 = vld [vmem:[%s766 + $0x34] sm:$0xf]
        %v1410 = vld [vmem:[%s766 + $0x38] sm:$0xf]
        %v1411 = vld [vmem:[%s766 + $0x3c] sm:$0xf]
        %v1412 = vpack.c.bf16 %v1297, %v1293
        %v1413 = vpack.c.bf16 %v1307, %v1303
        %v1414 = vpack.c.bf16 %v1317, %v1313
        %v1415 = vpack.c.bf16 %v1327, %v1323
        %1420 = vrot.lane.b32.xlu0 %v1412, 96
        %v1421 = vpop.permute.xlu0 %1420
        %1422 = vrot.lane.b32.xlu0 %v1413, 96
        %v1423 = vpop.permute.xlu0 %1422
        %1424 = vrot.lane.b32.xlu0 %v1414, 96
        %v1425 = vpop.permute.xlu0 %1424
        %1426 = vrot.lane.b32.xlu0 %v1415, 96
        %v1427 = vpop.permute.xlu0 %1426
        %1428 = vrot.lane.b32.xlu0 %v1412, 64
        %v1429 = vpop.permute.xlu0 %1428
        %1430 = vrot.lane.b32.xlu0 %v1413, 64
        %v1431 = vpop.permute.xlu0 %1430
        %1432 = vrot.lane.b32.xlu0 %v1414, 64
        %v1433 = vpop.permute.xlu0 %1432
        %1434 = vrot.lane.b32.xlu0 %v1415, 64
        %v1435 = vpop.permute.xlu0 %1434
        %1436 = vrot.lane.b32.xlu0 %v1412, 32
        %v1437 = vpop.permute.xlu0 %1436
        %1438 = vrot.lane.b32.xlu0 %v1413, 32
        %v1439 = vpop.permute.xlu0 %1438
        %1440 = vrot.lane.b32.xlu0 %v1414, 32
        %v1441 = vpop.permute.xlu0 %1440
        %1442 = vrot.lane.b32.xlu0 %v1415, 32
        %v1443 = vpop.permute.xlu0 %1442
        %v1444 = vpack.c.bf16 %v1299, %v1295
        %v1445 = vpack.c.bf16 %v1309, %v1305
        %v1446 = vpack.c.bf16 %v1319, %v1315
        %v1447 = vpack.c.bf16 %v1329, %v1325
        %1452 = vrot.lane.b32.xlu0 %v1444, 96
        %v1453 = vpop.permute.xlu0 %1452
        %1454 = vrot.lane.b32.xlu0 %v1445, 96
        %v1455 = vpop.permute.xlu0 %1454
        %1456 = vrot.lane.b32.xlu0 %v1446, 96
        %v1457 = vpop.permute.xlu0 %1456
        %1458 = vrot.lane.b32.xlu0 %v1447, 96
        %v1459 = vpop.permute.xlu0 %1458
        %1460 = vrot.lane.b32.xlu0 %v1444, 64
        %v1461 = vpop.permute.xlu0 %1460
        %1462 = vrot.lane.b32.xlu0 %v1445, 64
        %v1463 = vpop.permute.xlu0 %1462
        %1464 = vrot.lane.b32.xlu0 %v1446, 64
        %v1465 = vpop.permute.xlu0 %1464
        %1466 = vrot.lane.b32.xlu0 %v1447, 64
        %v1467 = vpop.permute.xlu0 %1466
        %1468 = vrot.lane.b32.xlu0 %v1444, 32
        %v1469 = vpop.permute.xlu0 %1468
        %1470 = vrot.lane.b32.xlu0 %v1445, 32
        %v1471 = vpop.permute.xlu0 %1470
        %1472 = vrot.lane.b32.xlu0 %v1446, 32
        %v1473 = vpop.permute.xlu0 %1472
        %1474 = vrot.lane.b32.xlu0 %v1447, 32
        %v1475 = vpop.permute.xlu0 %1474
        %v1476 = vpack.c.bf16 %v1369, %v1366
        %v1477 = vpack.c.bf16 %v1377, %v1374
        %v1478 = vpack.c.bf16 %v1385, %v1382
        %v1479 = vpack.c.bf16 %v1393, %v1390
        %1484 = vrot.lane.b32.xlu0 %v1476, 96
        %v1485 = vpop.permute.xlu0 %1484
        %1486 = vrot.lane.b32.xlu0 %v1477, 96
        %v1487 = vpop.permute.xlu0 %1486
        %1488 = vrot.lane.b32.xlu0 %v1478, 96
        %v1489 = vpop.permute.xlu0 %1488
        %1490 = vrot.lane.b32.xlu0 %v1479, 96
        %v1491 = vpop.permute.xlu0 %1490
        %1496 = vrot.lane.b32.xlu0 %v1476, 64
        %v1497 = vpop.permute.xlu0 %1496
        %1498 = vrot.lane.b32.xlu0 %v1477, 64
        %v1499 = vpop.permute.xlu0 %1498
        %1500 = vrot.lane.b32.xlu0 %v1478, 64
        %v1501 = vpop.permute.xlu0 %1500
        %1502 = vrot.lane.b32.xlu0 %v1479, 64
        %v1503 = vpop.permute.xlu0 %1502
        %1508 = vrot.lane.b32.xlu0 %v1476, 32
        %v1509 = vpop.permute.xlu0 %1508
        %1510 = vrot.lane.b32.xlu0 %v1477, 32
        %v1511 = vpop.permute.xlu0 %1510
        %1512 = vrot.lane.b32.xlu0 %v1478, 32
        %v1513 = vpop.permute.xlu0 %1512
        %1514 = vrot.lane.b32.xlu0 %v1479, 32
        %v1515 = vpop.permute.xlu0 %1514
        %vm1520 = vcmask 261120
        %v1522 = vsel %vm1520, %v1412, 0
        %v1525 = vsel %vm1520, %v1413, 0
        %v1528 = vsel %vm1520, %v1414, 0
        %v1531 = vsel %vm1520, %v1415, 0
        %v1534 = vsel %vm1520, %v1444, 0
        %v1537 = vsel %vm1520, %v1445, 0
        %v1540 = vsel %vm1520, %v1446, 0
        %v1543 = vsel %vm1520, %v1447, 0
        %1545 = vmatprep.subr.bf16.mxu0 0
        %1546 = vmatpush1.bf16.xpose.msra.mxu0 %v1534
        %1547 = vmatprep.subr.bf16.mxu0 0
        %1548 = vmatpush1.bf16.xpose.msra.mxu0 %v1537
        %1549 = vmatprep.subr.bf16.mxu0 0
        %1550 = vmatpush1.bf16.xpose.msra.mxu0 %v1540
        %1551 = vmatprep.subr.bf16.mxu0 0
        %1552 = vmatpush1.bf16.xpose.msra.mxu0 %v1543
        %1553 = vmatprep.subr.bf16.mxu0 0
        %1554 = vmatpush1.bf16.xpose.msra.mxu0 0
        %1555 = vmatprep.subr.bf16.mxu0 0
        %1556 = vmatpush1.bf16.xpose.msra.mxu0 0
        %1557 = vmatprep.subr.bf16.mxu0 0
        %1558 = vmatpush1.bf16.xpose.msra.mxu0 0
        %1559 = vmatprep.subr.bf16.mxu0 0
        %1560 = vmatpush1.bf16.xpose.msra.mxu0 0
        %1561 = vmatprep.subr.bf16.mxu0 0
        %1562 = vmatpush1.bf16.xpose.msra.mxu0 0
        %1563 = vmatprep.subr.bf16.mxu0 0
        %1564 = vmatpush1.bf16.xpose.msra.mxu0 0
        %1565 = vmatprep.subr.bf16.mxu0 0
        %1566 = vmatpush1.bf16.xpose.msra.mxu0 0
        %1567 = vmatprep.subr.bf16.mxu0 0
        %1568 = vmatpush1.bf16.xpose.msra.mxu0 0
        %1569 = vmatprep.subr.bf16.mxu0 0
        %1570 = vmatpush1.bf16.xpose.msra.mxu0 0
        %1571 = vmatprep.subr.bf16.mxu0 0
        %1572 = vmatpush1.bf16.xpose.msra.mxu0 0
        %1573 = vmatprep.subr.bf16.mxu0 0
        %1574 = vmatpush1.bf16.xpose.msra.mxu0 0
        %1575 = vmatprep.subr.bf16.mxu0 0
        %1576 = vmatpush1.bf16.xpose.msra.mxu0 0
        %1577 = vmatprep.mubr.bf16.mxu0 0
        %1578 = vmatmul.mubr.bf16.gmra.mrb[0].mxu0 %v1522
        %v1579 = vpop.f32.mrb[0].mxu0
        %v1580 = vadd.f32 0.0, %v1579
        %v1581 = vpop.f32.mrb[0].mxu0
        %v1582 = vpop.f32.mrb[0].mxu0
        %v1583 = vadd.f32 0.0, %v1582
        %v1584 = vpop.f32.mrb[0].mxu0
        %1585 = vmatprep.mubr.bf16.mxu0 0
        %1586 = vmatmul.mubr.bf16.gmra.mrb[0].mxu0 %v1525
        %v1587 = vpop.f32.mrb[0].mxu0
        %v1588 = vadd.f32 0.0, %v1587
        %v1589 = vpop.f32.mrb[0].mxu0
        %v1590 = vpop.f32.mrb[0].mxu0
        %v1591 = vadd.f32 0.0, %v1590
        %v1592 = vpop.f32.mrb[0].mxu0
        %1593 = vmatprep.mubr.bf16.mxu0 0
        %1594 = vmatmul.mubr.bf16.gmra.mrb[0].mxu0 %v1528
        %v1595 = vpop.f32.mrb[0].mxu0
        %v1596 = vadd.f32 0.0, %v1595
        %v1597 = vpop.f32.mrb[0].mxu0
        %v1598 = vpop.f32.mrb[0].mxu0
        %v1599 = vadd.f32 0.0, %v1598
        %v1600 = vpop.f32.mrb[0].mxu0
        %1601 = vmatprep.mubr.bf16.mxu0 0
        %1602 = vmatmul.mubr.bf16.gmra.mrb[0].mxu0 %v1531
        %v1603 = vpop.f32.mrb[0].mxu0
        %v1604 = vadd.f32 0.0, %v1603
        %v1605 = vpop.f32.mrb[0].mxu0
        %v1606 = vpop.f32.mrb[0].mxu0
        %v1607 = vadd.f32 0.0, %v1606
        %v1608 = vpop.f32.mrb[0].mxu0
        %1609 = vdwg.mxu0
        %v1611 = vsel %vm1520, %v1421, 0
        %v1614 = vsel %vm1520, %v1423, 0
        %v1617 = vsel %vm1520, %v1425, 0
        %v1620 = vsel %vm1520, %v1427, 0
        %v1623 = vsel %vm1520, %v1453, 0
        %v1626 = vsel %vm1520, %v1455, 0
        %v1629 = vsel %vm1520, %v1457, 0
        %v1632 = vsel %vm1520, %v1459, 0
        %1634 = vmatprep.subr.bf16.mxu0 0
        %1635 = vmatpush1.bf16.xpose.msra.mxu0 %v1623
        %1636 = vmatprep.subr.bf16.mxu0 0
        %1637 = vmatpush1.bf16.xpose.msra.mxu0 %v1626
        %1638 = vmatprep.subr.bf16.mxu0 0
        %1639 = vmatpush1.bf16.xpose.msra.mxu0 %v1629
        %1640 = vmatprep.subr.bf16.mxu0 0
        %1641 = vmatpush1.bf16.xpose.msra.mxu0 %v1632
        %1642 = vmatprep.subr.bf16.mxu0 0
        %1643 = vmatpush1.bf16.xpose.msra.mxu0 0
        %1644 = vmatprep.subr.bf16.mxu0 0
        %1645 = vmatpush1.bf16.xpose.msra.mxu0 0
        %1646 = vmatprep.subr.bf16.mxu0 0
        %1647 = vmatpush1.bf16.xpose.msra.mxu0 0
        %1648 = vmatprep.subr.bf16.mxu0 0
        %1649 = vmatpush1.bf16.xpose.msra.mxu0 0
        %1650 = vmatprep.subr.bf16.mxu0 0
        %1651 = vmatpush1.bf16.xpose.msra.mxu0 0
        %1652 = vmatprep.subr.bf16.mxu0 0
        %1653 = vmatpush1.bf16.xpose.msra.mxu0 0
        %1654 = vmatprep.subr.bf16.mxu0 0
        %1655 = vmatpush1.bf16.xpose.msra.mxu0 0
        %1656 = vmatprep.subr.bf16.mxu0 0
        %1657 = vmatpush1.bf16.xpose.msra.mxu0 0
        %1658 = vmatprep.subr.bf16.mxu0 0
        %1659 = vmatpush1.bf16.xpose.msra.mxu0 0
        %1660 = vmatprep.subr.bf16.mxu0 0
        %1661 = vmatpush1.bf16.xpose.msra.mxu0 0
        %1662 = vmatprep.subr.bf16.mxu0 0
        %1663 = vmatpush1.bf16.xpose.msra.mxu0 0
        %1664 = vmatprep.subr.bf16.mxu0 0
        %1665 = vmatpush1.bf16.xpose.msra.mxu0 0
        %1666 = vmatprep.mubr.bf16.mxu0 0
        %1667 = vmatmul.mubr.bf16.gmra.mrb[0].mxu0 %v1611
        %v1668 = vpop.f32.mrb[0].mxu0
        %v1669 = vadd.f32 0.0, %v1668
        %v1670 = vpop.f32.mrb[0].mxu0
        %v1671 = vpop.f32.mrb[0].mxu0
        %v1672 = vadd.f32 0.0, %v1671
        %v1673 = vpop.f32.mrb[0].mxu0
        %1674 = vmatprep.mubr.bf16.mxu0 0
        %1675 = vmatmul.mubr.bf16.gmra.mrb[0].mxu0 %v1614
        %v1676 = vpop.f32.mrb[0].mxu0
        %v1677 = vadd.f32 0.0, %v1676
        %v1678 = vpop.f32.mrb[0].mxu0
        %v1679 = vpop.f32.mrb[0].mxu0
        %v1680 = vadd.f32 0.0, %v1679
        %v1681 = vpop.f32.mrb[0].mxu0
        %1682 = vmatprep.mubr.bf16.mxu0 0
        %1683 = vmatmul.mubr.bf16.gmra.mrb[0].mxu0 %v1617
        %v1684 = vpop.f32.mrb[0].mxu0
        %v1685 = vadd.f32 0.0, %v1684
        %v1686 = vpop.f32.mrb[0].mxu0
        %v1687 = vpop.f32.mrb[0].mxu0
        %v1688 = vadd.f32 0.0, %v1687
        %v1689 = vpop.f32.mrb[0].mxu0
        %1690 = vmatprep.mubr.bf16.mxu0 0
        %1691 = vmatmul.mubr.bf16.gmra.mrb[0].mxu0 %v1620
        %v1692 = vpop.f32.mrb[0].mxu0
        %v1693 = vadd.f32 0.0, %v1692
        %v1694 = vpop.f32.mrb[0].mxu0
        %v1695 = vpop.f32.mrb[0].mxu0
        %v1696 = vadd.f32 0.0, %v1695
        %v1697 = vpop.f32.mrb[0].mxu0
        %1698 = vdwg.mxu0
        %v1700 = vsel %vm1520, %v1429, 0
        %v1703 = vsel %vm1520, %v1431, 0
        %v1706 = vsel %vm1520, %v1433, 0
        %v1709 = vsel %vm1520, %v1435, 0
        %v1712 = vsel %vm1520, %v1461, 0
        %v1715 = vsel %vm1520, %v1463, 0
        %v1718 = vsel %vm1520, %v1465, 0
        %v1721 = vsel %vm1520, %v1467, 0
        %1723 = vmatprep.subr.bf16.mxu0 0
        %1724 = vmatpush1.bf16.xpose.msra.mxu0 %v1712
        %1725 = vmatprep.subr.bf16.mxu0 0
        %1726 = vmatpush1.bf16.xpose.msra.mxu0 %v1715
        %1727 = vmatprep.subr.bf16.mxu0 0
        %1728 = vmatpush1.bf16.xpose.msra.mxu0 %v1718
        %1729 = vmatprep.subr.bf16.mxu0 0
        %1730 = vmatpush1.bf16.xpose.msra.mxu0 %v1721
        %1731 = vmatprep.subr.bf16.mxu0 0
        %1732 = vmatpush1.bf16.xpose.msra.mxu0 0
        %1733 = vmatprep.subr.bf16.mxu0 0
        %1734 = vmatpush1.bf16.xpose.msra.mxu0 0
        %1735 = vmatprep.subr.bf16.mxu0 0
        %1736 = vmatpush1.bf16.xpose.msra.mxu0 0
        %1737 = vmatprep.subr.bf16.mxu0 0
        %1738 = vmatpush1.bf16.xpose.msra.mxu0 0
        %1739 = vmatprep.subr.bf16.mxu0 0
        %1740 = vmatpush1.bf16.xpose.msra.mxu0 0
        %1741 = vmatprep.subr.bf16.mxu0 0
        %1742 = vmatpush1.bf16.xpose.msra.mxu0 0
        %1743 = vmatprep.subr.bf16.mxu0 0
        %1744 = vmatpush1.bf16.xpose.msra.mxu0 0
        %1745 = vmatprep.subr.bf16.mxu0 0
        %1746 = vmatpush1.bf16.xpose.msra.mxu0 0
        %1747 = vmatprep.subr.bf16.mxu0 0
        %1748 = vmatpush1.bf16.xpose.msra.mxu0 0
        %1749 = vmatprep.subr.bf16.mxu0 0
        %1750 = vmatpush1.bf16.xpose.msra.mxu0 0
        %1751 = vmatprep.subr.bf16.mxu0 0
        %1752 = vmatpush1.bf16.xpose.msra.mxu0 0
        %1753 = vmatprep.subr.bf16.mxu0 0
        %1754 = vmatpush1.bf16.xpose.msra.mxu0 0
        %1755 = vmatprep.mubr.bf16.mxu0 0
        %1756 = vmatmul.mubr.bf16.gmra.mrb[0].mxu0 %v1700
        %v1757 = vpop.f32.mrb[0].mxu0
        %v1758 = vadd.f32 0.0, %v1757
        %v1759 = vpop.f32.mrb[0].mxu0
        %v1760 = vpop.f32.mrb[0].mxu0
        %v1761 = vadd.f32 0.0, %v1760
        %v1762 = vpop.f32.mrb[0].mxu0
        %1763 = vmatprep.mubr.bf16.mxu0 0
        %1764 = vmatmul.mubr.bf16.gmra.mrb[0].mxu0 %v1703
        %v1765 = vpop.f32.mrb[0].mxu0
        %v1766 = vadd.f32 0.0, %v1765
        %v1767 = vpop.f32.mrb[0].mxu0
        %v1768 = vpop.f32.mrb[0].mxu0
        %v1769 = vadd.f32 0.0, %v1768
        %v1770 = vpop.f32.mrb[0].mxu0
        %1771 = vmatprep.mubr.bf16.mxu0 0
        %1772 = vmatmul.mubr.bf16.gmra.mrb[0].mxu0 %v1706
        %v1773 = vpop.f32.mrb[0].mxu0
        %v1774 = vadd.f32 0.0, %v1773
        %v1775 = vpop.f32.mrb[0].mxu0
        %v1776 = vpop.f32.mrb[0].mxu0
        %v1777 = vadd.f32 0.0, %v1776
        %v1778 = vpop.f32.mrb[0].mxu0
        %1779 = vmatprep.mubr.bf16.mxu0 0
        %1780 = vmatmul.mubr.bf16.gmra.mrb[0].mxu0 %v1709
        %v1781 = vpop.f32.mrb[0].mxu0
        %v1782 = vadd.f32 0.0, %v1781
        %v1783 = vpop.f32.mrb[0].mxu0
        %v1784 = vpop.f32.mrb[0].mxu0
        %v1785 = vadd.f32 0.0, %v1784
        %v1786 = vpop.f32.mrb[0].mxu0
        %1787 = vdwg.mxu0
        %v1789 = vsel %vm1520, %v1437, 0
        %v1792 = vsel %vm1520, %v1439, 0
        %v1795 = vsel %vm1520, %v1441, 0
        %v1798 = vsel %vm1520, %v1443, 0
        %v1801 = vsel %vm1520, %v1469, 0
        %v1804 = vsel %vm1520, %v1471, 0
        %v1807 = vsel %vm1520, %v1473, 0
        %v1810 = vsel %vm1520, %v1475, 0
        %1812 = vmatprep.subr.bf16.mxu0 0
        %1813 = vmatpush1.bf16.xpose.msra.mxu0 %v1801
        %1814 = vmatprep.subr.bf16.mxu0 0
        %1815 = vmatpush1.bf16.xpose.msra.mxu0 %v1804
        %1816 = vmatprep.subr.bf16.mxu0 0
        %1817 = vmatpush1.bf16.xpose.msra.mxu0 %v1807
        %1818 = vmatprep.subr.bf16.mxu0 0
        %1819 = vmatpush1.bf16.xpose.msra.mxu0 %v1810
        %1820 = vmatprep.subr.bf16.mxu0 0
        %1821 = vmatpush1.bf16.xpose.msra.mxu0 0
        %1822 = vmatprep.subr.bf16.mxu0 0
        %1823 = vmatpush1.bf16.xpose.msra.mxu0 0
        %1824 = vmatprep.subr.bf16.mxu0 0
        %1825 = vmatpush1.bf16.xpose.msra.mxu0 0
        %1826 = vmatprep.subr.bf16.mxu0 0
        %1827 = vmatpush1.bf16.xpose.msra.mxu0 0
        %1828 = vmatprep.subr.bf16.mxu0 0
        %1829 = vmatpush1.bf16.xpose.msra.mxu0 0
        %1830 = vmatprep.subr.bf16.mxu0 0
        %1831 = vmatpush1.bf16.xpose.msra.mxu0 0
        %1832 = vmatprep.subr.bf16.mxu0 0
        %1833 = vmatpush1.bf16.xpose.msra.mxu0 0
        %1834 = vmatprep.subr.bf16.mxu0 0
        %1835 = vmatpush1.bf16.xpose.msra.mxu0 0
        %1836 = vmatprep.subr.bf16.mxu0 0
        %1837 = vmatpush1.bf16.xpose.msra.mxu0 0
        %1838 = vmatprep.subr.bf16.mxu0 0
        %1839 = vmatpush1.bf16.xpose.msra.mxu0 0
        %1840 = vmatprep.subr.bf16.mxu0 0
        %1841 = vmatpush1.bf16.xpose.msra.mxu0 0
        %1842 = vmatprep.subr.bf16.mxu0 0
        %1843 = vmatpush1.bf16.xpose.msra.mxu0 0
        %1844 = vmatprep.mubr.bf16.mxu0 0
        %1845 = vmatmul.mubr.bf16.gmra.mrb[0].mxu0 %v1789
        %v1846 = vpop.f32.mrb[0].mxu0
        %v1847 = vadd.f32 0.0, %v1846
        %v1848 = vpop.f32.mrb[0].mxu0
        %v1849 = vpop.f32.mrb[0].mxu0
        %v1850 = vadd.f32 0.0, %v1849
        %v1851 = vpop.f32.mrb[0].mxu0
        %1852 = vmatprep.mubr.bf16.mxu0 0
        %1853 = vmatmul.mubr.bf16.gmra.mrb[0].mxu0 %v1792
        %v1854 = vpop.f32.mrb[0].mxu0
        %v1855 = vadd.f32 0.0, %v1854
        %v1856 = vpop.f32.mrb[0].mxu0
        %v1857 = vpop.f32.mrb[0].mxu0
        %v1858 = vadd.f32 0.0, %v1857
        %v1859 = vpop.f32.mrb[0].mxu0
        %1860 = vmatprep.mubr.bf16.mxu0 0
        %1861 = vmatmul.mubr.bf16.gmra.mrb[0].mxu0 %v1795
        %v1862 = vpop.f32.mrb[0].mxu0
        %v1863 = vadd.f32 0.0, %v1862
        %v1864 = vpop.f32.mrb[0].mxu0
        %v1865 = vpop.f32.mrb[0].mxu0
        %v1866 = vadd.f32 0.0, %v1865
        %v1867 = vpop.f32.mrb[0].mxu0
        %1868 = vmatprep.mubr.bf16.mxu0 0
        %1869 = vmatmul.mubr.bf16.gmra.mrb[0].mxu0 %v1798
        %v1870 = vpop.f32.mrb[0].mxu0
        %v1871 = vadd.f32 0.0, %v1870
        %v1872 = vpop.f32.mrb[0].mxu0
        %v1873 = vpop.f32.mrb[0].mxu0
        %v1874 = vadd.f32 0.0, %v1873
        %v1875 = vpop.f32.mrb[0].mxu0
        %1876 = vdwg.mxu0
        %vm1877 = vcmask 523264
        %v1878 = vsel %vm1877, %v1580, -inf
        %1879 = vmax.xlane.f32.xlu0 %v1878
        %v1880 = vpop.xlane.xlu0 %1879
        %v1881 = vsel %vm1877, %v1583, -inf
        %1882 = vmax.xlane.f32.xlu0 %v1881
        %v1883 = vpop.xlane.xlu0 %1882
        %v1884 = vsel %vm1877, %v1588, -inf
        %1885 = vmax.xlane.f32.xlu0 %v1884
        %v1886 = vpop.xlane.xlu0 %1885
        %v1887 = vsel %vm1877, %v1591, -inf
        %1888 = vmax.xlane.f32.xlu0 %v1887
        %v1889 = vpop.xlane.xlu0 %1888
        %v1890 = vsel %vm1877, %v1596, -inf
        %1891 = vmax.xlane.f32.xlu0 %v1890
        %v1892 = vpop.xlane.xlu0 %1891
        %v1893 = vsel %vm1877, %v1599, -inf
        %1894 = vmax.xlane.f32.xlu0 %v1893
        %v1895 = vpop.xlane.xlu0 %1894
        %v1896 = vsel %vm1877, %v1604, -inf
        %1897 = vmax.xlane.f32.xlu0 %v1896
        %v1898 = vpop.xlane.xlu0 %1897
        %v1899 = vsel %vm1877, %v1607, -inf
        %1900 = vmax.xlane.f32.xlu0 %v1899
        %v1901 = vpop.xlane.xlu0 %1900
        %v1902 = vsel %vm1877, %v1669, -inf
        %1903 = vmax.xlane.f32.xlu0 %v1902
        %v1904 = vpop.xlane.xlu0 %1903
        %v1905 = vsel %vm1877, %v1672, -inf
        %1906 = vmax.xlane.f32.xlu0 %v1905
        %v1907 = vpop.xlane.xlu0 %1906
        %v1908 = vsel %vm1877, %v1677, -inf
        %1909 = vmax.xlane.f32.xlu0 %v1908
        %v1910 = vpop.xlane.xlu0 %1909
        %v1911 = vsel %vm1877, %v1680, -inf
        %1912 = vmax.xlane.f32.xlu0 %v1911
        %v1913 = vpop.xlane.xlu0 %1912
        %v1914 = vsel %vm1877, %v1685, -inf
        %1915 = vmax.xlane.f32.xlu0 %v1914
        %v1916 = vpop.xlane.xlu0 %1915
        %v1917 = vsel %vm1877, %v1688, -inf
        %1918 = vmax.xlane.f32.xlu0 %v1917
        %v1919 = vpop.xlane.xlu0 %1918
        %v1920 = vsel %vm1877, %v1693, -inf
        %1921 = vmax.xlane.f32.xlu0 %v1920
        %v1922 = vpop.xlane.xlu0 %1921
        %v1923 = vsel %vm1877, %v1696, -inf
        %1924 = vmax.xlane.f32.xlu0 %v1923
        %v1925 = vpop.xlane.xlu0 %1924
        %v1926 = vsel %vm1877, %v1758, -inf
        %1927 = vmax.xlane.f32.xlu0 %v1926
        %v1928 = vpop.xlane.xlu0 %1927
        %v1929 = vsel %vm1877, %v1761, -inf
        %1930 = vmax.xlane.f32.xlu0 %v1929
        %v1931 = vpop.xlane.xlu0 %1930
        %v1932 = vsel %vm1877, %v1766, -inf
        %1933 = vmax.xlane.f32.xlu0 %v1932
        %v1934 = vpop.xlane.xlu0 %1933
        %v1935 = vsel %vm1877, %v1769, -inf
        %1936 = vmax.xlane.f32.xlu0 %v1935
        %v1937 = vpop.xlane.xlu0 %1936
        %v1938 = vsel %vm1877, %v1774, -inf
        %1939 = vmax.xlane.f32.xlu0 %v1938
        %v1940 = vpop.xlane.xlu0 %1939
        %v1941 = vsel %vm1877, %v1777, -inf
        %1942 = vmax.xlane.f32.xlu0 %v1941
        %v1943 = vpop.xlane.xlu0 %1942
        %v1944 = vsel %vm1877, %v1782, -inf
        %1945 = vmax.xlane.f32.xlu0 %v1944
        %v1946 = vpop.xlane.xlu0 %1945
        %v1947 = vsel %vm1877, %v1785, -inf
        %1948 = vmax.xlane.f32.xlu0 %v1947
        %v1949 = vpop.xlane.xlu0 %1948
        %v1950 = vsel %vm1877, %v1847, -inf
        %1951 = vmax.xlane.f32.xlu0 %v1950
        %v1952 = vpop.xlane.xlu0 %1951
        %v1953 = vsel %vm1877, %v1850, -inf
        %1954 = vmax.xlane.f32.xlu0 %v1953
        %v1955 = vpop.xlane.xlu0 %1954
        %v1956 = vsel %vm1877, %v1855, -inf
        %1957 = vmax.xlane.f32.xlu0 %v1956
        %v1958 = vpop.xlane.xlu0 %1957
        %v1959 = vsel %vm1877, %v1858, -inf
        %1960 = vmax.xlane.f32.xlu0 %v1959
        %v1961 = vpop.xlane.xlu0 %1960
        %v1962 = vsel %vm1877, %v1863, -inf
        %1963 = vmax.xlane.f32.xlu0 %v1962
        %v1964 = vpop.xlane.xlu0 %1963
        %v1965 = vsel %vm1877, %v1866, -inf
        %1966 = vmax.xlane.f32.xlu0 %v1965
        %v1967 = vpop.xlane.xlu0 %1966
        %v1968 = vsel %vm1877, %v1871, -inf
        %1969 = vmax.xlane.f32.xlu0 %v1968
        %v1970 = vpop.xlane.xlu0 %1969
        %v1971 = vsel %vm1877, %v1874, -inf
        %1972 = vmax.xlane.f32.xlu0 %v1971
        %v1973 = vpop.xlane.xlu0 %1972
        %v1974 = vsub.f32 %v1580, %v1880
        %v1975 = vsub.f32 %v1583, %v1883
        %v1976 = vsub.f32 %v1588, %v1886
        %v1977 = vsub.f32 %v1591, %v1889
        %v1978 = vsub.f32 %v1596, %v1892
        %v1979 = vsub.f32 %v1599, %v1895
        %v1980 = vsub.f32 %v1604, %v1898
        %v1981 = vsub.f32 %v1607, %v1901
        %v1982 = vsub.f32 %v1669, %v1904
        %v1983 = vsub.f32 %v1672, %v1907
        %v1984 = vsub.f32 %v1677, %v1910
        %v1985 = vsub.f32 %v1680, %v1913
        %v1986 = vsub.f32 %v1685, %v1916
        %v1987 = vsub.f32 %v1688, %v1919
        %v1988 = vsub.f32 %v1693, %v1922
        %v1989 = vsub.f32 %v1696, %v1925
        %v1990 = vsub.f32 %v1758, %v1928
        %v1991 = vsub.f32 %v1761, %v1931
        %v1992 = vsub.f32 %v1766, %v1934
        %v1993 = vsub.f32 %v1769, %v1937
        %v1994 = vsub.f32 %v1774, %v1940
        %v1995 = vsub.f32 %v1777, %v1943
        %v1996 = vsub.f32 %v1782, %v1946
        %v1997 = vsub.f32 %v1785, %v1949
        %v1998 = vsub.f32 %v1847, %v1952
        %v1999 = vsub.f32 %v1850, %v1955
        %v2000 = vsub.f32 %v1855, %v1958
        %v2001 = vsub.f32 %v1858, %v1961
        %v2002 = vsub.f32 %v1863, %v1964
        %v2003 = vsub.f32 %v1866, %v1967
        %v2004 = vsub.f32 %v1871, %v1970
        %v2005 = vsub.f32 %v1874, %v1973
        %v2006 = vmul.f32 %v1974, 1.442695
        %v2007 = vpow.pop %v2006
        %v2008 = vmul.f32 %v1975, 1.442695
        %v2009 = vpow.pop %v2008
        %v2010 = vmul.f32 %v1976, 1.442695
        %v2011 = vpow.pop %v2010
        %v2012 = vmul.f32 %v1977, 1.442695
        %v2013 = vpow.pop %v2012
        %v2014 = vmul.f32 %v1978, 1.442695
        %v2015 = vpow.pop %v2014
        %v2016 = vmul.f32 %v1979, 1.442695
        %v2017 = vpow.pop %v2016
        %v2018 = vmul.f32 %v1980, 1.442695
        %v2019 = vpow.pop %v2018
        %v2020 = vmul.f32 %v1981, 1.442695
        %v2021 = vpow.pop %v2020
        %v2022 = vmul.f32 %v1982, 1.442695
        %v2023 = vpow.pop %v2022
        %v2024 = vmul.f32 %v1983, 1.442695
        %v2025 = vpow.pop %v2024
        %v2026 = vmul.f32 %v1984, 1.442695
        %v2027 = vpow.pop %v2026
        %v2028 = vmul.f32 %v1985, 1.442695
        %v2029 = vpow.pop %v2028
        %v2030 = vmul.f32 %v1986, 1.442695
        %v2031 = vpow.pop %v2030
        %v2032 = vmul.f32 %v1987, 1.442695
        %v2033 = vpow.pop %v2032
        %v2034 = vmul.f32 %v1988, 1.442695
        %v2035 = vpow.pop %v2034
        %v2036 = vmul.f32 %v1989, 1.442695
        %v2037 = vpow.pop %v2036
        %v2038 = vmul.f32 %v1990, 1.442695
        %v2039 = vpow.pop %v2038
        %v2040 = vmul.f32 %v1991, 1.442695
        %v2041 = vpow.pop %v2040
        %v2042 = vmul.f32 %v1992, 1.442695
        %v2043 = vpow.pop %v2042
        %v2044 = vmul.f32 %v1993, 1.442695
        %v2045 = vpow.pop %v2044
        %v2046 = vmul.f32 %v1994, 1.442695
        %v2047 = vpow.pop %v2046
        %v2048 = vmul.f32 %v1995, 1.442695
        %v2049 = vpow.pop %v2048
        %v2050 = vmul.f32 %v1996, 1.442695
        %v2051 = vpow.pop %v2050
        %v2052 = vmul.f32 %v1997, 1.442695
        %v2053 = vpow.pop %v2052
        %v2054 = vmul.f32 %v1998, 1.442695
        %v2055 = vpow.pop %v2054
        %v2056 = vmul.f32 %v1999, 1.442695
        %v2057 = vpow.pop %v2056
        %v2058 = vmul.f32 %v2000, 1.442695
        %v2059 = vpow.pop %v2058
        %v2060 = vmul.f32 %v2001, 1.442695
        %v2061 = vpow.pop %v2060
        %v2062 = vmul.f32 %v2002, 1.442695
        %v2063 = vpow.pop %v2062
        %v2064 = vmul.f32 %v2003, 1.442695
        %v2065 = vpow.pop %v2064
        %v2066 = vmul.f32 %v2004, 1.442695
        %v2067 = vpow.pop %v2066
        %v2068 = vmul.f32 %v2005, 1.442695
        %v2069 = vpow.pop %v2068
        %v2070 = vsel %vm1877, %v2007, 0.0
        %2071 = vadd.xlane.f32.xlu0 %v2070
        %v2072 = vpop.xlane.xlu0 %2071
        %v2073 = vsel %vm1877, %v2009, 0.0
        %2074 = vadd.xlane.f32.xlu0 %v2073
        %v2075 = vpop.xlane.xlu0 %2074
        %v2076 = vsel %vm1877, %v2011, 0.0
        %2077 = vadd.xlane.f32.xlu0 %v2076
        %v2078 = vpop.xlane.xlu0 %2077
        %v2079 = vsel %vm1877, %v2013, 0.0
        %2080 = vadd.xlane.f32.xlu0 %v2079
        %v2081 = vpop.xlane.xlu0 %2080
        %v2082 = vsel %vm1877, %v2015, 0.0
        %2083 = vadd.xlane.f32.xlu0 %v2082
        %v2084 = vpop.xlane.xlu0 %2083
        %v2085 = vsel %vm1877, %v2017, 0.0
        %2086 = vadd.xlane.f32.xlu0 %v2085
        %v2087 = vpop.xlane.xlu0 %2086
        %v2088 = vsel %vm1877, %v2019, 0.0
        %2089 = vadd.xlane.f32.xlu0 %v2088
        %v2090 = vpop.xlane.xlu0 %2089
        %v2091 = vsel %vm1877, %v2021, 0.0
        %2092 = vadd.xlane.f32.xlu0 %v2091
        %v2093 = vpop.xlane.xlu0 %2092
        %v2094 = vsel %vm1877, %v2023, 0.0
        %2095 = vadd.xlane.f32.xlu0 %v2094
        %v2096 = vpop.xlane.xlu0 %2095
        %v2097 = vsel %vm1877, %v2025, 0.0
        %2098 = vadd.xlane.f32.xlu0 %v2097
        %v2099 = vpop.xlane.xlu0 %2098
        %v2100 = vsel %vm1877, %v2027, 0.0
        %2101 = vadd.xlane.f32.xlu0 %v2100
        %v2102 = vpop.xlane.xlu0 %2101
        %v2103 = vsel %vm1877, %v2029, 0.0
        %2104 = vadd.xlane.f32.xlu0 %v2103
        %v2105 = vpop.xlane.xlu0 %2104
        %v2106 = vsel %vm1877, %v2031, 0.0
        %2107 = vadd.xlane.f32.xlu0 %v2106
        %v2108 = vpop.xlane.xlu0 %2107
        %v2109 = vsel %vm1877, %v2033, 0.0
        %2110 = vadd.xlane.f32.xlu0 %v2109
        %v2111 = vpop.xlane.xlu0 %2110
        %v2112 = vsel %vm1877, %v2035, 0.0
        %2113 = vadd.xlane.f32.xlu0 %v2112
        %v2114 = vpop.xlane.xlu0 %2113
        %v2115 = vsel %vm1877, %v2037, 0.0
        %2116 = vadd.xlane.f32.xlu0 %v2115
        %v2117 = vpop.xlane.xlu0 %2116
        %v2118 = vsel %vm1877, %v2039, 0.0
        %2119 = vadd.xlane.f32.xlu0 %v2118
        %v2120 = vpop.xlane.xlu0 %2119
        %v2121 = vsel %vm1877, %v2041, 0.0
        %2122 = vadd.xlane.f32.xlu0 %v2121
        %v2123 = vpop.xlane.xlu0 %2122
        %v2124 = vsel %vm1877, %v2043, 0.0
        %2125 = vadd.xlane.f32.xlu0 %v2124
        %v2126 = vpop.xlane.xlu0 %2125
        %v2127 = vsel %vm1877, %v2045, 0.0
        %2128 = vadd.xlane.f32.xlu0 %v2127
        %v2129 = vpop.xlane.xlu0 %2128
        %v2130 = vsel %vm1877, %v2047, 0.0
        %2131 = vadd.xlane.f32.xlu0 %v2130
        %v2132 = vpop.xlane.xlu0 %2131
        %v2133 = vsel %vm1877, %v2049, 0.0
        %2134 = vadd.xlane.f32.xlu0 %v2133
        %v2135 = vpop.xlane.xlu0 %2134
        %v2136 = vsel %vm1877, %v2051, 0.0
        %2137 = vadd.xlane.f32.xlu0 %v2136
        %v2138 = vpop.xlane.xlu0 %2137
        %v2139 = vsel %vm1877, %v2053, 0.0
        %2140 = vadd.xlane.f32.xlu0 %v2139
        %v2141 = vpop.xlane.xlu0 %2140
        %v2142 = vsel %vm1877, %v2055, 0.0
        %2143 = vadd.xlane.f32.xlu0 %v2142
        %v2144 = vpop.xlane.xlu0 %2143
        %v2145 = vsel %vm1877, %v2057, 0.0
        %2146 = vadd.xlane.f32.xlu0 %v2145
        %v2147 = vpop.xlane.xlu0 %2146
        %v2148 = vsel %vm1877, %v2059, 0.0
        %2149 = vadd.xlane.f32.xlu0 %v2148
        %v2150 = vpop.xlane.xlu0 %2149
        %v2151 = vsel %vm1877, %v2061, 0.0
        %2152 = vadd.xlane.f32.xlu0 %v2151
        %v2153 = vpop.xlane.xlu0 %2152
        %v2154 = vsel %vm1877, %v2063, 0.0
        %2155 = vadd.xlane.f32.xlu0 %v2154
        %v2156 = vpop.xlane.xlu0 %2155
        %v2157 = vsel %vm1877, %v2065, 0.0
        %2158 = vadd.xlane.f32.xlu0 %v2157
        %v2159 = vpop.xlane.xlu0 %2158
        %v2160 = vsel %vm1877, %v2067, 0.0
        %2161 = vadd.xlane.f32.xlu0 %v2160
        %v2162 = vpop.xlane.xlu0 %2161
        %v2163 = vsel %vm1877, %v2069, 0.0
        %2164 = vadd.xlane.f32.xlu0 %v2163
        %v2165 = vpop.xlane.xlu0 %2164
        %v2166 = vrcp.pop %v2072
        %v2167 = vrcp.pop %v2075
        %v2168 = vrcp.pop %v2078
        %v2169 = vrcp.pop %v2081
        %v2170 = vrcp.pop %v2084
        %v2171 = vrcp.pop %v2087
        %v2172 = vrcp.pop %v2090
        %v2173 = vrcp.pop %v2093
        %v2174 = vrcp.pop %v2096
        %v2175 = vrcp.pop %v2099
        %v2176 = vrcp.pop %v2102
        %v2177 = vrcp.pop %v2105
        %v2178 = vrcp.pop %v2108
        %v2179 = vrcp.pop %v2111
        %v2180 = vrcp.pop %v2114
        %v2181 = vrcp.pop %v2117
        %v2182 = vrcp.pop %v2120
        %v2183 = vrcp.pop %v2123
        %v2184 = vrcp.pop %v2126
        %v2185 = vrcp.pop %v2129
        %v2186 = vrcp.pop %v2132
        %v2187 = vrcp.pop %v2135
        %v2188 = vrcp.pop %v2138
        %v2189 = vrcp.pop %v2141
        %v2190 = vrcp.pop %v2144
        %v2191 = vrcp.pop %v2147
        %v2192 = vrcp.pop %v2150
        %v2193 = vrcp.pop %v2153
        %v2194 = vrcp.pop %v2156
        %v2195 = vrcp.pop %v2159
        %v2196 = vrcp.pop %v2162
        %v2197 = vrcp.pop %v2165
        %v2198 = vmul.f32 %v2007, %v2166
        %v2199 = vmul.f32 %v2009, %v2167
        %v2200 = vmul.f32 %v2011, %v2168
        %v2201 = vmul.f32 %v2013, %v2169
        %v2202 = vmul.f32 %v2015, %v2170
        %v2203 = vmul.f32 %v2017, %v2171
        %v2204 = vmul.f32 %v2019, %v2172
        %v2205 = vmul.f32 %v2021, %v2173
        %v2206 = vmul.f32 %v2023, %v2174
        %v2207 = vmul.f32 %v2025, %v2175
        %v2208 = vmul.f32 %v2027, %v2176
        %v2209 = vmul.f32 %v2029, %v2177
        %v2210 = vmul.f32 %v2031, %v2178
        %v2211 = vmul.f32 %v2033, %v2179
        %v2212 = vmul.f32 %v2035, %v2180
        %v2213 = vmul.f32 %v2037, %v2181
        %v2214 = vmul.f32 %v2039, %v2182
        %v2215 = vmul.f32 %v2041, %v2183
        %v2216 = vmul.f32 %v2043, %v2184
        %v2217 = vmul.f32 %v2045, %v2185
        %v2218 = vmul.f32 %v2047, %v2186
        %v2219 = vmul.f32 %v2049, %v2187
        %v2220 = vmul.f32 %v2051, %v2188
        %v2221 = vmul.f32 %v2053, %v2189
        %v2222 = vmul.f32 %v2055, %v2190
        %v2223 = vmul.f32 %v2057, %v2191
        %v2224 = vmul.f32 %v2059, %v2192
        %v2225 = vmul.f32 %v2061, %v2193
        %v2226 = vmul.f32 %v2063, %v2194
        %v2227 = vmul.f32 %v2065, %v2195
        %v2228 = vmul.f32 %v2067, %v2196
        %v2229 = vmul.f32 %v2069, %v2197
        %v2230 = vpack.c.bf16 %v2199, %v2198
        %v2231 = vpack.c.bf16 %v2201, %v2200
        %v2232 = vpack.c.bf16 %v2203, %v2202
        %v2233 = vpack.c.bf16 %v2205, %v2204
        %v2234 = vpack.c.bf16 %v2207, %v2206
        %v2235 = vpack.c.bf16 %v2209, %v2208
        %v2236 = vpack.c.bf16 %v2211, %v2210
        %v2237 = vpack.c.bf16 %v2213, %v2212
        %v2238 = vpack.c.bf16 %v2215, %v2214
        %v2239 = vpack.c.bf16 %v2217, %v2216
        %v2240 = vpack.c.bf16 %v2219, %v2218
        %v2241 = vpack.c.bf16 %v2221, %v2220
        %v2242 = vpack.c.bf16 %v2223, %v2222
        %v2243 = vpack.c.bf16 %v2225, %v2224
        %v2244 = vpack.c.bf16 %v2227, %v2226
        %v2245 = vpack.c.bf16 %v2229, %v2228
        %v2247 = vsel %vm1877, %v2230, 0
        %v2250 = vsel %vm1877, %v2231, 0
        %v2253 = vsel %vm1877, %v2232, 0
        %v2256 = vsel %vm1877, %v2233, 0
        %2258 = vmatprep.subr.bf16.mxu0 0
        %2259 = vmatpush1.bf16.msra.mxu0 %v1476
        %2260 = vmatprep.subr.bf16.mxu0 0
        %2261 = vmatpush1.bf16.msra.mxu0 %v1477
        %2262 = vmatprep.subr.bf16.mxu0 0
        %2263 = vmatpush1.bf16.msra.mxu0 %v1478
        %2264 = vmatprep.subr.bf16.mxu0 0
        %2265 = vmatpush1.bf16.msra.mxu0 %v1479
        %2266 = vmatprep.subr.bf16.mxu0 0
        %2267 = vmatpush1.bf16.msra.mxu0 0
        %2268 = vmatprep.subr.bf16.mxu0 0
        %2269 = vmatpush1.bf16.msra.mxu0 0
        %2270 = vmatprep.subr.bf16.mxu0 0
        %2271 = vmatpush1.bf16.msra.mxu0 0
        %2272 = vmatprep.subr.bf16.mxu0 0
        %2273 = vmatpush1.bf16.msra.mxu0 0
        %2274 = vmatprep.subr.bf16.mxu0 0
        %2275 = vmatpush1.bf16.msra.mxu0 0
        %2276 = vmatprep.subr.bf16.mxu0 0
        %2277 = vmatpush1.bf16.msra.mxu0 0
        %2278 = vmatprep.subr.bf16.mxu0 0
        %2279 = vmatpush1.bf16.msra.mxu0 0
        %2280 = vmatprep.subr.bf16.mxu0 0
        %2281 = vmatpush1.bf16.msra.mxu0 0
        %2282 = vmatprep.subr.bf16.mxu0 0
        %2283 = vmatpush1.bf16.msra.mxu0 0
        %2284 = vmatprep.subr.bf16.mxu0 0
        %2285 = vmatpush1.bf16.msra.mxu0 0
        %2286 = vmatprep.subr.bf16.mxu0 0
        %2287 = vmatpush1.bf16.msra.mxu0 0
        %2288 = vmatprep.subr.bf16.mxu0 0
        %2289 = vmatpush1.bf16.msra.mxu0 0
        %2290 = vmatprep.mubr.bf16.mxu0 0
        %2291 = vmatmul.mubr.bf16.gmra.mrb[0].mxu0 %v2247
        %v2292 = vpop.f32.mrb[0].mxu0
        %v2293 = vadd.f32 0.0, %v2292
        %v2294 = vpop.f32.mrb[0].mxu0
        %v2295 = vpop.f32.mrb[0].mxu0
        %v2296 = vadd.f32 0.0, %v2295
        %v2297 = vpop.f32.mrb[0].mxu0
        %2298 = vmatprep.mubr.bf16.mxu0 0
        %2299 = vmatmul.mubr.bf16.gmra.mrb[0].mxu0 %v2250
        %v2300 = vpop.f32.mrb[0].mxu0
        %v2301 = vadd.f32 0.0, %v2300
        %v2302 = vpop.f32.mrb[0].mxu0
        %v2303 = vpop.f32.mrb[0].mxu0
        %v2304 = vadd.f32 0.0, %v2303
        %v2305 = vpop.f32.mrb[0].mxu0
        %2306 = vmatprep.mubr.bf16.mxu0 0
        %2307 = vmatmul.mubr.bf16.gmra.mrb[0].mxu0 %v2253
        %v2308 = vpop.f32.mrb[0].mxu0
        %v2309 = vadd.f32 0.0, %v2308
        %v2310 = vpop.f32.mrb[0].mxu0
        %v2311 = vpop.f32.mrb[0].mxu0
        %v2312 = vadd.f32 0.0, %v2311
        %v2313 = vpop.f32.mrb[0].mxu0
        %2314 = vmatprep.mubr.bf16.mxu0 0
        %2315 = vmatmul.mubr.bf16.gmra.mrb[0].mxu0 %v2256
        %v2316 = vpop.f32.mrb[0].mxu0
        %v2317 = vadd.f32 0.0, %v2316
        %v2318 = vpop.f32.mrb[0].mxu0
        %v2319 = vpop.f32.mrb[0].mxu0
        %v2320 = vadd.f32 0.0, %v2319
        %v2321 = vpop.f32.mrb[0].mxu0
        %2322 = vdwg.mxu0
        %v2324 = vsel %vm1877, %v2234, 0
        %v2327 = vsel %vm1877, %v2235, 0
        %v2330 = vsel %vm1877, %v2236, 0
        %v2333 = vsel %vm1877, %v2237, 0
        %2335 = vmatprep.subr.bf16.mxu0 0
        %2336 = vmatpush1.bf16.msra.mxu0 %v1485
        %2337 = vmatprep.subr.bf16.mxu0 0
        %2338 = vmatpush1.bf16.msra.mxu0 %v1487
        %2339 = vmatprep.subr.bf16.mxu0 0
        %2340 = vmatpush1.bf16.msra.mxu0 %v1489
        %2341 = vmatprep.subr.bf16.mxu0 0
        %2342 = vmatpush1.bf16.msra.mxu0 %v1491
        %2343 = vmatprep.subr.bf16.mxu0 0
        %2344 = vmatpush1.bf16.msra.mxu0 0
        %2345 = vmatprep.subr.bf16.mxu0 0
        %2346 = vmatpush1.bf16.msra.mxu0 0
        %2347 = vmatprep.subr.bf16.mxu0 0
        %2348 = vmatpush1.bf16.msra.mxu0 0
        %2349 = vmatprep.subr.bf16.mxu0 0
        %2350 = vmatpush1.bf16.msra.mxu0 0
        %2351 = vmatprep.subr.bf16.mxu0 0
        %2352 = vmatpush1.bf16.msra.mxu0 0
        %2353 = vmatprep.subr.bf16.mxu0 0
        %2354 = vmatpush1.bf16.msra.mxu0 0
        %2355 = vmatprep.subr.bf16.mxu0 0
        %2356 = vmatpush1.bf16.msra.mxu0 0
        %2357 = vmatprep.subr.bf16.mxu0 0
        %2358 = vmatpush1.bf16.msra.mxu0 0
        %2359 = vmatprep.subr.bf16.mxu0 0
        %2360 = vmatpush1.bf16.msra.mxu0 0
        %2361 = vmatprep.subr.bf16.mxu0 0
        %2362 = vmatpush1.bf16.msra.mxu0 0
        %2363 = vmatprep.subr.bf16.mxu0 0
        %2364 = vmatpush1.bf16.msra.mxu0 0
        %2365 = vmatprep.subr.bf16.mxu0 0
        %2366 = vmatpush1.bf16.msra.mxu0 0
        %2367 = vmatprep.mubr.bf16.mxu0 0
        %2368 = vmatmul.mubr.bf16.gmra.mrb[0].mxu0 %v2324
        %v2369 = vpop.f32.mrb[0].mxu0
        %v2370 = vadd.f32 0.0, %v2369
        %v2371 = vpop.f32.mrb[0].mxu0
        %v2372 = vpop.f32.mrb[0].mxu0
        %v2373 = vadd.f32 0.0, %v2372
        %v2374 = vpop.f32.mrb[0].mxu0
        %2375 = vmatprep.mubr.bf16.mxu0 0
        %2376 = vmatmul.mubr.bf16.gmra.mrb[0].mxu0 %v2327
        %v2377 = vpop.f32.mrb[0].mxu0
        %v2378 = vadd.f32 0.0, %v2377
        %v2379 = vpop.f32.mrb[0].mxu0
        %v2380 = vpop.f32.mrb[0].mxu0
        %v2381 = vadd.f32 0.0, %v2380
        %v2382 = vpop.f32.mrb[0].mxu0
        %2383 = vmatprep.mubr.bf16.mxu0 0
        %2384 = vmatmul.mubr.bf16.gmra.mrb[0].mxu0 %v2330
        %v2385 = vpop.f32.mrb[0].mxu0
        %v2386 = vadd.f32 0.0, %v2385
        %v2387 = vpop.f32.mrb[0].mxu0
        %v2388 = vpop.f32.mrb[0].mxu0
        %v2389 = vadd.f32 0.0, %v2388
        %v2390 = vpop.f32.mrb[0].mxu0
        %2391 = vmatprep.mubr.bf16.mxu0 0
        %2392 = vmatmul.mubr.bf16.gmra.mrb[0].mxu0 %v2333
        %v2393 = vpop.f32.mrb[0].mxu0
        %v2394 = vadd.f32 0.0, %v2393
        %v2395 = vpop.f32.mrb[0].mxu0
        %v2396 = vpop.f32.mrb[0].mxu0
        %v2397 = vadd.f32 0.0, %v2396
        %v2398 = vpop.f32.mrb[0].mxu0
        %2399 = vdwg.mxu0
        %v2401 = vsel %vm1877, %v2238, 0
        %v2404 = vsel %vm1877, %v2239, 0
        %v2407 = vsel %vm1877, %v2240, 0
        %v2410 = vsel %vm1877, %v2241, 0
        %2412 = vmatprep.subr.bf16.mxu0 0
        %2413 = vmatpush1.bf16.msra.mxu0 %v1497
        %2414 = vmatprep.subr.bf16.mxu0 0
        %2415 = vmatpush1.bf16.msra.mxu0 %v1499
        %2416 = vmatprep.subr.bf16.mxu0 0
        %2417 = vmatpush1.bf16.msra.mxu0 %v1501
        %2418 = vmatprep.subr.bf16.mxu0 0
        %2419 = vmatpush1.bf16.msra.mxu0 %v1503
        %2420 = vmatprep.subr.bf16.mxu0 0
        %2421 = vmatpush1.bf16.msra.mxu0 0
        %2422 = vmatprep.subr.bf16.mxu0 0
        %2423 = vmatpush1.bf16.msra.mxu0 0
        %2424 = vmatprep.subr.bf16.mxu0 0
        %2425 = vmatpush1.bf16.msra.mxu0 0
        %2426 = vmatprep.subr.bf16.mxu0 0
        %2427 = vmatpush1.bf16.msra.mxu0 0
        %2428 = vmatprep.subr.bf16.mxu0 0
        %2429 = vmatpush1.bf16.msra.mxu0 0
        %2430 = vmatprep.subr.bf16.mxu0 0
        %2431 = vmatpush1.bf16.msra.mxu0 0
        %2432 = vmatprep.subr.bf16.mxu0 0
        %2433 = vmatpush1.bf16.msra.mxu0 0
        %2434 = vmatprep.subr.bf16.mxu0 0
        %2435 = vmatpush1.bf16.msra.mxu0 0
        %2436 = vmatprep.subr.bf16.mxu0 0
        %2437 = vmatpush1.bf16.msra.mxu0 0
        %2438 = vmatprep.subr.bf16.mxu0 0
        %2439 = vmatpush1.bf16.msra.mxu0 0
        %2440 = vmatprep.subr.bf16.mxu0 0
        %2441 = vmatpush1.bf16.msra.mxu0 0
        %2442 = vmatprep.subr.bf16.mxu0 0
        %2443 = vmatpush1.bf16.msra.mxu0 0
        %2444 = vmatprep.mubr.bf16.mxu0 0
        %2445 = vmatmul.mubr.bf16.gmra.mrb[0].mxu0 %v2401
        %v2446 = vpop.f32.mrb[0].mxu0
        %v2447 = vadd.f32 0.0, %v2446
        %v2448 = vpop.f32.mrb[0].mxu0
        %v2449 = vpop.f32.mrb[0].mxu0
        %v2450 = vadd.f32 0.0, %v2449
        %v2451 = vpop.f32.mrb[0].mxu0
        %2452 = vmatprep.mubr.bf16.mxu0 0
        %2453 = vmatmul.mubr.bf16.gmra.mrb[0].mxu0 %v2404
        %v2454 = vpop.f32.mrb[0].mxu0
        %v2455 = vadd.f32 0.0, %v2454
        %v2456 = vpop.f32.mrb[0].mxu0
        %v2457 = vpop.f32.mrb[0].mxu0
        %v2458 = vadd.f32 0.0, %v2457
        %v2459 = vpop.f32.mrb[0].mxu0
        %2460 = vmatprep.mubr.bf16.mxu0 0
        %2461 = vmatmul.mubr.bf16.gmra.mrb[0].mxu0 %v2407
        %v2462 = vpop.f32.mrb[0].mxu0
        %v2463 = vadd.f32 0.0, %v2462
        %v2464 = vpop.f32.mrb[0].mxu0
        %v2465 = vpop.f32.mrb[0].mxu0
        %v2466 = vadd.f32 0.0, %v2465
        %v2467 = vpop.f32.mrb[0].mxu0
        %2468 = vmatprep.mubr.bf16.mxu0 0
        %2469 = vmatmul.mubr.bf16.gmra.mrb[0].mxu0 %v2410
        %v2470 = vpop.f32.mrb[0].mxu0
        %v2471 = vadd.f32 0.0, %v2470
        %v2472 = vpop.f32.mrb[0].mxu0
        %v2473 = vpop.f32.mrb[0].mxu0
        %v2474 = vadd.f32 0.0, %v2473
        %v2475 = vpop.f32.mrb[0].mxu0
        %2476 = vdwg.mxu0
        %v2478 = vsel %vm1877, %v2242, 0
        %v2481 = vsel %vm1877, %v2243, 0
        %v2484 = vsel %vm1877, %v2244, 0
        %v2487 = vsel %vm1877, %v2245, 0
        %2489 = vmatprep.subr.bf16.mxu0 0
        %2490 = vmatpush1.bf16.msra.mxu0 %v1509
        %2491 = vmatprep.subr.bf16.mxu0 0
        %2492 = vmatpush1.bf16.msra.mxu0 %v1511
        %2493 = vmatprep.subr.bf16.mxu0 0
        %2494 = vmatpush1.bf16.msra.mxu0 %v1513
        %2495 = vmatprep.subr.bf16.mxu0 0
        %2496 = vmatpush1.bf16.msra.mxu0 %v1515
        %2497 = vmatprep.subr.bf16.mxu0 0
        %2498 = vmatpush1.bf16.msra.mxu0 0
        %2499 = vmatprep.subr.bf16.mxu0 0
        %2500 = vmatpush1.bf16.msra.mxu0 0
        %2501 = vmatprep.subr.bf16.mxu0 0
        %2502 = vmatpush1.bf16.msra.mxu0 0
        %2503 = vmatprep.subr.bf16.mxu0 0
        %2504 = vmatpush1.bf16.msra.mxu0 0
        %2505 = vmatprep.subr.bf16.mxu0 0
        %2506 = vmatpush1.bf16.msra.mxu0 0
        %2507 = vmatprep.subr.bf16.mxu0 0
        %2508 = vmatpush1.bf16.msra.mxu0 0
        %2509 = vmatprep.subr.bf16.mxu0 0
        %2510 = vmatpush1.bf16.msra.mxu0 0
        %2511 = vmatprep.subr.bf16.mxu0 0
        %2512 = vmatpush1.bf16.msra.mxu0 0
        %2513 = vmatprep.subr.bf16.mxu0 0
        %2514 = vmatpush1.bf16.msra.mxu0 0
        %2515 = vmatprep.subr.bf16.mxu0 0
        %2516 = vmatpush1.bf16.msra.mxu0 0
        %2517 = vmatprep.subr.bf16.mxu0 0
        %2518 = vmatpush1.bf16.msra.mxu0 0
        %2519 = vmatprep.subr.bf16.mxu0 0
        %2520 = vmatpush1.bf16.msra.mxu0 0
        %2521 = vmatprep.mubr.bf16.mxu0 0
        %2522 = vmatmul.mubr.bf16.gmra.mrb[0].mxu0 %v2478
        %v2523 = vpop.f32.mrb[0].mxu0
        %v2524 = vadd.f32 0.0, %v2523
        %v2525 = vpop.f32.mrb[0].mxu0
        %v2526 = vpop.f32.mrb[0].mxu0
        %v2527 = vadd.f32 0.0, %v2526
        %v2528 = vpop.f32.mrb[0].mxu0
        %2529 = vmatprep.mubr.bf16.mxu0 0
        %2530 = vmatmul.mubr.bf16.gmra.mrb[0].mxu0 %v2481
        %v2531 = vpop.f32.mrb[0].mxu0
        %v2532 = vadd.f32 0.0, %v2531
        %v2533 = vpop.f32.mrb[0].mxu0
        %v2534 = vpop.f32.mrb[0].mxu0
        %v2535 = vadd.f32 0.0, %v2534
        %v2536 = vpop.f32.mrb[0].mxu0
        %2537 = vmatprep.mubr.bf16.mxu0 0
        %2538 = vmatmul.mubr.bf16.gmra.mrb[0].mxu0 %v2484
        %v2539 = vpop.f32.mrb[0].mxu0
        %v2540 = vadd.f32 0.0, %v2539
        %v2541 = vpop.f32.mrb[0].mxu0
        %v2542 = vpop.f32.mrb[0].mxu0
        %v2543 = vadd.f32 0.0, %v2542
        %v2544 = vpop.f32.mrb[0].mxu0
        %2545 = vmatprep.mubr.bf16.mxu0 0
        %2546 = vmatmul.mubr.bf16.gmra.mrb[0].mxu0 %v2487
        %v2547 = vpop.f32.mrb[0].mxu0
        %v2548 = vadd.f32 0.0, %v2547
        %v2549 = vpop.f32.mrb[0].mxu0
        %v2550 = vpop.f32.mrb[0].mxu0
        %v2551 = vadd.f32 0.0, %v2550
        %v2552 = vpop.f32.mrb[0].mxu0
        %2553 = vdwg.mxu0
        %v2554 = vpack.c.bf16 %v2296, %v2293
        %v2555 = vpack.c.bf16 %v2304, %v2301
        %v2556 = vpack.c.bf16 %v2312, %v2309
        %v2557 = vpack.c.bf16 %v2320, %v2317
        %v2558 = vpack.c.bf16 %v2373, %v2370
        %v2559 = vpack.c.bf16 %v2381, %v2378
        %v2560 = vpack.c.bf16 %v2389, %v2386
        %v2561 = vpack.c.bf16 %v2397, %v2394
        %v2562 = vpack.c.bf16 %v2450, %v2447
        %v2563 = vpack.c.bf16 %v2458, %v2455
        %v2564 = vpack.c.bf16 %v2466, %v2463
        %v2565 = vpack.c.bf16 %v2474, %v2471
        %v2566 = vpack.c.bf16 %v2527, %v2524
        %v2567 = vpack.c.bf16 %v2535, %v2532
        %v2568 = vpack.c.bf16 %v2543, %v2540
        %v2569 = vpack.c.bf16 %v2551, %v2548
        %v2574 = vunpack.c.l.b16 %v1396
        %v2575 = vunpack.c.l.b16 %v1397
        %v2576 = vunpack.c.l.b16 %v1398
        %v2577 = vunpack.c.l.b16 %v1399
        %v2578 = vpack.c.b16 %v2575, %v2574
        %v2579 = vpack.c.b16 %v2577, %v2576
        %v2583 = vsel %vm1520, %v2554, 0
        %v2586 = vsel %vm1520, %v2555, 0
        %v2589 = vsel %vm1520, %v2556, 0
        %v2592 = vsel %vm1520, %v2557, 0
        %2594 = vmatprep.subr.bf16.mxu0 0
        %2595 = vmatpush1.bf16.msra.mxu0 %v2578
        %2596 = vmatprep.subr.bf16.mxu0 0
        %2597 = vmatpush1.bf16.msra.mxu0 %v2579
        %2598 = vmatprep.subr.bf16.mxu0 0
        %2599 = vmatpush1.bf16.msra.mxu0 0
        %2600 = vmatprep.subr.bf16.mxu0 0
        %2601 = vmatpush1.bf16.msra.mxu0 0
        %2602 = vmatprep.subr.bf16.mxu0 0
        %2603 = vmatpush1.bf16.msra.mxu0 0
        %2604 = vmatprep.subr.bf16.mxu0 0
        %2605 = vmatpush1.bf16.msra.mxu0 0
        %2606 = vmatprep.subr.bf16.mxu0 0
        %2607 = vmatpush1.bf16.msra.mxu0 0
        %2608 = vmatprep.subr.bf16.mxu0 0
        %2609 = vmatpush1.bf16.msra.mxu0 0
        %2610 = vmatprep.subr.bf16.mxu0 0
        %2611 = vmatpush1.bf16.msra.mxu0 0
        %2612 = vmatprep.subr.bf16.mxu0 0
        %2613 = vmatpush1.bf16.msra.mxu0 0
        %2614 = vmatprep.subr.bf16.mxu0 0
        %2615 = vmatpush1.bf16.msra.mxu0 0
        %2616 = vmatprep.subr.bf16.mxu0 0
        %2617 = vmatpush1.bf16.msra.mxu0 0
        %2618 = vmatprep.subr.bf16.mxu0 0
        %2619 = vmatpush1.bf16.msra.mxu0 0
        %2620 = vmatprep.subr.bf16.mxu0 0
        %2621 = vmatpush1.bf16.msra.mxu0 0
        %2622 = vmatprep.subr.bf16.mxu0 0
        %2623 = vmatpush1.bf16.msra.mxu0 0
        %2624 = vmatprep.subr.bf16.mxu0 0
        %2625 = vmatpush1.bf16.msra.mxu0 0
        %2626 = vmatprep.mubr.bf16.mxu0 0
        %2627 = vmatmul.mubr.bf16.gmra.mrb[0].mxu0 %v2583
        %v2628 = vpop.f32.mrb[0].mxu0
        %v2629 = vadd.f32 0.0, %v2628
        %v2630 = vpop.f32.mrb[0].mxu0
        %v2631 = vpop.f32.mrb[0].mxu0
        %v2632 = vadd.f32 0.0, %v2631
        %v2633 = vpop.f32.mrb[0].mxu0
        %2634 = vmatprep.mubr.bf16.mxu0 0
        %2635 = vmatmul.mubr.bf16.gmra.mrb[0].mxu0 %v2586
        %v2636 = vpop.f32.mrb[0].mxu0
        %v2637 = vadd.f32 0.0, %v2636
        %v2638 = vpop.f32.mrb[0].mxu0
        %v2639 = vpop.f32.mrb[0].mxu0
        %v2640 = vadd.f32 0.0, %v2639
        %v2641 = vpop.f32.mrb[0].mxu0
        %2642 = vmatprep.mubr.bf16.mxu0 0
        %2643 = vmatmul.mubr.bf16.gmra.mrb[0].mxu0 %v2589
        %v2644 = vpop.f32.mrb[0].mxu0
        %v2645 = vadd.f32 0.0, %v2644
        %v2646 = vpop.f32.mrb[0].mxu0
        %v2647 = vpop.f32.mrb[0].mxu0
        %v2648 = vadd.f32 0.0, %v2647
        %v2649 = vpop.f32.mrb[0].mxu0
        %2650 = vmatprep.mubr.bf16.mxu0 0
        %2651 = vmatmul.mubr.bf16.gmra.mrb[0].mxu0 %v2592
        %v2652 = vpop.f32.mrb[0].mxu0
        %v2653 = vadd.f32 0.0, %v2652
        %v2654 = vpop.f32.mrb[0].mxu0
        %v2655 = vpop.f32.mrb[0].mxu0
        %v2656 = vadd.f32 0.0, %v2655
        %v2657 = vpop.f32.mrb[0].mxu0
        %2658 = vdwg.mxu0
        %v2663 = vunpack.c.l.b16 %v1400
        %v2664 = vunpack.c.l.b16 %v1401
        %v2665 = vunpack.c.l.b16 %v1402
        %v2666 = vunpack.c.l.b16 %v1403
        %v2667 = vpack.c.b16 %v2664, %v2663
        %v2668 = vpack.c.b16 %v2666, %v2665
        %v2672 = vsel %vm1520, %v2558, 0
        %v2675 = vsel %vm1520, %v2559, 0
        %v2678 = vsel %vm1520, %v2560, 0
        %v2681 = vsel %vm1520, %v2561, 0
        %2683 = vmatprep.subr.bf16.mxu0 0
        %2684 = vmatpush1.bf16.msra.mxu0 %v2667
        %2685 = vmatprep.subr.bf16.mxu0 0
        %2686 = vmatpush1.bf16.msra.mxu0 %v2668
        %2687 = vmatprep.subr.bf16.mxu0 0
        %2688 = vmatpush1.bf16.msra.mxu0 0
        %2689 = vmatprep.subr.bf16.mxu0 0
        %2690 = vmatpush1.bf16.msra.mxu0 0
        %2691 = vmatprep.subr.bf16.mxu0 0
        %2692 = vmatpush1.bf16.msra.mxu0 0
        %2693 = vmatprep.subr.bf16.mxu0 0
        %2694 = vmatpush1.bf16.msra.mxu0 0
        %2695 = vmatprep.subr.bf16.mxu0 0
        %2696 = vmatpush1.bf16.msra.mxu0 0
        %2697 = vmatprep.subr.bf16.mxu0 0
        %2698 = vmatpush1.bf16.msra.mxu0 0
        %2699 = vmatprep.subr.bf16.mxu0 0
        %2700 = vmatpush1.bf16.msra.mxu0 0
        %2701 = vmatprep.subr.bf16.mxu0 0
        %2702 = vmatpush1.bf16.msra.mxu0 0
        %2703 = vmatprep.subr.bf16.mxu0 0
        %2704 = vmatpush1.bf16.msra.mxu0 0
        %2705 = vmatprep.subr.bf16.mxu0 0
        %2706 = vmatpush1.bf16.msra.mxu0 0
        %2707 = vmatprep.subr.bf16.mxu0 0
        %2708 = vmatpush1.bf16.msra.mxu0 0
        %2709 = vmatprep.subr.bf16.mxu0 0
        %2710 = vmatpush1.bf16.msra.mxu0 0
        %2711 = vmatprep.subr.bf16.mxu0 0
        %2712 = vmatpush1.bf16.msra.mxu0 0
        %2713 = vmatprep.subr.bf16.mxu0 0
        %2714 = vmatpush1.bf16.msra.mxu0 0
        %2715 = vmatprep.mubr.bf16.mxu0 0
        %2716 = vmatmul.mubr.bf16.gmra.mrb[0].mxu0 %v2672
        %v2717 = vpop.f32.mrb[0].mxu0
        %v2718 = vadd.f32 0.0, %v2717
        %v2719 = vpop.f32.mrb[0].mxu0
        %v2720 = vpop.f32.mrb[0].mxu0
        %v2721 = vadd.f32 0.0, %v2720
        %v2722 = vpop.f32.mrb[0].mxu0
        %2723 = vmatprep.mubr.bf16.mxu0 0
        %2724 = vmatmul.mubr.bf16.gmra.mrb[0].mxu0 %v2675
        %v2725 = vpop.f32.mrb[0].mxu0
        %v2726 = vadd.f32 0.0, %v2725
        %v2727 = vpop.f32.mrb[0].mxu0
        %v2728 = vpop.f32.mrb[0].mxu0
        %v2729 = vadd.f32 0.0, %v2728
        %v2730 = vpop.f32.mrb[0].mxu0
        %2731 = vmatprep.mubr.bf16.mxu0 0
        %2732 = vmatmul.mubr.bf16.gmra.mrb[0].mxu0 %v2678
        %v2733 = vpop.f32.mrb[0].mxu0
        %v2734 = vadd.f32 0.0, %v2733
        %v2735 = vpop.f32.mrb[0].mxu0
        %v2736 = vpop.f32.mrb[0].mxu0
        %v2737 = vadd.f32 0.0, %v2736
        %v2738 = vpop.f32.mrb[0].mxu0
        %2739 = vmatprep.mubr.bf16.mxu0 0
        %2740 = vmatmul.mubr.bf16.gmra.mrb[0].mxu0 %v2681
        %v2741 = vpop.f32.mrb[0].mxu0
        %v2742 = vadd.f32 0.0, %v2741
        %v2743 = vpop.f32.mrb[0].mxu0
        %v2744 = vpop.f32.mrb[0].mxu0
        %v2745 = vadd.f32 0.0, %v2744
        %v2746 = vpop.f32.mrb[0].mxu0
        %2747 = vdwg.mxu0
        %v2752 = vunpack.c.l.b16 %v1404
        %v2753 = vunpack.c.l.b16 %v1405
        %v2754 = vunpack.c.l.b16 %v1406
        %v2755 = vunpack.c.l.b16 %v1407
        %v2756 = vpack.c.b16 %v2753, %v2752
        %v2757 = vpack.c.b16 %v2755, %v2754
        %v2761 = vsel %vm1520, %v2562, 0
        %v2764 = vsel %vm1520, %v2563, 0
        %v2767 = vsel %vm1520, %v2564, 0
        %v2770 = vsel %vm1520, %v2565, 0
        %2772 = vmatprep.subr.bf16.mxu0 0
        %2773 = vmatpush1.bf16.msra.mxu0 %v2756
        %2774 = vmatprep.subr.bf16.mxu0 0
        %2775 = vmatpush1.bf16.msra.mxu0 %v2757
        %2776 = vmatprep.subr.bf16.mxu0 0
        %2777 = vmatpush1.bf16.msra.mxu0 0
        %2778 = vmatprep.subr.bf16.mxu0 0
        %2779 = vmatpush1.bf16.msra.mxu0 0
        %2780 = vmatprep.subr.bf16.mxu0 0
        %2781 = vmatpush1.bf16.msra.mxu0 0
        %2782 = vmatprep.subr.bf16.mxu0 0
        %2783 = vmatpush1.bf16.msra.mxu0 0
        %2784 = vmatprep.subr.bf16.mxu0 0
        %2785 = vmatpush1.bf16.msra.mxu0 0
        %2786 = vmatprep.subr.bf16.mxu0 0
        %2787 = vmatpush1.bf16.msra.mxu0 0
        %2788 = vmatprep.subr.bf16.mxu0 0
        %2789 = vmatpush1.bf16.msra.mxu0 0
        %2790 = vmatprep.subr.bf16.mxu0 0
        %2791 = vmatpush1.bf16.msra.mxu0 0
        %2792 = vmatprep.subr.bf16.mxu0 0
        %2793 = vmatpush1.bf16.msra.mxu0 0
        %2794 = vmatprep.subr.bf16.mxu0 0
        %2795 = vmatpush1.bf16.msra.mxu0 0
        %2796 = vmatprep.subr.bf16.mxu0 0
        %2797 = vmatpush1.bf16.msra.mxu0 0
        %2798 = vmatprep.subr.bf16.mxu0 0
        %2799 = vmatpush1.bf16.msra.mxu0 0
        %2800 = vmatprep.subr.bf16.mxu0 0
        %2801 = vmatpush1.bf16.msra.mxu0 0
        %2802 = vmatprep.subr.bf16.mxu0 0
        %2803 = vmatpush1.bf16.msra.mxu0 0
        %2804 = vmatprep.mubr.bf16.mxu0 0
        %2805 = vmatmul.mubr.bf16.gmra.mrb[0].mxu0 %v2761
        %v2806 = vpop.f32.mrb[0].mxu0
        %v2807 = vadd.f32 0.0, %v2806
        %v2808 = vpop.f32.mrb[0].mxu0
        %v2809 = vpop.f32.mrb[0].mxu0
        %v2810 = vadd.f32 0.0, %v2809
        %v2811 = vpop.f32.mrb[0].mxu0
        %2812 = vmatprep.mubr.bf16.mxu0 0
        %2813 = vmatmul.mubr.bf16.gmra.mrb[0].mxu0 %v2764
        %v2814 = vpop.f32.mrb[0].mxu0
        %v2815 = vadd.f32 0.0, %v2814
        %v2816 = vpop.f32.mrb[0].mxu0
        %v2817 = vpop.f32.mrb[0].mxu0
        %v2818 = vadd.f32 0.0, %v2817
        %v2819 = vpop.f32.mrb[0].mxu0
        %2820 = vmatprep.mubr.bf16.mxu0 0
        %2821 = vmatmul.mubr.bf16.gmra.mrb[0].mxu0 %v2767
        %v2822 = vpop.f32.mrb[0].mxu0
        %v2823 = vadd.f32 0.0, %v2822
        %v2824 = vpop.f32.mrb[0].mxu0
        %v2825 = vpop.f32.mrb[0].mxu0
        %v2826 = vadd.f32 0.0, %v2825
        %v2827 = vpop.f32.mrb[0].mxu0
        %2828 = vmatprep.mubr.bf16.mxu0 0
        %2829 = vmatmul.mubr.bf16.gmra.mrb[0].mxu0 %v2770
        %v2830 = vpop.f32.mrb[0].mxu0
        %v2831 = vadd.f32 0.0, %v2830
        %v2832 = vpop.f32.mrb[0].mxu0
        %v2833 = vpop.f32.mrb[0].mxu0
        %v2834 = vadd.f32 0.0, %v2833
        %v2835 = vpop.f32.mrb[0].mxu0
        %2836 = vdwg.mxu0
        %v2841 = vunpack.c.l.b16 %v1408
        %v2842 = vunpack.c.l.b16 %v1409
        %v2843 = vunpack.c.l.b16 %v1410
        %v2844 = vunpack.c.l.b16 %v1411
        %v2845 = vpack.c.b16 %v2842, %v2841
        %v2846 = vpack.c.b16 %v2844, %v2843
        %v2850 = vsel %vm1520, %v2566, 0
        %v2853 = vsel %vm1520, %v2567, 0
        %v2856 = vsel %vm1520, %v2568, 0
        %v2859 = vsel %vm1520, %v2569, 0
        %2861 = vmatprep.subr.bf16.mxu0 0
        %2862 = vmatpush1.bf16.msra.mxu0 %v2845
        %2863 = vmatprep.subr.bf16.mxu0 0
        %2864 = vmatpush1.bf16.msra.mxu0 %v2846
        %2865 = vmatprep.subr.bf16.mxu0 0
        %2866 = vmatpush1.bf16.msra.mxu0 0
        %2867 = vmatprep.subr.bf16.mxu0 0
        %2868 = vmatpush1.bf16.msra.mxu0 0
        %2869 = vmatprep.subr.bf16.mxu0 0
        %2870 = vmatpush1.bf16.msra.mxu0 0
        %2871 = vmatprep.subr.bf16.mxu0 0
        %2872 = vmatpush1.bf16.msra.mxu0 0
        %2873 = vmatprep.subr.bf16.mxu0 0
        %2874 = vmatpush1.bf16.msra.mxu0 0
        %2875 = vmatprep.subr.bf16.mxu0 0
        %2876 = vmatpush1.bf16.msra.mxu0 0
        %2877 = vmatprep.subr.bf16.mxu0 0
        %2878 = vmatpush1.bf16.msra.mxu0 0
        %2879 = vmatprep.subr.bf16.mxu0 0
        %2880 = vmatpush1.bf16.msra.mxu0 0
        %2881 = vmatprep.subr.bf16.mxu0 0
        %2882 = vmatpush1.bf16.msra.mxu0 0
        %2883 = vmatprep.subr.bf16.mxu0 0
        %2884 = vmatpush1.bf16.msra.mxu0 0
        %2885 = vmatprep.subr.bf16.mxu0 0
        %2886 = vmatpush1.bf16.msra.mxu0 0
        %2887 = vmatprep.subr.bf16.mxu0 0
        %2888 = vmatpush1.bf16.msra.mxu0 0
        %2889 = vmatprep.subr.bf16.mxu0 0
        %2890 = vmatpush1.bf16.msra.mxu0 0
        %2891 = vmatprep.subr.bf16.mxu0 0
        %2892 = vmatpush1.bf16.msra.mxu0 0
        %2893 = vmatprep.mubr.bf16.mxu0 0
        %2894 = vmatmul.mubr.bf16.gmra.mrb[0].mxu0 %v2850
        %v2895 = vpop.f32.mrb[0].mxu0
        %v2896 = vadd.f32 0.0, %v2895
        %v2897 = vpop.f32.mrb[0].mxu0
        %v2898 = vpop.f32.mrb[0].mxu0
        %v2899 = vadd.f32 0.0, %v2898
        %v2900 = vpop.f32.mrb[0].mxu0
        %2901 = vmatprep.mubr.bf16.mxu0 0
        %2902 = vmatmul.mubr.bf16.gmra.mrb[0].mxu0 %v2853
        %v2903 = vpop.f32.mrb[0].mxu0
        %v2904 = vadd.f32 0.0, %v2903
        %v2905 = vpop.f32.mrb[0].mxu0
        %v2906 = vpop.f32.mrb[0].mxu0
        %v2907 = vadd.f32 0.0, %v2906
        %v2908 = vpop.f32.mrb[0].mxu0
        %2909 = vmatprep.mubr.bf16.mxu0 0
        %2910 = vmatmul.mubr.bf16.gmra.mrb[0].mxu0 %v2856
        %v2911 = vpop.f32.mrb[0].mxu0
        %v2912 = vadd.f32 0.0, %v2911
        %v2913 = vpop.f32.mrb[0].mxu0
        %v2914 = vpop.f32.mrb[0].mxu0
        %v2915 = vadd.f32 0.0, %v2914
        %v2916 = vpop.f32.mrb[0].mxu0
        %2917 = vmatprep.mubr.bf16.mxu0 0
        %2918 = vmatmul.mubr.bf16.gmra.mrb[0].mxu0 %v2859
        %v2919 = vpop.f32.mrb[0].mxu0
        %v2920 = vadd.f32 0.0, %v2919
        %v2921 = vpop.f32.mrb[0].mxu0
        %v2922 = vpop.f32.mrb[0].mxu0
        %v2923 = vadd.f32 0.0, %v2922
        %v2924 = vpop.f32.mrb[0].mxu0
        %2925 = vdwg.mxu0
        %v2926 = vadd.f32 %v2629, %v2718
        %v2927 = vadd.f32 %v2926, %v2807
        %v2928 = vadd.f32 %v2927, %v2896
        %v2929 = vadd.f32 %v2632, %v2721
        %v2930 = vadd.f32 %v2929, %v2810
        %v2931 = vadd.f32 %v2930, %v2899
        %v2932 = vadd.f32 %v2637, %v2726
        %v2933 = vadd.f32 %v2932, %v2815
        %v2934 = vadd.f32 %v2933, %v2904
        %v2935 = vadd.f32 %v2640, %v2729
        %v2936 = vadd.f32 %v2935, %v2818
        %v2937 = vadd.f32 %v2936, %v2907
        %v2938 = vadd.f32 %v2645, %v2734
        %v2939 = vadd.f32 %v2938, %v2823
        %v2940 = vadd.f32 %v2939, %v2912
        %v2941 = vadd.f32 %v2648, %v2737
        %v2942 = vadd.f32 %v2941, %v2826
        %v2943 = vadd.f32 %v2942, %v2915
        %v2944 = vadd.f32 %v2653, %v2742
        %v2945 = vadd.f32 %v2944, %v2831
        %v2946 = vadd.f32 %v2945, %v2920
        %v2947 = vadd.f32 %v2656, %v2745
        %v2948 = vadd.f32 %v2947, %v2834
        %v2949 = vadd.f32 %v2948, %v2923
        %v2950 = vld [vmem:[%s769] sm:$0x1]
        %v2952 = vlaneseq
        %v2953 = vshrl.u32 %v2952, 7
        %v2954 = vsub.s32 0, %v2953
        %v2955 = vrot.slane %v2950, %v2954
        %v2957 = vadd.f32 %v2928, %v2955
        %v2958 = vadd.f32 %v2931, %v2955
        %v2959 = vadd.f32 %v2934, %v2955
        %v2960 = vadd.f32 %v2937, %v2955
        %v2961 = vadd.f32 %v2940, %v2955
        %v2962 = vadd.f32 %v2943, %v2955
        %v2963 = vadd.f32 %v2946, %v2955
        %v2964 = vadd.f32 %v2949, %v2955
        %v2965 = vadd.f32 %v1069, %v2957
        %v2966 = vadd.f32 %v1070, %v2958
        %v2967 = vadd.f32 %v1071, %v2959
        %v2968 = vadd.f32 %v1072, %v2960
        %v2969 = vadd.f32 %v1073, %v2961
        %v2970 = vadd.f32 %v1074, %v2962
        %v2971 = vadd.f32 %v1075, %v2963
        %v2972 = vadd.f32 %v1076, %v2964
        %v2973 = vld [vmem:[%s772] sm:$0x1]
        %v2974 = vld [vmem:[%s775] sm:$0x1]
        %2975 = vadd.xlane.f32.xlu0 %v2965
        %v2976 = vpop.xlane.xlu0 %2975
        %2977 = vadd.xlane.f32.xlu0 %v2966
        %v2978 = vpop.xlane.xlu0 %2977
        %2979 = vadd.xlane.f32.xlu0 %v2967
        %v2980 = vpop.xlane.xlu0 %2979
        %2981 = vadd.xlane.f32.xlu0 %v2968
        %v2982 = vpop.xlane.xlu0 %2981
        %2983 = vadd.xlane.f32.xlu0 %v2969
        %v2984 = vpop.xlane.xlu0 %2983
        %2985 = vadd.xlane.f32.xlu0 %v2970
        %v2986 = vpop.xlane.xlu0 %2985
        %2987 = vadd.xlane.f32.xlu0 %v2971
        %v2988 = vpop.xlane.xlu0 %2987
        %2989 = vadd.xlane.f32.xlu0 %v2972
        %v2990 = vpop.xlane.xlu0 %2989
        %v2991 = vrcp.pop 128.0
        %v2992 = vmul.f32 %v2976, %v2991
        %v2993 = vmul.f32 %v2978, %v2991
        %v2994 = vmul.f32 %v2980, %v2991
        %v2995 = vmul.f32 %v2982, %v2991
        %v2996 = vmul.f32 %v2984, %v2991
        %v2997 = vmul.f32 %v2986, %v2991
        %v2998 = vmul.f32 %v2988, %v2991
        %v2999 = vmul.f32 %v2990, %v2991
        %v3000 = vsub.f32 %v2965, %v2992
        %v3001 = vsub.f32 %v2966, %v2993
        %v3002 = vsub.f32 %v2967, %v2994
        %v3003 = vsub.f32 %v2968, %v2995
        %v3004 = vsub.f32 %v2969, %v2996
        %v3005 = vsub.f32 %v2970, %v2997
        %v3006 = vsub.f32 %v2971, %v2998
        %v3007 = vsub.f32 %v2972, %v2999
        %v3008 = vmul.f32 %v3000, %v3000
        %v3009 = vmul.f32 %v3001, %v3001
        %v3010 = vmul.f32 %v3002, %v3002
        %v3011 = vmul.f32 %v3003, %v3003
        %v3012 = vmul.f32 %v3004, %v3004
        %v3013 = vmul.f32 %v3005, %v3005
        %v3014 = vmul.f32 %v3006, %v3006
        %v3015 = vmul.f32 %v3007, %v3007
        %3016 = vadd.xlane.f32.xlu0 %v3008
        %v3017 = vpop.xlane.xlu0 %3016
        %3018 = vadd.xlane.f32.xlu0 %v3009
        %v3019 = vpop.xlane.xlu0 %3018
        %3020 = vadd.xlane.f32.xlu0 %v3010
        %v3021 = vpop.xlane.xlu0 %3020
        %3022 = vadd.xlane.f32.xlu0 %v3011
        %v3023 = vpop.xlane.xlu0 %3022
        %3024 = vadd.xlane.f32.xlu0 %v3012
        %v3025 = vpop.xlane.xlu0 %3024
        %3026 = vadd.xlane.f32.xlu0 %v3013
        %v3027 = vpop.xlane.xlu0 %3026
        %3028 = vadd.xlane.f32.xlu0 %v3014
        %v3029 = vpop.xlane.xlu0 %3028
        %3030 = vadd.xlane.f32.xlu0 %v3015
        %v3031 = vpop.xlane.xlu0 %3030
        %v3032 = vmul.f32 %v3017, %v2991
        %v3033 = vmul.f32 %v3019, %v2991
        %v3034 = vmul.f32 %v3021, %v2991
        %v3035 = vmul.f32 %v3023, %v2991
        %v3036 = vmul.f32 %v3025, %v2991
        %v3037 = vmul.f32 %v3027, %v2991
        %v3038 = vmul.f32 %v3029, %v2991
        %v3039 = vmul.f32 %v3031, %v2991
        %v3040 = vadd.f32 %v3032, 1e-05
        %v3041 = vadd.f32 %v3033, 1e-05
        %v3042 = vadd.f32 %v3034, 1e-05
        %v3043 = vadd.f32 %v3035, 1e-05
        %v3044 = vadd.f32 %v3036, 1e-05
        %v3045 = vadd.f32 %v3037, 1e-05
        %v3046 = vadd.f32 %v3038, 1e-05
        %v3047 = vadd.f32 %v3039, 1e-05
        %v3048 = vrsqrt.pop %v3040
        %v3049 = vrsqrt.pop %v3041
        %v3050 = vrsqrt.pop %v3042
        %v3051 = vrsqrt.pop %v3043
        %v3052 = vrsqrt.pop %v3044
        %v3053 = vrsqrt.pop %v3045
        %v3054 = vrsqrt.pop %v3046
        %v3055 = vrsqrt.pop %v3047
        %v3056 = vmul.f32 %v3000, %v3048
        %v3057 = vmul.f32 %v3001, %v3049
        %v3058 = vmul.f32 %v3002, %v3050
        %v3059 = vmul.f32 %v3003, %v3051
        %v3060 = vmul.f32 %v3004, %v3052
        %v3061 = vmul.f32 %v3005, %v3053
        %v3062 = vmul.f32 %v3006, %v3054
        %v3063 = vmul.f32 %v3007, %v3055
        %v3065 = vlaneseq
        %v3066 = vshrl.u32 %v3065, 7
        %v3067 = vsub.s32 0, %v3066
        %v3068 = vrot.slane %v2973, %v3067
        %v3070 = vmul.f32 %v3056, %v3068
        %v3071 = vmul.f32 %v3057, %v3068
        %v3072 = vmul.f32 %v3058, %v3068
        %v3073 = vmul.f32 %v3059, %v3068
        %v3074 = vmul.f32 %v3060, %v3068
        %v3075 = vmul.f32 %v3061, %v3068
        %v3076 = vmul.f32 %v3062, %v3068
        %v3077 = vmul.f32 %v3063, %v3068
        %v3079 = vlaneseq
        %v3080 = vshrl.u32 %v3079, 7
        %v3081 = vsub.s32 0, %v3080
        %v3082 = vrot.slane %v2974, %v3081
        %v3084 = vadd.f32 %v3070, %v3082
        %v3085 = vadd.f32 %v3071, %v3082
        %v3086 = vadd.f32 %v3072, %v3082
        %v3087 = vadd.f32 %v3073, %v3082
        %v3088 = vadd.f32 %v3074, %v3082
        %v3089 = vadd.f32 %v3075, %v3082
        %v3090 = vadd.f32 %v3076, %v3082
        %v3091 = vadd.f32 %v3077, %v3082
        %v3092 = vld [vmem:[%s780] sm:$0xff]
        %v3093 = vld [vmem:[%s780 + $0x8] sm:$0xff]
        %v3094 = vld [vmem:[%s780 + $0x10] sm:$0xff]
        %v3095 = vld [vmem:[%s780 + $0x18] sm:$0xff]
        %v3096 = vld [vmem:[%s780 + $0x20] sm:$0xff]
        %v3097 = vld [vmem:[%s780 + $0x28] sm:$0xff]
        %v3098 = vld [vmem:[%s780 + $0x30] sm:$0xff]
        %v3099 = vld [vmem:[%s780 + $0x38] sm:$0xff]
        %v3100 = vld [vmem:[%s780 + $0x40] sm:$0xff]
        %v3101 = vld [vmem:[%s780 + $0x48] sm:$0xff]
        %v3102 = vld [vmem:[%s780 + $0x50] sm:$0xff]
        %v3103 = vld [vmem:[%s780 + $0x58] sm:$0xff]
        %v3104 = vld [vmem:[%s780 + $0x60] sm:$0xff]
        %v3105 = vld [vmem:[%s780 + $0x68] sm:$0xff]
        %v3106 = vld [vmem:[%s780 + $0x70] sm:$0xff]
        %v3107 = vld [vmem:[%s780 + $0x78] sm:$0xff]
        %v3108 = vld [vmem:[%s784] sm:$0x3]
        %v3109 = vld [vmem:[%s789] sm:$0xf]
        %v3110 = vld [vmem:[%s789 + $0x4] sm:$0xf]
        %v3111 = vld [vmem:[%s789 + $0x8] sm:$0xf]
        %v3112 = vld [vmem:[%s789 + $0xc] sm:$0xf]
        %v3113 = vld [vmem:[%s789 + $0x10] sm:$0xf]
        %v3114 = vld [vmem:[%s789 + $0x14] sm:$0xf]
        %v3115 = vld [vmem:[%s789 + $0x18] sm:$0xf]
        %v3116 = vld [vmem:[%s789 + $0x1c] sm:$0xf]
        %v3117 = vld [vmem:[%s789 + $0x20] sm:$0xf]
        %v3118 = vld [vmem:[%s789 + $0x24] sm:$0xf]
        %v3119 = vld [vmem:[%s789 + $0x28] sm:$0xf]
        %v3120 = vld [vmem:[%s789 + $0x2c] sm:$0xf]
        %v3121 = vld [vmem:[%s789 + $0x30] sm:$0xf]
        %v3122 = vld [vmem:[%s789 + $0x34] sm:$0xf]
        %v3123 = vld [vmem:[%s789 + $0x38] sm:$0xf]
        %v3124 = vld [vmem:[%s789 + $0x3c] sm:$0xf]
        %v3125 = vld [vmem:[%s789 + $0x40] sm:$0xf]
        %v3126 = vld [vmem:[%s789 + $0x44] sm:$0xf]
        %v3127 = vld [vmem:[%s789 + $0x48] sm:$0xf]
        %v3128 = vld [vmem:[%s789 + $0x4c] sm:$0xf]
        %v3129 = vld [vmem:[%s789 + $0x50] sm:$0xf]
        %v3130 = vld [vmem:[%s789 + $0x54] sm:$0xf]
        %v3131 = vld [vmem:[%s789 + $0x58] sm:$0xf]
        %v3132 = vld [vmem:[%s789 + $0x5c] sm:$0xf]
        %v3133 = vld [vmem:[%s789 + $0x60] sm:$0xf]
        %v3134 = vld [vmem:[%s789 + $0x64] sm:$0xf]
        %v3135 = vld [vmem:[%s789 + $0x68] sm:$0xf]
        %v3136 = vld [vmem:[%s789 + $0x6c] sm:$0xf]
        %v3137 = vld [vmem:[%s789 + $0x70] sm:$0xf]
        %v3138 = vld [vmem:[%s789 + $0x74] sm:$0xf]
        %v3139 = vld [vmem:[%s789 + $0x78] sm:$0xf]
        %v3140 = vld [vmem:[%s789 + $0x7c] sm:$0xf]
        %v3141 = vld [vmem:[%s792] sm:$0x1]
        %v3142 = vpack.c.bf16 %v3085, %v3084
        %v3143 = vpack.c.bf16 %v3087, %v3086
        %v3144 = vpack.c.bf16 %v3089, %v3088
        %v3145 = vpack.c.bf16 %v3091, %v3090
        %v3147 = vlaneseq
        %v3148 = vshrl.u32 %v3147, 7
        %v3149 = vsub.s32 0, %v3148
        %v3150 = vrot.slane %v3108, %v3149
        %v3151 = vlaneseq
        %v3152 = vshrl.u32 %v3151, 7
        %v3153 = vsub.s32 1, %v3152
        %v3154 = vrot.slane %v3108, %v3153
        %v3173 = vunpack.c.l.b16 %v3092
        %v3174 = vunpack.c.h.b16 %v3092
        %v3175 = vunpack.c.l.b16 %v3093
        %v3176 = vunpack.c.h.b16 %v3093
        %v3177 = vunpack.c.l.b16 %v3094
        %v3178 = vunpack.c.h.b16 %v3094
        %v3179 = vunpack.c.l.b16 %v3095
        %v3180 = vunpack.c.h.b16 %v3095
        %v3181 = vunpack.c.l.b16 %v3096
        %v3182 = vunpack.c.h.b16 %v3096
        %v3183 = vunpack.c.l.b16 %v3097
        %v3184 = vunpack.c.h.b16 %v3097
        %v3185 = vunpack.c.l.b16 %v3098
        %v3186 = vunpack.c.h.b16 %v3098
        %v3187 = vunpack.c.l.b16 %v3099
        %v3188 = vunpack.c.h.b16 %v3099
        %v3189 = vunpack.c.l.b16 %v3100
        %v3190 = vunpack.c.h.b16 %v3100
        %v3191 = vunpack.c.l.b16 %v3101
        %v3192 = vunpack.c.h.b16 %v3101
        %v3193 = vunpack.c.l.b16 %v3102
        %v3194 = vunpack.c.h.b16 %v3102
        %v3195 = vunpack.c.l.b16 %v3103
        %v3196 = vunpack.c.h.b16 %v3103
        %v3197 = vunpack.c.l.b16 %v3104
        %v3198 = vunpack.c.h.b16 %v3104
        %v3199 = vunpack.c.l.b16 %v3105
        %v3200 = vunpack.c.h.b16 %v3105
        %v3201 = vunpack.c.l.b16 %v3106
        %v3202 = vunpack.c.h.b16 %v3106
        %v3203 = vunpack.c.l.b16 %v3107
        %v3204 = vunpack.c.h.b16 %v3107
        %v3205 = vpack.c.b16 %v3175, %v3173
        %v3206 = vpack.c.b16 %v3176, %v3174
        %v3207 = vpack.c.b16 %v3179, %v3177
        %v3208 = vpack.c.b16 %v3180, %v3178
        %v3209 = vpack.c.b16 %v3183, %v3181
        %v3210 = vpack.c.b16 %v3184, %v3182
        %v3211 = vpack.c.b16 %v3187, %v3185
        %v3212 = vpack.c.b16 %v3188, %v3186
        %v3213 = vpack.c.b16 %v3191, %v3189
        %v3214 = vpack.c.b16 %v3192, %v3190
        %v3215 = vpack.c.b16 %v3195, %v3193
        %v3216 = vpack.c.b16 %v3196, %v3194
        %v3217 = vpack.c.b16 %v3199, %v3197
        %v3218 = vpack.c.b16 %v3200, %v3198
        %v3219 = vpack.c.b16 %v3203, %v3201
        %v3220 = vpack.c.b16 %v3204, %v3202
        %3237 = vmatprep.subr.bf16.mxu0 %v3206
        %3238 = vmatpush1.bf16.msra.mxu0 %v3205
        %3239 = vmatprep.subr.bf16.mxu0 %v3208
        %3240 = vmatpush1.bf16.msra.mxu0 %v3207
        %3241 = vmatprep.subr.bf16.mxu0 %v3210
        %3242 = vmatpush1.bf16.msra.mxu0 %v3209
        %3243 = vmatprep.subr.bf16.mxu0 %v3212
        %3244 = vmatpush1.bf16.msra.mxu0 %v3211
        %3245 = vmatprep.subr.bf16.mxu0 %v3214
        %3246 = vmatpush1.bf16.msra.mxu0 %v3213
        %3247 = vmatprep.subr.bf16.mxu0 %v3216
        %3248 = vmatpush1.bf16.msra.mxu0 %v3215
        %3249 = vmatprep.subr.bf16.mxu0 %v3218
        %3250 = vmatpush1.bf16.msra.mxu0 %v3217
        %3251 = vmatprep.subr.bf16.mxu0 %v3220
        %3252 = vmatpush1.bf16.msra.mxu0 %v3219
        %3253 = vmatprep.subr.bf16.mxu0 0
        %3254 = vmatpush1.bf16.msra.mxu0 0
        %3255 = vmatprep.subr.bf16.mxu0 0
        %3256 = vmatpush1.bf16.msra.mxu0 0
        %3257 = vmatprep.subr.bf16.mxu0 0
        %3258 = vmatpush1.bf16.msra.mxu0 0
        %3259 = vmatprep.subr.bf16.mxu0 0
        %3260 = vmatpush1.bf16.msra.mxu0 0
        %3261 = vmatprep.subr.bf16.mxu0 0
        %3262 = vmatpush1.bf16.msra.mxu0 0
        %3263 = vmatprep.subr.bf16.mxu0 0
        %3264 = vmatpush1.bf16.msra.mxu0 0
        %3265 = vmatprep.subr.bf16.mxu0 0
        %3266 = vmatpush1.bf16.msra.mxu0 0
        %3267 = vmatprep.subr.bf16.mxu0 0
        %3268 = vmatpush1.bf16.msra.mxu0 0
        %3269 = vmatprep.mubr.bf16.mxu0 0
        %3270 = vmatmul.mubr.bf16.gmra.mrb[0].mxu0 %v3142
        %v3271 = vpop.f32.mrb[0].mxu0
        %v3272 = vadd.f32 %v3150, %v3271
        %v3273 = vpop.f32.mrb[0].mxu0
        %v3274 = vadd.f32 %v3154, %v3273
        %v3275 = vpop.f32.mrb[0].mxu0
        %v3276 = vadd.f32 %v3150, %v3275
        %v3277 = vpop.f32.mrb[0].mxu0
        %v3278 = vadd.f32 %v3154, %v3277
        %3279 = vmatprep.mubr.bf16.mxu0 0
        %3280 = vmatmul.mubr.bf16.gmra.mrb[0].mxu0 %v3143
        %v3281 = vpop.f32.mrb[0].mxu0
        %v3282 = vadd.f32 %v3150, %v3281
        %v3283 = vpop.f32.mrb[0].mxu0
        %v3284 = vadd.f32 %v3154, %v3283
        %v3285 = vpop.f32.mrb[0].mxu0
        %v3286 = vadd.f32 %v3150, %v3285
        %v3287 = vpop.f32.mrb[0].mxu0
        %v3288 = vadd.f32 %v3154, %v3287
        %3289 = vmatprep.mubr.bf16.mxu0 0
        %3290 = vmatmul.mubr.bf16.gmra.mrb[0].mxu0 %v3144
        %v3291 = vpop.f32.mrb[0].mxu0
        %v3292 = vadd.f32 %v3150, %v3291
        %v3293 = vpop.f32.mrb[0].mxu0
        %v3294 = vadd.f32 %v3154, %v3293
        %v3295 = vpop.f32.mrb[0].mxu0
        %v3296 = vadd.f32 %v3150, %v3295
        %v3297 = vpop.f32.mrb[0].mxu0
        %v3298 = vadd.f32 %v3154, %v3297
        %3299 = vmatprep.mubr.bf16.mxu0 0
        %3300 = vmatmul.mubr.bf16.gmra.mrb[0].mxu0 %v3145
        %v3301 = vpop.f32.mrb[0].mxu0
        %v3302 = vadd.f32 %v3150, %v3301
        %v3303 = vpop.f32.mrb[0].mxu0
        %v3304 = vadd.f32 %v3154, %v3303
        %v3305 = vpop.f32.mrb[0].mxu0
        %v3306 = vadd.f32 %v3150, %v3305
        %v3307 = vpop.f32.mrb[0].mxu0
        %v3308 = vadd.f32 %v3154, %v3307
        %3309 = vdwg.mxu0
        %v3310 = vmax.f32 %v3272, 0.0
        %v3311 = vmax.f32 %v3274, 0.0
        %v3312 = vmax.f32 %v3276, 0.0
        %v3313 = vmax.f32 %v3278, 0.0
        %v3314 = vmax.f32 %v3282, 0.0
        %v3315 = vmax.f32 %v3284, 0.0
        %v3316 = vmax.f32 %v3286, 0.0
        %v3317 = vmax.f32 %v3288, 0.0
        %v3318 = vmax.f32 %v3292, 0.0
        %v3319 = vmax.f32 %v3294, 0.0
        %v3320 = vmax.f32 %v3296, 0.0
        %v3321 = vmax.f32 %v3298, 0.0
        %v3322 = vmax.f32 %v3302, 0.0
        %v3323 = vmax.f32 %v3304, 0.0
        %v3324 = vmax.f32 %v3306, 0.0
        %v3325 = vmax.f32 %v3308, 0.0
        %v3326 = vpack.c.bf16 %v3312, %v3310
        %v3327 = vpack.c.bf16 %v3313, %v3311
        %v3328 = vpack.c.bf16 %v3316, %v3314
        %v3329 = vpack.c.bf16 %v3317, %v3315
        %v3330 = vpack.c.bf16 %v3320, %v3318
        %v3331 = vpack.c.bf16 %v3321, %v3319
        %v3332 = vpack.c.bf16 %v3324, %v3322
        %v3333 = vpack.c.bf16 %v3325, %v3323
        %v3335 = vlaneseq
        %v3336 = vshrl.u32 %v3335, 7
        %v3337 = vsub.s32 0, %v3336
        %v3338 = vrot.slane %v3141, %v3337
        %v3372 = vunpack.c.l.b16 %v3109
        %v3373 = vunpack.c.l.b16 %v3110
        %v3374 = vunpack.c.l.b16 %v3111
        %v3375 = vunpack.c.l.b16 %v3112
        %v3376 = vunpack.c.l.b16 %v3113
        %v3377 = vunpack.c.l.b16 %v3114
        %v3378 = vunpack.c.l.b16 %v3115
        %v3379 = vunpack.c.l.b16 %v3116
        %v3380 = vunpack.c.l.b16 %v3117
        %v3381 = vunpack.c.l.b16 %v3118
        %v3382 = vunpack.c.l.b16 %v3119
        %v3383 = vunpack.c.l.b16 %v3120
        %v3384 = vunpack.c.l.b16 %v3121
        %v3385 = vunpack.c.l.b16 %v3122
        %v3386 = vunpack.c.l.b16 %v3123
        %v3387 = vunpack.c.l.b16 %v3124
        %v3388 = vunpack.c.l.b16 %v3125
        %v3389 = vunpack.c.l.b16 %v3126
        %v3390 = vunpack.c.l.b16 %v3127
        %v3391 = vunpack.c.l.b16 %v3128
        %v3392 = vunpack.c.l.b16 %v3129
        %v3393 = vunpack.c.l.b16 %v3130
        %v3394 = vunpack.c.l.b16 %v3131
        %v3395 = vunpack.c.l.b16 %v3132
        %v3396 = vunpack.c.l.b16 %v3133
        %v3397 = vunpack.c.l.b16 %v3134
        %v3398 = vunpack.c.l.b16 %v3135
        %v3399 = vunpack.c.l.b16 %v3136
        %v3400 = vunpack.c.l.b16 %v3137
        %v3401 = vunpack.c.l.b16 %v3138
        %v3402 = vunpack.c.l.b16 %v3139
        %v3403 = vunpack.c.l.b16 %v3140
        %v3404 = vpack.c.b16 %v3373, %v3372
        %v3405 = vpack.c.b16 %v3375, %v3374
        %v3406 = vpack.c.b16 %v3377, %v3376
        %v3407 = vpack.c.b16 %v3379, %v3378
        %v3408 = vpack.c.b16 %v3381, %v3380
        %v3409 = vpack.c.b16 %v3383, %v3382
        %v3410 = vpack.c.b16 %v3385, %v3384
        %v3411 = vpack.c.b16 %v3387, %v3386
        %v3412 = vpack.c.b16 %v3389, %v3388
        %v3413 = vpack.c.b16 %v3391, %v3390
        %v3414 = vpack.c.b16 %v3393, %v3392
        %v3415 = vpack.c.b16 %v3395, %v3394
        %v3416 = vpack.c.b16 %v3397, %v3396
        %v3417 = vpack.c.b16 %v3399, %v3398
        %v3418 = vpack.c.b16 %v3401, %v3400
        %v3419 = vpack.c.b16 %v3403, %v3402
        %3436 = vmatprep.subr.bf16.mxu0 0
        %3437 = vmatpush1.bf16.msra.mxu0 %v3404
        %3438 = vmatprep.subr.bf16.mxu0 0
        %3439 = vmatpush1.bf16.msra.mxu0 %v3405
        %3440 = vmatprep.subr.bf16.mxu0 0
        %3441 = vmatpush1.bf16.msra.mxu0 %v3406
        %3442 = vmatprep.subr.bf16.mxu0 0
        %3443 = vmatpush1.bf16.msra.mxu0 %v3407
        %3444 = vmatprep.subr.bf16.mxu0 0
        %3445 = vmatpush1.bf16.msra.mxu0 %v3408
        %3446 = vmatprep.subr.bf16.mxu0 0
        %3447 = vmatpush1.bf16.msra.mxu0 %v3409
        %3448 = vmatprep.subr.bf16.mxu0 0
        %3449 = vmatpush1.bf16.msra.mxu0 %v3410
        %3450 = vmatprep.subr.bf16.mxu0 0
        %3451 = vmatpush1.bf16.msra.mxu0 %v3411
        %3452 = vmatprep.subr.bf16.mxu0 0
        %3453 = vmatpush1.bf16.msra.mxu0 %v3412
        %3454 = vmatprep.subr.bf16.mxu0 0
        %3455 = vmatpush1.bf16.msra.mxu0 %v3413
        %3456 = vmatprep.subr.bf16.mxu0 0
        %3457 = vmatpush1.bf16.msra.mxu0 %v3414
        %3458 = vmatprep.subr.bf16.mxu0 0
        %3459 = vmatpush1.bf16.msra.mxu0 %v3415
        %3460 = vmatprep.subr.bf16.mxu0 0
        %3461 = vmatpush1.bf16.msra.mxu0 %v3416
        %3462 = vmatprep.subr.bf16.mxu0 0
        %3463 = vmatpush1.bf16.msra.mxu0 %v3417
        %3464 = vmatprep.subr.bf16.mxu0 0
        %3465 = vmatpush1.bf16.msra.mxu0 %v3418
        %3466 = vmatprep.subr.bf16.mxu0 0
        %3467 = vmatpush1.bf16.msra.mxu0 %v3419
        %3468 = vmatprep.mubr.bf16.mxu0 %v3327
        %3469 = vmatmul.mubr.bf16.gmra.mrb[0].mxu0 %v3326
        %v3470 = vpop.f32.mrb[0].mxu0
        %v3471 = vadd.f32 %v3338, %v3470
        %v3472 = vpop.f32.mrb[0].mxu0
        %v3473 = vpop.f32.mrb[0].mxu0
        %v3474 = vadd.f32 %v3338, %v3473
        %v3475 = vpop.f32.mrb[0].mxu0
        %3476 = vmatprep.mubr.bf16.mxu0 %v3329
        %3477 = vmatmul.mubr.bf16.gmra.mrb[0].mxu0 %v3328
        %v3478 = vpop.f32.mrb[0].mxu0
        %v3479 = vadd.f32 %v3338, %v3478
        %v3480 = vpop.f32.mrb[0].mxu0
        %v3481 = vpop.f32.mrb[0].mxu0
        %v3482 = vadd.f32 %v3338, %v3481
        %v3483 = vpop.f32.mrb[0].mxu0
        %3484 = vmatprep.mubr.bf16.mxu0 %v3331
        %3485 = vmatmul.mubr.bf16.gmra.mrb[0].mxu0 %v3330
        %v3486 = vpop.f32.mrb[0].mxu0
        %v3487 = vadd.f32 %v3338, %v3486
        %v3488 = vpop.f32.mrb[0].mxu0
        %v3489 = vpop.f32.mrb[0].mxu0
        %v3490 = vadd.f32 %v3338, %v3489
        %v3491 = vpop.f32.mrb[0].mxu0
        %3492 = vmatprep.mubr.bf16.mxu0 %v3333
        %3493 = vmatmul.mubr.bf16.gmra.mrb[0].mxu0 %v3332
        %v3494 = vpop.f32.mrb[0].mxu0
        %v3495 = vadd.f32 %v3338, %v3494
        %v3496 = vpop.f32.mrb[0].mxu0
        %v3497 = vpop.f32.mrb[0].mxu0
        %v3498 = vadd.f32 %v3338, %v3497
        %v3499 = vpop.f32.mrb[0].mxu0
        %3500 = vdwg.mxu0
        %v3501 = vadd.f32 %v3084, %v3471
        %v3502 = vadd.f32 %v3085, %v3474
        %v3503 = vadd.f32 %v3086, %v3479
        %v3504 = vadd.f32 %v3087, %v3482
        %v3505 = vadd.f32 %v3088, %v3487
        %v3506 = vadd.f32 %v3089, %v3490
        %v3507 = vadd.f32 %v3090, %v3495
        %v3508 = vadd.f32 %v3091, %v3498
        %v3509 = vld [vmem:[#allocation3] sm:$0x1]
        %v3510 = vld [vmem:[#allocation5] sm:$0x1]
        %3511 = vadd.xlane.f32.xlu0 %v3501
        %v3512 = vpop.xlane.xlu0 %3511
        %3513 = vadd.xlane.f32.xlu0 %v3502
        %v3514 = vpop.xlane.xlu0 %3513
        %3515 = vadd.xlane.f32.xlu0 %v3503
        %v3516 = vpop.xlane.xlu0 %3515
        %3517 = vadd.xlane.f32.xlu0 %v3504
        %v3518 = vpop.xlane.xlu0 %3517
        %3519 = vadd.xlane.f32.xlu0 %v3505
        %v3520 = vpop.xlane.xlu0 %3519
        %3521 = vadd.xlane.f32.xlu0 %v3506
        %v3522 = vpop.xlane.xlu0 %3521
        %3523 = vadd.xlane.f32.xlu0 %v3507
        %v3524 = vpop.xlane.xlu0 %3523
        %3525 = vadd.xlane.f32.xlu0 %v3508
        %v3526 = vpop.xlane.xlu0 %3525
        %v3527 = vmul.f32 %v3512, %v2991
        %v3528 = vmul.f32 %v3514, %v2991
        %v3529 = vmul.f32 %v3516, %v2991
        %v3530 = vmul.f32 %v3518, %v2991
        %v3531 = vmul.f32 %v3520, %v2991
        %v3532 = vmul.f32 %v3522, %v2991
        %v3533 = vmul.f32 %v3524, %v2991
        %v3534 = vmul.f32 %v3526, %v2991
        %v3535 = vsub.f32 %v3501, %v3527
        %v3536 = vsub.f32 %v3502, %v3528
        %v3537 = vsub.f32 %v3503, %v3529
        %v3538 = vsub.f32 %v3504, %v3530
        %v3539 = vsub.f32 %v3505, %v3531
        %v3540 = vsub.f32 %v3506, %v3532
        %v3541 = vsub.f32 %v3507, %v3533
        %v3542 = vsub.f32 %v3508, %v3534
        %v3543 = vmul.f32 %v3535, %v3535
        %v3544 = vmul.f32 %v3536, %v3536
        %v3545 = vmul.f32 %v3537, %v3537
        %v3546 = vmul.f32 %v3538, %v3538
        %v3547 = vmul.f32 %v3539, %v3539
        %v3548 = vmul.f32 %v3540, %v3540
        %v3549 = vmul.f32 %v3541, %v3541
        %v3550 = vmul.f32 %v3542, %v3542
        %3551 = vadd.xlane.f32.xlu0 %v3543
        %v3552 = vpop.xlane.xlu0 %3551
        %3553 = vadd.xlane.f32.xlu0 %v3544
        %v3554 = vpop.xlane.xlu0 %3553
        %3555 = vadd.xlane.f32.xlu0 %v3545
        %v3556 = vpop.xlane.xlu0 %3555
        %3557 = vadd.xlane.f32.xlu0 %v3546
        %v3558 = vpop.xlane.xlu0 %3557
        %3559 = vadd.xlane.f32.xlu0 %v3547
        %v3560 = vpop.xlane.xlu0 %3559
        %3561 = vadd.xlane.f32.xlu0 %v3548
        %v3562 = vpop.xlane.xlu0 %3561
        %3563 = vadd.xlane.f32.xlu0 %v3549
        %v3564 = vpop.xlane.xlu0 %3563
        %3565 = vadd.xlane.f32.xlu0 %v3550
        %v3566 = vpop.xlane.xlu0 %3565
        %v3567 = vmul.f32 %v3552, %v2991
        %v3568 = vmul.f32 %v3554, %v2991
        %v3569 = vmul.f32 %v3556, %v2991
        %v3570 = vmul.f32 %v3558, %v2991
        %v3571 = vmul.f32 %v3560, %v2991
        %v3572 = vmul.f32 %v3562, %v2991
        %v3573 = vmul.f32 %v3564, %v2991
        %v3574 = vmul.f32 %v3566, %v2991
        %v3575 = vadd.f32 %v3567, 1e-05
        %v3576 = vadd.f32 %v3568, 1e-05
        %v3577 = vadd.f32 %v3569, 1e-05
        %v3578 = vadd.f32 %v3570, 1e-05
        %v3579 = vadd.f32 %v3571, 1e-05
        %v3580 = vadd.f32 %v3572, 1e-05
        %v3581 = vadd.f32 %v3573, 1e-05
        %v3582 = vadd.f32 %v3574, 1e-05
        %v3583 = vrsqrt.pop %v3575
        %v3584 = vrsqrt.pop %v3576
        %v3585 = vrsqrt.pop %v3577
        %v3586 = vrsqrt.pop %v3578
        %v3587 = vrsqrt.pop %v3579
        %v3588 = vrsqrt.pop %v3580
        %v3589 = vrsqrt.pop %v3581
        %v3590 = vrsqrt.pop %v3582
        %v3591 = vmul.f32 %v3535, %v3583
        %v3592 = vmul.f32 %v3536, %v3584
        %v3593 = vmul.f32 %v3537, %v3585
        %v3594 = vmul.f32 %v3538, %v3586
        %v3595 = vmul.f32 %v3539, %v3587
        %v3596 = vmul.f32 %v3540, %v3588
        %v3597 = vmul.f32 %v3541, %v3589
        %v3598 = vmul.f32 %v3542, %v3590
        %v3600 = vlaneseq
        %v3601 = vshrl.u32 %v3600, 7
        %v3602 = vsub.s32 0, %v3601
        %v3603 = vrot.slane %v3509, %v3602
        %v3605 = vmul.f32 %v3591, %v3603
        %v3606 = vmul.f32 %v3592, %v3603
        %v3607 = vmul.f32 %v3593, %v3603
        %v3608 = vmul.f32 %v3594, %v3603
        %v3609 = vmul.f32 %v3595, %v3603
        %v3610 = vmul.f32 %v3596, %v3603
        %v3611 = vmul.f32 %v3597, %v3603
        %v3612 = vmul.f32 %v3598, %v3603
        %v3614 = vlaneseq
        %v3615 = vshrl.u32 %v3614, 7
        %v3616 = vsub.s32 0, %v3615
        %v3617 = vrot.slane %v3510, %v3616
        %v3619 = vadd.f32 %v3605, %v3617
        %v3620 = vadd.f32 %v3606, %v3617
        %v3621 = vadd.f32 %v3607, %v3617
        %v3622 = vadd.f32 %v3608, %v3617
        %v3623 = vadd.f32 %v3609, %v3617
        %v3624 = vadd.f32 %v3610, %v3617
        %v3625 = vadd.f32 %v3611, %v3617
        %v3626 = vadd.f32 %v3612, %v3617
        %3627 = vst [vmem:[#allocation2] sm:$0xff] %v3619
        %3628 = vst [vmem:[#allocation2 + $0x8] sm:$0xff] %v3620
        %3629 = vst [vmem:[#allocation2 + $0x10] sm:$0xff] %v3621
        %3630 = vst [vmem:[#allocation2 + $0x18] sm:$0xff] %v3622
        %3631 = vst [vmem:[#allocation2 + $0x20] sm:$0xff] %v3623
        %3632 = vst [vmem:[#allocation2 + $0x28] sm:$0xff] %v3624
        %3633 = vst [vmem:[#allocation2 + $0x30] sm:$0xff] %v3625
        %3634 = vst [vmem:[#allocation2 + $0x38] sm:$0xff] %v3626
        // Predicated region
        $region105: #{transformer_forward.2} parent=91 // pred_check
          %p3635 = pneg %p799
        $region106: #{transformer_forward.2} parent=91 // pred_check_branch
          %3637 = sbr.rel (%p3635) target = $region108
        $region107: #{transformer_forward.2} parent=91 // pred_region
          %v3638 = vld [vmem:[#allocation2] sm:$0xff]
          %v3639 = vld [vmem:[#allocation2 + $0x8] sm:$0xff]
          %v3640 = vld [vmem:[#allocation2 + $0x10] sm:$0xff]
          %v3641 = vld [vmem:[#allocation2 + $0x18] sm:$0xff]
          %v3642 = vld [vmem:[#allocation2 + $0x20] sm:$0xff]
          %v3643 = vld [vmem:[#allocation2 + $0x28] sm:$0xff]
          %v3644 = vld [vmem:[#allocation2 + $0x30] sm:$0xff]
          %v3645 = vld [vmem:[#allocation2 + $0x38] sm:$0xff]
          %3646 = vst [vmem:[%s797] sm:$0xff] %v3638
          %3647 = vst [vmem:[%s797 + $0x8] sm:$0xff] %v3639
          %3648 = vst [vmem:[%s797 + $0x10] sm:$0xff] %v3640
          %3649 = vst [vmem:[%s797 + $0x18] sm:$0xff] %v3641
          %3650 = vst [vmem:[%s797 + $0x20] sm:$0xff] %v3642
          %3651 = vst [vmem:[%s797 + $0x28] sm:$0xff] %v3643
          %3652 = vst [vmem:[%s797 + $0x30] sm:$0xff] %v3644
          %3653 = vst [vmem:[%s797 + $0x38] sm:$0xff] %v3645
        $region108: #{transformer_forward.2} parent=91 // pred_fallthru
          _
        %p3654 = scmp.lt.s32.totalorder %s35, 1
        %s3655 = scalar_select %p3654, %s35, 1
        %s3656 = smul.addr %s3655, 8
        %s3657 = smul.addr %s3656, 8
        %s3658 = scalar_lea.vmem %s18, %s3657
        // Predicated region
        $region109: #{transformer_forward.2} parent=91 // pred_check
          %p3659 = pneg %p504
        $region110: #{transformer_forward.2} parent=91 // pred_check_branch
          %3661 = sbr.rel (%p3659) target = $region112
        $region111: #{transformer_forward.2} parent=91 // pred_region
          _
        $region112: #{transformer_forward.2} parent=91 // pred_fallthru
          _
      $region92: #{transformer_forward.2} parent=5 // pred_fallthru
        _
      %p3662 = scmp.le.s32.totalorder 2, %s26
      // Predicated region
      $region113: #{transformer_forward.2} parent=5 // pred_check
        %p3663 = pneg %p3662
      $region114: #{transformer_forward.2} parent=5 // pred_check_branch
        %3665 = sbr.rel (%p3663) target = $region116
      $region115: #{transformer_forward.2} parent=5 // pred_region
        %s3666 = ssub.s32 %s26, 2
        // Predicated region
        $region117: #{transformer_forward.2} parent=115 // pred_check
          %p3667 = pneg %p510
        $region118: #{transformer_forward.2} parent=115 // pred_check_branch
          %3669 = sbr.rel (%p3667) target = $region120
        $region119: #{transformer_forward.2} parent=115 // pred_region
          %p3670 = scmp.lt.s32.totalorder %s37, 1
          %s3671 = scalar_select %p3670, %s37, 1
          %s3672 = smul.addr %s3671, 8
          %s3673 = smul.addr %s3672, 8
          %s3674 = scalar_lea.vmem %s18, %s3673
        $region120: #{transformer_forward.2} parent=115 // pred_fallthru
          _
      $region116: #{transformer_forward.2} parent=5 // pred_fallthru
        _
    $region6: #{transformer_forward.2} parent=1 // loop_footer
      %s30 = sadd.s32 1, %s26
    $region7: #{transformer_forward.2} parent=1 // loop_footer_branch
      %25 = sbr.rel target = $region3
    $region8: #{transformer_forward.2} parent=1 // loop_exit
      _
    %3675 = vsyncpa [#allocation4], 1
    %s3676 = scalar_lea.sflag [#allocation4], 1
    %3677 = vsyncpa %s3676, 1
    %3678 = vsyncpa [#allocation6], 1

// kernel: transformer_forward.3
$region0: #{transformer_forward.3}
  #allocation0 [shape = 'u32[]', space=smem, size = 0x4, offset = 0x4, fixed_abs, tag = 'smem constant byte address 0x4 - core index']
  #allocation1 [shape = 'u32[144,128]{1,0:T(1,128)}', space=vmem, size = 0x12000, scoped, tag = 'internal scratch']
  #allocation2 [shape = 'f32[8,128]{1,0:T(8,128)}', space=vmem, size = 0x1000, scoped, tag = 'scratch operand']
  #allocation3 [shape = 'f32[8,8]{1,0:T(8,128)}', space=vmem, size = 0x1000, scoped, tag = 'scratch operand']
  %s0 = inlined_call_operand.vmem [shape: f32[2,8,128], index: 0, kind: input, shape index: {}]
  %s1 = inlined_call_operand.vmem [shape: f32[2,64,128], index: 1, kind: input, shape index: {}]
  %s2 = inlined_call_operand.vmem [shape: f32[2,1,8], index: 2, kind: input, shape index: {}]
  %s3 = inlined_call_operand.vmem [shape: bf16[2,128,384], index: 3, kind: input, shape index: {}]
  %s4 = inlined_call_operand.vmem [shape: f32[2,1,384], index: 4, kind: input, shape index: {}]
  %s5 = inlined_call_operand.vmem [shape: bf16[2,4,32,128], index: 5, kind: input, shape index: {}]
  %s6 = inlined_call_operand.vmem [shape: f32[2,1,128], index: 6, kind: input, shape index: {}]
  %s7 = inlined_call_operand.vmem [shape: f32[2,1,128], index: 7, kind: input, shape index: {}]
  %s8 = inlined_call_operand.vmem [shape: f32[2,1,128], index: 8, kind: input, shape index: {}]
  %s9 = inlined_call_operand.vmem [shape: bf16[2,128,128], index: 9, kind: input, shape index: {}]
  %s10 = inlined_call_operand.vmem [shape: f32[2,1,128], index: 10, kind: input, shape index: {}]
  %s11 = inlined_call_operand.vmem [shape: bf16[2,128,256], index: 11, kind: input, shape index: {}]
  %s12 = inlined_call_operand.vmem [shape: f32[2,1,256], index: 12, kind: input, shape index: {}]
  %s13 = inlined_call_operand.vmem [shape: bf16[2,4,32,128], index: 13, kind: input, shape index: {}]
  %s14 = inlined_call_operand.vmem [shape: f32[2,1,128], index: 14, kind: input, shape index: {}]
  %s15 = inlined_call_operand.vmem [shape: f32[2,1,128], index: 15, kind: input, shape index: {}]
  %s16 = inlined_call_operand.vmem [shape: f32[2,1,128], index: 16, kind: input, shape index: {}]
  %s17 = inlined_call_operand.vmem [shape: bf16[2,128,256], index: 17, kind: input, shape index: {}]
  %s18 = inlined_call_operand.vmem [shape: f32[2,1,256], index: 18, kind: input, shape index: {}]
  %s19 = inlined_call_operand.vmem [shape: bf16[2,256,128], index: 19, kind: input, shape index: {}]
  %s20 = inlined_call_operand.vmem [shape: f32[2,1,128], index: 20, kind: input, shape index: {}]
  %s21 = inlined_call_operand.vmem [shape: f32[2,1,128], index: 21, kind: input, shape index: {}]
  %s22 = inlined_call_operand.vmem [shape: f32[2,1,128], index: 22, kind: input, shape index: {}]
  %s23 = inlined_call_operand.vmem [shape: bf16[128,128], index: 23, kind: input, shape index: {}]
  %s24 = inlined_call_operand.vmem [shape: f32[1,128], index: 24, kind: input, shape index: {}]
  %s25 = inlined_call_operand.hbm [shape: f32[2,8,128], index: 25, kind: output, shape index: {}]
  %s26 = sld [smem:[#allocation0]]
  $region141: #{transformer_forward.3} parent=0
    _
  %s28 = ssub.s32 1, %s26
  %s29 = scalar_select 0, %s28, %s26
  $region1: #{transformer_forward.3} parent=0
    #allocation4 [shape = 'u8[8192]{0}', space=vmem, size = 0x2000, scoped, tag = 'output window, operand 0']
    #allocation5 [shape = 's32[2]{0}', space=sflag, size = 0x8, scoped, tag = 'scoped memory for transformer_forward.3']
    %30 = vsyncpa [#allocation5], 0
    %s31 = scalar_lea.sflag [#allocation5], 1
    %32 = vsyncpa %s31, 0
    loop: start=0, step=1, limit=6
    $region2: #{transformer_forward.3} parent=1 // loop_pre_header
      _
    $region3: #{transformer_forward.3} parent=1 // loop_header
      %s34 = sphi 0, %s38
      %p35 = scmp.ge.s32.totalorder %s34, 6
      %s41 = sphi 0, %s53
      %s42 = sphi 0, %s49
      %s43 = sphi 0, %s41
      %s44 = sphi 0, %s42
      %s45 = sphi 0, %s43
      %s46 = sphi 0, %s44
      %s56 = sphi 0, %s58
      %s59 = sphi 0, %s56
      %s60 = sphi 0, %s59
      %s76 = sphi 0, %s60
      %s82 = sphi 0, %s84
      %s85 = sphi 0, %s82
      %s86 = sphi 0, %s85
      %s102 = sphi 0, %s86
      %s108 = sphi 0, %s110
      %s111 = sphi 0, %s108
      %s112 = sphi 0, %s111
      %s128 = sphi 0, %s112
      %s134 = sphi 0, %s136
      %s137 = sphi 0, %s134
      %s138 = sphi 0, %s137
      %s154 = sphi 0, %s138
      %s160 = sphi 0, %s162
      %s163 = sphi 0, %s160
      %s164 = sphi 0, %s163
      %s180 = sphi 0, %s164
      %s186 = sphi 0, %s188
      %s189 = sphi 0, %s186
      %s190 = sphi 0, %s189
      %s206 = sphi 0, %s190
      %s212 = sphi 0, %s214
      %s215 = sphi 0, %s212
      %s216 = sphi 0, %s215
      %s232 = sphi 0, %s216
      %s238 = sphi 0, %s240
      %s241 = sphi 0, %s238
      %s242 = sphi 0, %s241
      %s258 = sphi 0, %s242
      %s264 = sphi 0, %s266
      %s267 = sphi 0, %s264
      %s268 = sphi 0, %s267
      %s284 = sphi 0, %s268
      %s290 = sphi 0, %s292
      %s293 = sphi 0, %s290
      %s294 = sphi 0, %s293
      %s310 = sphi 0, %s294
      %s316 = sphi 0, %s318
      %s319 = sphi 0, %s316
      %s320 = sphi 0, %s319
      %s336 = sphi 0, %s320
      %s342 = sphi 0, %s344
      %s345 = sphi 0, %s342
      %s346 = sphi 0, %s345
      %s362 = sphi 0, %s346
      %s368 = sphi 0, %s370
      %s371 = sphi 0, %s368
      %s372 = sphi 0, %s371
      %s388 = sphi 0, %s372
      %s394 = sphi 0, %s396
      %s397 = sphi 0, %s394
      %s398 = sphi 0, %s397
      %s414 = sphi 0, %s398
      %s420 = sphi 0, %s422
      %s423 = sphi 0, %s420
      %s424 = sphi 0, %s423
      %s440 = sphi 0, %s424
      %s446 = sphi 0, %s448
      %s449 = sphi 0, %s446
      %s450 = sphi 0, %s449
      %s466 = sphi 0, %s450
      %s472 = sphi 0, %s474
      %s475 = sphi 0, %s472
      %s476 = sphi 0, %s475
      %s492 = sphi 0, %s476
      %s498 = sphi 0, %s500
      %s501 = sphi 0, %s498
      %s502 = sphi 0, %s501
      %s518 = sphi 0, %s502
      %s524 = sphi 0, %s526
      %s527 = sphi 0, %s524
      %s528 = sphi 0, %s527
      %s544 = sphi 0, %s528
      %s550 = sphi 0, %s552
      %s553 = sphi 0, %s550
      %s554 = sphi 0, %s553
      %s570 = sphi 0, %s554
      %s576 = sphi 0, %s578
      %s579 = sphi 0, %s576
      %s580 = sphi 0, %s579
      %s596 = sphi 0, %s580
      %s602 = sphi 0, %s604
      %s605 = sphi 0, %s602
      %s606 = sphi 0, %s605
      %s622 = sphi 0, %s606
      %s628 = sphi 0, %s630
      %s631 = sphi 0, %s628
      %s632 = sphi 0, %s631
      %s648 = sphi 0, %s632
      %s652 = sphi 0, %s652
      %s654 = sphi 0, %s652
      %s655 = sphi 0, %s654
      %s669 = sphi 0, %s655
      %s673 = sphi 0, %s673
      %s675 = sphi 0, %s673
      %s676 = sphi 0, %s675
      %s690 = sphi 0, %s676
      %s696 = sphi 0, %s698
      %s699 = sphi 0, %s696
      %s700 = sphi 0, %s699
      %s716 = sphi 0, %s700
    $region4: #{transformer_forward.3} parent=1 // loop_header_branch
      %37 = sbr.rel (%p35) target = $region8
    $region5: #{transformer_forward.3} parent=1 // loop_body
      %s39 = ssub.s32 %s34, 1
      %s40 = ssub.s32 %s34, 2
      %s47 = sadd.s32 1, %s42
      %p48 = scmp.ge.s32.totalorder %s47, 2
      %s49 = scalar_select %p48, 0, %s47
      %s50 = sadd.s32 1, %s41
      %s51 = scalar_select %p48, %s50, %s41
      %p52 = scmp.ge.s32.totalorder %s51, 2
      %s53 = scalar_select %p52, 0, %s51
      %s54 = ssub.s32 %s41, %s53
      %p55 = scmp.eq.s32.totalorder %s54, 0
      %s57 = sadd.s32 %s56, 1
      %s58 = scalar_select %p55, %s56, %s57
      %p61 = pneg %p55
      %p62 = scmp.eq.s32.totalorder %s34, 3
      %p63 = por %p61, %p62
      %p64 = scmp.ne.s32.totalorder %s56, %s59
      %p65 = scmp.eq.s32.totalorder %s34, 0
      %p66 = por %p64, %p65
      %p67 = scmp.ne.s32.totalorder %s56, %s59
      %p68 = scmp.eq.s32.totalorder %s39, 3
      %p69 = por %p67, %p68
      %p70 = scmp.ne.s32.totalorder %s59, %s60
      %p71 = scmp.eq.s32.totalorder %s39, 0
      %p72 = por %p70, %p71
      %p73 = scmp.ne.s32.totalorder %s59, %s60
      %p74 = scmp.eq.s32.totalorder %s40, 3
      %p75 = por %p73, %p74
      %p77 = scmp.ne.s32.totalorder %s60, %s76
      %p78 = scmp.eq.s32.totalorder %s40, 0
      %p79 = por %p77, %p78
      %s80 = ssub.s32 %s41, %s53
      %p81 = scmp.eq.s32.totalorder %s80, 0
      %s83 = sadd.s32 %s82, 1
      %s84 = scalar_select %p81, %s82, %s83
      %p87 = pneg %p81
      %p88 = scmp.eq.s32.totalorder %s34, 3
      %p89 = por %p87, %p88
      %p90 = scmp.ne.s32.totalorder %s82, %s85
      %p91 = scmp.eq.s32.totalorder %s34, 0
      %p92 = por %p90, %p91
      %p93 = scmp.ne.s32.totalorder %s82, %s85
      %p94 = scmp.eq.s32.totalorder %s39, 3
      %p95 = por %p93, %p94
      %p96 = scmp.ne.s32.totalorder %s85, %s86
      %p97 = scmp.eq.s32.totalorder %s39, 0
      %p98 = por %p96, %p97
      %p99 = scmp.ne.s32.totalorder %s85, %s86
      %p100 = scmp.eq.s32.totalorder %s40, 3
      %p101 = por %p99, %p100
      %p103 = scmp.ne.s32.totalorder %s86, %s102
      %p104 = scmp.eq.s32.totalorder %s40, 0
      %p105 = por %p103, %p104
      %s106 = ssub.s32 %s41, %s53
      %p107 = scmp.eq.s32.totalorder %s106, 0
      %s109 = sadd.s32 %s108, 1
      %s110 = scalar_select %p107, %s108, %s109
      %p113 = pneg %p107
      %p114 = scmp.eq.s32.totalorder %s34, 3
      %p115 = por %p113, %p114
      %p116 = scmp.ne.s32.totalorder %s108, %s111
      %p117 = scmp.eq.s32.totalorder %s34, 0
      %p118 = por %p116, %p117
      %p119 = scmp.ne.s32.totalorder %s108, %s111
      %p120 = scmp.eq.s32.totalorder %s39, 3
      %p121 = por %p119, %p120
      %p122 = scmp.ne.s32.totalorder %s111, %s112
      %p123 = scmp.eq.s32.totalorder %s39, 0
      %p124 = por %p122, %p123
      %p125 = scmp.ne.s32.totalorder %s111, %s112
      %p126 = scmp.eq.s32.totalorder %s40, 3
      %p127 = por %p125, %p126
      %p129 = scmp.ne.s32.totalorder %s112, %s128
      %p130 = scmp.eq.s32.totalorder %s40, 0
      %p131 = por %p129, %p130
      %s132 = ssub.s32 %s42, %s49
      %p133 = scmp.eq.s32.totalorder %s132, 0
      %s135 = sadd.s32 %s134, 1
      %s136 = scalar_select %p133, %s134, %s135
      %p139 = pneg %p133
      %p140 = scmp.eq.s32.totalorder %s34, 3
      %p141 = por %p139, %p140
      %p142 = scmp.ne.s32.totalorder %s134, %s137
      %p143 = scmp.eq.s32.totalorder %s34, 0
      %p144 = por %p142, %p143
      %p145 = scmp.ne.s32.totalorder %s134, %s137
      %p146 = scmp.eq.s32.totalorder %s39, 3
      %p147 = por %p145, %p146
      %p148 = scmp.ne.s32.totalorder %s137, %s138
      %p149 = scmp.eq.s32.totalorder %s39, 0
      %p150 = por %p148, %p149
      %p151 = scmp.ne.s32.totalorder %s137, %s138
      %p152 = scmp.eq.s32.totalorder %s40, 3
      %p153 = por %p151, %p152
      %p155 = scmp.ne.s32.totalorder %s138, %s154
      %p156 = scmp.eq.s32.totalorder %s40, 0
      %p157 = por %p155, %p156
      %s158 = ssub.s32 %s42, %s49
      %p159 = scmp.eq.s32.totalorder %s158, 0
      %s161 = sadd.s32 %s160, 1
      %s162 = scalar_select %p159, %s160, %s161
      %p165 = pneg %p159
      %p166 = scmp.eq.s32.totalorder %s34, 3
      %p167 = por %p165, %p166
      %p168 = scmp.ne.s32.totalorder %s160, %s163
      %p169 = scmp.eq.s32.totalorder %s34, 0
      %p170 = por %p168, %p169
      %p171 = scmp.ne.s32.totalorder %s160, %s163
      %p172 = scmp.eq.s32.totalorder %s39, 3
      %p173 = por %p171, %p172
      %p174 = scmp.ne.s32.totalorder %s163, %s164
      %p175 = scmp.eq.s32.totalorder %s39, 0
      %p176 = por %p174, %p175
      %p177 = scmp.ne.s32.totalorder %s163, %s164
      %p178 = scmp.eq.s32.totalorder %s40, 3
      %p179 = por %p177, %p178
      %p181 = scmp.ne.s32.totalorder %s164, %s180
      %p182 = scmp.eq.s32.totalorder %s40, 0
      %p183 = por %p181, %p182
      %s184 = ssub.s32 %s42, %s49
      %p185 = scmp.eq.s32.totalorder %s184, 0
      %s187 = sadd.s32 %s186, 1
      %s188 = scalar_select %p185, %s186, %s187
      %p191 = pneg %p185
      %p192 = scmp.eq.s32.totalorder %s34, 3
      %p193 = por %p191, %p192
      %p194 = scmp.ne.s32.totalorder %s186, %s189
      %p195 = scmp.eq.s32.totalorder %s34, 0
      %p196 = por %p194, %p195
      %p197 = scmp.ne.s32.totalorder %s186, %s189
      %p198 = scmp.eq.s32.totalorder %s39, 3
      %p199 = por %p197, %p198
      %p200 = scmp.ne.s32.totalorder %s189, %s190
      %p201 = scmp.eq.s32.totalorder %s39, 0
      %p202 = por %p200, %p201
      %p203 = scmp.ne.s32.totalorder %s189, %s190
      %p204 = scmp.eq.s32.totalorder %s40, 3
      %p205 = por %p203, %p204
      %p207 = scmp.ne.s32.totalorder %s190, %s206
      %p208 = scmp.eq.s32.totalorder %s40, 0
      %p209 = por %p207, %p208
      %s210 = ssub.s32 %s42, %s49
      %p211 = scmp.eq.s32.totalorder %s210, 0
      %s213 = sadd.s32 %s212, 1
      %s214 = scalar_select %p211, %s212, %s213
      %p217 = pneg %p211
      %p218 = scmp.eq.s32.totalorder %s34, 3
      %p219 = por %p217, %p218
      %p220 = scmp.ne.s32.totalorder %s212, %s215
      %p221 = scmp.eq.s32.totalorder %s34, 0
      %p222 = por %p220, %p221
      %p223 = scmp.ne.s32.totalorder %s212, %s215
      %p224 = scmp.eq.s32.totalorder %s39, 3
      %p225 = por %p223, %p224
      %p226 = scmp.ne.s32.totalorder %s215, %s216
      %p227 = scmp.eq.s32.totalorder %s39, 0
      %p228 = por %p226, %p227
      %p229 = scmp.ne.s32.totalorder %s215, %s216
      %p230 = scmp.eq.s32.totalorder %s40, 3
      %p231 = por %p229, %p230
      %p233 = scmp.ne.s32.totalorder %s216, %s232
      %p234 = scmp.eq.s32.totalorder %s40, 0
      %p235 = por %p233, %p234
      %s236 = ssub.s32 %s42, %s49
      %p237 = scmp.eq.s32.totalorder %s236, 0
      %s239 = sadd.s32 %s238, 1
      %s240 = scalar_select %p237, %s238, %s239
      %p243 = pneg %p237
      %p244 = scmp.eq.s32.totalorder %s34, 3
      %p245 = por %p243, %p244
      %p246 = scmp.ne.s32.totalorder %s238, %s241
      %p247 = scmp.eq.s32.totalorder %s34, 0
      %p248 = por %p246, %p247
      %p249 = scmp.ne.s32.totalorder %s238, %s241
      %p250 = scmp.eq.s32.totalorder %s39, 3
      %p251 = por %p249, %p250
      %p252 = scmp.ne.s32.totalorder %s241, %s242
      %p253 = scmp.eq.s32.totalorder %s39, 0
      %p254 = por %p252, %p253
      %p255 = scmp.ne.s32.totalorder %s241, %s242
      %p256 = scmp.eq.s32.totalorder %s40, 3
      %p257 = por %p255, %p256
      %p259 = scmp.ne.s32.totalorder %s242, %s258
      %p260 = scmp.eq.s32.totalorder %s40, 0
      %p261 = por %p259, %p260
      %s262 = ssub.s32 %s42, %s49
      %p263 = scmp.eq.s32.totalorder %s262, 0
      %s265 = sadd.s32 %s264, 1
      %s266 = scalar_select %p263, %s264, %s265
      %p269 = pneg %p263
      %p270 = scmp.eq.s32.totalorder %s34, 3
      %p271 = por %p269, %p270
      %p272 = scmp.ne.s32.totalorder %s264, %s267
      %p273 = scmp.eq.s32.totalorder %s34, 0
      %p274 = por %p272, %p273
      %p275 = scmp.ne.s32.totalorder %s264, %s267
      %p276 = scmp.eq.s32.totalorder %s39, 3
      %p277 = por %p275, %p276
      %p278 = scmp.ne.s32.totalorder %s267, %s268
      %p279 = scmp.eq.s32.totalorder %s39, 0
      %p280 = por %p278, %p279
      %p281 = scmp.ne.s32.totalorder %s267, %s268
      %p282 = scmp.eq.s32.totalorder %s40, 3
      %p283 = por %p281, %p282
      %p285 = scmp.ne.s32.totalorder %s268, %s284
      %p286 = scmp.eq.s32.totalorder %s40, 0
      %p287 = por %p285, %p286
      %s288 = ssub.s32 %s42, %s49
      %p289 = scmp.eq.s32.totalorder %s288, 0
      %s291 = sadd.s32 %s290, 1
      %s292 = scalar_select %p289, %s290, %s291
      %p295 = pneg %p289
      %p296 = scmp.eq.s32.totalorder %s34, 3
      %p297 = por %p295, %p296
      %p298 = scmp.ne.s32.totalorder %s290, %s293
      %p299 = scmp.eq.s32.totalorder %s34, 0
      %p300 = por %p298, %p299
      %p301 = scmp.ne.s32.totalorder %s290, %s293
      %p302 = scmp.eq.s32.totalorder %s39, 3
      %p303 = por %p301, %p302
      %p304 = scmp.ne.s32.totalorder %s293, %s294
      %p305 = scmp.eq.s32.totalorder %s39, 0
      %p306 = por %p304, %p305
      %p307 = scmp.ne.s32.totalorder %s293, %s294
      %p308 = scmp.eq.s32.totalorder %s40, 3
      %p309 = por %p307, %p308
      %p311 = scmp.ne.s32.totalorder %s294, %s310
      %p312 = scmp.eq.s32.totalorder %s40, 0
      %p313 = por %p311, %p312
      %s314 = ssub.s32 %s42, %s49
      %p315 = scmp.eq.s32.totalorder %s314, 0
      %s317 = sadd.s32 %s316, 1
      %s318 = scalar_select %p315, %s316, %s317
      %p321 = pneg %p315
      %p322 = scmp.eq.s32.totalorder %s34, 3
      %p323 = por %p321, %p322
      %p324 = scmp.ne.s32.totalorder %s316, %s319
      %p325 = scmp.eq.s32.totalorder %s34, 0
      %p326 = por %p324, %p325
      %p327 = scmp.ne.s32.totalorder %s316, %s319
      %p328 = scmp.eq.s32.totalorder %s39, 3
      %p329 = por %p327, %p328
      %p330 = scmp.ne.s32.totalorder %s319, %s320
      %p331 = scmp.eq.s32.totalorder %s39, 0
      %p332 = por %p330, %p331
      %p333 = scmp.ne.s32.totalorder %s319, %s320
      %p334 = scmp.eq.s32.totalorder %s40, 3
      %p335 = por %p333, %p334
      %p337 = scmp.ne.s32.totalorder %s320, %s336
      %p338 = scmp.eq.s32.totalorder %s40, 0
      %p339 = por %p337, %p338
      %s340 = ssub.s32 %s42, %s49
      %p341 = scmp.eq.s32.totalorder %s340, 0
      %s343 = sadd.s32 %s342, 1
      %s344 = scalar_select %p341, %s342, %s343
      %p347 = pneg %p341
      %p348 = scmp.eq.s32.totalorder %s34, 3
      %p349 = por %p347, %p348
      %p350 = scmp.ne.s32.totalorder %s342, %s345
      %p351 = scmp.eq.s32.totalorder %s34, 0
      %p352 = por %p350, %p351
      %p353 = scmp.ne.s32.totalorder %s342, %s345
      %p354 = scmp.eq.s32.totalorder %s39, 3
      %p355 = por %p353, %p354
      %p356 = scmp.ne.s32.totalorder %s345, %s346
      %p357 = scmp.eq.s32.totalorder %s39, 0
      %p358 = por %p356, %p357
      %p359 = scmp.ne.s32.totalorder %s345, %s346
      %p360 = scmp.eq.s32.totalorder %s40, 3
      %p361 = por %p359, %p360
      %p363 = scmp.ne.s32.totalorder %s346, %s362
      %p364 = scmp.eq.s32.totalorder %s40, 0
      %p365 = por %p363, %p364
      %s366 = ssub.s32 %s42, %s49
      %p367 = scmp.eq.s32.totalorder %s366, 0
      %s369 = sadd.s32 %s368, 1
      %s370 = scalar_select %p367, %s368, %s369
      %p373 = pneg %p367
      %p374 = scmp.eq.s32.totalorder %s34, 3
      %p375 = por %p373, %p374
      %p376 = scmp.ne.s32.totalorder %s368, %s371
      %p377 = scmp.eq.s32.totalorder %s34, 0
      %p378 = por %p376, %p377
      %p379 = scmp.ne.s32.totalorder %s368, %s371
      %p380 = scmp.eq.s32.totalorder %s39, 3
      %p381 = por %p379, %p380
      %p382 = scmp.ne.s32.totalorder %s371, %s372
      %p383 = scmp.eq.s32.totalorder %s39, 0
      %p384 = por %p382, %p383
      %p385 = scmp.ne.s32.totalorder %s371, %s372
      %p386 = scmp.eq.s32.totalorder %s40, 3
      %p387 = por %p385, %p386
      %p389 = scmp.ne.s32.totalorder %s372, %s388
      %p390 = scmp.eq.s32.totalorder %s40, 0
      %p391 = por %p389, %p390
      %s392 = ssub.s32 %s42, %s49
      %p393 = scmp.eq.s32.totalorder %s392, 0
      %s395 = sadd.s32 %s394, 1
      %s396 = scalar_select %p393, %s394, %s395
      %p399 = pneg %p393
      %p400 = scmp.eq.s32.totalorder %s34, 3
      %p401 = por %p399, %p400
      %p402 = scmp.ne.s32.totalorder %s394, %s397
      %p403 = scmp.eq.s32.totalorder %s34, 0
      %p404 = por %p402, %p403
      %p405 = scmp.ne.s32.totalorder %s394, %s397
      %p406 = scmp.eq.s32.totalorder %s39, 3
      %p407 = por %p405, %p406
      %p408 = scmp.ne.s32.totalorder %s397, %s398
      %p409 = scmp.eq.s32.totalorder %s39, 0
      %p410 = por %p408, %p409
      %p411 = scmp.ne.s32.totalorder %s397, %s398
      %p412 = scmp.eq.s32.totalorder %s40, 3
      %p413 = por %p411, %p412
      %p415 = scmp.ne.s32.totalorder %s398, %s414
      %p416 = scmp.eq.s32.totalorder %s40, 0
      %p417 = por %p415, %p416
      %s418 = ssub.s32 %s42, %s49
      %p419 = scmp.eq.s32.totalorder %s418, 0
      %s421 = sadd.s32 %s420, 1
      %s422 = scalar_select %p419, %s420, %s421
      %p425 = pneg %p419
      %p426 = scmp.eq.s32.totalorder %s34, 3
      %p427 = por %p425, %p426
      %p428 = scmp.ne.s32.totalorder %s420, %s423
      %p429 = scmp.eq.s32.totalorder %s34, 0
      %p430 = por %p428, %p429
      %p431 = scmp.ne.s32.totalorder %s420, %s423
      %p432 = scmp.eq.s32.totalorder %s39, 3
      %p433 = por %p431, %p432
      %p434 = scmp.ne.s32.totalorder %s423, %s424
      %p435 = scmp.eq.s32.totalorder %s39, 0
      %p436 = por %p434, %p435
      %p437 = scmp.ne.s32.totalorder %s423, %s424
      %p438 = scmp.eq.s32.totalorder %s40, 3
      %p439 = por %p437, %p438
      %p441 = scmp.ne.s32.totalorder %s424, %s440
      %p442 = scmp.eq.s32.totalorder %s40, 0
      %p443 = por %p441, %p442
      %s444 = ssub.s32 %s42, %s49
      %p445 = scmp.eq.s32.totalorder %s444, 0
      %s447 = sadd.s32 %s446, 1
      %s448 = scalar_select %p445, %s446, %s447
      %p451 = pneg %p445
      %p452 = scmp.eq.s32.totalorder %s34, 3
      %p453 = por %p451, %p452
      %p454 = scmp.ne.s32.totalorder %s446, %s449
      %p455 = scmp.eq.s32.totalorder %s34, 0
      %p456 = por %p454, %p455
      %p457 = scmp.ne.s32.totalorder %s446, %s449
      %p458 = scmp.eq.s32.totalorder %s39, 3
      %p459 = por %p457, %p458
      %p460 = scmp.ne.s32.totalorder %s449, %s450
      %p461 = scmp.eq.s32.totalorder %s39, 0
      %p462 = por %p460, %p461
      %p463 = scmp.ne.s32.totalorder %s449, %s450
      %p464 = scmp.eq.s32.totalorder %s40, 3
      %p465 = por %p463, %p464
      %p467 = scmp.ne.s32.totalorder %s450, %s466
      %p468 = scmp.eq.s32.totalorder %s40, 0
      %p469 = por %p467, %p468
      %s470 = ssub.s32 %s42, %s49
      %p471 = scmp.eq.s32.totalorder %s470, 0
      %s473 = sadd.s32 %s472, 1
      %s474 = scalar_select %p471, %s472, %s473
      %p477 = pneg %p471
      %p478 = scmp.eq.s32.totalorder %s34, 3
      %p479 = por %p477, %p478
      %p480 = scmp.ne.s32.totalorder %s472, %s475
      %p481 = scmp.eq.s32.totalorder %s34, 0
      %p482 = por %p480, %p481
      %p483 = scmp.ne.s32.totalorder %s472, %s475
      %p484 = scmp.eq.s32.totalorder %s39, 3
      %p485 = por %p483, %p484
      %p486 = scmp.ne.s32.totalorder %s475, %s476
      %p487 = scmp.eq.s32.totalorder %s39, 0
      %p488 = por %p486, %p487
      %p489 = scmp.ne.s32.totalorder %s475, %s476
      %p490 = scmp.eq.s32.totalorder %s40, 3
      %p491 = por %p489, %p490
      %p493 = scmp.ne.s32.totalorder %s476, %s492
      %p494 = scmp.eq.s32.totalorder %s40, 0
      %p495 = por %p493, %p494
      %s496 = ssub.s32 %s42, %s49
      %p497 = scmp.eq.s32.totalorder %s496, 0
      %s499 = sadd.s32 %s498, 1
      %s500 = scalar_select %p497, %s498, %s499
      %p503 = pneg %p497
      %p504 = scmp.eq.s32.totalorder %s34, 3
      %p505 = por %p503, %p504
      %p506 = scmp.ne.s32.totalorder %s498, %s501
      %p507 = scmp.eq.s32.totalorder %s34, 0
      %p508 = por %p506, %p507
      %p509 = scmp.ne.s32.totalorder %s498, %s501
      %p510 = scmp.eq.s32.totalorder %s39, 3
      %p511 = por %p509, %p510
      %p512 = scmp.ne.s32.totalorder %s501, %s502
      %p513 = scmp.eq.s32.totalorder %s39, 0
      %p514 = por %p512, %p513
      %p515 = scmp.ne.s32.totalorder %s501, %s502
      %p516 = scmp.eq.s32.totalorder %s40, 3
      %p517 = por %p515, %p516
      %p519 = scmp.ne.s32.totalorder %s502, %s518
      %p520 = scmp.eq.s32.totalorder %s40, 0
      %p521 = por %p519, %p520
      %s522 = ssub.s32 %s42, %s49
      %p523 = scmp.eq.s32.totalorder %s522, 0
      %s525 = sadd.s32 %s524, 1
      %s526 = scalar_select %p523, %s524, %s525
      %p529 = pneg %p523
      %p530 = scmp.eq.s32.totalorder %s34, 3
      %p531 = por %p529, %p530
      %p532 = scmp.ne.s32.totalorder %s524, %s527
      %p533 = scmp.eq.s32.totalorder %s34, 0
      %p534 = por %p532, %p533
      %p535 = scmp.ne.s32.totalorder %s524, %s527
      %p536 = scmp.eq.s32.totalorder %s39, 3
      %p537 = por %p535, %p536
      %p538 = scmp.ne.s32.totalorder %s527, %s528
      %p539 = scmp.eq.s32.totalorder %s39, 0
      %p540 = por %p538, %p539
      %p541 = scmp.ne.s32.totalorder %s527, %s528
      %p542 = scmp.eq.s32.totalorder %s40, 3
      %p543 = por %p541, %p542
      %p545 = scmp.ne.s32.totalorder %s528, %s544
      %p546 = scmp.eq.s32.totalorder %s40, 0
      %p547 = por %p545, %p546
      %s548 = ssub.s32 %s42, %s49
      %p549 = scmp.eq.s32.totalorder %s548, 0
      %s551 = sadd.s32 %s550, 1
      %s552 = scalar_select %p549, %s550, %s551
      %p555 = pneg %p549
      %p556 = scmp.eq.s32.totalorder %s34, 3
      %p557 = por %p555, %p556
      %p558 = scmp.ne.s32.totalorder %s550, %s553
      %p559 = scmp.eq.s32.totalorder %s34, 0
      %p560 = por %p558, %p559
      %p561 = scmp.ne.s32.totalorder %s550, %s553
      %p562 = scmp.eq.s32.totalorder %s39, 3
      %p563 = por %p561, %p562
      %p564 = scmp.ne.s32.totalorder %s553, %s554
      %p565 = scmp.eq.s32.totalorder %s39, 0
      %p566 = por %p564, %p565
      %p567 = scmp.ne.s32.totalorder %s553, %s554
      %p568 = scmp.eq.s32.totalorder %s40, 3
      %p569 = por %p567, %p568
      %p571 = scmp.ne.s32.totalorder %s554, %s570
      %p572 = scmp.eq.s32.totalorder %s40, 0
      %p573 = por %p571, %p572
      %s574 = ssub.s32 %s42, %s49
      %p575 = scmp.eq.s32.totalorder %s574, 0
      %s577 = sadd.s32 %s576, 1
      %s578 = scalar_select %p575, %s576, %s577
      %p581 = pneg %p575
      %p582 = scmp.eq.s32.totalorder %s34, 3
      %p583 = por %p581, %p582
      %p584 = scmp.ne.s32.totalorder %s576, %s579
      %p585 = scmp.eq.s32.totalorder %s34, 0
      %p586 = por %p584, %p585
      %p587 = scmp.ne.s32.totalorder %s576, %s579
      %p588 = scmp.eq.s32.totalorder %s39, 3
      %p589 = por %p587, %p588
      %p590 = scmp.ne.s32.totalorder %s579, %s580
      %p591 = scmp.eq.s32.totalorder %s39, 0
      %p592 = por %p590, %p591
      %p593 = scmp.ne.s32.totalorder %s579, %s580
      %p594 = scmp.eq.s32.totalorder %s40, 3
      %p595 = por %p593, %p594
      %p597 = scmp.ne.s32.totalorder %s580, %s596
      %p598 = scmp.eq.s32.totalorder %s40, 0
      %p599 = por %p597, %p598
      %s600 = ssub.s32 %s42, %s49
      %p601 = scmp.eq.s32.totalorder %s600, 0
      %s603 = sadd.s32 %s602, 1
      %s604 = scalar_select %p601, %s602, %s603
      %p607 = pneg %p601
      %p608 = scmp.eq.s32.totalorder %s34, 3
      %p609 = por %p607, %p608
      %p610 = scmp.ne.s32.totalorder %s602, %s605
      %p611 = scmp.eq.s32.totalorder %s34, 0
      %p612 = por %p610, %p611
      %p613 = scmp.ne.s32.totalorder %s602, %s605
      %p614 = scmp.eq.s32.totalorder %s39, 3
      %p615 = por %p613, %p614
      %p616 = scmp.ne.s32.totalorder %s605, %s606
      %p617 = scmp.eq.s32.totalorder %s39, 0
      %p618 = por %p616, %p617
      %p619 = scmp.ne.s32.totalorder %s605, %s606
      %p620 = scmp.eq.s32.totalorder %s40, 3
      %p621 = por %p619, %p620
      %p623 = scmp.ne.s32.totalorder %s606, %s622
      %p624 = scmp.eq.s32.totalorder %s40, 0
      %p625 = por %p623, %p624
      %s626 = ssub.s32 %s42, %s49
      %p627 = scmp.eq.s32.totalorder %s626, 0
      %s629 = sadd.s32 %s628, 1
      %s630 = scalar_select %p627, %s628, %s629
      %p633 = pneg %p627
      %p634 = scmp.eq.s32.totalorder %s34, 3
      %p635 = por %p633, %p634
      %p636 = scmp.ne.s32.totalorder %s628, %s631
      %p637 = scmp.eq.s32.totalorder %s34, 0
      %p638 = por %p636, %p637
      %p639 = scmp.ne.s32.totalorder %s628, %s631
      %p640 = scmp.eq.s32.totalorder %s39, 3
      %p641 = por %p639, %p640
      %p642 = scmp.ne.s32.totalorder %s631, %s632
      %p643 = scmp.eq.s32.totalorder %s39, 0
      %p644 = por %p642, %p643
      %p645 = scmp.ne.s32.totalorder %s631, %s632
      %p646 = scmp.eq.s32.totalorder %s40, 3
      %p647 = por %p645, %p646
      %p649 = scmp.ne.s32.totalorder %s632, %s648
      %p650 = scmp.eq.s32.totalorder %s40, 0
      %p651 = por %p649, %p650
      %s653 = sadd.s32 %s652, 1
      %p656 = scmp.eq.s32.totalorder %s34, 3
      %p657 = scmp.ne.s32.totalorder %s652, %s654
      %p658 = scmp.eq.s32.totalorder %s34, 0
      %p659 = por %p657, %p658
      %p660 = scmp.ne.s32.totalorder %s652, %s654
      %p661 = scmp.eq.s32.totalorder %s39, 3
      %p662 = por %p660, %p661
      %p663 = scmp.ne.s32.totalorder %s654, %s655
      %p664 = scmp.eq.s32.totalorder %s39, 0
      %p665 = por %p663, %p664
      %p666 = scmp.ne.s32.totalorder %s654, %s655
      %p667 = scmp.eq.s32.totalorder %s40, 3
      %p668 = por %p666, %p667
      %p670 = scmp.ne.s32.totalorder %s655, %s669
      %p671 = scmp.eq.s32.totalorder %s40, 0
      %p672 = por %p670, %p671
      %s674 = sadd.s32 %s673, 1
      %p677 = scmp.eq.s32.totalorder %s34, 3
      %p678 = scmp.ne.s32.totalorder %s673, %s675
      %p679 = scmp.eq.s32.totalorder %s34, 0
      %p680 = por %p678, %p679
      %p681 = scmp.ne.s32.totalorder %s673, %s675
      %p682 = scmp.eq.s32.totalorder %s39, 3
      %p683 = por %p681, %p682
      %p684 = scmp.ne.s32.totalorder %s675, %s676
      %p685 = scmp.eq.s32.totalorder %s39, 0
      %p686 = por %p684, %p685
      %p687 = scmp.ne.s32.totalorder %s675, %s676
      %p688 = scmp.eq.s32.totalorder %s40, 3
      %p689 = por %p687, %p688
      %p691 = scmp.ne.s32.totalorder %s676, %s690
      %p692 = scmp.eq.s32.totalorder %s40, 0
      %p693 = por %p691, %p692
      %s694 = ssub.s32 %s41, %s53
      %p695 = scmp.eq.s32.totalorder %s694, 0
      %s697 = sadd.s32 %s696, 1
      %s698 = scalar_select %p695, %s696, %s697
      %p701 = pneg %p695
      %p702 = scmp.eq.s32.totalorder %s34, 3
      %p703 = por %p701, %p702
      %p704 = scmp.ne.s32.totalorder %s696, %s699
      %p705 = scmp.eq.s32.totalorder %s34, 0
      %p706 = por %p704, %p705
      %p707 = scmp.ne.s32.totalorder %s696, %s699
      %p708 = scmp.eq.s32.totalorder %s39, 3
      %p709 = por %p707, %p708
      %p710 = scmp.ne.s32.totalorder %s699, %s700
      %p711 = scmp.eq.s32.totalorder %s39, 0
      %p712 = por %p710, %p711
      %p713 = scmp.ne.s32.totalorder %s699, %s700
      %p714 = scmp.eq.s32.totalorder %s40, 3
      %p715 = por %p713, %p714
      %p717 = scmp.ne.s32.totalorder %s700, %s716
      %p718 = scmp.eq.s32.totalorder %s40, 0
      %p719 = por %p717, %p718
      %p720 = scmp.le.s32.totalorder 1, %s34
      %p721 = scmp.lt.s32.totalorder %s34, 5
      %p722 = pnand %p720, %p721
      %p723 = pneg %p722
      // Predicated region
      $region9: #{transformer_forward.3} parent=5 // pred_check
        _
      $region10: #{transformer_forward.3} parent=5 // pred_check_branch
        %725 = sbr.rel (%p722) target = $region12
      $region11: #{transformer_forward.3} parent=5 // pred_region
        %s726 = ssub.s32 %s34, 1
        // Predicated region
        $region13: #{transformer_forward.3} parent=11 // pred_check
          %p727 = pneg %p665
        $region14: #{transformer_forward.3} parent=11 // pred_check_branch
          %729 = sbr.rel (%p727) target = $region16
        $region15: #{transformer_forward.3} parent=11 // pred_region
          _
        $region16: #{transformer_forward.3} parent=11 // pred_fallthru
          _
        // Predicated region
        $region17: #{transformer_forward.3} parent=11 // pred_check
          %p730 = pneg %p686
        $region18: #{transformer_forward.3} parent=11 // pred_check_branch
          %732 = sbr.rel (%p730) target = $region20
        $region19: #{transformer_forward.3} parent=11 // pred_region
          _
        $region20: #{transformer_forward.3} parent=11 // pred_fallthru
          _
      $region12: #{transformer_forward.3} parent=5 // pred_fallthru
        _
      %p733 = scmp.lt.s32.totalorder %s34, 4
      // Predicated region
      $region21: #{transformer_forward.3} parent=5 // pred_check
        %p734 = pneg %p733
      $region22: #{transformer_forward.3} parent=5 // pred_check_branch
        %736 = sbr.rel (%p734) target = $region24
      $region23: #{transformer_forward.3} parent=5 // pred_region
        // Predicated region
        $region25: #{transformer_forward.3} parent=23 // pred_check
          %p737 = pneg %p66
        $region26: #{transformer_forward.3} parent=23 // pred_check_branch
          %739 = sbr.rel (%p737) target = $region28
        $region27: #{transformer_forward.3} parent=23 // pred_region
          %p740 = scmp.lt.s32.totalorder %s41, 1
          %s741 = scalar_select %p740, %s41, 1
          %s742 = smul.addr %s741, 8
          %s743 = scalar_lea.vmem %s0, %s742
        $region28: #{transformer_forward.3} parent=23 // pred_fallthru
          _
        // Predicated region
        $region29: #{transformer_forward.3} parent=23 // pred_check
          %p744 = pneg %p92
        $region30: #{transformer_forward.3} parent=23 // pred_check_branch
          %746 = sbr.rel (%p744) target = $region32
        $region31: #{transformer_forward.3} parent=23 // pred_region
          %p747 = scmp.lt.s32.totalorder %s41, 1
          %s748 = scalar_select %p747, %s41, 1
          %s749 = smul.addr %s748, 8
          %s750 = smul.addr %s749, 8
          %s751 = scalar_lea.vmem %s1, %s750
        $region32: #{transformer_forward.3} parent=23 // pred_fallthru
          _
        // Predicated region
        $region33: #{transformer_forward.3} parent=23 // pred_check
          %p752 = pneg %p118
        $region34: #{transformer_forward.3} parent=23 // pred_check_branch
          %754 = sbr.rel (%p752) target = $region36
        $region35: #{transformer_forward.3} parent=23 // pred_region
          %p755 = scmp.lt.s32.totalorder %s41, 1
          %s756 = scalar_select %p755, %s41, 1
          %s757 = scalar_lea.vmem %s2, %s756
        $region36: #{transformer_forward.3} parent=23 // pred_fallthru
          _
        // Predicated region
        $region37: #{transformer_forward.3} parent=23 // pred_check
          %p758 = pneg %p144
        $region38: #{transformer_forward.3} parent=23 // pred_check_branch
          %760 = sbr.rel (%p758) target = $region40
        $region39: #{transformer_forward.3} parent=23 // pred_region
          %p761 = scmp.lt.s32.totalorder %s42, 1
          %s762 = scalar_select %p761, %s42, 1
          %s763 = smul.addr %s762, 48
          %s764 = smul.addr %s763, 4
          %s765 = scalar_lea.vmem %s3, %s764
        $region40: #{transformer_forward.3} parent=23 // pred_fallthru
          _
        // Predicated region
        $region41: #{transformer_forward.3} parent=23 // pred_check
          %p766 = pneg %p170
        $region42: #{transformer_forward.3} parent=23 // pred_check_branch
          %768 = sbr.rel (%p766) target = $region44
        $region43: #{transformer_forward.3} parent=23 // pred_region
          %p769 = scmp.lt.s32.totalorder %s42, 1
          %s770 = scalar_select %p769, %s42, 1
          %s771 = smul.addr %s770, 3
          %s772 = scalar_lea.vmem %s4, %s771
        $region44: #{transformer_forward.3} parent=23 // pred_fallthru
          _
        // Predicated region
        $region45: #{transformer_forward.3} parent=23 // pred_check
          %p773 = pneg %p196
        $region46: #{transformer_forward.3} parent=23 // pred_check_branch
          %775 = sbr.rel (%p773) target = $region48
        $region47: #{transformer_forward.3} parent=23 // pred_region
          %p776 = scmp.lt.s32.totalorder %s42, 1
          %s777 = scalar_select %p776, %s42, 1
          %s778 = smul.addr %s777, 16
          %s779 = smul.addr %s778, 4
          %s780 = scalar_lea.vmem %s5, %s779
        $region48: #{transformer_forward.3} parent=23 // pred_fallthru
          _
        // Predicated region
        $region49: #{transformer_forward.3} parent=23 // pred_check
          %p781 = pneg %p222
        $region50: #{transformer_forward.3} parent=23 // pred_check_branch
          %783 = sbr.rel (%p781) target = $region52
        $region51: #{transformer_forward.3} parent=23 // pred_region
          %p784 = scmp.lt.s32.totalorder %s42, 1
          %s785 = scalar_select %p784, %s42, 1
          %s786 = scalar_lea.vmem %s6, %s785
        $region52: #{transformer_forward.3} parent=23 // pred_fallthru
          _
        // Predicated region
        $region53: #{transformer_forward.3} parent=23 // pred_check
          %p787 = pneg %p248
        $region54: #{transformer_forward.3} parent=23 // pred_check_branch
          %789 = sbr.rel (%p787) target = $region56
        $region55: #{transformer_forward.3} parent=23 // pred_region
          %p790 = scmp.lt.s32.totalorder %s42, 1
          %s791 = scalar_select %p790, %s42, 1
          %s792 = scalar_lea.vmem %s7, %s791
        $region56: #{transformer_forward.3} parent=23 // pred_fallthru
          _
        // Predicated region
        $region57: #{transformer_forward.3} parent=23 // pred_check
          %p793 = pneg %p274
        $region58: #{transformer_forward.3} parent=23 // pred_check_branch
          %795 = sbr.rel (%p793) target = $region60
        $region59: #{transformer_forward.3} parent=23 // pred_region
          %p796 = scmp.lt.s32.totalorder %s42, 1
          %s797 = scalar_select %p796, %s42, 1
          %s798 = scalar_lea.vmem %s8, %s797
        $region60: #{transformer_forward.3} parent=23 // pred_fallthru
          _
        // Predicated region
        $region61: #{transformer_forward.3} parent=23 // pred_check
          %p799 = pneg %p300
        $region62: #{transformer_forward.3} parent=23 // pred_check_branch
          %801 = sbr.rel (%p799) target = $region64
        $region63: #{transformer_forward.3} parent=23 // pred_region
          %p802 = scmp.lt.s32.totalorder %s42, 1
          %s803 = scalar_select %p802, %s42, 1
          %s804 = smul.addr %s803, 16
          %s805 = smul.addr %s804, 4
          %s806 = scalar_lea.vmem %s9, %s805
        $region64: #{transformer_forward.3} parent=23 // pred_fallthru
          _
        // Predicated region
        $region65: #{transformer_forward.3} parent=23 // pred_check
          %p807 = pneg %p326
        $region66: #{transformer_forward.3} parent=23 // pred_check_branch
          %809 = sbr.rel (%p807) target = $region68
        $region67: #{transformer_forward.3} parent=23 // pred_region
          %p810 = scmp.lt.s32.totalorder %s42, 1
          %s811 = scalar_select %p810, %s42, 1
          %s812 = scalar_lea.vmem %s10, %s811
        $region68: #{transformer_forward.3} parent=23 // pred_fallthru
          _
        // Predicated region
        $region69: #{transformer_forward.3} parent=23 // pred_check
          %p813 = pneg %p352
        $region70: #{transformer_forward.3} parent=23 // pred_check_branch
          %815 = sbr.rel (%p813) target = $region72
        $region71: #{transformer_forward.3} parent=23 // pred_region
          %p816 = scmp.lt.s32.totalorder %s42, 1
          %s817 = scalar_select %p816, %s42, 1
          %s818 = smul.addr %s817, 32
          %s819 = smul.addr %s818, 4
          %s820 = scalar_lea.vmem %s11, %s819
        $region72: #{transformer_forward.3} parent=23 // pred_fallthru
          _
        // Predicated region
        $region73: #{transformer_forward.3} parent=23 // pred_check
          %p821 = pneg %p378
        $region74: #{transformer_forward.3} parent=23 // pred_check_branch
          %823 = sbr.rel (%p821) target = $region76
        $region75: #{transformer_forward.3} parent=23 // pred_region
          %p824 = scmp.lt.s32.totalorder %s42, 1
          %s825 = scalar_select %p824, %s42, 1
          %s826 = smul.addr %s825, 2
          %s827 = scalar_lea.vmem %s12, %s826
        $region76: #{transformer_forward.3} parent=23 // pred_fallthru
          _
        // Predicated region
        $region77: #{transformer_forward.3} parent=23 // pred_check
          %p828 = pneg %p404
        $region78: #{transformer_forward.3} parent=23 // pred_check_branch
          %830 = sbr.rel (%p828) target = $region80
        $region79: #{transformer_forward.3} parent=23 // pred_region
          %p831 = scmp.lt.s32.totalorder %s42, 1
          %s832 = scalar_select %p831, %s42, 1
          %s833 = smul.addr %s832, 16
          %s834 = smul.addr %s833, 4
          %s835 = scalar_lea.vmem %s13, %s834
        $region80: #{transformer_forward.3} parent=23 // pred_fallthru
          _
        // Predicated region
        $region81: #{transformer_forward.3} parent=23 // pred_check
          %p836 = pneg %p430
        $region82: #{transformer_forward.3} parent=23 // pred_check_branch
          %838 = sbr.rel (%p836) target = $region84
        $region83: #{transformer_forward.3} parent=23 // pred_region
          %p839 = scmp.lt.s32.totalorder %s42, 1
          %s840 = scalar_select %p839, %s42, 1
          %s841 = scalar_lea.vmem %s14, %s840
        $region84: #{transformer_forward.3} parent=23 // pred_fallthru
          _
        // Predicated region
        $region85: #{transformer_forward.3} parent=23 // pred_check
          %p842 = pneg %p456
        $region86: #{transformer_forward.3} parent=23 // pred_check_branch
          %844 = sbr.rel (%p842) target = $region88
        $region87: #{transformer_forward.3} parent=23 // pred_region
          %p845 = scmp.lt.s32.totalorder %s42, 1
          %s846 = scalar_select %p845, %s42, 1
          %s847 = scalar_lea.vmem %s15, %s846
        $region88: #{transformer_forward.3} parent=23 // pred_fallthru
          _
        // Predicated region
        $region89: #{transformer_forward.3} parent=23 // pred_check
          %p848 = pneg %p482
        $region90: #{transformer_forward.3} parent=23 // pred_check_branch
          %850 = sbr.rel (%p848) target = $region92
        $region91: #{transformer_forward.3} parent=23 // pred_region
          %p851 = scmp.lt.s32.totalorder %s42, 1
          %s852 = scalar_select %p851, %s42, 1
          %s853 = scalar_lea.vmem %s16, %s852
        $region92: #{transformer_forward.3} parent=23 // pred_fallthru
          _
        // Predicated region
        $region93: #{transformer_forward.3} parent=23 // pred_check
          %p854 = pneg %p508
        $region94: #{transformer_forward.3} parent=23 // pred_check_branch
          %856 = sbr.rel (%p854) target = $region96
        $region95: #{transformer_forward.3} parent=23 // pred_region
          %p857 = scmp.lt.s32.totalorder %s42, 1
          %s858 = scalar_select %p857, %s42, 1
          %s859 = smul.addr %s858, 32
          %s860 = smul.addr %s859, 4
          %s861 = scalar_lea.vmem %s17, %s860
        $region96: #{transformer_forward.3} parent=23 // pred_fallthru
          _
        // Predicated region
        $region97: #{transformer_forward.3} parent=23 // pred_check
          %p862 = pneg %p534
        $region98: #{transformer_forward.3} parent=23 // pred_check_branch
          %864 = sbr.rel (%p862) target = $region100
        $region99: #{transformer_forward.3} parent=23 // pred_region
          %p865 = scmp.lt.s32.totalorder %s42, 1
          %s866 = scalar_select %p865, %s42, 1
          %s867 = smul.addr %s866, 2
          %s868 = scalar_lea.vmem %s18, %s867
        $region100: #{transformer_forward.3} parent=23 // pred_fallthru
          _
        // Predicated region
        $region101: #{transformer_forward.3} parent=23 // pred_check
          %p869 = pneg %p560
        $region102: #{transformer_forward.3} parent=23 // pred_check_branch
          %871 = sbr.rel (%p869) target = $region104
        $region103: #{transformer_forward.3} parent=23 // pred_region
          %p872 = scmp.lt.s32.totalorder %s42, 1
          %s873 = scalar_select %p872, %s42, 1
          %s874 = smul.addr %s873, 32
          %s875 = smul.addr %s874, 4
          %s876 = scalar_lea.vmem %s19, %s875
        $region104: #{transformer_forward.3} parent=23 // pred_fallthru
          _
        // Predicated region
        $region105: #{transformer_forward.3} parent=23 // pred_check
          %p877 = pneg %p586
        $region106: #{transformer_forward.3} parent=23 // pred_check_branch
          %879 = sbr.rel (%p877) target = $region108
        $region107: #{transformer_forward.3} parent=23 // pred_region
          %p880 = scmp.lt.s32.totalorder %s42, 1
          %s881 = scalar_select %p880, %s42, 1
          %s882 = scalar_lea.vmem %s20, %s881
        $region108: #{transformer_forward.3} parent=23 // pred_fallthru
          _
        // Predicated region
        $region109: #{transformer_forward.3} parent=23 // pred_check
          %p883 = pneg %p612
        $region110: #{transformer_forward.3} parent=23 // pred_check_branch
          %885 = sbr.rel (%p883) target = $region112
        $region111: #{transformer_forward.3} parent=23 // pred_region
          %p886 = scmp.lt.s32.totalorder %s42, 1
          %s887 = scalar_select %p886, %s42, 1
          %s888 = scalar_lea.vmem %s21, %s887
        $region112: #{transformer_forward.3} parent=23 // pred_fallthru
          _
        // Predicated region
        $region113: #{transformer_forward.3} parent=23 // pred_check
          %p889 = pneg %p638
        $region114: #{transformer_forward.3} parent=23 // pred_check_branch
          %891 = sbr.rel (%p889) target = $region116
        $region115: #{transformer_forward.3} parent=23 // pred_region
          %p892 = scmp.lt.s32.totalorder %s42, 1
          %s893 = scalar_select %p892, %s42, 1
          %s894 = scalar_lea.vmem %s22, %s893
        $region116: #{transformer_forward.3} parent=23 // pred_fallthru
          _
      $region24: #{transformer_forward.3} parent=5 // pred_fallthru
        _
      %p895 = scmp.le.s32.totalorder 1, %s34
      %p896 = scmp.lt.s32.totalorder %s34, 5
      %p897 = pnand %p895, %p896
      %p898 = pneg %p897
      // Predicated region
      $region117: #{transformer_forward.3} parent=5 // pred_check
        _
      $region118: #{transformer_forward.3} parent=5 // pred_check_branch
        %900 = sbr.rel (%p897) target = $region120
      $region119: #{transformer_forward.3} parent=5 // pred_region
        %s901 = ssub.s32 %s34, 1
        %p902 = scmp.lt.s32.totalorder %s43, 1
        %s903 = scalar_select %p902, %s43, 1
        %s904 = smul.addr %s903, 8
        %s905 = scalar_lea.vmem %s0, %s904
        %p906 = pneg %p72
        %p907 = pneg %p69
        %p908 = scmp.lt.s32.totalorder %s43, 1
        %s909 = scalar_select %p908, %s43, 1
        %s910 = smul.addr %s909, 8
        %s911 = smul.addr %s910, 8
        %s912 = scalar_lea.vmem %s1, %s911
        %p913 = pneg %p98
        %p914 = pneg %p95
        %p915 = scmp.lt.s32.totalorder %s43, 1
        %s916 = scalar_select %p915, %s43, 1
        %s917 = scalar_lea.vmem %s2, %s916
        %p918 = pneg %p124
        %p919 = pneg %p121
        %p920 = scmp.lt.s32.totalorder %s44, 1
        %s921 = scalar_select %p920, %s44, 1
        %s922 = smul.addr %s921, 48
        %s923 = smul.addr %s922, 4
        %s924 = scalar_lea.vmem %s3, %s923
        %p925 = pneg %p150
        %p926 = pneg %p147
        %p927 = scmp.lt.s32.totalorder %s44, 1
        %s928 = scalar_select %p927, %s44, 1
        %s929 = smul.addr %s928, 3
        %s930 = scalar_lea.vmem %s4, %s929
        %p931 = pneg %p176
        %p932 = pneg %p173
        %p933 = scmp.lt.s32.totalorder %s44, 1
        %s934 = scalar_select %p933, %s44, 1
        %s935 = smul.addr %s934, 16
        %s936 = smul.addr %s935, 4
        %s937 = scalar_lea.vmem %s5, %s936
        %p938 = pneg %p202
        %p939 = pneg %p199
        %p940 = scmp.lt.s32.totalorder %s44, 1
        %s941 = scalar_select %p940, %s44, 1
        %s942 = scalar_lea.vmem %s6, %s941
        %p943 = pneg %p228
        %p944 = pneg %p225
        %p945 = scmp.lt.s32.totalorder %s44, 1
        %s946 = scalar_select %p945, %s44, 1
        %s947 = scalar_lea.vmem %s7, %s946
        %p948 = pneg %p254
        %p949 = pneg %p251
        %p950 = scmp.lt.s32.totalorder %s44, 1
        %s951 = scalar_select %p950, %s44, 1
        %s952 = scalar_lea.vmem %s8, %s951
        %p953 = pneg %p280
        %p954 = pneg %p277
        %p955 = scmp.lt.s32.totalorder %s44, 1
        %s956 = scalar_select %p955, %s44, 1
        %s957 = smul.addr %s956, 16
        %s958 = smul.addr %s957, 4
        %s959 = scalar_lea.vmem %s9, %s958
        %p960 = pneg %p306
        %p961 = pneg %p303
        %p962 = scmp.lt.s32.totalorder %s44, 1
        %s963 = scalar_select %p962, %s44, 1
        %s964 = scalar_lea.vmem %s10, %s963
        %p965 = pneg %p332
        %p966 = pneg %p329
        %p967 = scmp.lt.s32.totalorder %s44, 1
        %s968 = scalar_select %p967, %s44, 1
        %s969 = smul.addr %s968, 32
        %s970 = smul.addr %s969, 4
        %s971 = scalar_lea.vmem %s11, %s970
        %p972 = pneg %p358
        %p973 = pneg %p355
        %p974 = scmp.lt.s32.totalorder %s44, 1
        %s975 = scalar_select %p974, %s44, 1
        %s976 = smul.addr %s975, 2
        %s977 = scalar_lea.vmem %s12, %s976
        %p978 = pneg %p384
        %p979 = pneg %p381
        %p980 = scmp.lt.s32.totalorder %s44, 1
        %s981 = scalar_select %p980, %s44, 1
        %s982 = smul.addr %s981, 16
        %s983 = smul.addr %s982, 4
        %s984 = scalar_lea.vmem %s13, %s983
        %p985 = pneg %p410
        %p986 = pneg %p407
        %p987 = scmp.lt.s32.totalorder %s44, 1
        %s988 = scalar_select %p987, %s44, 1
        %s989 = scalar_lea.vmem %s14, %s988
        %p990 = pneg %p436
        %p991 = pneg %p433
        %p992 = scmp.lt.s32.totalorder %s44, 1
        %s993 = scalar_select %p992, %s44, 1
        %s994 = scalar_lea.vmem %s15, %s993
        %p995 = pneg %p462
        %p996 = pneg %p459
        %p997 = scmp.lt.s32.totalorder %s44, 1
        %s998 = scalar_select %p997, %s44, 1
        %s999 = scalar_lea.vmem %s16, %s998
        %p1000 = pneg %p488
        %p1001 = pneg %p485
        %p1002 = scmp.lt.s32.totalorder %s44, 1
        %s1003 = scalar_select %p1002, %s44, 1
        %s1004 = smul.addr %s1003, 32
        %s1005 = smul.addr %s1004, 4
        %s1006 = scalar_lea.vmem %s17, %s1005
        %p1007 = pneg %p514
        %p1008 = pneg %p511
        %p1009 = scmp.lt.s32.totalorder %s44, 1
        %s1010 = scalar_select %p1009, %s44, 1
        %s1011 = smul.addr %s1010, 2
        %s1012 = scalar_lea.vmem %s18, %s1011
        %p1013 = pneg %p540
        %p1014 = pneg %p537
        %p1015 = scmp.lt.s32.totalorder %s44, 1
        %s1016 = scalar_select %p1015, %s44, 1
        %s1017 = smul.addr %s1016, 32
        %s1018 = smul.addr %s1017, 4
        %s1019 = scalar_lea.vmem %s19, %s1018
        %p1020 = pneg %p566
        %p1021 = pneg %p563
        %p1022 = scmp.lt.s32.totalorder %s44, 1
        %s1023 = scalar_select %p1022, %s44, 1
        %s1024 = scalar_lea.vmem %s20, %s1023
        %p1025 = pneg %p592
        %p1026 = pneg %p589
        %p1027 = scmp.lt.s32.totalorder %s44, 1
        %s1028 = scalar_select %p1027, %s44, 1
        %s1029 = scalar_lea.vmem %s21, %s1028
        %p1030 = pneg %p618
        %p1031 = pneg %p615
        %p1032 = scmp.lt.s32.totalorder %s44, 1
        %s1033 = scalar_select %p1032, %s44, 1
        %s1034 = scalar_lea.vmem %s22, %s1033
        %p1035 = pneg %p644
        %p1036 = pneg %p641
        %p1037 = pneg %p665
        %p1038 = pneg %p662
        %p1039 = pneg %p686
        %p1040 = pneg %p683
        %p1041 = pneg %p712
        %p1042 = pneg %p709
        %s1043 = sand.u32 %s699, 1
        %s1044 = scalar_lea.sflag [#allocation5], %s1043
        %s1045 = sand.u32 %s699, 1
        %s1046 = smul.addr %s1045, 8
        %s1047 = scalar_lea.vmem [#allocation4], %s1046
        %p1048 = scmp.lt.s32.totalorder %s43, 1
        %s1049 = scalar_select %p1048, %s43, 1
        %s1050 = smul.addr %s1049, 8
        %s1051 = scalar_lea.vmem %s0, %s1050
        %p1052 = scmp.lt.s32.totalorder %s43, 1
        %s1053 = scalar_select %p1052, %s43, 1
        %s1054 = smul.addr %s1053, 8
        %s1055 = smul.addr %s1054, 8
        %s1056 = scalar_lea.vmem %s1, %s1055
        %p1057 = scmp.lt.s32.totalorder %s43, 1
        %s1058 = scalar_select %p1057, %s43, 1
        %s1059 = scalar_lea.vmem %s2, %s1058
        %p1060 = scmp.lt.s32.totalorder %s44, 1
        %s1061 = scalar_select %p1060, %s44, 1
        %s1062 = smul.addr %s1061, 48
        %s1063 = smul.addr %s1062, 4
        %s1064 = scalar_lea.vmem %s3, %s1063
        %p1065 = scmp.lt.s32.totalorder %s44, 1
        %s1066 = scalar_select %p1065, %s44, 1
        %s1067 = smul.addr %s1066, 3
        %s1068 = scalar_lea.vmem %s4, %s1067
        %p1069 = scmp.lt.s32.totalorder %s44, 1
        %s1070 = scalar_select %p1069, %s44, 1
        %s1071 = smul.addr %s1070, 16
        %s1072 = smul.addr %s1071, 4
        %s1073 = scalar_lea.vmem %s5, %s1072
        %p1074 = scmp.lt.s32.totalorder %s44, 1
        %s1075 = scalar_select %p1074, %s44, 1
        %s1076 = scalar_lea.vmem %s6, %s1075
        %p1077 = scmp.lt.s32.totalorder %s44, 1
        %s1078 = scalar_select %p1077, %s44, 1
        %s1079 = scalar_lea.vmem %s7, %s1078
        %p1080 = scmp.lt.s32.totalorder %s44, 1
        %s1081 = scalar_select %p1080, %s44, 1
        %s1082 = scalar_lea.vmem %s8, %s1081
        %p1083 = scmp.lt.s32.totalorder %s44, 1
        %s1084 = scalar_select %p1083, %s44, 1
        %s1085 = smul.addr %s1084, 16
        %s1086 = smul.addr %s1085, 4
        %s1087 = scalar_lea.vmem %s9, %s1086
        %p1088 = scmp.lt.s32.totalorder %s44, 1
        %s1089 = scalar_select %p1088, %s44, 1
        %s1090 = scalar_lea.vmem %s10, %s1089
        %p1091 = scmp.lt.s32.totalorder %s44, 1
        %s1092 = scalar_select %p1091, %s44, 1
        %s1093 = smul.addr %s1092, 32
        %s1094 = smul.addr %s1093, 4
        %s1095 = scalar_lea.vmem %s11, %s1094
        %p1096 = scmp.lt.s32.totalorder %s44, 1
        %s1097 = scalar_select %p1096, %s44, 1
        %s1098 = smul.addr %s1097, 2
        %s1099 = scalar_lea.vmem %s12, %s1098
        %p1100 = scmp.lt.s32.totalorder %s44, 1
        %s1101 = scalar_select %p1100, %s44, 1
        %s1102 = smul.addr %s1101, 16
        %s1103 = smul.addr %s1102, 4
        %s1104 = scalar_lea.vmem %s13, %s1103
        %p1105 = scmp.lt.s32.totalorder %s44, 1
        %s1106 = scalar_select %p1105, %s44, 1
        %s1107 = scalar_lea.vmem %s14, %s1106
        %p1108 = scmp.lt.s32.totalorder %s44, 1
        %s1109 = scalar_select %p1108, %s44, 1
        %s1110 = scalar_lea.vmem %s15, %s1109
        %p1111 = scmp.lt.s32.totalorder %s44, 1
        %s1112 = scalar_select %p1111, %s44, 1
        %s1113 = scalar_lea.vmem %s16, %s1112
        %p1114 = scmp.lt.s32.totalorder %s44, 1
        %s1115 = scalar_select %p1114, %s44, 1
        %s1116 = smul.addr %s1115, 32
        %s1117 = smul.addr %s1116, 4
        %s1118 = scalar_lea.vmem %s17, %s1117
        %p1119 = scmp.lt.s32.totalorder %s44, 1
        %s1120 = scalar_select %p1119, %s44, 1
        %s1121 = smul.addr %s1120, 2
        %s1122 = scalar_lea.vmem %s18, %s1121
        %p1123 = scmp.lt.s32.totalorder %s44, 1
        %s1124 = scalar_select %p1123, %s44, 1
        %s1125 = smul.addr %s1124, 32
        %s1126 = smul.addr %s1125, 4
        %s1127 = scalar_lea.vmem %s19, %s1126
        %p1128 = scmp.lt.s32.totalorder %s44, 1
        %s1129 = scalar_select %p1128, %s44, 1
        %s1130 = scalar_lea.vmem %s20, %s1129
        %p1131 = scmp.lt.s32.totalorder %s44, 1
        %s1132 = scalar_select %p1131, %s44, 1
        %s1133 = scalar_lea.vmem %s21, %s1132
        %p1134 = scmp.lt.s32.totalorder %s44, 1
        %s1135 = scalar_select %p1134, %s44, 1
        %s1136 = scalar_lea.vmem %s22, %s1135
        %p1138 = scmp.eq.s32.totalorder %s44, 0
        // Predicated region
        $region121: #{transformer_forward.3} parent=119 // pred_check
          %p1139 = pneg %p1138
        $region122: #{transformer_forward.3} parent=119 // pred_check_branch
          %1141 = sbr.rel (%p1139) target = $region124
        $region123: #{transformer_forward.3} parent=119 // pred_region
          %v1142 = vld [vmem:[%s1051] sm:$0xff]
          %1143 = vst [vmem:[#allocation2] sm:$0xff] %v1142
          %v1144 = vlaneseq
          %v1145 = vshrl.u32 %v1144, 7
          %v1146 = vlaneseq
          %v1147 = vand.u32 %v1146, 127
          %vm1148 = vcmp.le.s32.totalorder %v1147, %v1145
          %v1149 = vsel %vm1148, 0.0, -1e+30
          %v1150 = vld [vmem:[%s1059] sm:$0x1]
          %vm1151 = vcmp.gt.f32.partialorder %v1150, 0.5
          %v1152 = vsel %vm1151, -1e+30, 0.0
          %v1154 = vlaneseq
          %v1155 = vshrl.u32 %v1154, 7
          %v1156 = vsub.s32 0, %v1155
          %v1157 = vrot.slane %v1152, %v1156
          %v1159 = vadd.f32 %v1149, %v1157
          %vm1160 = vcmask 64512
          %1161 = vst.msk [vmem:[#allocation3] sm:$0xff] %vm1160, %v1159
        $region124: #{transformer_forward.3} parent=119 // pred_fallthru
          _
        %v1162 = vld [vmem:[#allocation2] sm:$0xff]
        %v1163 = vld [vmem:[%s1056] sm:$0xff]
        %v1164 = vld [vmem:[%s1056 + $0x8] sm:$0xff]
        %v1165 = vld [vmem:[%s1056 + $0x10] sm:$0xff]
        %v1166 = vld [vmem:[%s1056 + $0x18] sm:$0xff]
        %v1167 = vld [vmem:[%s1056 + $0x20] sm:$0xff]
        %v1168 = vld [vmem:[%s1056 + $0x28] sm:$0xff]
        %v1169 = vld [vmem:[%s1056 + $0x30] sm:$0xff]
        %v1170 = vld [vmem:[%s1056 + $0x38] sm:$0xff]
        %v1171 = vld [vmem:[#allocation3] sm:$0xff]
        %v1172 = vpack.c.bf16 %v1162, %v1162
        %v1173 = vld [vmem:[%s1064] sm:$0xff]
        %v1174 = vld [vmem:[%s1064 + $0x8] sm:$0xf]
        %v1175 = vld [vmem:[%s1064 + $0xc] sm:$0xff]
        %v1176 = vld [vmem:[%s1064 + $0x14] sm:$0xf]
        %v1177 = vld [vmem:[%s1064 + $0x18] sm:$0xff]
        %v1178 = vld [vmem:[%s1064 + $0x20] sm:$0xf]
        %v1179 = vld [vmem:[%s1064 + $0x24] sm:$0xff]
        %v1180 = vld [vmem:[%s1064 + $0x2c] sm:$0xf]
        %v1181 = vld [vmem:[%s1064 + $0x30] sm:$0xff]
        %v1182 = vld [vmem:[%s1064 + $0x38] sm:$0xf]
        %v1183 = vld [vmem:[%s1064 + $0x3c] sm:$0xff]
        %v1184 = vld [vmem:[%s1064 + $0x44] sm:$0xf]
        %v1185 = vld [vmem:[%s1064 + $0x48] sm:$0xff]
        %v1186 = vld [vmem:[%s1064 + $0x50] sm:$0xf]
        %v1187 = vld [vmem:[%s1064 + $0x54] sm:$0xff]
        %v1188 = vld [vmem:[%s1064 + $0x5c] sm:$0xf]
        %v1189 = vld [vmem:[%s1064 + $0x60] sm:$0xff]
        %v1190 = vld [vmem:[%s1064 + $0x68] sm:$0xf]
        %v1191 = vld [vmem:[%s1064 + $0x6c] sm:$0xff]
        %v1192 = vld [vmem:[%s1064 + $0x74] sm:$0xf]
        %v1193 = vld [vmem:[%s1064 + $0x78] sm:$0xff]
        %v1194 = vld [vmem:[%s1064 + $0x80] sm:$0xf]
        %v1195 = vld [vmem:[%s1064 + $0x84] sm:$0xff]
        %v1196 = vld [vmem:[%s1064 + $0x8c] sm:$0xf]
        %v1197 = vld [vmem:[%s1064 + $0x90] sm:$0xff]
        %v1198 = vld [vmem:[%s1064 + $0x98] sm:$0xf]
        %v1199 = vld [vmem:[%s1064 + $0x9c] sm:$0xff]
        %v1200 = vld [vmem:[%s1064 + $0xa4] sm:$0xf]
        %v1201 = vld [vmem:[%s1064 + $0xa8] sm:$0xff]
        %v1202 = vld [vmem:[%s1064 + $0xb0] sm:$0xf]
        %v1203 = vld [vmem:[%s1064 + $0xb4] sm:$0xff]
        %v1204 = vld [vmem:[%s1064 + $0xbc] sm:$0xf]
        %v1205 = vld [vmem:[%s1068] sm:$0x7]
        %v1207 = vlaneseq
        %v1208 = vshrl.u32 %v1207, 7
        %v1209 = vsub.s32 0, %v1208
        %v1210 = vrot.slane %v1205, %v1209
        %v1211 = vlaneseq
        %v1212 = vshrl.u32 %v1211, 7
        %v1213 = vsub.s32 1, %v1212
        %v1214 = vrot.slane %v1205, %v1213
        %v1215 = vlaneseq
        %v1216 = vshrl.u32 %v1215, 7
        %v1217 = vsub.s32 2, %v1216
        %v1218 = vrot.slane %v1205, %v1217
        %v1254 = vunpack.c.l.b16 %v1173
        %v1255 = vunpack.c.h.b16 %v1173
        %v1256 = vunpack.c.l.b16 %v1174
        %v1257 = vunpack.c.l.b16 %v1175
        %v1258 = vunpack.c.h.b16 %v1175
        %v1259 = vunpack.c.l.b16 %v1176
        %v1260 = vunpack.c.l.b16 %v1177
        %v1261 = vunpack.c.h.b16 %v1177
        %v1262 = vunpack.c.l.b16 %v1178
        %v1263 = vunpack.c.l.b16 %v1179
        %v1264 = vunpack.c.h.b16 %v1179
        %v1265 = vunpack.c.l.b16 %v1180
        %v1266 = vunpack.c.l.b16 %v1181
        %v1267 = vunpack.c.h.b16 %v1181
        %v1268 = vunpack.c.l.b16 %v1182
        %v1269 = vunpack.c.l.b16 %v1183
        %v1270 = vunpack.c.h.b16 %v1183
        %v1271 = vunpack.c.l.b16 %v1184
        %v1272 = vunpack.c.l.b16 %v1185
        %v1273 = vunpack.c.h.b16 %v1185
        %v1274 = vunpack.c.l.b16 %v1186
        %v1275 = vunpack.c.l.b16 %v1187
        %v1276 = vunpack.c.h.b16 %v1187
        %v1277 = vunpack.c.l.b16 %v1188
        %v1278 = vunpack.c.l.b16 %v1189
        %v1279 = vunpack.c.h.b16 %v1189
        %v1280 = vunpack.c.l.b16 %v1190
        %v1281 = vunpack.c.l.b16 %v1191
        %v1282 = vunpack.c.h.b16 %v1191
        %v1283 = vunpack.c.l.b16 %v1192
        %v1284 = vunpack.c.l.b16 %v1193
        %v1285 = vunpack.c.h.b16 %v1193
        %v1286 = vunpack.c.l.b16 %v1194
        %v1287 = vunpack.c.l.b16 %v1195
        %v1288 = vunpack.c.h.b16 %v1195
        %v1289 = vunpack.c.l.b16 %v1196
        %v1290 = vunpack.c.l.b16 %v1197
        %v1291 = vunpack.c.h.b16 %v1197
        %v1292 = vunpack.c.l.b16 %v1198
        %v1293 = vunpack.c.l.b16 %v1199
        %v1294 = vunpack.c.h.b16 %v1199
        %v1295 = vunpack.c.l.b16 %v1200
        %v1296 = vunpack.c.l.b16 %v1201
        %v1297 = vunpack.c.h.b16 %v1201
        %v1298 = vunpack.c.l.b16 %v1202
        %v1299 = vunpack.c.l.b16 %v1203
        %v1300 = vunpack.c.h.b16 %v1203
        %v1301 = vunpack.c.l.b16 %v1204
        %v1302 = vpack.c.b16 %v1257, %v1254
        %v1303 = vpack.c.b16 %v1258, %v1255
        %v1304 = vpack.c.b16 %v1259, %v1256
        %v1305 = vpack.c.b16 %v1263, %v1260
        %v1306 = vpack.c.b16 %v1264, %v1261
        %v1307 = vpack.c.b16 %v1265, %v1262
        %v1308 = vpack.c.b16 %v1269, %v1266
        %v1309 = vpack.c.b16 %v1270, %v1267
        %v1310 = vpack.c.b16 %v1271, %v1268
        %v1311 = vpack.c.b16 %v1275, %v1272
        %v1312 = vpack.c.b16 %v1276, %v1273
        %v1313 = vpack.c.b16 %v1277, %v1274
        %v1314 = vpack.c.b16 %v1281, %v1278
        %v1315 = vpack.c.b16 %v1282, %v1279
        %v1316 = vpack.c.b16 %v1283, %v1280
        %v1317 = vpack.c.b16 %v1287, %v1284
        %v1318 = vpack.c.b16 %v1288, %v1285
        %v1319 = vpack.c.b16 %v1289, %v1286
        %v1320 = vpack.c.b16 %v1293, %v1290
        %v1321 = vpack.c.b16 %v1294, %v1291
        %v1322 = vpack.c.b16 %v1295, %v1292
        %v1323 = vpack.c.b16 %v1299, %v1296
        %v1324 = vpack.c.b16 %v1300, %v1297
        %v1325 = vpack.c.b16 %v1301, %v1298
        %1350 = vmatprep.subr.bf16.mxu0 %v1303
        %1351 = vmatpush1.bf16.msra.mxu0 %v1302
        %1352 = vmatprep.subr.bf16.mxu0 %v1306
        %1353 = vmatpush1.bf16.msra.mxu0 %v1305
        %1354 = vmatprep.subr.bf16.mxu0 %v1309
        %1355 = vmatpush1.bf16.msra.mxu0 %v1308
        %1356 = vmatprep.subr.bf16.mxu0 %v1312
        %1357 = vmatpush1.bf16.msra.mxu0 %v1311
        %1358 = vmatprep.subr.bf16.mxu0 %v1315
        %1359 = vmatpush1.bf16.msra.mxu0 %v1314
        %1360 = vmatprep.subr.bf16.mxu0 %v1318
        %1361 = vmatpush1.bf16.msra.mxu0 %v1317
        %1362 = vmatprep.subr.bf16.mxu0 %v1321
        %1363 = vmatpush1.bf16.msra.mxu0 %v1320
        %1364 = vmatprep.subr.bf16.mxu0 %v1324
        %1365 = vmatpush1.bf16.msra.mxu0 %v1323
        %1366 = vmatprep.subr.bf16.mxu0 0
        %1367 = vmatpush1.bf16.msra.mxu0 0
        %1368 = vmatprep.subr.bf16.mxu0 0
        %1369 = vmatpush1.bf16.msra.mxu0 0
        %1370 = vmatprep.subr.bf16.mxu0 0
        %1371 = vmatpush1.bf16.msra.mxu0 0
        %1372 = vmatprep.subr.bf16.mxu0 0
        %1373 = vmatpush1.bf16.msra.mxu0 0
        %1374 = vmatprep.subr.bf16.mxu0 0
        %1375 = vmatpush1.bf16.msra.mxu0 0
        %1376 = vmatprep.subr.bf16.mxu0 0
        %1377 = vmatpush1.bf16.msra.mxu0 0
        %1378 = vmatprep.subr.bf16.mxu0 0
        %1379 = vmatpush1.bf16.msra.mxu0 0
        %1380 = vmatprep.subr.bf16.mxu0 0
        %1381 = vmatpush1.bf16.msra.mxu0 0
        %1382 = vmatprep.mubr.bf16.mxu0 0
        %1383 = vmatmul.mubr.bf16.gmra.mrb[0].mxu0 %v1172
        %v1384 = vpop.f32.mrb[0].mxu0
        %v1385 = vadd.f32 %v1210, %v1384
        %v1386 = vpop.f32.mrb[0].mxu0
        %v1387 = vadd.f32 %v1214, %v1386
        %v1388 = vpop.f32.mrb[0].mxu0
        %v1389 = vpop.f32.mrb[0].mxu0
        %1390 = vdwg.mxu0
        %1391 = vmatprep.subr.bf16.mxu0 0
        %1392 = vmatpush1.bf16.msra.mxu0 %v1304
        %1393 = vmatprep.subr.bf16.mxu0 0
        %1394 = vmatpush1.bf16.msra.mxu0 %v1307
        %1395 = vmatprep.subr.bf16.mxu0 0
        %1396 = vmatpush1.bf16.msra.mxu0 %v1310
        %1397 = vmatprep.subr.bf16.mxu0 0
        %1398 = vmatpush1.bf16.msra.mxu0 %v1313
        %1399 = vmatprep.subr.bf16.mxu0 0
        %1400 = vmatpush1.bf16.msra.mxu0 %v1316
        %1401 = vmatprep.subr.bf16.mxu0 0
        %1402 = vmatpush1.bf16.msra.mxu0 %v1319
        %1403 = vmatprep.subr.bf16.mxu0 0
        %1404 = vmatpush1.bf16.msra.mxu0 %v1322
        %1405 = vmatprep.subr.bf16.mxu0 0
        %1406 = vmatpush1.bf16.msra.mxu0 %v1325
        %1407 = vmatprep.subr.bf16.mxu0 0
        %1408 = vmatpush1.bf16.msra.mxu0 0
        %1409 = vmatprep.subr.bf16.mxu0 0
        %1410 = vmatpush1.bf16.msra.mxu0 0
        %1411 = vmatprep.subr.bf16.mxu0 0
        %1412 = vmatpush1.bf16.msra.mxu0 0
        %1413 = vmatprep.subr.bf16.mxu0 0
        %1414 = vmatpush1.bf16.msra.mxu0 0
        %1415 = vmatprep.subr.bf16.mxu0 0
        %1416 = vmatpush1.bf16.msra.mxu0 0
        %1417 = vmatprep.subr.bf16.mxu0 0
        %1418 = vmatpush1.bf16.msra.mxu0 0
        %1419 = vmatprep.subr.bf16.mxu0 0
        %1420 = vmatpush1.bf16.msra.mxu0 0
        %1421 = vmatprep.subr.bf16.mxu0 0
        %1422 = vmatpush1.bf16.msra.mxu0 0
        %1423 = vmatprep.mubr.bf16.mxu0 0
        %1424 = vmatmul.mubr.bf16.gmra.mrb[0].mxu0 %v1172
        %v1425 = vpop.f32.mrb[0].mxu0
        %v1426 = vadd.f32 %v1218, %v1425
        %v1427 = vpop.f32.mrb[0].mxu0
        %v1428 = vpop.f32.mrb[0].mxu0
        %v1429 = vpop.f32.mrb[0].mxu0
        %1430 = vdwg.mxu0
        %v1431 = vld [vmem:[%s1073] sm:$0xf]
        %v1432 = vld [vmem:[%s1073 + $0x4] sm:$0xf]
        %v1433 = vld [vmem:[%s1073 + $0x8] sm:$0xf]
        %v1434 = vld [vmem:[%s1073 + $0xc] sm:$0xf]
        %v1435 = vld [vmem:[%s1073 + $0x10] sm:$0xf]
        %v1436 = vld [vmem:[%s1073 + $0x14] sm:$0xf]
        %v1437 = vld [vmem:[%s1073 + $0x18] sm:$0xf]
        %v1438 = vld [vmem:[%s1073 + $0x1c] sm:$0xf]
        %v1439 = vld [vmem:[%s1073 + $0x20] sm:$0xf]
        %v1440 = vld [vmem:[%s1073 + $0x24] sm:$0xf]
        %v1441 = vld [vmem:[%s1073 + $0x28] sm:$0xf]
        %v1442 = vld [vmem:[%s1073 + $0x2c] sm:$0xf]
        %v1443 = vld [vmem:[%s1073 + $0x30] sm:$0xf]
        %v1444 = vld [vmem:[%s1073 + $0x34] sm:$0xf]
        %v1445 = vld [vmem:[%s1073 + $0x38] sm:$0xf]
        %v1446 = vld [vmem:[%s1073 + $0x3c] sm:$0xf]
        %v1447 = vpack.c.bf16 %v1385, %v1385
        %1449 = vrot.lane.b32.xlu0 %v1447, 96
        %v1450 = vpop.permute.xlu0 %1449
        %1451 = vrot.lane.b32.xlu0 %v1447, 64
        %v1452 = vpop.permute.xlu0 %1451
        %1453 = vrot.lane.b32.xlu0 %v1447, 32
        %v1454 = vpop.permute.xlu0 %1453
        %v1455 = vpack.c.bf16 %v1387, %v1387
        %1457 = vrot.lane.b32.xlu0 %v1455, 96
        %v1458 = vpop.permute.xlu0 %1457
        %1459 = vrot.lane.b32.xlu0 %v1455, 64
        %v1460 = vpop.permute.xlu0 %1459
        %1461 = vrot.lane.b32.xlu0 %v1455, 32
        %v1462 = vpop.permute.xlu0 %1461
        %v1463 = vpack.c.bf16 %v1426, %v1426
        %1465 = vrot.lane.b32.xlu0 %v1463, 96
        %v1466 = vpop.permute.xlu0 %1465
        %1467 = vrot.lane.b32.xlu0 %v1463, 64
        %v1468 = vpop.permute.xlu0 %1467
        %1469 = vrot.lane.b32.xlu0 %v1463, 32
        %v1470 = vpop.permute.xlu0 %1469
        %vm1471 = vcmask 261120
        %v1473 = vsel %vm1471, %v1447, 0
        %v1476 = vsel %vm1471, %v1455, 0
        %1478 = vmatprep.subr.bf16.mxu0 0
        %1479 = vmatpush1.bf16.xpose.msra.mxu0 %v1476
        %1480 = vmatprep.subr.bf16.mxu0 0
        %1481 = vmatpush1.bf16.xpose.msra.mxu0 0
        %1482 = vmatprep.subr.bf16.mxu0 0
        %1483 = vmatpush1.bf16.xpose.msra.mxu0 0
        %1484 = vmatprep.subr.bf16.mxu0 0
        %1485 = vmatpush1.bf16.xpose.msra.mxu0 0
        %1486 = vmatprep.subr.bf16.mxu0 0
        %1487 = vmatpush1.bf16.xpose.msra.mxu0 0
        %1488 = vmatprep.subr.bf16.mxu0 0
        %1489 = vmatpush1.bf16.xpose.msra.mxu0 0
        %1490 = vmatprep.subr.bf16.mxu0 0
        %1491 = vmatpush1.bf16.xpose.msra.mxu0 0
        %1492 = vmatprep.subr.bf16.mxu0 0
        %1493 = vmatpush1.bf16.xpose.msra.mxu0 0
        %1494 = vmatprep.subr.bf16.mxu0 0
        %1495 = vmatpush1.bf16.xpose.msra.mxu0 0
        %1496 = vmatprep.subr.bf16.mxu0 0
        %1497 = vmatpush1.bf16.xpose.msra.mxu0 0
        %1498 = vmatprep.subr.bf16.mxu0 0
        %1499 = vmatpush1.bf16.xpose.msra.mxu0 0
        %1500 = vmatprep.subr.bf16.mxu0 0
        %1501 = vmatpush1.bf16.xpose.msra.mxu0 0
        %1502 = vmatprep.subr.bf16.mxu0 0
        %1503 = vmatpush1.bf16.xpose.msra.mxu0 0
        %1504 = vmatprep.subr.bf16.mxu0 0
        %1505 = vmatpush1.bf16.xpose.msra.mxu0 0
        %1506 = vmatprep.subr.bf16.mxu0 0
        %1507 = vmatpush1.bf16.xpose.msra.mxu0 0
        %1508 = vmatprep.subr.bf16.mxu0 0
        %1509 = vmatpush1.bf16.xpose.msra.mxu0 0
        %1510 = vmatprep.mubr.bf16.mxu0 0
        %1511 = vmatmul.mubr.bf16.gmra.mrb[0].mxu0 %v1473
        %v1512 = vpop.f32.mrb[0].mxu0
        %v1513 = vadd.f32 %v1171, %v1512
        %v1514 = vpop.f32.mrb[0].mxu0
        %v1515 = vpop.f32.mrb[0].mxu0
        %v1516 = vpop.f32.mrb[0].mxu0
        %1517 = vdwg.mxu0
        %v1519 = vsel %vm1471, %v1450, 0
        %v1522 = vsel %vm1471, %v1458, 0
        %1524 = vmatprep.subr.bf16.mxu0 0
        %1525 = vmatpush1.bf16.xpose.msra.mxu0 %v1522
        %1526 = vmatprep.subr.bf16.mxu0 0
        %1527 = vmatpush1.bf16.xpose.msra.mxu0 0
        %1528 = vmatprep.subr.bf16.mxu0 0
        %1529 = vmatpush1.bf16.xpose.msra.mxu0 0
        %1530 = vmatprep.subr.bf16.mxu0 0
        %1531 = vmatpush1.bf16.xpose.msra.mxu0 0
        %1532 = vmatprep.subr.bf16.mxu0 0
        %1533 = vmatpush1.bf16.xpose.msra.mxu0 0
        %1534 = vmatprep.subr.bf16.mxu0 0
        %1535 = vmatpush1.bf16.xpose.msra.mxu0 0
        %1536 = vmatprep.subr.bf16.mxu0 0
        %1537 = vmatpush1.bf16.xpose.msra.mxu0 0
        %1538 = vmatprep.subr.bf16.mxu0 0
        %1539 = vmatpush1.bf16.xpose.msra.mxu0 0
        %1540 = vmatprep.subr.bf16.mxu0 0
        %1541 = vmatpush1.bf16.xpose.msra.mxu0 0
        %1542 = vmatprep.subr.bf16.mxu0 0
        %1543 = vmatpush1.bf16.xpose.msra.mxu0 0
        %1544 = vmatprep.subr.bf16.mxu0 0
        %1545 = vmatpush1.bf16.xpose.msra.mxu0 0
        %1546 = vmatprep.subr.bf16.mxu0 0
        %1547 = vmatpush1.bf16.xpose.msra.mxu0 0
        %1548 = vmatprep.subr.bf16.mxu0 0
        %1549 = vmatpush1.bf16.xpose.msra.mxu0 0
        %1550 = vmatprep.subr.bf16.mxu0 0
        %1551 = vmatpush1.bf16.xpose.msra.mxu0 0
        %1552 = vmatprep.subr.bf16.mxu0 0
        %1553 = vmatpush1.bf16.xpose.msra.mxu0 0
        %1554 = vmatprep.subr.bf16.mxu0 0
        %1555 = vmatpush1.bf16.xpose.msra.mxu0 0
        %1556 = vmatprep.mubr.bf16.mxu0 0
        %1557 = vmatmul.mubr.bf16.gmra.mrb[0].mxu0 %v1519
        %v1558 = vpop.f32.mrb[0].mxu0
        %v1559 = vadd.f32 %v1171, %v1558
        %v1560 = vpop.f32.mrb[0].mxu0
        %v1561 = vpop.f32.mrb[0].mxu0
        %v1562 = vpop.f32.mrb[0].mxu0
        %1563 = vdwg.mxu0
        %v1565 = vsel %vm1471, %v1452, 0
        %v1568 = vsel %vm1471, %v1460, 0
        %1570 = vmatprep.subr.bf16.mxu0 0
        %1571 = vmatpush1.bf16.xpose.msra.mxu0 %v1568
        %1572 = vmatprep.subr.bf16.mxu0 0
        %1573 = vmatpush1.bf16.xpose.msra.mxu0 0
        %1574 = vmatprep.subr.bf16.mxu0 0
        %1575 = vmatpush1.bf16.xpose.msra.mxu0 0
        %1576 = vmatprep.subr.bf16.mxu0 0
        %1577 = vmatpush1.bf16.xpose.msra.mxu0 0
        %1578 = vmatprep.subr.bf16.mxu0 0
        %1579 = vmatpush1.bf16.xpose.msra.mxu0 0
        %1580 = vmatprep.subr.bf16.mxu0 0
        %1581 = vmatpush1.bf16.xpose.msra.mxu0 0
        %1582 = vmatprep.subr.bf16.mxu0 0
        %1583 = vmatpush1.bf16.xpose.msra.mxu0 0
        %1584 = vmatprep.subr.bf16.mxu0 0
        %1585 = vmatpush1.bf16.xpose.msra.mxu0 0
        %1586 = vmatprep.subr.bf16.mxu0 0
        %1587 = vmatpush1.bf16.xpose.msra.mxu0 0
        %1588 = vmatprep.subr.bf16.mxu0 0
        %1589 = vmatpush1.bf16.xpose.msra.mxu0 0
        %1590 = vmatprep.subr.bf16.mxu0 0
        %1591 = vmatpush1.bf16.xpose.msra.mxu0 0
        %1592 = vmatprep.subr.bf16.mxu0 0
        %1593 = vmatpush1.bf16.xpose.msra.mxu0 0
        %1594 = vmatprep.subr.bf16.mxu0 0
        %1595 = vmatpush1.bf16.xpose.msra.mxu0 0
        %1596 = vmatprep.subr.bf16.mxu0 0
        %1597 = vmatpush1.bf16.xpose.msra.mxu0 0
        %1598 = vmatprep.subr.bf16.mxu0 0
        %1599 = vmatpush1.bf16.xpose.msra.mxu0 0
        %1600 = vmatprep.subr.bf16.mxu0 0
        %1601 = vmatpush1.bf16.xpose.msra.mxu0 0
        %1602 = vmatprep.mubr.bf16.mxu0 0
        %1603 = vmatmul.mubr.bf16.gmra.mrb[0].mxu0 %v1565
        %v1604 = vpop.f32.mrb[0].mxu0
        %v1605 = vadd.f32 %v1171, %v1604
        %v1606 = vpop.f32.mrb[0].mxu0
        %v1607 = vpop.f32.mrb[0].mxu0
        %v1608 = vpop.f32.mrb[0].mxu0
        %1609 = vdwg.mxu0
        %v1611 = vsel %vm1471, %v1454, 0
        %v1614 = vsel %vm1471, %v1462, 0
        %1616 = vmatprep.subr.bf16.mxu0 0
        %1617 = vmatpush1.bf16.xpose.msra.mxu0 %v1614
        %1618 = vmatprep.subr.bf16.mxu0 0
        %1619 = vmatpush1.bf16.xpose.msra.mxu0 0
        %1620 = vmatprep.subr.bf16.mxu0 0
        %1621 = vmatpush1.bf16.xpose.msra.mxu0 0
        %1622 = vmatprep.subr.bf16.mxu0 0
        %1623 = vmatpush1.bf16.xpose.msra.mxu0 0
        %1624 = vmatprep.subr.bf16.mxu0 0
        %1625 = vmatpush1.bf16.xpose.msra.mxu0 0
        %1626 = vmatprep.subr.bf16.mxu0 0
        %1627 = vmatpush1.bf16.xpose.msra.mxu0 0
        %1628 = vmatprep.subr.bf16.mxu0 0
        %1629 = vmatpush1.bf16.xpose.msra.mxu0 0
        %1630 = vmatprep.subr.bf16.mxu0 0
        %1631 = vmatpush1.bf16.xpose.msra.mxu0 0
        %1632 = vmatprep.subr.bf16.mxu0 0
        %1633 = vmatpush1.bf16.xpose.msra.mxu0 0
        %1634 = vmatprep.subr.bf16.mxu0 0
        %1635 = vmatpush1.bf16.xpose.msra.mxu0 0
        %1636 = vmatprep.subr.bf16.mxu0 0
        %1637 = vmatpush1.bf16.xpose.msra.mxu0 0
        %1638 = vmatprep.subr.bf16.mxu0 0
        %1639 = vmatpush1.bf16.xpose.msra.mxu0 0
        %1640 = vmatprep.subr.bf16.mxu0 0
        %1641 = vmatpush1.bf16.xpose.msra.mxu0 0
        %1642 = vmatprep.subr.bf16.mxu0 0
        %1643 = vmatpush1.bf16.xpose.msra.mxu0 0
        %1644 = vmatprep.subr.bf16.mxu0 0
        %1645 = vmatpush1.bf16.xpose.msra.mxu0 0
        %1646 = vmatprep.subr.bf16.mxu0 0
        %1647 = vmatpush1.bf16.xpose.msra.mxu0 0
        %1648 = vmatprep.mubr.bf16.mxu0 0
        %1649 = vmatmul.mubr.bf16.gmra.mrb[0].mxu0 %v1611
        %v1650 = vpop.f32.mrb[0].mxu0
        %v1651 = vadd.f32 %v1171, %v1650
        %v1652 = vpop.f32.mrb[0].mxu0
        %v1653 = vpop.f32.mrb[0].mxu0
        %v1654 = vpop.f32.mrb[0].mxu0
        %1655 = vdwg.mxu0
        %vm1656 = vcmask 64512
        %v1657 = vsel %vm1656, %v1513, -inf
        %1658 = vmax.xlane.f32.xlu0 %v1657
        %v1659 = vpop.xlane.xlu0 %1658
        %v1660 = vsel %vm1656, %v1559, -inf
        %1661 = vmax.xlane.f32.xlu0 %v1660
        %v1662 = vpop.xlane.xlu0 %1661
        %v1663 = vsel %vm1656, %v1605, -inf
        %1664 = vmax.xlane.f32.xlu0 %v1663
        %v1665 = vpop.xlane.xlu0 %1664
        %v1666 = vsel %vm1656, %v1651, -inf
        %1667 = vmax.xlane.f32.xlu0 %v1666
        %v1668 = vpop.xlane.xlu0 %1667
        %v1669 = vsub.f32 %v1513, %v1659
        %v1670 = vsub.f32 %v1559, %v1662
        %v1671 = vsub.f32 %v1605, %v1665
        %v1672 = vsub.f32 %v1651, %v1668
        %v1673 = vmul.f32 %v1669, 1.442695
        %v1674 = vpow.pop %v1673
        %v1675 = vmul.f32 %v1670, 1.442695
        %v1676 = vpow.pop %v1675
        %v1677 = vmul.f32 %v1671, 1.442695
        %v1678 = vpow.pop %v1677
        %v1679 = vmul.f32 %v1672, 1.442695
        %v1680 = vpow.pop %v1679
        %v1681 = vsel %vm1656, %v1674, 0.0
        %1682 = vadd.xlane.f32.xlu0 %v1681
        %v1683 = vpop.xlane.xlu0 %1682
        %v1684 = vsel %vm1656, %v1676, 0.0
        %1685 = vadd.xlane.f32.xlu0 %v1684
        %v1686 = vpop.xlane.xlu0 %1685
        %v1687 = vsel %vm1656, %v1678, 0.0
        %1688 = vadd.xlane.f32.xlu0 %v1687
        %v1689 = vpop.xlane.xlu0 %1688
        %v1690 = vsel %vm1656, %v1680, 0.0
        %1691 = vadd.xlane.f32.xlu0 %v1690
        %v1692 = vpop.xlane.xlu0 %1691
        %v1693 = vrcp.pop %v1683
        %v1694 = vrcp.pop %v1686
        %v1695 = vrcp.pop %v1689
        %v1696 = vrcp.pop %v1692
        %v1697 = vmul.f32 %v1674, %v1693
        %v1698 = vmul.f32 %v1676, %v1694
        %v1699 = vmul.f32 %v1678, %v1695
        %v1700 = vmul.f32 %v1680, %v1696
        %v1701 = vpack.c.bf16 %v1697, %v1697
        %v1702 = vpack.c.bf16 %v1698, %v1698
        %v1703 = vpack.c.bf16 %v1699, %v1699
        %v1704 = vpack.c.bf16 %v1700, %v1700
        %v1706 = vsel %vm1656, %v1701, 0
        %vm1708 = vcmask 1043456
        %v1710 = vsel %vm1708, %v1463, 0
        %1712 = vmatprep.subr.bf16.mxu0 0
        %1713 = vmatpush1.bf16.msra.mxu0 %v1710
        %1714 = vmatprep.subr.bf16.mxu0 0
        %1715 = vmatpush1.bf16.msra.mxu0 0
        %1716 = vmatprep.subr.bf16.mxu0 0
        %1717 = vmatpush1.bf16.msra.mxu0 0
        %1718 = vmatprep.subr.bf16.mxu0 0
        %1719 = vmatpush1.bf16.msra.mxu0 0
        %1720 = vmatprep.subr.bf16.mxu0 0
        %1721 = vmatpush1.bf16.msra.mxu0 0
        %1722 = vmatprep.subr.bf16.mxu0 0
        %1723 = vmatpush1.bf16.msra.mxu0 0
        %1724 = vmatprep.subr.bf16.mxu0 0
        %1725 = vmatpush1.bf16.msra.mxu0 0
        %1726 = vmatprep.subr.bf16.mxu0 0
        %1727 = vmatpush1.bf16.msra.mxu0 0
        %1728 = vmatprep.subr.bf16.mxu0 0
        %1729 = vmatpush1.bf16.msra.mxu0 0
        %1730 = vmatprep.subr.bf16.mxu0 0
        %1731 = vmatpush1.bf16.msra.mxu0 0
        %1732 = vmatprep.subr.bf16.mxu0 0
        %1733 = vmatpush1.bf16.msra.mxu0 0
        %1734 = vmatprep.subr.bf16.mxu0 0
        %1735 = vmatpush1.bf16.msra.mxu0 0
        %1736 = vmatprep.subr.bf16.mxu0 0
        %1737 = vmatpush1.bf16.msra.mxu0 0
        %1738 = vmatprep.subr.bf16.mxu0 0
        %1739 = vmatpush1.bf16.msra.mxu0 0
        %1740 = vmatprep.subr.bf16.mxu0 0
        %1741 = vmatpush1.bf16.msra.mxu0 0
        %1742 = vmatprep.subr.bf16.mxu0 0
        %1743 = vmatpush1.bf16.msra.mxu0 0
        %1744 = vmatprep.mubr.bf16.mxu0 0
        %1745 = vmatmul.mubr.bf16.gmra.mrb[0].mxu0 %v1706
        %v1746 = vpop.f32.mrb[0].mxu0
        %v1747 = vadd.f32 0.0, %v1746
        %v1748 = vpop.f32.mrb[0].mxu0
        %v1749 = vpop.f32.mrb[0].mxu0
        %v1750 = vpop.f32.mrb[0].mxu0
        %1751 = vdwg.mxu0
        %v1753 = vsel %vm1656, %v1702, 0
        %v1756 = vsel %vm1708, %v1466, 0
        %1758 = vmatprep.subr.bf16.mxu0 0
        %1759 = vmatpush1.bf16.msra.mxu0 %v1756
        %1760 = vmatprep.subr.bf16.mxu0 0
        %1761 = vmatpush1.bf16.msra.mxu0 0
        %1762 = vmatprep.subr.bf16.mxu0 0
        %1763 = vmatpush1.bf16.msra.mxu0 0
        %1764 = vmatprep.subr.bf16.mxu0 0
        %1765 = vmatpush1.bf16.msra.mxu0 0
        %1766 = vmatprep.subr.bf16.mxu0 0
        %1767 = vmatpush1.bf16.msra.mxu0 0
        %1768 = vmatprep.subr.bf16.mxu0 0
        %1769 = vmatpush1.bf16.msra.mxu0 0
        %1770 = vmatprep.subr.bf16.mxu0 0
        %1771 = vmatpush1.bf16.msra.mxu0 0
        %1772 = vmatprep.subr.bf16.mxu0 0
        %1773 = vmatpush1.bf16.msra.mxu0 0
        %1774 = vmatprep.subr.bf16.mxu0 0
        %1775 = vmatpush1.bf16.msra.mxu0 0
        %1776 = vmatprep.subr.bf16.mxu0 0
        %1777 = vmatpush1.bf16.msra.mxu0 0
        %1778 = vmatprep.subr.bf16.mxu0 0
        %1779 = vmatpush1.bf16.msra.mxu0 0
        %1780 = vmatprep.subr.bf16.mxu0 0
        %1781 = vmatpush1.bf16.msra.mxu0 0
        %1782 = vmatprep.subr.bf16.mxu0 0
        %1783 = vmatpush1.bf16.msra.mxu0 0
        %1784 = vmatprep.subr.bf16.mxu0 0
        %1785 = vmatpush1.bf16.msra.mxu0 0
        %1786 = vmatprep.subr.bf16.mxu0 0
        %1787 = vmatpush1.bf16.msra.mxu0 0
        %1788 = vmatprep.subr.bf16.mxu0 0
        %1789 = vmatpush1.bf16.msra.mxu0 0
        %1790 = vmatprep.mubr.bf16.mxu0 0
        %1791 = vmatmul.mubr.bf16.gmra.mrb[0].mxu0 %v1753
        %v1792 = vpop.f32.mrb[0].mxu0
        %v1793 = vadd.f32 0.0, %v1792
        %v1794 = vpop.f32.mrb[0].mxu0
        %v1795 = vpop.f32.mrb[0].mxu0
        %v1796 = vpop.f32.mrb[0].mxu0
        %1797 = vdwg.mxu0
        %v1799 = vsel %vm1656, %v1703, 0
        %v1802 = vsel %vm1708, %v1468, 0
        %1804 = vmatprep.subr.bf16.mxu0 0
        %1805 = vmatpush1.bf16.msra.mxu0 %v1802
        %1806 = vmatprep.subr.bf16.mxu0 0
        %1807 = vmatpush1.bf16.msra.mxu0 0
        %1808 = vmatprep.subr.bf16.mxu0 0
        %1809 = vmatpush1.bf16.msra.mxu0 0
        %1810 = vmatprep.subr.bf16.mxu0 0
        %1811 = vmatpush1.bf16.msra.mxu0 0
        %1812 = vmatprep.subr.bf16.mxu0 0
        %1813 = vmatpush1.bf16.msra.mxu0 0
        %1814 = vmatprep.subr.bf16.mxu0 0
        %1815 = vmatpush1.bf16.msra.mxu0 0
        %1816 = vmatprep.subr.bf16.mxu0 0
        %1817 = vmatpush1.bf16.msra.mxu0 0
        %1818 = vmatprep.subr.bf16.mxu0 0
        %1819 = vmatpush1.bf16.msra.mxu0 0
        %1820 = vmatprep.subr.bf16.mxu0 0
        %1821 = vmatpush1.bf16.msra.mxu0 0
        %1822 = vmatprep.subr.bf16.mxu0 0
        %1823 = vmatpush1.bf16.msra.mxu0 0
        %1824 = vmatprep.subr.bf16.mxu0 0
        %1825 = vmatpush1.bf16.msra.mxu0 0
        %1826 = vmatprep.subr.bf16.mxu0 0
        %1827 = vmatpush1.bf16.msra.mxu0 0
        %1828 = vmatprep.subr.bf16.mxu0 0
        %1829 = vmatpush1.bf16.msra.mxu0 0
        %1830 = vmatprep.subr.bf16.mxu0 0
        %1831 = vmatpush1.bf16.msra.mxu0 0
        %1832 = vmatprep.subr.bf16.mxu0 0
        %1833 = vmatpush1.bf16.msra.mxu0 0
        %1834 = vmatprep.subr.bf16.mxu0 0
        %1835 = vmatpush1.bf16.msra.mxu0 0
        %1836 = vmatprep.mubr.bf16.mxu0 0
        %1837 = vmatmul.mubr.bf16.gmra.mrb[0].mxu0 %v1799
        %v1838 = vpop.f32.mrb[0].mxu0
        %v1839 = vadd.f32 0.0, %v1838
        %v1840 = vpop.f32.mrb[0].mxu0
        %v1841 = vpop.f32.mrb[0].mxu0
        %v1842 = vpop.f32.mrb[0].mxu0
        %1843 = vdwg.mxu0
        %v1845 = vsel %vm1656, %v1704, 0
        %v1848 = vsel %vm1708, %v1470, 0
        %1850 = vmatprep.subr.bf16.mxu0 0
        %1851 = vmatpush1.bf16.msra.mxu0 %v1848
        %1852 = vmatprep.subr.bf16.mxu0 0
        %1853 = vmatpush1.bf16.msra.mxu0 0
        %1854 = vmatprep.subr.bf16.mxu0 0
        %1855 = vmatpush1.bf16.msra.mxu0 0
        %1856 = vmatprep.subr.bf16.mxu0 0
        %1857 = vmatpush1.bf16.msra.mxu0 0
        %1858 = vmatprep.subr.bf16.mxu0 0
        %1859 = vmatpush1.bf16.msra.mxu0 0
        %1860 = vmatprep.subr.bf16.mxu0 0
        %1861 = vmatpush1.bf16.msra.mxu0 0
        %1862 = vmatprep.subr.bf16.mxu0 0
        %1863 = vmatpush1.bf16.msra.mxu0 0
        %1864 = vmatprep.subr.bf16.mxu0 0
        %1865 = vmatpush1.bf16.msra.mxu0 0
        %1866 = vmatprep.subr.bf16.mxu0 0
        %1867 = vmatpush1.bf16.msra.mxu0 0
        %1868 = vmatprep.subr.bf16.mxu0 0
        %1869 = vmatpush1.bf16.msra.mxu0 0
        %1870 = vmatprep.subr.bf16.mxu0 0
        %1871 = vmatpush1.bf16.msra.mxu0 0
        %1872 = vmatprep.subr.bf16.mxu0 0
        %1873 = vmatpush1.bf16.msra.mxu0 0
        %1874 = vmatprep.subr.bf16.mxu0 0
        %1875 = vmatpush1.bf16.msra.mxu0 0
        %1876 = vmatprep.subr.bf16.mxu0 0
        %1877 = vmatpush1.bf16.msra.mxu0 0
        %1878 = vmatprep.subr.bf16.mxu0 0
        %1879 = vmatpush1.bf16.msra.mxu0 0
        %1880 = vmatprep.subr.bf16.mxu0 0
        %1881 = vmatpush1.bf16.msra.mxu0 0
        %1882 = vmatprep.mubr.bf16.mxu0 0
        %1883 = vmatmul.mubr.bf16.gmra.mrb[0].mxu0 %v1845
        %v1884 = vpop.f32.mrb[0].mxu0
        %v1885 = vadd.f32 0.0, %v1884
        %v1886 = vpop.f32.mrb[0].mxu0
        %v1887 = vpop.f32.mrb[0].mxu0
        %v1888 = vpop.f32.mrb[0].mxu0
        %1889 = vdwg.mxu0
        %v1890 = vpack.c.bf16 %v1747, %v1747
        %v1891 = vpack.c.bf16 %v1793, %v1793
        %v1892 = vpack.c.bf16 %v1839, %v1839
        %v1893 = vpack.c.bf16 %v1885, %v1885
        %v1898 = vunpack.c.l.b16 %v1431
        %v1899 = vunpack.c.l.b16 %v1432
        %v1900 = vunpack.c.l.b16 %v1433
        %v1901 = vunpack.c.l.b16 %v1434
        %v1902 = vpack.c.b16 %v1899, %v1898
        %v1903 = vpack.c.b16 %v1901, %v1900
        %v1907 = vsel %vm1471, %v1890, 0
        %1909 = vmatprep.subr.bf16.mxu0 0
        %1910 = vmatpush1.bf16.msra.mxu0 %v1902
        %1911 = vmatprep.subr.bf16.mxu0 0
        %1912 = vmatpush1.bf16.msra.mxu0 %v1903
        %1913 = vmatprep.subr.bf16.mxu0 0
        %1914 = vmatpush1.bf16.msra.mxu0 0
        %1915 = vmatprep.subr.bf16.mxu0 0
        %1916 = vmatpush1.bf16.msra.mxu0 0
        %1917 = vmatprep.subr.bf16.mxu0 0
        %1918 = vmatpush1.bf16.msra.mxu0 0
        %1919 = vmatprep.subr.bf16.mxu0 0
        %1920 = vmatpush1.bf16.msra.mxu0 0
        %1921 = vmatprep.subr.bf16.mxu0 0
        %1922 = vmatpush1.bf16.msra.mxu0 0
        %1923 = vmatprep.subr.bf16.mxu0 0
        %1924 = vmatpush1.bf16.msra.mxu0 0
        %1925 = vmatprep.subr.bf16.mxu0 0
        %1926 = vmatpush1.bf16.msra.mxu0 0
        %1927 = vmatprep.subr.bf16.mxu0 0
        %1928 = vmatpush1.bf16.msra.mxu0 0
        %1929 = vmatprep.subr.bf16.mxu0 0
        %1930 = vmatpush1.bf16.msra.mxu0 0
        %1931 = vmatprep.subr.bf16.mxu0 0
        %1932 = vmatpush1.bf16.msra.mxu0 0
        %1933 = vmatprep.subr.bf16.mxu0 0
        %1934 = vmatpush1.bf16.msra.mxu0 0
        %1935 = vmatprep.subr.bf16.mxu0 0
        %1936 = vmatpush1.bf16.msra.mxu0 0
        %1937 = vmatprep.subr.bf16.mxu0 0
        %1938 = vmatpush1.bf16.msra.mxu0 0
        %1939 = vmatprep.subr.bf16.mxu0 0
        %1940 = vmatpush1.bf16.msra.mxu0 0
        %1941 = vmatprep.mubr.bf16.mxu0 0
        %1942 = vmatmul.mubr.bf16.gmra.mrb[0].mxu0 %v1907
        %v1943 = vpop.f32.mrb[0].mxu0
        %v1944 = vadd.f32 0.0, %v1943
        %v1945 = vpop.f32.mrb[0].mxu0
        %v1946 = vpop.f32.mrb[0].mxu0
        %v1947 = vpop.f32.mrb[0].mxu0
        %1948 = vdwg.mxu0
        %v1953 = vunpack.c.l.b16 %v1435
        %v1954 = vunpack.c.l.b16 %v1436
        %v1955 = vunpack.c.l.b16 %v1437
        %v1956 = vunpack.c.l.b16 %v1438
        %v1957 = vpack.c.b16 %v1954, %v1953
        %v1958 = vpack.c.b16 %v1956, %v1955
        %v1962 = vsel %vm1471, %v1891, 0
        %1964 = vmatprep.subr.bf16.mxu0 0
        %1965 = vmatpush1.bf16.msra.mxu0 %v1957
        %1966 = vmatprep.subr.bf16.mxu0 0
        %1967 = vmatpush1.bf16.msra.mxu0 %v1958
        %1968 = vmatprep.subr.bf16.mxu0 0
        %1969 = vmatpush1.bf16.msra.mxu0 0
        %1970 = vmatprep.subr.bf16.mxu0 0
        %1971 = vmatpush1.bf16.msra.mxu0 0
        %1972 = vmatprep.subr.bf16.mxu0 0
        %1973 = vmatpush1.bf16.msra.mxu0 0
        %1974 = vmatprep.subr.bf16.mxu0 0
        %1975 = vmatpush1.bf16.msra.mxu0 0
        %1976 = vmatprep.subr.bf16.mxu0 0
        %1977 = vmatpush1.bf16.msra.mxu0 0
        %1978 = vmatprep.subr.bf16.mxu0 0
        %1979 = vmatpush1.bf16.msra.mxu0 0
        %1980 = vmatprep.subr.bf16.mxu0 0
        %1981 = vmatpush1.bf16.msra.mxu0 0
        %1982 = vmatprep.subr.bf16.mxu0 0
        %1983 = vmatpush1.bf16.msra.mxu0 0
        %1984 = vmatprep.subr.bf16.mxu0 0
        %1985 = vmatpush1.bf16.msra.mxu0 0
        %1986 = vmatprep.subr.bf16.mxu0 0
        %1987 = vmatpush1.bf16.msra.mxu0 0
        %1988 = vmatprep.subr.bf16.mxu0 0
        %1989 = vmatpush1.bf16.msra.mxu0 0
        %1990 = vmatprep.subr.bf16.mxu0 0
        %1991 = vmatpush1.bf16.msra.mxu0 0
        %1992 = vmatprep.subr.bf16.mxu0 0
        %1993 = vmatpush1.bf16.msra.mxu0 0
        %1994 = vmatprep.subr.bf16.mxu0 0
        %1995 = vmatpush1.bf16.msra.mxu0 0
        %1996 = vmatprep.mubr.bf16.mxu0 0
        %1997 = vmatmul.mubr.bf16.gmra.mrb[0].mxu0 %v1962
        %v1998 = vpop.f32.mrb[0].mxu0
        %v1999 = vadd.f32 0.0, %v1998
        %v2000 = vpop.f32.mrb[0].mxu0
        %v2001 = vpop.f32.mrb[0].mxu0
        %v2002 = vpop.f32.mrb[0].mxu0
        %2003 = vdwg.mxu0
        %v2008 = vunpack.c.l.b16 %v1439
        %v2009 = vunpack.c.l.b16 %v1440
        %v2010 = vunpack.c.l.b16 %v1441
        %v2011 = vunpack.c.l.b16 %v1442
        %v2012 = vpack.c.b16 %v2009, %v2008
        %v2013 = vpack.c.b16 %v2011, %v2010
        %v2017 = vsel %vm1471, %v1892, 0
        %2019 = vmatprep.subr.bf16.mxu0 0
        %2020 = vmatpush1.bf16.msra.mxu0 %v2012
        %2021 = vmatprep.subr.bf16.mxu0 0
        %2022 = vmatpush1.bf16.msra.mxu0 %v2013
        %2023 = vmatprep.subr.bf16.mxu0 0
        %2024 = vmatpush1.bf16.msra.mxu0 0
        %2025 = vmatprep.subr.bf16.mxu0 0
        %2026 = vmatpush1.bf16.msra.mxu0 0
        %2027 = vmatprep.subr.bf16.mxu0 0
        %2028 = vmatpush1.bf16.msra.mxu0 0
        %2029 = vmatprep.subr.bf16.mxu0 0
        %2030 = vmatpush1.bf16.msra.mxu0 0
        %2031 = vmatprep.subr.bf16.mxu0 0
        %2032 = vmatpush1.bf16.msra.mxu0 0
        %2033 = vmatprep.subr.bf16.mxu0 0
        %2034 = vmatpush1.bf16.msra.mxu0 0
        %2035 = vmatprep.subr.bf16.mxu0 0
        %2036 = vmatpush1.bf16.msra.mxu0 0
        %2037 = vmatprep.subr.bf16.mxu0 0
        %2038 = vmatpush1.bf16.msra.mxu0 0
        %2039 = vmatprep.subr.bf16.mxu0 0
        %2040 = vmatpush1.bf16.msra.mxu0 0
        %2041 = vmatprep.subr.bf16.mxu0 0
        %2042 = vmatpush1.bf16.msra.mxu0 0
        %2043 = vmatprep.subr.bf16.mxu0 0
        %2044 = vmatpush1.bf16.msra.mxu0 0
        %2045 = vmatprep.subr.bf16.mxu0 0
        %2046 = vmatpush1.bf16.msra.mxu0 0
        %2047 = vmatprep.subr.bf16.mxu0 0
        %2048 = vmatpush1.bf16.msra.mxu0 0
        %2049 = vmatprep.subr.bf16.mxu0 0
        %2050 = vmatpush1.bf16.msra.mxu0 0
        %2051 = vmatprep.mubr.bf16.mxu0 0
        %2052 = vmatmul.mubr.bf16.gmra.mrb[0].mxu0 %v2017
        %v2053 = vpop.f32.mrb[0].mxu0
        %v2054 = vadd.f32 0.0, %v2053
        %v2055 = vpop.f32.mrb[0].mxu0
        %v2056 = vpop.f32.mrb[0].mxu0
        %v2057 = vpop.f32.mrb[0].mxu0
        %2058 = vdwg.mxu0
        %v2063 = vunpack.c.l.b16 %v1443
        %v2064 = vunpack.c.l.b16 %v1444
        %v2065 = vunpack.c.l.b16 %v1445
        %v2066 = vunpack.c.l.b16 %v1446
        %v2067 = vpack.c.b16 %v2064, %v2063
        %v2068 = vpack.c.b16 %v2066, %v2065
        %v2072 = vsel %vm1471, %v1893, 0
        %2074 = vmatprep.subr.bf16.mxu0 0
        %2075 = vmatpush1.bf16.msra.mxu0 %v2067
        %2076 = vmatprep.subr.bf16.mxu0 0
        %2077 = vmatpush1.bf16.msra.mxu0 %v2068
        %2078 = vmatprep.subr.bf16.mxu0 0
        %2079 = vmatpush1.bf16.msra.mxu0 0
        %2080 = vmatprep.subr.bf16.mxu0 0
        %2081 = vmatpush1.bf16.msra.mxu0 0
        %2082 = vmatprep.subr.bf16.mxu0 0
        %2083 = vmatpush1.bf16.msra.mxu0 0
        %2084 = vmatprep.subr.bf16.mxu0 0
        %2085 = vmatpush1.bf16.msra.mxu0 0
        %2086 = vmatprep.subr.bf16.mxu0 0
        %2087 = vmatpush1.bf16.msra.mxu0 0
        %2088 = vmatprep.subr.bf16.mxu0 0
        %2089 = vmatpush1.bf16.msra.mxu0 0
        %2090 = vmatprep.subr.bf16.mxu0 0
        %2091 = vmatpush1.bf16.msra.mxu0 0
        %2092 = vmatprep.subr.bf16.mxu0 0
        %2093 = vmatpush1.bf16.msra.mxu0 0
        %2094 = vmatprep.subr.bf16.mxu0 0
        %2095 = vmatpush1.bf16.msra.mxu0 0
        %2096 = vmatprep.subr.bf16.mxu0 0
        %2097 = vmatpush1.bf16.msra.mxu0 0
        %2098 = vmatprep.subr.bf16.mxu0 0
        %2099 = vmatpush1.bf16.msra.mxu0 0
        %2100 = vmatprep.subr.bf16.mxu0 0
        %2101 = vmatpush1.bf16.msra.mxu0 0
        %2102 = vmatprep.subr.bf16.mxu0 0
        %2103 = vmatpush1.bf16.msra.mxu0 0
        %2104 = vmatprep.subr.bf16.mxu0 0
        %2105 = vmatpush1.bf16.msra.mxu0 0
        %2106 = vmatprep.mubr.bf16.mxu0 0
        %2107 = vmatmul.mubr.bf16.gmra.mrb[0].mxu0 %v2072
        %v2108 = vpop.f32.mrb[0].mxu0
        %v2109 = vadd.f32 0.0, %v2108
        %v2110 = vpop.f32.mrb[0].mxu0
        %v2111 = vpop.f32.mrb[0].mxu0
        %v2112 = vpop.f32.mrb[0].mxu0
        %2113 = vdwg.mxu0
        %v2114 = vadd.f32 %v1944, %v1999
        %v2115 = vadd.f32 %v2114, %v2054
        %v2116 = vadd.f32 %v2115, %v2109
        %v2117 = vld [vmem:[%s1076] sm:$0x1]
        %v2119 = vlaneseq
        %v2120 = vshrl.u32 %v2119, 7
        %v2121 = vsub.s32 0, %v2120
        %v2122 = vrot.slane %v2117, %v2121
        %v2124 = vadd.f32 %v2116, %v2122
        %v2125 = vadd.f32 %v1162, %v2124
        %v2126 = vld [vmem:[%s1079] sm:$0x1]
        %v2127 = vld [vmem:[%s1082] sm:$0x1]
        %2128 = vadd.xlane.f32.xlu0 %v2125
        %v2129 = vpop.xlane.xlu0 %2128
        %v2130 = vrcp.pop 128.0
        %v2131 = vmul.f32 %v2129, %v2130
        %v2132 = vsub.f32 %v2125, %v2131
        %v2133 = vmul.f32 %v2132, %v2132
        %2134 = vadd.xlane.f32.xlu0 %v2133
        %v2135 = vpop.xlane.xlu0 %2134
        %v2136 = vmul.f32 %v2135, %v2130
        %v2137 = vadd.f32 %v2136, 1e-05
        %v2138 = vrsqrt.pop %v2137
        %v2139 = vmul.f32 %v2132, %v2138
        %v2141 = vlaneseq
        %v2142 = vshrl.u32 %v2141, 7
        %v2143 = vsub.s32 0, %v2142
        %v2144 = vrot.slane %v2126, %v2143
        %v2146 = vmul.f32 %v2139, %v2144
        %v2148 = vlaneseq
        %v2149 = vshrl.u32 %v2148, 7
        %v2150 = vsub.s32 0, %v2149
        %v2151 = vrot.slane %v2127, %v2150
        %v2153 = vadd.f32 %v2146, %v2151
        %v2154 = vpack.c.bf16 %v2153, %v2153
        %v2155 = vld [vmem:[%s1087] sm:$0xf]
        %v2156 = vld [vmem:[%s1087 + $0x4] sm:$0xf]
        %v2157 = vld [vmem:[%s1087 + $0x8] sm:$0xf]
        %v2158 = vld [vmem:[%s1087 + $0xc] sm:$0xf]
        %v2159 = vld [vmem:[%s1087 + $0x10] sm:$0xf]
        %v2160 = vld [vmem:[%s1087 + $0x14] sm:$0xf]
        %v2161 = vld [vmem:[%s1087 + $0x18] sm:$0xf]
        %v2162 = vld [vmem:[%s1087 + $0x1c] sm:$0xf]
        %v2163 = vld [vmem:[%s1087 + $0x20] sm:$0xf]
        %v2164 = vld [vmem:[%s1087 + $0x24] sm:$0xf]
        %v2165 = vld [vmem:[%s1087 + $0x28] sm:$0xf]
        %v2166 = vld [vmem:[%s1087 + $0x2c] sm:$0xf]
        %v2167 = vld [vmem:[%s1087 + $0x30] sm:$0xf]
        %v2168 = vld [vmem:[%s1087 + $0x34] sm:$0xf]
        %v2169 = vld [vmem:[%s1087 + $0x38] sm:$0xf]
        %v2170 = vld [vmem:[%s1087 + $0x3c] sm:$0xf]
        %v2171 = vld [vmem:[%s1090] sm:$0x1]
        %v2173 = vlaneseq
        %v2174 = vshrl.u32 %v2173, 7
        %v2175 = vsub.s32 0, %v2174
        %v2176 = vrot.slane %v2171, %v2175
        %v2194 = vunpack.c.l.b16 %v2155
        %v2195 = vunpack.c.l.b16 %v2156
        %v2196 = vunpack.c.l.b16 %v2157
        %v2197 = vunpack.c.l.b16 %v2158
        %v2198 = vunpack.c.l.b16 %v2159
        %v2199 = vunpack.c.l.b16 %v2160
        %v2200 = vunpack.c.l.b16 %v2161
        %v2201 = vunpack.c.l.b16 %v2162
        %v2202 = vunpack.c.l.b16 %v2163
        %v2203 = vunpack.c.l.b16 %v2164
        %v2204 = vunpack.c.l.b16 %v2165
        %v2205 = vunpack.c.l.b16 %v2166
        %v2206 = vunpack.c.l.b16 %v2167
        %v2207 = vunpack.c.l.b16 %v2168
        %v2208 = vunpack.c.l.b16 %v2169
        %v2209 = vunpack.c.l.b16 %v2170
        %v2210 = vpack.c.b16 %v2195, %v2194
        %v2211 = vpack.c.b16 %v2197, %v2196
        %v2212 = vpack.c.b16 %v2199, %v2198
        %v2213 = vpack.c.b16 %v2201, %v2200
        %v2214 = vpack.c.b16 %v2203, %v2202
        %v2215 = vpack.c.b16 %v2205, %v2204
        %v2216 = vpack.c.b16 %v2207, %v2206
        %v2217 = vpack.c.b16 %v2209, %v2208
        %2226 = vmatprep.subr.bf16.mxu0 0
        %2227 = vmatpush1.bf16.msra.mxu0 %v2210
        %2228 = vmatprep.subr.bf16.mxu0 0
        %2229 = vmatpush1.bf16.msra.mxu0 %v2211
        %2230 = vmatprep.subr.bf16.mxu0 0
        %2231 = vmatpush1.bf16.msra.mxu0 %v2212
        %2232 = vmatprep.subr.bf16.mxu0 0
        %2233 = vmatpush1.bf16.msra.mxu0 %v2213
        %2234 = vmatprep.subr.bf16.mxu0 0
        %2235 = vmatpush1.bf16.msra.mxu0 %v2214
        %2236 = vmatprep.subr.bf16.mxu0 0
        %2237 = vmatpush1.bf16.msra.mxu0 %v2215
        %2238 = vmatprep.subr.bf16.mxu0 0
        %2239 = vmatpush1.bf16.msra.mxu0 %v2216
        %2240 = vmatprep.subr.bf16.mxu0 0
        %2241 = vmatpush1.bf16.msra.mxu0 %v2217
        %2242 = vmatprep.subr.bf16.mxu0 0
        %2243 = vmatpush1.bf16.msra.mxu0 0
        %2244 = vmatprep.subr.bf16.mxu0 0
        %2245 = vmatpush1.bf16.msra.mxu0 0
        %2246 = vmatprep.subr.bf16.mxu0 0
        %2247 = vmatpush1.bf16.msra.mxu0 0
        %2248 = vmatprep.subr.bf16.mxu0 0
        %2249 = vmatpush1.bf16.msra.mxu0 0
        %2250 = vmatprep.subr.bf16.mxu0 0
        %2251 = vmatpush1.bf16.msra.mxu0 0
        %2252 = vmatprep.subr.bf16.mxu0 0
        %2253 = vmatpush1.bf16.msra.mxu0 0
        %2254 = vmatprep.subr.bf16.mxu0 0
        %2255 = vmatpush1.bf16.msra.mxu0 0
        %2256 = vmatprep.subr.bf16.mxu0 0
        %2257 = vmatpush1.bf16.msra.mxu0 0
        %2258 = vmatprep.mubr.bf16.mxu0 0
        %2259 = vmatmul.mubr.bf16.gmra.mrb[0].mxu0 %v2154
        %v2260 = vpop.f32.mrb[0].mxu0
        %v2261 = vadd.f32 %v2176, %v2260
        %v2262 = vpop.f32.mrb[0].mxu0
        %v2263 = vpop.f32.mrb[0].mxu0
        %v2264 = vpop.f32.mrb[0].mxu0
        %2265 = vdwg.mxu0
        %v2266 = vpack.c.bf16 %v1164, %v1163
        %v2267 = vpack.c.bf16 %v1166, %v1165
        %v2268 = vpack.c.bf16 %v1168, %v1167
        %v2269 = vpack.c.bf16 %v1170, %v1169
        %v2270 = vld [vmem:[%s1095] sm:$0xff]
        %v2271 = vld [vmem:[%s1095 + $0x8] sm:$0xff]
        %v2272 = vld [vmem:[%s1095 + $0x10] sm:$0xff]
        %v2273 = vld [vmem:[%s1095 + $0x18] sm:$0xff]
        %v2274 = vld [vmem:[%s1095 + $0x20] sm:$0xff]
        %v2275 = vld [vmem:[%s1095 + $0x28] sm:$0xff]
        %v2276 = vld [vmem:[%s1095 + $0x30] sm:$0xff]
        %v2277 = vld [vmem:[%s1095 + $0x38] sm:$0xff]
        %v2278 = vld [vmem:[%s1095 + $0x40] sm:$0xff]
        %v2279 = vld [vmem:[%s1095 + $0x48] sm:$0xff]
        %v2280 = vld [vmem:[%s1095 + $0x50] sm:$0xff]
        %v2281 = vld [vmem:[%s1095 + $0x58] sm:$0xff]
        %v2282 = vld [vmem:[%s1095 + $0x60] sm:$0xff]
        %v2283 = vld [vmem:[%s1095 + $0x68] sm:$0xff]
        %v2284 = vld [vmem:[%s1095 + $0x70] sm:$0xff]
        %v2285 = vld [vmem:[%s1095 + $0x78] sm:$0xff]
        %v2286 = vld [vmem:[%s1099] sm:$0x3]
        %v2288 = vlaneseq
        %v2289 = vshrl.u32 %v2288, 7
        %v2290 = vsub.s32 0, %v2289
        %v2291 = vrot.slane %v2286, %v2290
        %v2292 = vlaneseq
        %v2293 = vshrl.u32 %v2292, 7
        %v2294 = vsub.s32 1, %v2293
        %v2295 = vrot.slane %v2286, %v2294
        %v2314 = vunpack.c.l.b16 %v2270
        %v2315 = vunpack.c.h.b16 %v2270
        %v2316 = vunpack.c.l.b16 %v2271
        %v2317 = vunpack.c.h.b16 %v2271
        %v2318 = vunpack.c.l.b16 %v2272
        %v2319 = vunpack.c.h.b16 %v2272
        %v2320 = vunpack.c.l.b16 %v2273
        %v2321 = vunpack.c.h.b16 %v2273
        %v2322 = vunpack.c.l.b16 %v2274
        %v2323 = vunpack.c.h.b16 %v2274
        %v2324 = vunpack.c.l.b16 %v2275
        %v2325 = vunpack.c.h.b16 %v2275
        %v2326 = vunpack.c.l.b16 %v2276
        %v2327 = vunpack.c.h.b16 %v2276
        %v2328 = vunpack.c.l.b16 %v2277
        %v2329 = vunpack.c.h.b16 %v2277
        %v2330 = vunpack.c.l.b16 %v2278
        %v2331 = vunpack.c.h.b16 %v2278
        %v2332 = vunpack.c.l.b16 %v2279
        %v2333 = vunpack.c.h.b16 %v2279
        %v2334 = vunpack.c.l.b16 %v2280
        %v2335 = vunpack.c.h.b16 %v2280
        %v2336 = vunpack.c.l.b16 %v2281
        %v2337 = vunpack.c.h.b16 %v2281
        %v2338 = vunpack.c.l.b16 %v2282
        %v2339 = vunpack.c.h.b16 %v2282
        %v2340 = vunpack.c.l.b16 %v2283
        %v2341 = vunpack.c.h.b16 %v2283
        %v2342 = vunpack.c.l.b16 %v2284
        %v2343 = vunpack.c.h.b16 %v2284
        %v2344 = vunpack.c.l.b16 %v2285
        %v2345 = vunpack.c.h.b16 %v2285
        %v2346 = vpack.c.b16 %v2316, %v2314
        %v2347 = vpack.c.b16 %v2317, %v2315
        %v2348 = vpack.c.b16 %v2320, %v2318
        %v2349 = vpack.c.b16 %v2321, %v2319
        %v2350 = vpack.c.b16 %v2324, %v2322
        %v2351 = vpack.c.b16 %v2325, %v2323
        %v2352 = vpack.c.b16 %v2328, %v2326
        %v2353 = vpack.c.b16 %v2329, %v2327
        %v2354 = vpack.c.b16 %v2332, %v2330
        %v2355 = vpack.c.b16 %v2333, %v2331
        %v2356 = vpack.c.b16 %v2336, %v2334
        %v2357 = vpack.c.b16 %v2337, %v2335
        %v2358 = vpack.c.b16 %v2340, %v2338
        %v2359 = vpack.c.b16 %v2341, %v2339
        %v2360 = vpack.c.b16 %v2344, %v2342
        %v2361 = vpack.c.b16 %v2345, %v2343
        %2378 = vmatprep.subr.bf16.mxu0 %v2347
        %2379 = vmatpush1.bf16.msra.mxu0 %v2346
        %2380 = vmatprep.subr.bf16.mxu0 %v2349
        %2381 = vmatpush1.bf16.msra.mxu0 %v2348
        %2382 = vmatprep.subr.bf16.mxu0 %v2351
        %2383 = vmatpush1.bf16.msra.mxu0 %v2350
        %2384 = vmatprep.subr.bf16.mxu0 %v2353
        %2385 = vmatpush1.bf16.msra.mxu0 %v2352
        %2386 = vmatprep.subr.bf16.mxu0 %v2355
        %2387 = vmatpush1.bf16.msra.mxu0 %v2354
        %2388 = vmatprep.subr.bf16.mxu0 %v2357
        %2389 = vmatpush1.bf16.msra.mxu0 %v2356
        %2390 = vmatprep.subr.bf16.mxu0 %v2359
        %2391 = vmatpush1.bf16.msra.mxu0 %v2358
        %2392 = vmatprep.subr.bf16.mxu0 %v2361
        %2393 = vmatpush1.bf16.msra.mxu0 %v2360
        %2394 = vmatprep.subr.bf16.mxu0 0
        %2395 = vmatpush1.bf16.msra.mxu0 0
        %2396 = vmatprep.subr.bf16.mxu0 0
        %2397 = vmatpush1.bf16.msra.mxu0 0
        %2398 = vmatprep.subr.bf16.mxu0 0
        %2399 = vmatpush1.bf16.msra.mxu0 0
        %2400 = vmatprep.subr.bf16.mxu0 0
        %2401 = vmatpush1.bf16.msra.mxu0 0
        %2402 = vmatprep.subr.bf16.mxu0 0
        %2403 = vmatpush1.bf16.msra.mxu0 0
        %2404 = vmatprep.subr.bf16.mxu0 0
        %2405 = vmatpush1.bf16.msra.mxu0 0
        %2406 = vmatprep.subr.bf16.mxu0 0
        %2407 = vmatpush1.bf16.msra.mxu0 0
        %2408 = vmatprep.subr.bf16.mxu0 0
        %2409 = vmatpush1.bf16.msra.mxu0 0
        %2410 = vmatprep.mubr.bf16.mxu0 0
        %2411 = vmatmul.mubr.bf16.gmra.mrb[0].mxu0 %v2266
        %v2412 = vpop.f32.mrb[0].mxu0
        %v2413 = vadd.f32 %v2291, %v2412
        %v2414 = vpop.f32.mrb[0].mxu0
        %v2415 = vadd.f32 %v2295, %v2414
        %v2416 = vpop.f32.mrb[0].mxu0
        %v2417 = vadd.f32 %v2291, %v2416
        %v2418 = vpop.f32.mrb[0].mxu0
        %v2419 = vadd.f32 %v2295, %v2418
        %2420 = vmatprep.mubr.bf16.mxu0 0
        %2421 = vmatmul.mubr.bf16.gmra.mrb[0].mxu0 %v2267
        %v2422 = vpop.f32.mrb[0].mxu0
        %v2423 = vadd.f32 %v2291, %v2422
        %v2424 = vpop.f32.mrb[0].mxu0
        %v2425 = vadd.f32 %v2295, %v2424
        %v2426 = vpop.f32.mrb[0].mxu0
        %v2427 = vadd.f32 %v2291, %v2426
        %v2428 = vpop.f32.mrb[0].mxu0
        %v2429 = vadd.f32 %v2295, %v2428
        %2430 = vmatprep.mubr.bf16.mxu0 0
        %2431 = vmatmul.mubr.bf16.gmra.mrb[0].mxu0 %v2268
        %v2432 = vpop.f32.mrb[0].mxu0
        %v2433 = vadd.f32 %v2291, %v2432
        %v2434 = vpop.f32.mrb[0].mxu0
        %v2435 = vadd.f32 %v2295, %v2434
        %v2436 = vpop.f32.mrb[0].mxu0
        %v2437 = vadd.f32 %v2291, %v2436
        %v2438 = vpop.f32.mrb[0].mxu0
        %v2439 = vadd.f32 %v2295, %v2438
        %2440 = vmatprep.mubr.bf16.mxu0 0
        %2441 = vmatmul.mubr.bf16.gmra.mrb[0].mxu0 %v2269
        %v2442 = vpop.f32.mrb[0].mxu0
        %v2443 = vadd.f32 %v2291, %v2442
        %v2444 = vpop.f32.mrb[0].mxu0
        %v2445 = vadd.f32 %v2295, %v2444
        %v2446 = vpop.f32.mrb[0].mxu0
        %v2447 = vadd.f32 %v2291, %v2446
        %v2448 = vpop.f32.mrb[0].mxu0
        %v2449 = vadd.f32 %v2295, %v2448
        %2450 = vdwg.mxu0
        %v2451 = vld [vmem:[%s1104] sm:$0xf]
        %v2452 = vld [vmem:[%s1104 + $0x4] sm:$0xf]
        %v2453 = vld [vmem:[%s1104 + $0x8] sm:$0xf]
        %v2454 = vld [vmem:[%s1104 + $0xc] sm:$0xf]
        %v2455 = vld [vmem:[%s1104 + $0x10] sm:$0xf]
        %v2456 = vld [vmem:[%s1104 + $0x14] sm:$0xf]
        %v2457 = vld [vmem:[%s1104 + $0x18] sm:$0xf]
        %v2458 = vld [vmem:[%s1104 + $0x1c] sm:$0xf]
        %v2459 = vld [vmem:[%s1104 + $0x20] sm:$0xf]
        %v2460 = vld [vmem:[%s1104 + $0x24] sm:$0xf]
        %v2461 = vld [vmem:[%s1104 + $0x28] sm:$0xf]
        %v2462 = vld [vmem:[%s1104 + $0x2c] sm:$0xf]
        %v2463 = vld [vmem:[%s1104 + $0x30] sm:$0xf]
        %v2464 = vld [vmem:[%s1104 + $0x34] sm:$0xf]
        %v2465 = vld [vmem:[%s1104 + $0x38] sm:$0xf]
        %v2466 = vld [vmem:[%s1104 + $0x3c] sm:$0xf]
        %v2467 = vpack.c.bf16 %v2261, %v2261
        %2469 = vrot.lane.b32.xlu0 %v2467, 96
        %v2470 = vpop.permute.xlu0 %2469
        %2471 = vrot.lane.b32.xlu0 %v2467, 64
        %v2472 = vpop.permute.xlu0 %2471
        %2473 = vrot.lane.b32.xlu0 %v2467, 32
        %v2474 = vpop.permute.xlu0 %2473
        %v2475 = vpack.c.bf16 %v2417, %v2413
        %v2476 = vpack.c.bf16 %v2427, %v2423
        %v2477 = vpack.c.bf16 %v2437, %v2433
        %v2478 = vpack.c.bf16 %v2447, %v2443
        %2483 = vrot.lane.b32.xlu0 %v2475, 96
        %v2484 = vpop.permute.xlu0 %2483
        %2485 = vrot.lane.b32.xlu0 %v2476, 96
        %v2486 = vpop.permute.xlu0 %2485
        %2487 = vrot.lane.b32.xlu0 %v2477, 96
        %v2488 = vpop.permute.xlu0 %2487
        %2489 = vrot.lane.b32.xlu0 %v2478, 96
        %v2490 = vpop.permute.xlu0 %2489
        %2491 = vrot.lane.b32.xlu0 %v2475, 64
        %v2492 = vpop.permute.xlu0 %2491
        %2493 = vrot.lane.b32.xlu0 %v2476, 64
        %v2494 = vpop.permute.xlu0 %2493
        %2495 = vrot.lane.b32.xlu0 %v2477, 64
        %v2496 = vpop.permute.xlu0 %2495
        %2497 = vrot.lane.b32.xlu0 %v2478, 64
        %v2498 = vpop.permute.xlu0 %2497
        %2499 = vrot.lane.b32.xlu0 %v2475, 32
        %v2500 = vpop.permute.xlu0 %2499
        %2501 = vrot.lane.b32.xlu0 %v2476, 32
        %v2502 = vpop.permute.xlu0 %2501
        %2503 = vrot.lane.b32.xlu0 %v2477, 32
        %v2504 = vpop.permute.xlu0 %2503
        %2505 = vrot.lane.b32.xlu0 %v2478, 32
        %v2506 = vpop.permute.xlu0 %2505
        %v2507 = vpack.c.bf16 %v2419, %v2415
        %v2508 = vpack.c.bf16 %v2429, %v2425
        %v2509 = vpack.c.bf16 %v2439, %v2435
        %v2510 = vpack.c.bf16 %v2449, %v2445
        %2515 = vrot.lane.b32.xlu0 %v2507, 96
        %v2516 = vpop.permute.xlu0 %2515
        %2517 = vrot.lane.b32.xlu0 %v2508, 96
        %v2518 = vpop.permute.xlu0 %2517
        %2519 = vrot.lane.b32.xlu0 %v2509, 96
        %v2520 = vpop.permute.xlu0 %2519
        %2521 = vrot.lane.b32.xlu0 %v2510, 96
        %v2522 = vpop.permute.xlu0 %2521
        %2527 = vrot.lane.b32.xlu0 %v2507, 64
        %v2528 = vpop.permute.xlu0 %2527
        %2529 = vrot.lane.b32.xlu0 %v2508, 64
        %v2530 = vpop.permute.xlu0 %2529
        %2531 = vrot.lane.b32.xlu0 %v2509, 64
        %v2532 = vpop.permute.xlu0 %2531
        %2533 = vrot.lane.b32.xlu0 %v2510, 64
        %v2534 = vpop.permute.xlu0 %2533
        %2539 = vrot.lane.b32.xlu0 %v2507, 32
        %v2540 = vpop.permute.xlu0 %2539
        %2541 = vrot.lane.b32.xlu0 %v2508, 32
        %v2542 = vpop.permute.xlu0 %2541
        %2543 = vrot.lane.b32.xlu0 %v2509, 32
        %v2544 = vpop.permute.xlu0 %2543
        %2545 = vrot.lane.b32.xlu0 %v2510, 32
        %v2546 = vpop.permute.xlu0 %2545
        %v2552 = vsel %vm1471, %v2467, 0
        %v2555 = vsel %vm1471, %v2475, 0
        %v2558 = vsel %vm1471, %v2476, 0
        %v2561 = vsel %vm1471, %v2477, 0
        %v2564 = vsel %vm1471, %v2478, 0
        %2566 = vmatprep.subr.bf16.mxu0 0
        %2567 = vmatpush1.bf16.xpose.msra.mxu0 %v2555
        %2568 = vmatprep.subr.bf16.mxu0 0
        %2569 = vmatpush1.bf16.xpose.msra.mxu0 %v2558
        %2570 = vmatprep.subr.bf16.mxu0 0
        %2571 = vmatpush1.bf16.xpose.msra.mxu0 %v2561
        %2572 = vmatprep.subr.bf16.mxu0 0
        %2573 = vmatpush1.bf16.xpose.msra.mxu0 %v2564
        %2574 = vmatprep.subr.bf16.mxu0 0
        %2575 = vmatpush1.bf16.xpose.msra.mxu0 0
        %2576 = vmatprep.subr.bf16.mxu0 0
        %2577 = vmatpush1.bf16.xpose.msra.mxu0 0
        %2578 = vmatprep.subr.bf16.mxu0 0
        %2579 = vmatpush1.bf16.xpose.msra.mxu0 0
        %2580 = vmatprep.subr.bf16.mxu0 0
        %2581 = vmatpush1.bf16.xpose.msra.mxu0 0
        %2582 = vmatprep.subr.bf16.mxu0 0
        %2583 = vmatpush1.bf16.xpose.msra.mxu0 0
        %2584 = vmatprep.subr.bf16.mxu0 0
        %2585 = vmatpush1.bf16.xpose.msra.mxu0 0
        %2586 = vmatprep.subr.bf16.mxu0 0
        %2587 = vmatpush1.bf16.xpose.msra.mxu0 0
        %2588 = vmatprep.subr.bf16.mxu0 0
        %2589 = vmatpush1.bf16.xpose.msra.mxu0 0
        %2590 = vmatprep.subr.bf16.mxu0 0
        %2591 = vmatpush1.bf16.xpose.msra.mxu0 0
        %2592 = vmatprep.subr.bf16.mxu0 0
        %2593 = vmatpush1.bf16.xpose.msra.mxu0 0
        %2594 = vmatprep.subr.bf16.mxu0 0
        %2595 = vmatpush1.bf16.xpose.msra.mxu0 0
        %2596 = vmatprep.subr.bf16.mxu0 0
        %2597 = vmatpush1.bf16.xpose.msra.mxu0 0
        %2598 = vmatprep.mubr.bf16.mxu0 0
        %2599 = vmatmul.mubr.bf16.gmra.mrb[0].mxu0 %v2552
        %v2600 = vpop.f32.mrb[0].mxu0
        %v2601 = vadd.f32 0.0, %v2600
        %v2602 = vpop.f32.mrb[0].mxu0
        %v2603 = vpop.f32.mrb[0].mxu0
        %v2604 = vpop.f32.mrb[0].mxu0
        %2605 = vdwg.mxu0
        %v2607 = vsel %vm1471, %v2470, 0
        %v2610 = vsel %vm1471, %v2484, 0
        %v2613 = vsel %vm1471, %v2486, 0
        %v2616 = vsel %vm1471, %v2488, 0
        %v2619 = vsel %vm1471, %v2490, 0
        %2621 = vmatprep.subr.bf16.mxu0 0
        %2622 = vmatpush1.bf16.xpose.msra.mxu0 %v2610
        %2623 = vmatprep.subr.bf16.mxu0 0
        %2624 = vmatpush1.bf16.xpose.msra.mxu0 %v2613
        %2625 = vmatprep.subr.bf16.mxu0 0
        %2626 = vmatpush1.bf16.xpose.msra.mxu0 %v2616
        %2627 = vmatprep.subr.bf16.mxu0 0
        %2628 = vmatpush1.bf16.xpose.msra.mxu0 %v2619
        %2629 = vmatprep.subr.bf16.mxu0 0
        %2630 = vmatpush1.bf16.xpose.msra.mxu0 0
        %2631 = vmatprep.subr.bf16.mxu0 0
        %2632 = vmatpush1.bf16.xpose.msra.mxu0 0
        %2633 = vmatprep.subr.bf16.mxu0 0
        %2634 = vmatpush1.bf16.xpose.msra.mxu0 0
        %2635 = vmatprep.subr.bf16.mxu0 0
        %2636 = vmatpush1.bf16.xpose.msra.mxu0 0
        %2637 = vmatprep.subr.bf16.mxu0 0
        %2638 = vmatpush1.bf16.xpose.msra.mxu0 0
        %2639 = vmatprep.subr.bf16.mxu0 0
        %2640 = vmatpush1.bf16.xpose.msra.mxu0 0
        %2641 = vmatprep.subr.bf16.mxu0 0
        %2642 = vmatpush1.bf16.xpose.msra.mxu0 0
        %2643 = vmatprep.subr.bf16.mxu0 0
        %2644 = vmatpush1.bf16.xpose.msra.mxu0 0
        %2645 = vmatprep.subr.bf16.mxu0 0
        %2646 = vmatpush1.bf16.xpose.msra.mxu0 0
        %2647 = vmatprep.subr.bf16.mxu0 0
        %2648 = vmatpush1.bf16.xpose.msra.mxu0 0
        %2649 = vmatprep.subr.bf16.mxu0 0
        %2650 = vmatpush1.bf16.xpose.msra.mxu0 0
        %2651 = vmatprep.subr.bf16.mxu0 0
        %2652 = vmatpush1.bf16.xpose.msra.mxu0 0
        %2653 = vmatprep.mubr.bf16.mxu0 0
        %2654 = vmatmul.mubr.bf16.gmra.mrb[0].mxu0 %v2607
        %v2655 = vpop.f32.mrb[0].mxu0
        %v2656 = vadd.f32 0.0, %v2655
        %v2657 = vpop.f32.mrb[0].mxu0
        %v2658 = vpop.f32.mrb[0].mxu0
        %v2659 = vpop.f32.mrb[0].mxu0
        %2660 = vdwg.mxu0
        %v2662 = vsel %vm1471, %v2472, 0
        %v2665 = vsel %vm1471, %v2492, 0
        %v2668 = vsel %vm1471, %v2494, 0
        %v2671 = vsel %vm1471, %v2496, 0
        %v2674 = vsel %vm1471, %v2498, 0
        %2676 = vmatprep.subr.bf16.mxu0 0
        %2677 = vmatpush1.bf16.xpose.msra.mxu0 %v2665
        %2678 = vmatprep.subr.bf16.mxu0 0
        %2679 = vmatpush1.bf16.xpose.msra.mxu0 %v2668
        %2680 = vmatprep.subr.bf16.mxu0 0
        %2681 = vmatpush1.bf16.xpose.msra.mxu0 %v2671
        %2682 = vmatprep.subr.bf16.mxu0 0
        %2683 = vmatpush1.bf16.xpose.msra.mxu0 %v2674
        %2684 = vmatprep.subr.bf16.mxu0 0
        %2685 = vmatpush1.bf16.xpose.msra.mxu0 0
        %2686 = vmatprep.subr.bf16.mxu0 0
        %2687 = vmatpush1.bf16.xpose.msra.mxu0 0
        %2688 = vmatprep.subr.bf16.mxu0 0
        %2689 = vmatpush1.bf16.xpose.msra.mxu0 0
        %2690 = vmatprep.subr.bf16.mxu0 0
        %2691 = vmatpush1.bf16.xpose.msra.mxu0 0
        %2692 = vmatprep.subr.bf16.mxu0 0
        %2693 = vmatpush1.bf16.xpose.msra.mxu0 0
        %2694 = vmatprep.subr.bf16.mxu0 0
        %2695 = vmatpush1.bf16.xpose.msra.mxu0 0
        %2696 = vmatprep.subr.bf16.mxu0 0
        %2697 = vmatpush1.bf16.xpose.msra.mxu0 0
        %2698 = vmatprep.subr.bf16.mxu0 0
        %2699 = vmatpush1.bf16.xpose.msra.mxu0 0
        %2700 = vmatprep.subr.bf16.mxu0 0
        %2701 = vmatpush1.bf16.xpose.msra.mxu0 0
        %2702 = vmatprep.subr.bf16.mxu0 0
        %2703 = vmatpush1.bf16.xpose.msra.mxu0 0
        %2704 = vmatprep.subr.bf16.mxu0 0
        %2705 = vmatpush1.bf16.xpose.msra.mxu0 0
        %2706 = vmatprep.subr.bf16.mxu0 0
        %2707 = vmatpush1.bf16.xpose.msra.mxu0 0
        %2708 = vmatprep.mubr.bf16.mxu0 0
        %2709 = vmatmul.mubr.bf16.gmra.mrb[0].mxu0 %v2662
        %v2710 = vpop.f32.mrb[0].mxu0
        %v2711 = vadd.f32 0.0, %v2710
        %v2712 = vpop.f32.mrb[0].mxu0
        %v2713 = vpop.f32.mrb[0].mxu0
        %v2714 = vpop.f32.mrb[0].mxu0
        %2715 = vdwg.mxu0
        %v2717 = vsel %vm1471, %v2474, 0
        %v2720 = vsel %vm1471, %v2500, 0
        %v2723 = vsel %vm1471, %v2502, 0
        %v2726 = vsel %vm1471, %v2504, 0
        %v2729 = vsel %vm1471, %v2506, 0
        %2731 = vmatprep.subr.bf16.mxu0 0
        %2732 = vmatpush1.bf16.xpose.msra.mxu0 %v2720
        %2733 = vmatprep.subr.bf16.mxu0 0
        %2734 = vmatpush1.bf16.xpose.msra.mxu0 %v2723
        %2735 = vmatprep.subr.bf16.mxu0 0
        %2736 = vmatpush1.bf16.xpose.msra.mxu0 %v2726
        %2737 = vmatprep.subr.bf16.mxu0 0
        %2738 = vmatpush1.bf16.xpose.msra.mxu0 %v2729
        %2739 = vmatprep.subr.bf16.mxu0 0
        %2740 = vmatpush1.bf16.xpose.msra.mxu0 0
        %2741 = vmatprep.subr.bf16.mxu0 0
        %2742 = vmatpush1.bf16.xpose.msra.mxu0 0
        %2743 = vmatprep.subr.bf16.mxu0 0
        %2744 = vmatpush1.bf16.xpose.msra.mxu0 0
        %2745 = vmatprep.subr.bf16.mxu0 0
        %2746 = vmatpush1.bf16.xpose.msra.mxu0 0
        %2747 = vmatprep.subr.bf16.mxu0 0
        %2748 = vmatpush1.bf16.xpose.msra.mxu0 0
        %2749 = vmatprep.subr.bf16.mxu0 0
        %2750 = vmatpush1.bf16.xpose.msra.mxu0 0
        %2751 = vmatprep.subr.bf16.mxu0 0
        %2752 = vmatpush1.bf16.xpose.msra.mxu0 0
        %2753 = vmatprep.subr.bf16.mxu0 0
        %2754 = vmatpush1.bf16.xpose.msra.mxu0 0
        %2755 = vmatprep.subr.bf16.mxu0 0
        %2756 = vmatpush1.bf16.xpose.msra.mxu0 0
        %2757 = vmatprep.subr.bf16.mxu0 0
        %2758 = vmatpush1.bf16.xpose.msra.mxu0 0
        %2759 = vmatprep.subr.bf16.mxu0 0
        %2760 = vmatpush1.bf16.xpose.msra.mxu0 0
        %2761 = vmatprep.subr.bf16.mxu0 0
        %2762 = vmatpush1.bf16.xpose.msra.mxu0 0
        %2763 = vmatprep.mubr.bf16.mxu0 0
        %2764 = vmatmul.mubr.bf16.gmra.mrb[0].mxu0 %v2717
        %v2765 = vpop.f32.mrb[0].mxu0
        %v2766 = vadd.f32 0.0, %v2765
        %v2767 = vpop.f32.mrb[0].mxu0
        %v2768 = vpop.f32.mrb[0].mxu0
        %v2769 = vpop.f32.mrb[0].mxu0
        %2770 = vdwg.mxu0
        %vm2771 = vcmask 523264
        %v2772 = vsel %vm2771, %v2601, -inf
        %2773 = vmax.xlane.f32.xlu0 %v2772
        %v2774 = vpop.xlane.xlu0 %2773
        %v2775 = vsel %vm2771, %v2656, -inf
        %2776 = vmax.xlane.f32.xlu0 %v2775
        %v2777 = vpop.xlane.xlu0 %2776
        %v2778 = vsel %vm2771, %v2711, -inf
        %2779 = vmax.xlane.f32.xlu0 %v2778
        %v2780 = vpop.xlane.xlu0 %2779
        %v2781 = vsel %vm2771, %v2766, -inf
        %2782 = vmax.xlane.f32.xlu0 %v2781
        %v2783 = vpop.xlane.xlu0 %2782
        %v2784 = vsub.f32 %v2601, %v2774
        %v2785 = vsub.f32 %v2656, %v2777
        %v2786 = vsub.f32 %v2711, %v2780
        %v2787 = vsub.f32 %v2766, %v2783
        %v2788 = vmul.f32 %v2784, 1.442695
        %v2789 = vpow.pop %v2788
        %v2790 = vmul.f32 %v2785, 1.442695
        %v2791 = vpow.pop %v2790
        %v2792 = vmul.f32 %v2786, 1.442695
        %v2793 = vpow.pop %v2792
        %v2794 = vmul.f32 %v2787, 1.442695
        %v2795 = vpow.pop %v2794
        %v2796 = vsel %vm2771, %v2789, 0.0
        %2797 = vadd.xlane.f32.xlu0 %v2796
        %v2798 = vpop.xlane.xlu0 %2797
        %v2799 = vsel %vm2771, %v2791, 0.0
        %2800 = vadd.xlane.f32.xlu0 %v2799
        %v2801 = vpop.xlane.xlu0 %2800
        %v2802 = vsel %vm2771, %v2793, 0.0
        %2803 = vadd.xlane.f32.xlu0 %v2802
        %v2804 = vpop.xlane.xlu0 %2803
        %v2805 = vsel %vm2771, %v2795, 0.0
        %2806 = vadd.xlane.f32.xlu0 %v2805
        %v2807 = vpop.xlane.xlu0 %2806
        %v2808 = vrcp.pop %v2798
        %v2809 = vrcp.pop %v2801
        %v2810 = vrcp.pop %v2804
        %v2811 = vrcp.pop %v2807
        %v2812 = vmul.f32 %v2789, %v2808
        %v2813 = vmul.f32 %v2791, %v2809
        %v2814 = vmul.f32 %v2793, %v2810
        %v2815 = vmul.f32 %v2795, %v2811
        %v2816 = vpack.c.bf16 %v2812, %v2812
        %v2817 = vpack.c.bf16 %v2813, %v2813
        %v2818 = vpack.c.bf16 %v2814, %v2814
        %v2819 = vpack.c.bf16 %v2815, %v2815
        %v2821 = vsel %vm2771, %v2816, 0
        %2823 = vmatprep.subr.bf16.mxu0 0
        %2824 = vmatpush1.bf16.msra.mxu0 %v2507
        %2825 = vmatprep.subr.bf16.mxu0 0
        %2826 = vmatpush1.bf16.msra.mxu0 %v2508
        %2827 = vmatprep.subr.bf16.mxu0 0
        %2828 = vmatpush1.bf16.msra.mxu0 %v2509
        %2829 = vmatprep.subr.bf16.mxu0 0
        %2830 = vmatpush1.bf16.msra.mxu0 %v2510
        %2831 = vmatprep.subr.bf16.mxu0 0
        %2832 = vmatpush1.bf16.msra.mxu0 0
        %2833 = vmatprep.subr.bf16.mxu0 0
        %2834 = vmatpush1.bf16.msra.mxu0 0
        %2835 = vmatprep.subr.bf16.mxu0 0
        %2836 = vmatpush1.bf16.msra.mxu0 0
        %2837 = vmatprep.subr.bf16.mxu0 0
        %2838 = vmatpush1.bf16.msra.mxu0 0
        %2839 = vmatprep.subr.bf16.mxu0 0
        %2840 = vmatpush1.bf16.msra.mxu0 0
        %2841 = vmatprep.subr.bf16.mxu0 0
        %2842 = vmatpush1.bf16.msra.mxu0 0
        %2843 = vmatprep.subr.bf16.mxu0 0
        %2844 = vmatpush1.bf16.msra.mxu0 0
        %2845 = vmatprep.subr.bf16.mxu0 0
        %2846 = vmatpush1.bf16.msra.mxu0 0
        %2847 = vmatprep.subr.bf16.mxu0 0
        %2848 = vmatpush1.bf16.msra.mxu0 0
        %2849 = vmatprep.subr.bf16.mxu0 0
        %2850 = vmatpush1.bf16.msra.mxu0 0
        %2851 = vmatprep.subr.bf16.mxu0 0
        %2852 = vmatpush1.bf16.msra.mxu0 0
        %2853 = vmatprep.subr.bf16.mxu0 0
        %2854 = vmatpush1.bf16.msra.mxu0 0
        %2855 = vmatprep.mubr.bf16.mxu0 0
        %2856 = vmatmul.mubr.bf16.gmra.mrb[0].mxu0 %v2821
        %v2857 = vpop.f32.mrb[0].mxu0
        %v2858 = vadd.f32 0.0, %v2857
        %v2859 = vpop.f32.mrb[0].mxu0
        %v2860 = vpop.f32.mrb[0].mxu0
        %v2861 = vpop.f32.mrb[0].mxu0
        %2862 = vdwg.mxu0
        %v2864 = vsel %vm2771, %v2817, 0
        %2866 = vmatprep.subr.bf16.mxu0 0
        %2867 = vmatpush1.bf16.msra.mxu0 %v2516
        %2868 = vmatprep.subr.bf16.mxu0 0
        %2869 = vmatpush1.bf16.msra.mxu0 %v2518
        %2870 = vmatprep.subr.bf16.mxu0 0
        %2871 = vmatpush1.bf16.msra.mxu0 %v2520
        %2872 = vmatprep.subr.bf16.mxu0 0
        %2873 = vmatpush1.bf16.msra.mxu0 %v2522
        %2874 = vmatprep.subr.bf16.mxu0 0
        %2875 = vmatpush1.bf16.msra.mxu0 0
        %2876 = vmatprep.subr.bf16.mxu0 0
        %2877 = vmatpush1.bf16.msra.mxu0 0
        %2878 = vmatprep.subr.bf16.mxu0 0
        %2879 = vmatpush1.bf16.msra.mxu0 0
        %2880 = vmatprep.subr.bf16.mxu0 0
        %2881 = vmatpush1.bf16.msra.mxu0 0
        %2882 = vmatprep.subr.bf16.mxu0 0
        %2883 = vmatpush1.bf16.msra.mxu0 0
        %2884 = vmatprep.subr.bf16.mxu0 0
        %2885 = vmatpush1.bf16.msra.mxu0 0
        %2886 = vmatprep.subr.bf16.mxu0 0
        %2887 = vmatpush1.bf16.msra.mxu0 0
        %2888 = vmatprep.subr.bf16.mxu0 0
        %2889 = vmatpush1.bf16.msra.mxu0 0
        %2890 = vmatprep.subr.bf16.mxu0 0
        %2891 = vmatpush1.bf16.msra.mxu0 0
        %2892 = vmatprep.subr.bf16.mxu0 0
        %2893 = vmatpush1.bf16.msra.mxu0 0
        %2894 = vmatprep.subr.bf16.mxu0 0
        %2895 = vmatpush1.bf16.msra.mxu0 0
        %2896 = vmatprep.subr.bf16.mxu0 0
        %2897 = vmatpush1.bf16.msra.mxu0 0
        %2898 = vmatprep.mubr.bf16.mxu0 0
        %2899 = vmatmul.mubr.bf16.gmra.mrb[0].mxu0 %v2864
        %v2900 = vpop.f32.mrb[0].mxu0
        %v2901 = vadd.f32 0.0, %v2900
        %v2902 = vpop.f32.mrb[0].mxu0
        %v2903 = vpop.f32.mrb[0].mxu0
        %v2904 = vpop.f32.mrb[0].mxu0
        %2905 = vdwg.mxu0
        %v2907 = vsel %vm2771, %v2818, 0
        %2909 = vmatprep.subr.bf16.mxu0 0
        %2910 = vmatpush1.bf16.msra.mxu0 %v2528
        %2911 = vmatprep.subr.bf16.mxu0 0
        %2912 = vmatpush1.bf16.msra.mxu0 %v2530
        %2913 = vmatprep.subr.bf16.mxu0 0
        %2914 = vmatpush1.bf16.msra.mxu0 %v2532
        %2915 = vmatprep.subr.bf16.mxu0 0
        %2916 = vmatpush1.bf16.msra.mxu0 %v2534
        %2917 = vmatprep.subr.bf16.mxu0 0
        %2918 = vmatpush1.bf16.msra.mxu0 0
        %2919 = vmatprep.subr.bf16.mxu0 0
        %2920 = vmatpush1.bf16.msra.mxu0 0
        %2921 = vmatprep.subr.bf16.mxu0 0
        %2922 = vmatpush1.bf16.msra.mxu0 0
        %2923 = vmatprep.subr.bf16.mxu0 0
        %2924 = vmatpush1.bf16.msra.mxu0 0
        %2925 = vmatprep.subr.bf16.mxu0 0
        %2926 = vmatpush1.bf16.msra.mxu0 0
        %2927 = vmatprep.subr.bf16.mxu0 0
        %2928 = vmatpush1.bf16.msra.mxu0 0
        %2929 = vmatprep.subr.bf16.mxu0 0
        %2930 = vmatpush1.bf16.msra.mxu0 0
        %2931 = vmatprep.subr.bf16.mxu0 0
        %2932 = vmatpush1.bf16.msra.mxu0 0
        %2933 = vmatprep.subr.bf16.mxu0 0
        %2934 = vmatpush1.bf16.msra.mxu0 0
        %2935 = vmatprep.subr.bf16.mxu0 0
        %2936 = vmatpush1.bf16.msra.mxu0 0
        %2937 = vmatprep.subr.bf16.mxu0 0
        %2938 = vmatpush1.bf16.msra.mxu0 0
        %2939 = vmatprep.subr.bf16.mxu0 0
        %2940 = vmatpush1.bf16.msra.mxu0 0
        %2941 = vmatprep.mubr.bf16.mxu0 0
        %2942 = vmatmul.mubr.bf16.gmra.mrb[0].mxu0 %v2907
        %v2943 = vpop.f32.mrb[0].mxu0
        %v2944 = vadd.f32 0.0, %v2943
        %v2945 = vpop.f32.mrb[0].mxu0
        %v2946 = vpop.f32.mrb[0].mxu0
        %v2947 = vpop.f32.mrb[0].mxu0
        %2948 = vdwg.mxu0
        %v2950 = vsel %vm2771, %v2819, 0
        %2952 = vmatprep.subr.bf16.mxu0 0
        %2953 = vmatpush1.bf16.msra.mxu0 %v2540
        %2954 = vmatprep.subr.bf16.mxu0 0
        %2955 = vmatpush1.bf16.msra.mxu0 %v2542
        %2956 = vmatprep.subr.bf16.mxu0 0
        %2957 = vmatpush1.bf16.msra.mxu0 %v2544
        %2958 = vmatprep.subr.bf16.mxu0 0
        %2959 = vmatpush1.bf16.msra.mxu0 %v2546
        %2960 = vmatprep.subr.bf16.mxu0 0
        %2961 = vmatpush1.bf16.msra.mxu0 0
        %2962 = vmatprep.subr.bf16.mxu0 0
        %2963 = vmatpush1.bf16.msra.mxu0 0
        %2964 = vmatprep.subr.bf16.mxu0 0
        %2965 = vmatpush1.bf16.msra.mxu0 0
        %2966 = vmatprep.subr.bf16.mxu0 0
        %2967 = vmatpush1.bf16.msra.mxu0 0
        %2968 = vmatprep.subr.bf16.mxu0 0
        %2969 = vmatpush1.bf16.msra.mxu0 0
        %2970 = vmatprep.subr.bf16.mxu0 0
        %2971 = vmatpush1.bf16.msra.mxu0 0
        %2972 = vmatprep.subr.bf16.mxu0 0
        %2973 = vmatpush1.bf16.msra.mxu0 0
        %2974 = vmatprep.subr.bf16.mxu0 0
        %2975 = vmatpush1.bf16.msra.mxu0 0
        %2976 = vmatprep.subr.bf16.mxu0 0
        %2977 = vmatpush1.bf16.msra.mxu0 0
        %2978 = vmatprep.subr.bf16.mxu0 0
        %2979 = vmatpush1.bf16.msra.mxu0 0
        %2980 = vmatprep.subr.bf16.mxu0 0
        %2981 = vmatpush1.bf16.msra.mxu0 0
        %2982 = vmatprep.subr.bf16.mxu0 0
        %2983 = vmatpush1.bf16.msra.mxu0 0
        %2984 = vmatprep.mubr.bf16.mxu0 0
        %2985 = vmatmul.mubr.bf16.gmra.mrb[0].mxu0 %v2950
        %v2986 = vpop.f32.mrb[0].mxu0
        %v2987 = vadd.f32 0.0, %v2986
        %v2988 = vpop.f32.mrb[0].mxu0
        %v2989 = vpop.f32.mrb[0].mxu0
        %v2990 = vpop.f32.mrb[0].mxu0
        %2991 = vdwg.mxu0
        %v2992 = vpack.c.bf16 %v2858, %v2858
        %v2993 = vpack.c.bf16 %v2901, %v2901
        %v2994 = vpack.c.bf16 %v2944, %v2944
        %v2995 = vpack.c.bf16 %v2987, %v2987
        %v3000 = vunpack.c.l.b16 %v2451
        %v3001 = vunpack.c.l.b16 %v2452
        %v3002 = vunpack.c.l.b16 %v2453
        %v3003 = vunpack.c.l.b16 %v2454
        %v3004 = vpack.c.b16 %v3001, %v3000
        %v3005 = vpack.c.b16 %v3003, %v3002
        %v3009 = vsel %vm1471, %v2992, 0
        %3011 = vmatprep.subr.bf16.mxu0 0
        %3012 = vmatpush1.bf16.msra.mxu0 %v3004
        %3013 = vmatprep.subr.bf16.mxu0 0
        %3014 = vmatpush1.bf16.msra.mxu0 %v3005
        %3015 = vmatprep.subr.bf16.mxu0 0
        %3016 = vmatpush1.bf16.msra.mxu0 0
        %3017 = vmatprep.subr.bf16.mxu0 0
        %3018 = vmatpush1.bf16.msra.mxu0 0
        %3019 = vmatprep.subr.bf16.mxu0 0
        %3020 = vmatpush1.bf16.msra.mxu0 0
        %3021 = vmatprep.subr.bf16.mxu0 0
        %3022 = vmatpush1.bf16.msra.mxu0 0
        %3023 = vmatprep.subr.bf16.mxu0 0
        %3024 = vmatpush1.bf16.msra.mxu0 0
        %3025 = vmatprep.subr.bf16.mxu0 0
        %3026 = vmatpush1.bf16.msra.mxu0 0
        %3027 = vmatprep.subr.bf16.mxu0 0
        %3028 = vmatpush1.bf16.msra.mxu0 0
        %3029 = vmatprep.subr.bf16.mxu0 0
        %3030 = vmatpush1.bf16.msra.mxu0 0
        %3031 = vmatprep.subr.bf16.mxu0 0
        %3032 = vmatpush1.bf16.msra.mxu0 0
        %3033 = vmatprep.subr.bf16.mxu0 0
        %3034 = vmatpush1.bf16.msra.mxu0 0
        %3035 = vmatprep.subr.bf16.mxu0 0
        %3036 = vmatpush1.bf16.msra.mxu0 0
        %3037 = vmatprep.subr.bf16.mxu0 0
        %3038 = vmatpush1.bf16.msra.mxu0 0
        %3039 = vmatprep.subr.bf16.mxu0 0
        %3040 = vmatpush1.bf16.msra.mxu0 0
        %3041 = vmatprep.subr.bf16.mxu0 0
        %3042 = vmatpush1.bf16.msra.mxu0 0
        %3043 = vmatprep.mubr.bf16.mxu0 0
        %3044 = vmatmul.mubr.bf16.gmra.mrb[0].mxu0 %v3009
        %v3045 = vpop.f32.mrb[0].mxu0
        %v3046 = vadd.f32 0.0, %v3045
        %v3047 = vpop.f32.mrb[0].mxu0
        %v3048 = vpop.f32.mrb[0].mxu0
        %v3049 = vpop.f32.mrb[0].mxu0
        %3050 = vdwg.mxu0
        %v3055 = vunpack.c.l.b16 %v2455
        %v3056 = vunpack.c.l.b16 %v2456
        %v3057 = vunpack.c.l.b16 %v2457
        %v3058 = vunpack.c.l.b16 %v2458
        %v3059 = vpack.c.b16 %v3056, %v3055
        %v3060 = vpack.c.b16 %v3058, %v3057
        %v3064 = vsel %vm1471, %v2993, 0
        %3066 = vmatprep.subr.bf16.mxu0 0
        %3067 = vmatpush1.bf16.msra.mxu0 %v3059
        %3068 = vmatprep.subr.bf16.mxu0 0
        %3069 = vmatpush1.bf16.msra.mxu0 %v3060
        %3070 = vmatprep.subr.bf16.mxu0 0
        %3071 = vmatpush1.bf16.msra.mxu0 0
        %3072 = vmatprep.subr.bf16.mxu0 0
        %3073 = vmatpush1.bf16.msra.mxu0 0
        %3074 = vmatprep.subr.bf16.mxu0 0
        %3075 = vmatpush1.bf16.msra.mxu0 0
        %3076 = vmatprep.subr.bf16.mxu0 0
        %3077 = vmatpush1.bf16.msra.mxu0 0
        %3078 = vmatprep.subr.bf16.mxu0 0
        %3079 = vmatpush1.bf16.msra.mxu0 0
        %3080 = vmatprep.subr.bf16.mxu0 0
        %3081 = vmatpush1.bf16.msra.mxu0 0
        %3082 = vmatprep.subr.bf16.mxu0 0
        %3083 = vmatpush1.bf16.msra.mxu0 0
        %3084 = vmatprep.subr.bf16.mxu0 0
        %3085 = vmatpush1.bf16.msra.mxu0 0
        %3086 = vmatprep.subr.bf16.mxu0 0
        %3087 = vmatpush1.bf16.msra.mxu0 0
        %3088 = vmatprep.subr.bf16.mxu0 0
        %3089 = vmatpush1.bf16.msra.mxu0 0
        %3090 = vmatprep.subr.bf16.mxu0 0
        %3091 = vmatpush1.bf16.msra.mxu0 0
        %3092 = vmatprep.subr.bf16.mxu0 0
        %3093 = vmatpush1.bf16.msra.mxu0 0
        %3094 = vmatprep.subr.bf16.mxu0 0
        %3095 = vmatpush1.bf16.msra.mxu0 0
        %3096 = vmatprep.subr.bf16.mxu0 0
        %3097 = vmatpush1.bf16.msra.mxu0 0
        %3098 = vmatprep.mubr.bf16.mxu0 0
        %3099 = vmatmul.mubr.bf16.gmra.mrb[0].mxu0 %v3064
        %v3100 = vpop.f32.mrb[0].mxu0
        %v3101 = vadd.f32 0.0, %v3100
        %v3102 = vpop.f32.mrb[0].mxu0
        %v3103 = vpop.f32.mrb[0].mxu0
        %v3104 = vpop.f32.mrb[0].mxu0
        %3105 = vdwg.mxu0
        %v3110 = vunpack.c.l.b16 %v2459
        %v3111 = vunpack.c.l.b16 %v2460
        %v3112 = vunpack.c.l.b16 %v2461
        %v3113 = vunpack.c.l.b16 %v2462
        %v3114 = vpack.c.b16 %v3111, %v3110
        %v3115 = vpack.c.b16 %v3113, %v3112
        %v3119 = vsel %vm1471, %v2994, 0
        %3121 = vmatprep.subr.bf16.mxu0 0
        %3122 = vmatpush1.bf16.msra.mxu0 %v3114
        %3123 = vmatprep.subr.bf16.mxu0 0
        %3124 = vmatpush1.bf16.msra.mxu0 %v3115
        %3125 = vmatprep.subr.bf16.mxu0 0
        %3126 = vmatpush1.bf16.msra.mxu0 0
        %3127 = vmatprep.subr.bf16.mxu0 0
        %3128 = vmatpush1.bf16.msra.mxu0 0
        %3129 = vmatprep.subr.bf16.mxu0 0
        %3130 = vmatpush1.bf16.msra.mxu0 0
        %3131 = vmatprep.subr.bf16.mxu0 0
        %3132 = vmatpush1.bf16.msra.mxu0 0
        %3133 = vmatprep.subr.bf16.mxu0 0
        %3134 = vmatpush1.bf16.msra.mxu0 0
        %3135 = vmatprep.subr.bf16.mxu0 0
        %3136 = vmatpush1.bf16.msra.mxu0 0
        %3137 = vmatprep.subr.bf16.mxu0 0
        %3138 = vmatpush1.bf16.msra.mxu0 0
        %3139 = vmatprep.subr.bf16.mxu0 0
        %3140 = vmatpush1.bf16.msra.mxu0 0
        %3141 = vmatprep.subr.bf16.mxu0 0
        %3142 = vmatpush1.bf16.msra.mxu0 0
        %3143 = vmatprep.subr.bf16.mxu0 0
        %3144 = vmatpush1.bf16.msra.mxu0 0
        %3145 = vmatprep.subr.bf16.mxu0 0
        %3146 = vmatpush1.bf16.msra.mxu0 0
        %3147 = vmatprep.subr.bf16.mxu0 0
        %3148 = vmatpush1.bf16.msra.mxu0 0
        %3149 = vmatprep.subr.bf16.mxu0 0
        %3150 = vmatpush1.bf16.msra.mxu0 0
        %3151 = vmatprep.subr.bf16.mxu0 0
        %3152 = vmatpush1.bf16.msra.mxu0 0
        %3153 = vmatprep.mubr.bf16.mxu0 0
        %3154 = vmatmul.mubr.bf16.gmra.mrb[0].mxu0 %v3119
        %v3155 = vpop.f32.mrb[0].mxu0
        %v3156 = vadd.f32 0.0, %v3155
        %v3157 = vpop.f32.mrb[0].mxu0
        %v3158 = vpop.f32.mrb[0].mxu0
        %v3159 = vpop.f32.mrb[0].mxu0
        %3160 = vdwg.mxu0
        %v3165 = vunpack.c.l.b16 %v2463
        %v3166 = vunpack.c.l.b16 %v2464
        %v3167 = vunpack.c.l.b16 %v2465
        %v3168 = vunpack.c.l.b16 %v2466
        %v3169 = vpack.c.b16 %v3166, %v3165
        %v3170 = vpack.c.b16 %v3168, %v3167
        %v3174 = vsel %vm1471, %v2995, 0
        %3176 = vmatprep.subr.bf16.mxu0 0
        %3177 = vmatpush1.bf16.msra.mxu0 %v3169
        %3178 = vmatprep.subr.bf16.mxu0 0
        %3179 = vmatpush1.bf16.msra.mxu0 %v3170
        %3180 = vmatprep.subr.bf16.mxu0 0
        %3181 = vmatpush1.bf16.msra.mxu0 0
        %3182 = vmatprep.subr.bf16.mxu0 0
        %3183 = vmatpush1.bf16.msra.mxu0 0
        %3184 = vmatprep.subr.bf16.mxu0 0
        %3185 = vmatpush1.bf16.msra.mxu0 0
        %3186 = vmatprep.subr.bf16.mxu0 0
        %3187 = vmatpush1.bf16.msra.mxu0 0
        %3188 = vmatprep.subr.bf16.mxu0 0
        %3189 = vmatpush1.bf16.msra.mxu0 0
        %3190 = vmatprep.subr.bf16.mxu0 0
        %3191 = vmatpush1.bf16.msra.mxu0 0
        %3192 = vmatprep.subr.bf16.mxu0 0
        %3193 = vmatpush1.bf16.msra.mxu0 0
        %3194 = vmatprep.subr.bf16.mxu0 0
        %3195 = vmatpush1.bf16.msra.mxu0 0
        %3196 = vmatprep.subr.bf16.mxu0 0
        %3197 = vmatpush1.bf16.msra.mxu0 0
        %3198 = vmatprep.subr.bf16.mxu0 0
        %3199 = vmatpush1.bf16.msra.mxu0 0
        %3200 = vmatprep.subr.bf16.mxu0 0
        %3201 = vmatpush1.bf16.msra.mxu0 0
        %3202 = vmatprep.subr.bf16.mxu0 0
        %3203 = vmatpush1.bf16.msra.mxu0 0
        %3204 = vmatprep.subr.bf16.mxu0 0
        %3205 = vmatpush1.bf16.msra.mxu0 0
        %3206 = vmatprep.subr.bf16.mxu0 0
        %3207 = vmatpush1.bf16.msra.mxu0 0
        %3208 = vmatprep.mubr.bf16.mxu0 0
        %3209 = vmatmul.mubr.bf16.gmra.mrb[0].mxu0 %v3174
        %v3210 = vpop.f32.mrb[0].mxu0
        %v3211 = vadd.f32 0.0, %v3210
        %v3212 = vpop.f32.mrb[0].mxu0
        %v3213 = vpop.f32.mrb[0].mxu0
        %v3214 = vpop.f32.mrb[0].mxu0
        %3215 = vdwg.mxu0
        %v3216 = vadd.f32 %v3046, %v3101
        %v3217 = vadd.f32 %v3216, %v3156
        %v3218 = vadd.f32 %v3217, %v3211
        %v3219 = vld [vmem:[%s1107] sm:$0x1]
        %v3221 = vlaneseq
        %v3222 = vshrl.u32 %v3221, 7
        %v3223 = vsub.s32 0, %v3222
        %v3224 = vrot.slane %v3219, %v3223
        %v3226 = vadd.f32 %v3218, %v3224
        %v3227 = vadd.f32 %v2153, %v3226
        %v3228 = vld [vmem:[%s1110] sm:$0x1]
        %v3229 = vld [vmem:[%s1113] sm:$0x1]
        %3230 = vadd.xlane.f32.xlu0 %v3227
        %v3231 = vpop.xlane.xlu0 %3230
        %v3232 = vmul.f32 %v3231, %v2130
        %v3233 = vsub.f32 %v3227, %v3232
        %v3234 = vmul.f32 %v3233, %v3233
        %3235 = vadd.xlane.f32.xlu0 %v3234
        %v3236 = vpop.xlane.xlu0 %3235
        %v3237 = vmul.f32 %v3236, %v2130
        %v3238 = vadd.f32 %v3237, 1e-05
        %v3239 = vrsqrt.pop %v3238
        %v3240 = vmul.f32 %v3233, %v3239
        %v3242 = vlaneseq
        %v3243 = vshrl.u32 %v3242, 7
        %v3244 = vsub.s32 0, %v3243
        %v3245 = vrot.slane %v3228, %v3244
        %v3247 = vmul.f32 %v3240, %v3245
        %v3249 = vlaneseq
        %v3250 = vshrl.u32 %v3249, 7
        %v3251 = vsub.s32 0, %v3250
        %v3252 = vrot.slane %v3229, %v3251
        %v3254 = vadd.f32 %v3247, %v3252
        %v3255 = vld [vmem:[%s1118] sm:$0xff]
        %v3256 = vld [vmem:[%s1118 + $0x8] sm:$0xff]
        %v3257 = vld [vmem:[%s1118 + $0x10] sm:$0xff]
        %v3258 = vld [vmem:[%s1118 + $0x18] sm:$0xff]
        %v3259 = vld [vmem:[%s1118 + $0x20] sm:$0xff]
        %v3260 = vld [vmem:[%s1118 + $0x28] sm:$0xff]
        %v3261 = vld [vmem:[%s1118 + $0x30] sm:$0xff]
        %v3262 = vld [vmem:[%s1118 + $0x38] sm:$0xff]
        %v3263 = vld [vmem:[%s1118 + $0x40] sm:$0xff]
        %v3264 = vld [vmem:[%s1118 + $0x48] sm:$0xff]
        %v3265 = vld [vmem:[%s1118 + $0x50] sm:$0xff]
        %v3266 = vld [vmem:[%s1118 + $0x58] sm:$0xff]
        %v3267 = vld [vmem:[%s1118 + $0x60] sm:$0xff]
        %v3268 = vld [vmem:[%s1118 + $0x68] sm:$0xff]
        %v3269 = vld [vmem:[%s1118 + $0x70] sm:$0xff]
        %v3270 = vld [vmem:[%s1118 + $0x78] sm:$0xff]
        %v3271 = vld [vmem:[%s1122] sm:$0x3]
        %v3272 = vld [vmem:[%s1127] sm:$0xf]
        %v3273 = vld [vmem:[%s1127 + $0x4] sm:$0xf]
        %v3274 = vld [vmem:[%s1127 + $0x8] sm:$0xf]
        %v3275 = vld [vmem:[%s1127 + $0xc] sm:$0xf]
        %v3276 = vld [vmem:[%s1127 + $0x10] sm:$0xf]
        %v3277 = vld [vmem:[%s1127 + $0x14] sm:$0xf]
        %v3278 = vld [vmem:[%s1127 + $0x18] sm:$0xf]
        %v3279 = vld [vmem:[%s1127 + $0x1c] sm:$0xf]
        %v3280 = vld [vmem:[%s1127 + $0x20] sm:$0xf]
        %v3281 = vld [vmem:[%s1127 + $0x24] sm:$0xf]
        %v3282 = vld [vmem:[%s1127 + $0x28] sm:$0xf]
        %v3283 = vld [vmem:[%s1127 + $0x2c] sm:$0xf]
        %v3284 = vld [vmem:[%s1127 + $0x30] sm:$0xf]
        %v3285 = vld [vmem:[%s1127 + $0x34] sm:$0xf]
        %v3286 = vld [vmem:[%s1127 + $0x38] sm:$0xf]
        %v3287 = vld [vmem:[%s1127 + $0x3c] sm:$0xf]
        %v3288 = vld [vmem:[%s1127 + $0x40] sm:$0xf]
        %v3289 = vld [vmem:[%s1127 + $0x44] sm:$0xf]
        %v3290 = vld [vmem:[%s1127 + $0x48] sm:$0xf]
        %v3291 = vld [vmem:[%s1127 + $0x4c] sm:$0xf]
        %v3292 = vld [vmem:[%s1127 + $0x50] sm:$0xf]
        %v3293 = vld [vmem:[%s1127 + $0x54] sm:$0xf]
        %v3294 = vld [vmem:[%s1127 + $0x58] sm:$0xf]
        %v3295 = vld [vmem:[%s1127 + $0x5c] sm:$0xf]
        %v3296 = vld [vmem:[%s1127 + $0x60] sm:$0xf]
        %v3297 = vld [vmem:[%s1127 + $0x64] sm:$0xf]
        %v3298 = vld [vmem:[%s1127 + $0x68] sm:$0xf]
        %v3299 = vld [vmem:[%s1127 + $0x6c] sm:$0xf]
        %v3300 = vld [vmem:[%s1127 + $0x70] sm:$0xf]
        %v3301 = vld [vmem:[%s1127 + $0x74] sm:$0xf]
        %v3302 = vld [vmem:[%s1127 + $0x78] sm:$0xf]
        %v3303 = vld [vmem:[%s1127 + $0x7c] sm:$0xf]
        %v3304 = vld [vmem:[%s1130] sm:$0x1]
        %v3305 = vpack.c.bf16 %v3254, %v3254
        %v3307 = vlaneseq
        %v3308 = vshrl.u32 %v3307, 7
        %v3309 = vsub.s32 0, %v3308
        %v3310 = vrot.slane %v3271, %v3309
        %v3311 = vlaneseq
        %v3312 = vshrl.u32 %v3311, 7
        %v3313 = vsub.s32 1, %v3312
        %v3314 = vrot.slane %v3271, %v3313
        %v3333 = vunpack.c.l.b16 %v3255
        %v3334 = vunpack.c.h.b16 %v3255
        %v3335 = vunpack.c.l.b16 %v3256
        %v3336 = vunpack.c.h.b16 %v3256
        %v3337 = vunpack.c.l.b16 %v3257
        %v3338 = vunpack.c.h.b16 %v3257
        %v3339 = vunpack.c.l.b16 %v3258
        %v3340 = vunpack.c.h.b16 %v3258
        %v3341 = vunpack.c.l.b16 %v3259
        %v3342 = vunpack.c.h.b16 %v3259
        %v3343 = vunpack.c.l.b16 %v3260
        %v3344 = vunpack.c.h.b16 %v3260
        %v3345 = vunpack.c.l.b16 %v3261
        %v3346 = vunpack.c.h.b16 %v3261
        %v3347 = vunpack.c.l.b16 %v3262
        %v3348 = vunpack.c.h.b16 %v3262
        %v3349 = vunpack.c.l.b16 %v3263
        %v3350 = vunpack.c.h.b16 %v3263
        %v3351 = vunpack.c.l.b16 %v3264
        %v3352 = vunpack.c.h.b16 %v3264
        %v3353 = vunpack.c.l.b16 %v3265
        %v3354 = vunpack.c.h.b16 %v3265
        %v3355 = vunpack.c.l.b16 %v3266
        %v3356 = vunpack.c.h.b16 %v3266
        %v3357 = vunpack.c.l.b16 %v3267
        %v3358 = vunpack.c.h.b16 %v3267
        %v3359 = vunpack.c.l.b16 %v3268
        %v3360 = vunpack.c.h.b16 %v3268
        %v3361 = vunpack.c.l.b16 %v3269
        %v3362 = vunpack.c.h.b16 %v3269
        %v3363 = vunpack.c.l.b16 %v3270
        %v3364 = vunpack.c.h.b16 %v3270
        %v3365 = vpack.c.b16 %v3335, %v3333
        %v3366 = vpack.c.b16 %v3336, %v3334
        %v3367 = vpack.c.b16 %v3339, %v3337
        %v3368 = vpack.c.b16 %v3340, %v3338
        %v3369 = vpack.c.b16 %v3343, %v3341
        %v3370 = vpack.c.b16 %v3344, %v3342
        %v3371 = vpack.c.b16 %v3347, %v3345
        %v3372 = vpack.c.b16 %v3348, %v3346
        %v3373 = vpack.c.b16 %v3351, %v3349
        %v3374 = vpack.c.b16 %v3352, %v3350
        %v3375 = vpack.c.b16 %v3355, %v3353
        %v3376 = vpack.c.b16 %v3356, %v3354
        %v3377 = vpack.c.b16 %v3359, %v3357
        %v3378 = vpack.c.b16 %v3360, %v3358
        %v3379 = vpack.c.b16 %v3363, %v3361
        %v3380 = vpack.c.b16 %v3364, %v3362
        %3397 = vmatprep.subr.bf16.mxu0 %v3366
        %3398 = vmatpush1.bf16.msra.mxu0 %v3365
        %3399 = vmatprep.subr.bf16.mxu0 %v3368
        %3400 = vmatpush1.bf16.msra.mxu0 %v3367
        %3401 = vmatprep.subr.bf16.mxu0 %v3370
        %3402 = vmatpush1.bf16.msra.mxu0 %v3369
        %3403 = vmatprep.subr.bf16.mxu0 %v3372
        %3404 = vmatpush1.bf16.msra.mxu0 %v3371
        %3405 = vmatprep.subr.bf16.mxu0 %v3374
        %3406 = vmatpush1.bf16.msra.mxu0 %v3373
        %3407 = vmatprep.subr.bf16.mxu0 %v3376
        %3408 = vmatpush1.bf16.msra.mxu0 %v3375
        %3409 = vmatprep.subr.bf16.mxu0 %v3378
        %3410 = vmatpush1.bf16.msra.mxu0 %v3377
        %3411 = vmatprep.subr.bf16.mxu0 %v3380
        %3412 = vmatpush1.bf16.msra.mxu0 %v3379
        %3413 = vmatprep.subr.bf16.mxu0 0
        %3414 = vmatpush1.bf16.msra.mxu0 0
        %3415 = vmatprep.subr.bf16.mxu0 0
        %3416 = vmatpush1.bf16.msra.mxu0 0
        %3417 = vmatprep.subr.bf16.mxu0 0
        %3418 = vmatpush1.bf16.msra.mxu0 0
        %3419 = vmatprep.subr.bf16.mxu0 0
        %3420 = vmatpush1.bf16.msra.mxu0 0
        %3421 = vmatprep.subr.bf16.mxu0 0
        %3422 = vmatpush1.bf16.msra.mxu0 0
        %3423 = vmatprep.subr.bf16.mxu0 0
        %3424 = vmatpush1.bf16.msra.mxu0 0
        %3425 = vmatprep.subr.bf16.mxu0 0
        %3426 = vmatpush1.bf16.msra.mxu0 0
        %3427 = vmatprep.subr.bf16.mxu0 0
        %3428 = vmatpush1.bf16.msra.mxu0 0
        %3429 = vmatprep.mubr.bf16.mxu0 0
        %3430 = vmatmul.mubr.bf16.gmra.mrb[0].mxu0 %v3305
        %v3431 = vpop.f32.mrb[0].mxu0
        %v3432 = vadd.f32 %v3310, %v3431
        %v3433 = vpop.f32.mrb[0].mxu0
        %v3434 = vadd.f32 %v3314, %v3433
        %v3435 = vpop.f32.mrb[0].mxu0
        %v3436 = vpop.f32.mrb[0].mxu0
        %3437 = vdwg.mxu0
        %v3438 = vmax.f32 %v3432, 0.0
        %v3439 = vmax.f32 %v3434, 0.0
        %v3440 = vpack.c.bf16 %v3438, %v3438
        %v3441 = vpack.c.bf16 %v3439, %v3439
        %v3443 = vlaneseq
        %v3444 = vshrl.u32 %v3443, 7
        %v3445 = vsub.s32 0, %v3444
        %v3446 = vrot.slane %v3304, %v3445
        %v3480 = vunpack.c.l.b16 %v3272
        %v3481 = vunpack.c.l.b16 %v3273
        %v3482 = vunpack.c.l.b16 %v3274
        %v3483 = vunpack.c.l.b16 %v3275
        %v3484 = vunpack.c.l.b16 %v3276
        %v3485 = vunpack.c.l.b16 %v3277
        %v3486 = vunpack.c.l.b16 %v3278
        %v3487 = vunpack.c.l.b16 %v3279
        %v3488 = vunpack.c.l.b16 %v3280
        %v3489 = vunpack.c.l.b16 %v3281
        %v3490 = vunpack.c.l.b16 %v3282
        %v3491 = vunpack.c.l.b16 %v3283
        %v3492 = vunpack.c.l.b16 %v3284
        %v3493 = vunpack.c.l.b16 %v3285
        %v3494 = vunpack.c.l.b16 %v3286
        %v3495 = vunpack.c.l.b16 %v3287
        %v3496 = vunpack.c.l.b16 %v3288
        %v3497 = vunpack.c.l.b16 %v3289
        %v3498 = vunpack.c.l.b16 %v3290
        %v3499 = vunpack.c.l.b16 %v3291
        %v3500 = vunpack.c.l.b16 %v3292
        %v3501 = vunpack.c.l.b16 %v3293
        %v3502 = vunpack.c.l.b16 %v3294
        %v3503 = vunpack.c.l.b16 %v3295
        %v3504 = vunpack.c.l.b16 %v3296
        %v3505 = vunpack.c.l.b16 %v3297
        %v3506 = vunpack.c.l.b16 %v3298
        %v3507 = vunpack.c.l.b16 %v3299
        %v3508 = vunpack.c.l.b16 %v3300
        %v3509 = vunpack.c.l.b16 %v3301
        %v3510 = vunpack.c.l.b16 %v3302
        %v3511 = vunpack.c.l.b16 %v3303
        %v3512 = vpack.c.b16 %v3481, %v3480
        %v3513 = vpack.c.b16 %v3483, %v3482
        %v3514 = vpack.c.b16 %v3485, %v3484
        %v3515 = vpack.c.b16 %v3487, %v3486
        %v3516 = vpack.c.b16 %v3489, %v3488
        %v3517 = vpack.c.b16 %v3491, %v3490
        %v3518 = vpack.c.b16 %v3493, %v3492
        %v3519 = vpack.c.b16 %v3495, %v3494
        %v3520 = vpack.c.b16 %v3497, %v3496
        %v3521 = vpack.c.b16 %v3499, %v3498
        %v3522 = vpack.c.b16 %v3501, %v3500
        %v3523 = vpack.c.b16 %v3503, %v3502
        %v3524 = vpack.c.b16 %v3505, %v3504
        %v3525 = vpack.c.b16 %v3507, %v3506
        %v3526 = vpack.c.b16 %v3509, %v3508
        %v3527 = vpack.c.b16 %v3511, %v3510
        %3544 = vmatprep.subr.bf16.mxu0 0
        %3545 = vmatpush1.bf16.msra.mxu0 %v3512
        %3546 = vmatprep.subr.bf16.mxu0 0
        %3547 = vmatpush1.bf16.msra.mxu0 %v3513
        %3548 = vmatprep.subr.bf16.mxu0 0
        %3549 = vmatpush1.bf16.msra.mxu0 %v3514
        %3550 = vmatprep.subr.bf16.mxu0 0
        %3551 = vmatpush1.bf16.msra.mxu0 %v3515
        %3552 = vmatprep.subr.bf16.mxu0 0
        %3553 = vmatpush1.bf16.msra.mxu0 %v3516
        %3554 = vmatprep.subr.bf16.mxu0 0
        %3555 = vmatpush1.bf16.msra.mxu0 %v3517
        %3556 = vmatprep.subr.bf16.mxu0 0
        %3557 = vmatpush1.bf16.msra.mxu0 %v3518
        %3558 = vmatprep.subr.bf16.mxu0 0
        %3559 = vmatpush1.bf16.msra.mxu0 %v3519
        %3560 = vmatprep.subr.bf16.mxu0 0
        %3561 = vmatpush1.bf16.msra.mxu0 %v3520
        %3562 = vmatprep.subr.bf16.mxu0 0
        %3563 = vmatpush1.bf16.msra.mxu0 %v3521
        %3564 = vmatprep.subr.bf16.mxu0 0
        %3565 = vmatpush1.bf16.msra.mxu0 %v3522
        %3566 = vmatprep.subr.bf16.mxu0 0
        %3567 = vmatpush1.bf16.msra.mxu0 %v3523
        %3568 = vmatprep.subr.bf16.mxu0 0
        %3569 = vmatpush1.bf16.msra.mxu0 %v3524
        %3570 = vmatprep.subr.bf16.mxu0 0
        %3571 = vmatpush1.bf16.msra.mxu0 %v3525
        %3572 = vmatprep.subr.bf16.mxu0 0
        %3573 = vmatpush1.bf16.msra.mxu0 %v3526
        %3574 = vmatprep.subr.bf16.mxu0 0
        %3575 = vmatpush1.bf16.msra.mxu0 %v3527
        %3576 = vmatprep.mubr.bf16.mxu0 %v3441
        %3577 = vmatmul.mubr.bf16.gmra.mrb[0].mxu0 %v3440
        %v3578 = vpop.f32.mrb[0].mxu0
        %v3579 = vadd.f32 %v3446, %v3578
        %v3580 = vpop.f32.mrb[0].mxu0
        %v3581 = vpop.f32.mrb[0].mxu0
        %v3582 = vpop.f32.mrb[0].mxu0
        %3583 = vdwg.mxu0
        %v3584 = vadd.f32 %v3254, %v3579
        %v3585 = vld [vmem:[%s1133] sm:$0x1]
        %v3586 = vld [vmem:[%s1136] sm:$0x1]
        %3587 = vadd.xlane.f32.xlu0 %v3584
        %v3588 = vpop.xlane.xlu0 %3587
        %v3589 = vmul.f32 %v3588, %v2130
        %v3590 = vsub.f32 %v3584, %v3589
        %v3591 = vmul.f32 %v3590, %v3590
        %3592 = vadd.xlane.f32.xlu0 %v3591
        %v3593 = vpop.xlane.xlu0 %3592
        %v3594 = vmul.f32 %v3593, %v2130
        %v3595 = vadd.f32 %v3594, 1e-05
        %v3596 = vrsqrt.pop %v3595
        %v3597 = vmul.f32 %v3590, %v3596
        %v3599 = vlaneseq
        %v3600 = vshrl.u32 %v3599, 7
        %v3601 = vsub.s32 0, %v3600
        %v3602 = vrot.slane %v3585, %v3601
        %v3604 = vmul.f32 %v3597, %v3602
        %v3606 = vlaneseq
        %v3607 = vshrl.u32 %v3606, 7
        %v3608 = vsub.s32 0, %v3607
        %v3609 = vrot.slane %v3586, %v3608
        %v3611 = vadd.f32 %v3604, %v3609
        %3612 = vst [vmem:[#allocation2] sm:$0xff] %v3611
        %p3613 = scmp.eq.s32.totalorder %s44, 1
        // Predicated region
        $region125: #{transformer_forward.3} parent=119 // pred_check
          %p3614 = pneg %p3613
        $region126: #{transformer_forward.3} parent=119 // pred_check_branch
          %3616 = sbr.rel (%p3614) target = $region128
        $region127: #{transformer_forward.3} parent=119 // pred_region
          %v3617 = vld [vmem:[#allocation2] sm:$0xff]
          %v3618 = vpack.c.bf16 %v3617, %v3617
          %v3619 = vld [vmem:[%s23] sm:$0xf]
          %v3620 = vld [vmem:[%s23 + $0x4] sm:$0xf]
          %v3621 = vld [vmem:[%s23 + $0x8] sm:$0xf]
          %v3622 = vld [vmem:[%s23 + $0xc] sm:$0xf]
          %v3623 = vld [vmem:[%s23 + $0x10] sm:$0xf]
          %v3624 = vld [vmem:[%s23 + $0x14] sm:$0xf]
          %v3625 = vld [vmem:[%s23 + $0x18] sm:$0xf]
          %v3626 = vld [vmem:[%s23 + $0x1c] sm:$0xf]
          %v3627 = vld [vmem:[%s23 + $0x20] sm:$0xf]
          %v3628 = vld [vmem:[%s23 + $0x24] sm:$0xf]
          %v3629 = vld [vmem:[%s23 + $0x28] sm:$0xf]
          %v3630 = vld [vmem:[%s23 + $0x2c] sm:$0xf]
          %v3631 = vld [vmem:[%s23 + $0x30] sm:$0xf]
          %v3632 = vld [vmem:[%s23 + $0x34] sm:$0xf]
          %v3633 = vld [vmem:[%s23 + $0x38] sm:$0xf]
          %v3634 = vld [vmem:[%s23 + $0x3c] sm:$0xf]
          %v3635 = vld [vmem:[%s24] sm:$0x1]
          %v3637 = vlaneseq
          %v3638 = vshrl.u32 %v3637, 7
          %v3639 = vsub.s32 0, %v3638
          %v3640 = vrot.slane %v3635, %v3639
          %v3658 = vunpack.c.l.b16 %v3619
          %v3659 = vunpack.c.l.b16 %v3620
          %v3660 = vunpack.c.l.b16 %v3621
          %v3661 = vunpack.c.l.b16 %v3622
          %v3662 = vunpack.c.l.b16 %v3623
          %v3663 = vunpack.c.l.b16 %v3624
          %v3664 = vunpack.c.l.b16 %v3625
          %v3665 = vunpack.c.l.b16 %v3626
          %v3666 = vunpack.c.l.b16 %v3627
          %v3667 = vunpack.c.l.b16 %v3628
          %v3668 = vunpack.c.l.b16 %v3629
          %v3669 = vunpack.c.l.b16 %v3630
          %v3670 = vunpack.c.l.b16 %v3631
          %v3671 = vunpack.c.l.b16 %v3632
          %v3672 = vunpack.c.l.b16 %v3633
          %v3673 = vunpack.c.l.b16 %v3634
          %v3674 = vpack.c.b16 %v3659, %v3658
          %v3675 = vpack.c.b16 %v3661, %v3660
          %v3676 = vpack.c.b16 %v3663, %v3662
          %v3677 = vpack.c.b16 %v3665, %v3664
          %v3678 = vpack.c.b16 %v3667, %v3666
          %v3679 = vpack.c.b16 %v3669, %v3668
          %v3680 = vpack.c.b16 %v3671, %v3670
          %v3681 = vpack.c.b16 %v3673, %v3672
          %3690 = vmatprep.subr.bf16.mxu0 0
          %3691 = vmatpush1.bf16.msra.mxu0 %v3674
          %3692 = vmatprep.subr.bf16.mxu0 0
          %3693 = vmatpush1.bf16.msra.mxu0 %v3675
          %3694 = vmatprep.subr.bf16.mxu0 0
          %3695 = vmatpush1.bf16.msra.mxu0 %v3676
          %3696 = vmatprep.subr.bf16.mxu0 0
          %3697 = vmatpush1.bf16.msra.mxu0 %v3677
          %3698 = vmatprep.subr.bf16.mxu0 0
          %3699 = vmatpush1.bf16.msra.mxu0 %v3678
          %3700 = vmatprep.subr.bf16.mxu0 0
          %3701 = vmatpush1.bf16.msra.mxu0 %v3679
          %3702 = vmatprep.subr.bf16.mxu0 0
          %3703 = vmatpush1.bf16.msra.mxu0 %v3680
          %3704 = vmatprep.subr.bf16.mxu0 0
          %3705 = vmatpush1.bf16.msra.mxu0 %v3681
          %3706 = vmatprep.subr.bf16.mxu0 0
          %3707 = vmatpush1.bf16.msra.mxu0 0
          %3708 = vmatprep.subr.bf16.mxu0 0
          %3709 = vmatpush1.bf16.msra.mxu0 0
          %3710 = vmatprep.subr.bf16.mxu0 0
          %3711 = vmatpush1.bf16.msra.mxu0 0
          %3712 = vmatprep.subr.bf16.mxu0 0
          %3713 = vmatpush1.bf16.msra.mxu0 0
          %3714 = vmatprep.subr.bf16.mxu0 0
          %3715 = vmatpush1.bf16.msra.mxu0 0
          %3716 = vmatprep.subr.bf16.mxu0 0
          %3717 = vmatpush1.bf16.msra.mxu0 0
          %3718 = vmatprep.subr.bf16.mxu0 0
          %3719 = vmatpush1.bf16.msra.mxu0 0
          %3720 = vmatprep.subr.bf16.mxu0 0
          %3721 = vmatpush1.bf16.msra.mxu0 0
          %3722 = vmatprep.mubr.bf16.mxu0 0
          %3723 = vmatmul.mubr.bf16.gmra.mrb[0].mxu0 %v3618
          %v3724 = vpop.f32.mrb[0].mxu0
          %v3725 = vadd.f32 %v3640, %v3724
          %v3726 = vpop.f32.mrb[0].mxu0
          %v3727 = vpop.f32.mrb[0].mxu0
          %v3728 = vpop.f32.mrb[0].mxu0
          %3729 = vdwg.mxu0
          %3730 = vmax.xlane.f32.xlu0 %v3725
          %v3731 = vpop.xlane.xlu0 %3730
          %v3732 = vsub.f32 %v3725, %v3731
          %v3733 = vmul.f32 %v3732, 1.442695
          %v3734 = vpow.pop %v3733
          %3735 = vadd.xlane.f32.xlu0 %v3734
          %v3736 = vpop.xlane.xlu0 %3735
          %v3737 = vrcp.pop %v3736
          %v3738 = vmul.f32 %v3734, %v3737
          %3739 = vst [vmem:[%s1047] sm:$0xff] %v3738
        $region128: #{transformer_forward.3} parent=119 // pred_fallthru
          _
        %s3740 = sand.u32 %s699, 1
        %s3741 = scalar_lea.sflag [#allocation5], %s3740
        %s3742 = sand.u32 %s699, 1
        %s3743 = smul.addr %s3742, 8
        %s3744 = scalar_lea.vmem [#allocation4], %s3743
        // Predicated region
        $region129: #{transformer_forward.3} parent=119 // pred_check
          %p3745 = pneg %p709
        $region130: #{transformer_forward.3} parent=119 // pred_check_branch
          %3747 = sbr.rel (%p3745) target = $region132
        $region131: #{transformer_forward.3} parent=119 // pred_region
          %s3749 = ssub.s32 128, 128
          %3750 = vsyncadd %s3741, %s3749
          %s3751 = smul.addr %s43, 128
          %s3752 = scalar_lea.hbm %s25, %s3751
          %s3754 = sshll.u32 %s3744, 4
          %s3755 = int_to_ptr.vmem [resolvable:$true] %s3754
          %3757 = dma.vmem_to_hbm [thread:$0]  %s3755, 128, %s3752, %s3741
        $region132: #{transformer_forward.3} parent=119 // pred_fallthru
          _
      $region120: #{transformer_forward.3} parent=5 // pred_fallthru
        _
      %p3758 = scmp.le.s32.totalorder 2, %s34
      // Predicated region
      $region133: #{transformer_forward.3} parent=5 // pred_check
        %p3759 = pneg %p3758
      $region134: #{transformer_forward.3} parent=5 // pred_check_branch
        %3761 = sbr.rel (%p3759) target = $region136
      $region135: #{transformer_forward.3} parent=5 // pred_region
        %s3762 = ssub.s32 %s34, 2
        // Predicated region
        $region137: #{transformer_forward.3} parent=135 // pred_check
          %p3763 = pneg %p715
        $region138: #{transformer_forward.3} parent=135 // pred_check_branch
          %3765 = sbr.rel (%p3763) target = $region140
        $region139: #{transformer_forward.3} parent=135 // pred_region
          %s3766 = sand.u32 %s700, 1
          %s3767 = scalar_lea.sflag [#allocation5], %s3766
          %s3768 = sand.u32 %s700, 1
          %s3769 = smul.addr %s3768, 8
          %s3770 = scalar_lea.vmem [#allocation4], %s3769
          %3771 = dma.done %s3767, 128
        $region140: #{transformer_forward.3} parent=135 // pred_fallthru
          _
      $region136: #{transformer_forward.3} parent=5 // pred_fallthru
        _
    $region6: #{transformer_forward.3} parent=1 // loop_footer
      %s38 = sadd.s32 1, %s34
    $region7: #{transformer_forward.3} parent=1 // loop_footer_branch
      %33 = sbr.rel target = $region3
    $region8: #{transformer_forward.3} parent=1 // loop_exit
      _
    %3772 = vsyncpa [#allocation5], 1
    %s3773 = scalar_lea.sflag [#allocation5], 1
    %3774 = vsyncpa %s3773, 1

</llo_original>
